<compile_context>
chip_gen: v5e
topology: v5e:2x2
jax: 0.10.0
libtpu: 0.0.40
codegen_flags: <defaults>
</compile_context>

<pallas_src>
import functools

import jax
import jax.numpy as jnp
from jax.experimental import pallas as pl
from jax.experimental.pallas import tpu as pltpu

BN_EPS = 1e-5
SRM_EPS = 1e-5
LANE = 128


# --------------------------------------------------------------------------
# Small helpers
# --------------------------------------------------------------------------
def _vmem_limit_bytes():
    # v5e/v6e: 128 MiB physical VMEM, v7x: 64 MiB.  Use ~3/4 of physical,
    # capped, leaving headroom for compiler scratch.
    try:
        phys = int(pltpu.get_tpu_info().vmem_capacity_bytes)
    except Exception:
        phys = 64 * 1024 * 1024          # conservative (v7x) fallback
    return int(min(phys * 3 // 4, 100 * 1024 * 1024))


def _const_spec(block_shape, index_map):
    """BlockSpec for grid-invariant operands (weights, folded BN vectors).

    Single-buffered where supported: the block index never changes across grid
    steps, so a second pipeline buffer only wastes VMEM (matters at large Cp,
    especially under v7x's 64 MiB budget)."""
    try:
        return pl.BlockSpec(block_shape, index_map, pipeline_mode=pl.Buffered(1))
    except Exception:                     # older JAX without pipeline_mode
        return pl.BlockSpec(block_shape, index_map)


def _round_up(v, m):
    return ((v + m - 1) // m) * m


def _pad_channels(a, cp):
    c = a.shape[-1]
    if c == cp:
        return a
    return jnp.pad(a, [(0, 0)] * (a.ndim - 1) + [(0, cp - c)])


def _conv_weight_to_taps(w_oihw, cp):
    """torch (Cout, Cin, 3, 3) -> (9, Cp, Cp) bf16, tap-major, zero padded."""
    cout, cin = w_oihw.shape[0], w_oihw.shape[1]
    w = jnp.transpose(w_oihw, (2, 3, 1, 0)).reshape(9, cin, cout)
    w = jnp.pad(w, ((0, 0), (0, cp - cin), (0, cp - cout)))
    return w.astype(jnp.bfloat16)


def _bn_fold(gamma, beta, rm, rv, cp, eps=BN_EPS):
    scale = gamma / jnp.sqrt(rv + eps)
    bias = beta - rm * scale
    return (_pad_channels(scale.reshape(1, -1), cp),
            _pad_channels(bias.reshape(1, -1), cp))


def _pad_spatial_flat(x_nhwc):
    """Zero-pad spatially (1 top row, 2 bottom rows, 1 col each side) and
    flatten (H, W) so the conv kernels see a (Hp*Wp, Cp) 2-D buffer.  The extra
    bottom row keeps every flattened-window tap slice in bounds."""
    n, h, w, c = x_nhwc.shape
    xp = jnp.pad(x_nhwc, ((0, 0), (1, 2), (1, 1), (0, 0)))
    return xp.reshape(n, (h + 3) * (w + 2), c)


# --------------------------------------------------------------------------
# Pallas kernels
# --------------------------------------------------------------------------
def _accum_taps(x_ref, w_ref, m, wp):
    """Sum of 9 contiguous-slice (M, Cp) x (Cp, Cp) MXU matmuls, f32 accum."""
    acc = None
    for kh in range(3):
        for kw in range(3):
            tap = x_ref[0, pl.ds(kh * wp + kw, m), :]          # contiguous slice
            d = jnp.dot(tap, w_ref[kh * 3 + kw],
                        preferred_element_type=jnp.float32)
            acc = d if acc is None else acc + d
    return acc                                                 # (M, Cp) f32


def _conv1_kernel(x_ref, w_ref, s_ref, b_ref, o_ref, *, h, w, wp):
    """conv3x3 + folded BN + ReLU, emitting a spatially padded bf16 output.

    x_ref : (1, (h+3)*wp, Cp) bf16  zero-padded input, rows flattened.
    w_ref : (9, Cp, Cp)       bf16  tap-major conv1 weights.
    s_ref / b_ref : (1, Cp)   f32   folded bn1 scale / bias.
    o_ref : (1, (h+3)*wp, Cp) bf16  output in the SAME padded layout so conv2
            can consume it directly (no XLA re-pad round trip).
    """
    m = h * wp
    y = _accum_taps(x_ref, w_ref, m, wp) * s_ref[...] + b_ref[...]
    y = jnp.maximum(y, 0.0)

    # Rows whose position within a flattened image row is >= w are junk from
    # the flattened-window trick; they land exactly on the padding columns of
    # the padded output layout, so force them to zero.
    cols = jax.lax.broadcasted_iota(jnp.int32, y.shape, 0) % wp
    y = jnp.where(cols < w, y, 0.0)

    cp = y.shape[-1]
    o_ref[0, pl.ds(0, wp + 1), :] = jnp.zeros((wp + 1, cp), o_ref.dtype)
    o_ref[0, pl.ds(wp + 1, m), :] = y.astype(o_ref.dtype)
    o_ref[0, pl.ds(wp + 1 + m, 2 * wp - 1), :] = jnp.zeros(
        (2 * wp - 1, cp), o_ref.dtype)


def _conv2_srm_kernel(o1_ref, xid_ref, w_ref, s_ref, b_ref, cfc_ref,
                      ss_ref, sb_ref, o_ref, *, h, w, wp):
    """conv3x3 + bn2 + SRM style pooling/gating + residual add + ReLU, fused.

    o1_ref : (1, (h+3)*wp, Cp) bf16  conv1 output (padded flat layout).
    xid_ref: (1, (h+3)*wp, Cp) bf16  block input (padded flat) = residual.
    w_ref  : (9, Cp, Cp)       bf16  tap-major conv2 weights.
    s_ref / b_ref : (1, Cp)    f32   folded bn2 scale / bias.
    cfc_ref: (2, Cp) f32  SRM cfc (row 0: mean coeff, row 1: std coeff).
    ss_ref / sb_ref : (1, Cp) f32    folded SRM BatchNorm scale / bias.
    o_ref  : (1, h*wp, Cp)     f32   gated + residual + ReLU output.
    """
    m = h * wp
    hw = float(h * w)
    y2 = _accum_taps(o1_ref, w_ref, m, wp) * s_ref[...] + b_ref[...]  # bn2 out

    cols = jax.lax.broadcasted_iota(jnp.int32, y2.shape, 0) % wp
    valid = cols < w                                           # junk-row mask

    # SRM style pooling: per-channel mean / unbiased std over the H*W valid
    # positions.  Two-pass variance (data is VMEM resident) avoids the
    # catastrophic cancellation of E[x^2]-E[x]^2.
    y2v = jnp.where(valid, y2, 0.0)
    mean = jnp.sum(y2v, axis=0, keepdims=True) * (1.0 / hw)    # (1, Cp)
    cent = jnp.where(valid, y2 - mean, 0.0)
    var = jnp.sum(cent * cent, axis=0, keepdims=True) * (1.0 / (hw - 1.0))
    std = jnp.sqrt(var + SRM_EPS)

    # SRM style integration: (1, Cp) sigmoid gate, broadcast afterwards.
    z = mean * cfc_ref[0:1, :] + std * cfc_ref[1:2, :]
    g = jax.nn.sigmoid(z * ss_ref[...] + sb_ref[...])

    # Residual read straight out of the padded bf16 input buffer (no extra
    # f32 identity tensor): interior starts at row offset wp + 1.
    identity = xid_ref[0, pl.ds(wp + 1, m), :].astype(jnp.float32)
    o_ref[0] = jnp.maximum(y2 * g + identity, 0.0).astype(o_ref.dtype)


# --------------------------------------------------------------------------
# pallas_call wrappers
# --------------------------------------------------------------------------
def conv1_bn_relu(x_pad, w9, scale, bias, *, h, w):
    n, mp, cp = x_pad.shape
    wp = w + 2
    kernel = functools.partial(_conv1_kernel, h=h, w=w, wp=wp)
    flops = 2 * n * h * wp * 9 * cp * cp
    bytes_accessed = 2 * 2 * n * mp * cp + 2 * w9.size
    return pl.pallas_call(
        kernel,
        out_shape=jax.ShapeDtypeStruct((n, mp, cp), jnp.bfloat16),
        grid=(n,),
        in_specs=[
            pl.BlockSpec((1, mp, cp), lambda i: (i, 0, 0)),
            _const_spec((9, cp, cp), lambda i: (0, 0, 0)),
            _const_spec((1, cp), lambda i: (0, 0)),
            _const_spec((1, cp), lambda i: (0, 0)),
        ],
        out_specs=pl.BlockSpec((1, mp, cp), lambda i: (i, 0, 0)),
        compiler_params=pltpu.CompilerParams(
            dimension_semantics=("parallel",),
            vmem_limit_bytes=_vmem_limit_bytes()),
        cost_estimate=pl.CostEstimate(flops=int(flops), transcendentals=0,
                                      bytes_accessed=int(bytes_accessed)),
    )(x_pad, w9, scale, bias)


def conv2_bn_srm_residual(out1_pad, x_pad, w9, scale, bias, cfc, ss, sb, *, h, w):
    n, mp, cp = out1_pad.shape
    wp = w + 2
    m = h * wp
    kernel = functools.partial(_conv2_srm_kernel, h=h, w=w, wp=wp)
    flops = 2 * n * m * 9 * cp * cp + 12 * n * m * cp
    bytes_accessed = 2 * 2 * n * mp * cp + 2 * w9.size + 4 * n * m * cp
    return pl.pallas_call(
        kernel,
        out_shape=jax.ShapeDtypeStruct((n, m, cp), jnp.float32),
        grid=(n,),
        in_specs=[
            pl.BlockSpec((1, mp, cp), lambda i: (i, 0, 0)),
            pl.BlockSpec((1, mp, cp), lambda i: (i, 0, 0)),
            _const_spec((9, cp, cp), lambda i: (0, 0, 0)),
            _const_spec((1, cp), lambda i: (0, 0)),
            _const_spec((1, cp), lambda i: (0, 0)),
            _const_spec((2, cp), lambda i: (0, 0)),
            _const_spec((1, cp), lambda i: (0, 0)),
            _const_spec((1, cp), lambda i: (0, 0)),
        ],
        out_specs=pl.BlockSpec((1, m, cp), lambda i: (i, 0, 0)),
        compiler_params=pltpu.CompilerParams(
            dimension_semantics=("parallel",),
            vmem_limit_bytes=_vmem_limit_bytes()),
        cost_estimate=pl.CostEstimate(flops=int(flops),
                                      transcendentals=int(2 * n * cp),
                                      bytes_accessed=int(bytes_accessed)),
    )(out1_pad, x_pad, w9, scale, bias, cfc, ss, sb)


# --------------------------------------------------------------------------
# Parameter construction and forward pass (pure-JAX glue / layout plumbing)
# --------------------------------------------------------------------------
def init_params(key, inplanes, planes):
    ks = jax.random.split(key, 10)
    return {
        # conv weights in torch layout (Cout, Cin, 3, 3), bias=False
        "w1": 0.1 * jax.random.normal(ks[0], (planes, inplanes, 3, 3), jnp.float32),
        "w2": 0.1 * jax.random.normal(ks[1], (planes, planes, 3, 3), jnp.float32),
        # bn1 / bn2 / srm.bn parameters + running stats (eval-mode BN)
        "bn1_g": 1.0 + 0.1 * jax.random.normal(ks[2], (planes,), jnp.float32),
        "bn1_b": 0.1 * jax.random.normal(ks[3], (planes,), jnp.float32),
        "bn1_rm": 0.05 * jax.random.normal(ks[4], (planes,), jnp.float32),
        "bn1_rv": 1.0 + 0.1 * jax.random.uniform(ks[5], (planes,), jnp.float32),
        "bn2_g": 1.0 + 0.1 * jax.random.normal(ks[6], (planes,), jnp.float32),
        "bn2_b": 0.1 * jax.random.normal(ks[7], (planes,), jnp.float32),
        "bn2_rm": jnp.zeros((planes,), jnp.float32),
        "bn2_rv": jnp.ones((planes,), jnp.float32),
        # SRM cfc is zero-initialized in the module; use small random values so
        # the style-integration path is exercised (deterministic via PRNGKey).
        "cfc": 0.5 * jax.random.normal(ks[8], (planes, 2), jnp.float32),
        "srm_g": 1.0 + 0.1 * jax.random.normal(ks[9], (planes,), jnp.float32),
        "srm_b": jnp.zeros((planes,), jnp.float32),
        "srm_rm": jnp.zeros((planes,), jnp.float32),
        "srm_rv": jnp.ones((planes,), jnp.float32),
    }


def basic_block_forward(x_nchw, p):
    """BasicBlock forward (stride=1, downsample=None).  NCHW in / NCHW out."""
    n, c, h, w = x_nchw.shape
    cp = _round_up(c, LANE)
    wp = w + 2

    x = jnp.transpose(x_nchw, (0, 2, 3, 1))                    # NHWC f32
    x_cp = _pad_channels(x, cp).astype(jnp.bfloat16)           # (N, H, W, Cp)
    x_pad = _pad_spatial_flat(x_cp)                            # (N, (H+3)*Wp, Cp)

    w1 = _conv_weight_to_taps(p["w1"], cp)
    w2 = _conv_weight_to_taps(p["w2"], cp)
    s1, b1 = _bn_fold(p["bn1_g"], p["bn1_b"], p["bn1_rm"], p["bn1_rv"], cp)
    s2, b2 = _bn_fold(p["bn2_g"], p["bn2_b"], p["bn2_rm"], p["bn2_rv"], cp)
    ss, sb = _bn_fold(p["srm_g"], p["srm_b"], p["srm_rm"], p["srm_rv"], cp)
    cfc = _pad_channels(jnp.transpose(p["cfc"], (1, 0)), cp)   # (2, Cp)

    # conv1 + bn1 + relu, output already in the padded flat layout
    out1_pad = conv1_bn_relu(x_pad, w1, s1, b1, h=h, w=w)
    # conv2 + bn2 + SRM gate + residual + relu, fully fused
    y = conv2_bn_srm_residual(out1_pad, x_pad, w2, s2, b2, cfc, ss, sb, h=h, w=w)

    y = y.reshape(n, h, wp, cp)[:, :, :w, :c]
    return jnp.transpose(y, (0, 3, 1, 2))


# --------------------------------------------------------------------------
# Pure-JAX reference (same math & same bf16 rounding points) for validation
# --------------------------------------------------------------------------
def reference_forward(x_nchw, p):
    def bf(v):
        return v.astype(jnp.bfloat16).astype(jnp.float32)

    n, c, h, w = x_nchw.shape
    xb = bf(jnp.transpose(x_nchw, (0, 2, 3, 1)))               # NHWC, bf16-rounded
    identity = xb.reshape(n, h * w, c)

    def conv_bn(u, w_oihw, g, b, rm, rv, relu):
        up = jnp.pad(u, ((0, 0), (1, 1), (1, 1), (0, 0)))
        wq = bf(w_oihw)
        acc = 0.0
        for kh in range(3):
            for kw in range(3):
                tap = up[:, kh:kh + h, kw:kw + w, :]
                acc = acc + jnp.einsum("nhwc,oc->nhwo", tap, wq[:, :, kh, kw],
                                       precision=jax.lax.Precision.HIGHEST)
        s = g / jnp.sqrt(rv + BN_EPS)
        bb = b - rm * s
        y = acc * s + bb
        return jnp.maximum(y, 0.0) if relu else y

    out1 = bf(conv_bn(xb, p["w1"], p["bn1_g"], p["bn1_b"],
                      p["bn1_rm"], p["bn1_rv"], True))          # bf16 intermediate
    out2 = conv_bn(out1, p["w2"], p["bn2_g"], p["bn2_b"],
                   p["bn2_rm"], p["bn2_rv"], False)             # f32 (fused path)

    flat = out2.reshape(n, h * w, c)
    mean = jnp.mean(flat, axis=1, keepdims=True)
    std = jnp.sqrt(jnp.var(flat, axis=1, keepdims=True, ddof=1) + SRM_EPS)
    z = mean * p["cfc"][:, 0][None, None, :] + std * p["cfc"][:, 1][None, None, :]
    ss = p["srm_g"] / jnp.sqrt(p["srm_rv"] + BN_EPS)
    sb = p["srm_b"] - p["srm_rm"] * ss
    gate = jax.nn.sigmoid(z * ss + sb)
    y = jnp.maximum(flat * gate + identity, 0.0)
    return jnp.transpose(y.reshape(n, h, w, c), (0, 3, 1, 2))


# --------------------------------------------------------------------------
if __name__ == "__main__":
    key = jax.random.PRNGKey(0)
    kx, kp = jax.random.split(key)

    N, C, H, W = 2, 4, 16, 16   # inplanes = planes = 4, stride = 1, no downsample
    x = jax.random.normal(kx, (N, C, H, W), jnp.float32)
    params = init_params(kp, inplanes=C, planes=C)

    fwd = jax.jit(basic_block_forward)
    y = jax.block_until_ready(fwd(x, params))
    y_ref = reference_forward(x, params)

    assert y.shape == (N, C, H, W), y.shape
    max_err = float(jnp.max(jnp.abs(y - y_ref)))
    if max_err > 2e-2:
        raise AssertionError(f"mismatch vs reference: max_err={max_err}")

    print("KERNEL_OK")
</pallas_src>

<mosaic_0001>
module attributes {stable_mosaic.version = 11 : i64} {
  func.func @_conv1_kernel(%arg0: i32, %arg1: memref<1x342x128xbf16, #tpu.memory_space<vmem>>, %arg2: memref<9x128x128xbf16, #tpu.memory_space<vmem>>, %arg3: memref<1x128xf32, #tpu.memory_space<vmem>>, %arg4: memref<1x128xf32, #tpu.memory_space<vmem>>, %arg5: memref<1x342x128xbf16, #tpu.memory_space<vmem>>) attributes {dimension_semantics = [#tpu.dimension_semantics<parallel>], iteration_bounds = array<i64: 2>, scalar_prefetch = 0 : i64, scratch_operands = 0 : i64, tpu.core_type = #tpu.core_type<tc>, window_params = [{transform_indices = @transform_0, window_bounds = array<i64: 1, 342, 128>}, {pipeline_mode = #tpu.pipeline_mode<synchronous>, transform_indices = @transform_1, window_bounds = array<i64: 9, 128, 128>}, {pipeline_mode = #tpu.pipeline_mode<synchronous>, transform_indices = @transform_2, window_bounds = array<i64: 1, 128>}, {pipeline_mode = #tpu.pipeline_mode<synchronous>, transform_indices = @transform_3, window_bounds = array<i64: 1, 128>}, {transform_indices = @transform_4, window_bounds = array<i64: 1, 342, 128>}]} {
    %c0 = arith.constant 0 : index
    %c0_0 = arith.constant 0 : index
    %c0_1 = arith.constant 0 : index
    %0 = vector.load %arg1[%c0, %c0_0, %c0_1] : memref<1x342x128xbf16, #tpu.memory_space<vmem>>, vector<1x288x128xbf16>
    %1 = vector.shape_cast %0 : vector<1x288x128xbf16> to vector<288x128xbf16>
    %c0_2 = arith.constant 0 : index
    %c0_3 = arith.constant 0 : index
    %c0_4 = arith.constant 0 : index
    %2 = vector.load %arg2[%c0_2, %c0_3, %c0_4] : memref<9x128x128xbf16, #tpu.memory_space<vmem>>, vector<1x128x128xbf16>
    %3 = vector.shape_cast %2 : vector<1x128x128xbf16> to vector<128x128xbf16>
    %cst = arith.constant dense<0.000000e+00> : vector<288x128xf32>
    %4 = tpu.matmul %1, %3, %cst {dimension_numbers = #tpu.dot_dimension_numbers<[1], [0], [0], [1], [0, 0, 1, 1], [], []>} : vector<288x128xbf16>, vector<128x128xbf16>, vector<288x128xf32> -> vector<288x128xf32>
    %c0_5 = arith.constant 0 : index
    %c1 = arith.constant 1 : index
    %c0_6 = arith.constant 0 : index
    %5 = vector.load %arg1[%c0_5, %c1, %c0_6] : memref<1x342x128xbf16, #tpu.memory_space<vmem>>, vector<1x288x128xbf16>
    %6 = vector.shape_cast %5 : vector<1x288x128xbf16> to vector<288x128xbf16>
    %c1_7 = arith.constant 1 : index
    %c0_8 = arith.constant 0 : index
    %c0_9 = arith.constant 0 : index
    %7 = vector.load %arg2[%c1_7, %c0_8, %c0_9] : memref<9x128x128xbf16, #tpu.memory_space<vmem>>, vector<1x128x128xbf16>
    %8 = vector.shape_cast %7 : vector<1x128x128xbf16> to vector<128x128xbf16>
    %cst_10 = arith.constant dense<0.000000e+00> : vector<288x128xf32>
    %9 = tpu.matmul %6, %8, %cst_10 {dimension_numbers = #tpu.dot_dimension_numbers<[1], [0], [0], [1], [0, 0, 1, 1], [], []>} : vector<288x128xbf16>, vector<128x128xbf16>, vector<288x128xf32> -> vector<288x128xf32>
    %10 = arith.addf %4, %9 : vector<288x128xf32>
    %c0_11 = arith.constant 0 : index
    %c2 = arith.constant 2 : index
    %c0_12 = arith.constant 0 : index
    %11 = vector.load %arg1[%c0_11, %c2, %c0_12] : memref<1x342x128xbf16, #tpu.memory_space<vmem>>, vector<1x288x128xbf16>
    %12 = vector.shape_cast %11 : vector<1x288x128xbf16> to vector<288x128xbf16>
    %c2_13 = arith.constant 2 : index
    %c0_14 = arith.constant 0 : index
    %c0_15 = arith.constant 0 : index
    %13 = vector.load %arg2[%c2_13, %c0_14, %c0_15] : memref<9x128x128xbf16, #tpu.memory_space<vmem>>, vector<1x128x128xbf16>
    %14 = vector.shape_cast %13 : vector<1x128x128xbf16> to vector<128x128xbf16>
    %cst_16 = arith.constant dense<0.000000e+00> : vector<288x128xf32>
    %15 = tpu.matmul %12, %14, %cst_16 {dimension_numbers = #tpu.dot_dimension_numbers<[1], [0], [0], [1], [0, 0, 1, 1], [], []>} : vector<288x128xbf16>, vector<128x128xbf16>, vector<288x128xf32> -> vector<288x128xf32>
    %16 = arith.addf %10, %15 : vector<288x128xf32>
    %c0_17 = arith.constant 0 : index
    %c18 = arith.constant 18 : index
    %c0_18 = arith.constant 0 : index
    %17 = vector.load %arg1[%c0_17, %c18, %c0_18] : memref<1x342x128xbf16, #tpu.memory_space<vmem>>, vector<1x288x128xbf16>
    %18 = vector.shape_cast %17 : vector<1x288x128xbf16> to vector<288x128xbf16>
    %c3 = arith.constant 3 : index
    %c0_19 = arith.constant 0 : index
    %c0_20 = arith.constant 0 : index
    %19 = vector.load %arg2[%c3, %c0_19, %c0_20] : memref<9x128x128xbf16, #tpu.memory_space<vmem>>, vector<1x128x128xbf16>
    %20 = vector.shape_cast %19 : vector<1x128x128xbf16> to vector<128x128xbf16>
    %cst_21 = arith.constant dense<0.000000e+00> : vector<288x128xf32>
    %21 = tpu.matmul %18, %20, %cst_21 {dimension_numbers = #tpu.dot_dimension_numbers<[1], [0], [0], [1], [0, 0, 1, 1], [], []>} : vector<288x128xbf16>, vector<128x128xbf16>, vector<288x128xf32> -> vector<288x128xf32>
    %22 = arith.addf %16, %21 : vector<288x128xf32>
    %c0_22 = arith.constant 0 : index
    %c19 = arith.constant 19 : index
    %c0_23 = arith.constant 0 : index
    %23 = vector.load %arg1[%c0_22, %c19, %c0_23] : memref<1x342x128xbf16, #tpu.memory_space<vmem>>, vector<1x288x128xbf16>
    %24 = vector.shape_cast %23 : vector<1x288x128xbf16> to vector<288x128xbf16>
    %c4 = arith.constant 4 : index
    %c0_24 = arith.constant 0 : index
    %c0_25 = arith.constant 0 : index
    %25 = vector.load %arg2[%c4, %c0_24, %c0_25] : memref<9x128x128xbf16, #tpu.memory_space<vmem>>, vector<1x128x128xbf16>
    %26 = vector.shape_cast %25 : vector<1x128x128xbf16> to vector<128x128xbf16>
    %cst_26 = arith.constant dense<0.000000e+00> : vector<288x128xf32>
    %27 = tpu.matmul %24, %26, %cst_26 {dimension_numbers = #tpu.dot_dimension_numbers<[1], [0], [0], [1], [0, 0, 1, 1], [], []>} : vector<288x128xbf16>, vector<128x128xbf16>, vector<288x128xf32> -> vector<288x128xf32>
    %28 = arith.addf %22, %27 : vector<288x128xf32>
    %c0_27 = arith.constant 0 : index
    %c20 = arith.constant 20 : index
    %c0_28 = arith.constant 0 : index
    %29 = vector.load %arg1[%c0_27, %c20, %c0_28] : memref<1x342x128xbf16, #tpu.memory_space<vmem>>, vector<1x288x128xbf16>
    %30 = vector.shape_cast %29 : vector<1x288x128xbf16> to vector<288x128xbf16>
    %c5 = arith.constant 5 : index
    %c0_29 = arith.constant 0 : index
    %c0_30 = arith.constant 0 : index
    %31 = vector.load %arg2[%c5, %c0_29, %c0_30] : memref<9x128x128xbf16, #tpu.memory_space<vmem>>, vector<1x128x128xbf16>
    %32 = vector.shape_cast %31 : vector<1x128x128xbf16> to vector<128x128xbf16>
    %cst_31 = arith.constant dense<0.000000e+00> : vector<288x128xf32>
    %33 = tpu.matmul %30, %32, %cst_31 {dimension_numbers = #tpu.dot_dimension_numbers<[1], [0], [0], [1], [0, 0, 1, 1], [], []>} : vector<288x128xbf16>, vector<128x128xbf16>, vector<288x128xf32> -> vector<288x128xf32>
    %34 = arith.addf %28, %33 : vector<288x128xf32>
    %c0_32 = arith.constant 0 : index
    %c36 = arith.constant 36 : index
    %c0_33 = arith.constant 0 : index
    %35 = vector.load %arg1[%c0_32, %c36, %c0_33] : memref<1x342x128xbf16, #tpu.memory_space<vmem>>, vector<1x288x128xbf16>
    %36 = vector.shape_cast %35 : vector<1x288x128xbf16> to vector<288x128xbf16>
    %c6 = arith.constant 6 : index
    %c0_34 = arith.constant 0 : index
    %c0_35 = arith.constant 0 : index
    %37 = vector.load %arg2[%c6, %c0_34, %c0_35] : memref<9x128x128xbf16, #tpu.memory_space<vmem>>, vector<1x128x128xbf16>
    %38 = vector.shape_cast %37 : vector<1x128x128xbf16> to vector<128x128xbf16>
    %cst_36 = arith.constant dense<0.000000e+00> : vector<288x128xf32>
    %39 = tpu.matmul %36, %38, %cst_36 {dimension_numbers = #tpu.dot_dimension_numbers<[1], [0], [0], [1], [0, 0, 1, 1], [], []>} : vector<288x128xbf16>, vector<128x128xbf16>, vector<288x128xf32> -> vector<288x128xf32>
    %40 = arith.addf %34, %39 : vector<288x128xf32>
    %c0_37 = arith.constant 0 : index
    %c37 = arith.constant 37 : index
    %c0_38 = arith.constant 0 : index
    %41 = vector.load %arg1[%c0_37, %c37, %c0_38] : memref<1x342x128xbf16, #tpu.memory_space<vmem>>, vector<1x288x128xbf16>
    %42 = vector.shape_cast %41 : vector<1x288x128xbf16> to vector<288x128xbf16>
    %c7 = arith.constant 7 : index
    %c0_39 = arith.constant 0 : index
    %c0_40 = arith.constant 0 : index
    %43 = vector.load %arg2[%c7, %c0_39, %c0_40] : memref<9x128x128xbf16, #tpu.memory_space<vmem>>, vector<1x128x128xbf16>
    %44 = vector.shape_cast %43 : vector<1x128x128xbf16> to vector<128x128xbf16>
    %cst_41 = arith.constant dense<0.000000e+00> : vector<288x128xf32>
    %45 = tpu.matmul %42, %44, %cst_41 {dimension_numbers = #tpu.dot_dimension_numbers<[1], [0], [0], [1], [0, 0, 1, 1], [], []>} : vector<288x128xbf16>, vector<128x128xbf16>, vector<288x128xf32> -> vector<288x128xf32>
    %46 = arith.addf %40, %45 : vector<288x128xf32>
    %c0_42 = arith.constant 0 : index
    %c38 = arith.constant 38 : index
    %c0_43 = arith.constant 0 : index
    %47 = vector.load %arg1[%c0_42, %c38, %c0_43] : memref<1x342x128xbf16, #tpu.memory_space<vmem>>, vector<1x288x128xbf16>
    %48 = vector.shape_cast %47 : vector<1x288x128xbf16> to vector<288x128xbf16>
    %c8 = arith.constant 8 : index
    %c0_44 = arith.constant 0 : index
    %c0_45 = arith.constant 0 : index
    %49 = vector.load %arg2[%c8, %c0_44, %c0_45] : memref<9x128x128xbf16, #tpu.memory_space<vmem>>, vector<1x128x128xbf16>
    %50 = vector.shape_cast %49 : vector<1x128x128xbf16> to vector<128x128xbf16>
    %cst_46 = arith.constant dense<0.000000e+00> : vector<288x128xf32>
    %51 = tpu.matmul %48, %50, %cst_46 {dimension_numbers = #tpu.dot_dimension_numbers<[1], [0], [0], [1], [0, 0, 1, 1], [], []>} : vector<288x128xbf16>, vector<128x128xbf16>, vector<288x128xf32> -> vector<288x128xf32>
    %52 = arith.addf %46, %51 : vector<288x128xf32>
    %c0_47 = arith.constant 0 : index
    %c0_48 = arith.constant 0 : index
    %53 = vector.load %arg3[%c0_47, %c0_48] : memref<1x128xf32, #tpu.memory_space<vmem>>, vector<1x128xf32>
    %54 = vector.broadcast %53 : vector<1x128xf32> to vector<288x128xf32>
    %55 = arith.mulf %52, %54 : vector<288x128xf32>
    %c0_49 = arith.constant 0 : index
    %c0_50 = arith.constant 0 : index
    %56 = vector.load %arg4[%c0_49, %c0_50] : memref<1x128xf32, #tpu.memory_space<vmem>>, vector<1x128xf32>
    %57 = vector.broadcast %56 : vector<1x128xf32> to vector<288x128xf32>
    %58 = arith.addf %55, %57 : vector<288x128xf32>
    %cst_51 = arith.constant 0.000000e+00 : f32
    %59 = vector.broadcast %cst_51 : f32 to vector<288x128xf32>
    %60 = arith.maximumf %58, %59 : vector<288x128xf32>
    %61 = tpu.iota {dimensions = array<i32: 0>} : vector<288x128xi32>
    %c18_i32 = arith.constant 18 : i32
    %c0_i32 = arith.constant 0 : i32
    %62 = arith.cmpi eq, %c18_i32, %c0_i32 : i32
    %c1_i32 = arith.constant 1 : i32
    %63 = arith.select %62, %c1_i32, %c18_i32 : i32
    %64 = vector.broadcast %63 : i32 to vector<288x128xi32>
    %65 = arith.remsi %61, %64 : vector<288x128xi32>
    %c0_i32_52 = arith.constant 0 : i32
    %66 = vector.broadcast %c0_i32_52 : i32 to vector<288x128xi32>
    %67 = arith.cmpi ne, %65, %66 : vector<288x128xi32>
    %c0_i32_53 = arith.constant 0 : i32
    %68 = vector.broadcast %c0_i32_53 : i32 to vector<288x128xi32>
    %69 = arith.cmpi slt, %65, %68 : vector<288x128xi32>
    %c0_i32_54 = arith.constant 0 : i32
    %70 = arith.cmpi slt, %63, %c0_i32_54 : i32
    %71 = vector.broadcast %70 : i1 to vector<288x128xi1>
    %72 = vector.broadcast %71 : vector<288x128xi1> to vector<288x128xi1>
    %73 = arith.xori %69, %72 : vector<288x128xi1>
    %74 = arith.andi %73, %67 : vector<288x128xi1>
    %75 = vector.broadcast %63 : i32 to vector<288x128xi32>
    %76 = arith.addi %65, %75 : vector<288x128xi32>
    %77 = arith.select %74, %76, %65 : vector<288x128xi1>, vector<288x128xi32>
    %c16_i32 = arith.constant 16 : i32
    %78 = vector.broadcast %c16_i32 : i32 to vector<288x128xi32>
    %79 = arith.cmpi slt, %77, %78 : vector<288x128xi32>
    %cst_55 = arith.constant 0.000000e+00 : f32
    %80 = vector.broadcast %cst_55 : f32 to vector<288x128xf32>
    %81 = arith.select %79, %60, %80 : vector<288x128xi1>, vector<288x128xf32>
    %cst_56 = arith.constant 0.000000e+00 : bf16
    %82 = vector.broadcast %cst_56 : bf16 to vector<19x128xbf16>
    %c0_57 = arith.constant 0 : index
    %c0_58 = arith.constant 0 : index
    %c0_59 = arith.constant 0 : index
    %83 = vector.load %arg5[%c0_57, %c0_58, %c0_59] : memref<1x342x128xbf16, #tpu.memory_space<vmem>>, vector<1x19x128xbf16>
    %84 = vector.shape_cast %83 : vector<1x19x128xbf16> to vector<19x128xbf16>
    %85 = vector.shape_cast %82 : vector<19x128xbf16> to vector<1x19x128xbf16>
    tpu.vector_store %arg5[%c0_57, %c0_58, %c0_59], %85 {strides = array<i32>} : memref<1x342x128xbf16, #tpu.memory_space<vmem>>, vector<1x19x128xbf16>,
    %86 = arith.truncf %81 : vector<288x128xf32> to vector<288x128xbf16>
    %c0_60 = arith.constant 0 : index
    %c19_61 = arith.constant 19 : index
    %c0_62 = arith.constant 0 : index
    %87 = vector.load %arg5[%c0_60, %c19_61, %c0_62] : memref<1x342x128xbf16, #tpu.memory_space<vmem>>, vector<1x288x128xbf16>
    %88 = vector.shape_cast %87 : vector<1x288x128xbf16> to vector<288x128xbf16>
    %89 = vector.shape_cast %86 : vector<288x128xbf16> to vector<1x288x128xbf16>
    tpu.vector_store %arg5[%c0_60, %c19_61, %c0_62], %89 {strides = array<i32>} : memref<1x342x128xbf16, #tpu.memory_space<vmem>>, vector<1x288x128xbf16>,
    %cst_63 = arith.constant 0.000000e+00 : bf16
    %90 = vector.broadcast %cst_63 : bf16 to vector<35x128xbf16>
    %c0_64 = arith.constant 0 : index
    %c307 = arith.constant 307 : index
    %c0_65 = arith.constant 0 : index
    %91 = vector.load %arg5[%c0_64, %c307, %c0_65] : memref<1x342x128xbf16, #tpu.memory_space<vmem>>, vector<1x35x128xbf16>
    %92 = vector.shape_cast %91 : vector<1x35x128xbf16> to vector<35x128xbf16>
    %93 = vector.shape_cast %90 : vector<35x128xbf16> to vector<1x35x128xbf16>
    tpu.vector_store %arg5[%c0_64, %c307, %c0_65], %93 {strides = array<i32>} : memref<1x342x128xbf16, #tpu.memory_space<vmem>>, vector<1x35x128xbf16>,
    return
  }
  func.func @transform_0(%arg0: i32) -> (i32, i32, i32) {
    %c0_i32 = arith.constant 0 : i32
    %c0_i32_0 = arith.constant 0 : i32
    %c0_i32_1 = arith.constant 0 : i32
    return %arg0, %c0_i32, %c0_i32_0 : i32, i32, i32
  }
  func.func @transform_1(%arg0: i32) -> (i32, i32, i32) {
    %c0_i32 = arith.constant 0 : i32
    %c0_i32_0 = arith.constant 0 : i32
    %c0_i32_1 = arith.constant 0 : i32
    %c0_i32_2 = arith.constant 0 : i32
    return %c0_i32, %c0_i32_0, %c0_i32_1 : i32, i32, i32
  }
  func.func @transform_2(%arg0: i32) -> (i32, i32) {
    %c0_i32 = arith.constant 0 : i32
    %c0_i32_0 = arith.constant 0 : i32
    %c0_i32_1 = arith.constant 0 : i32
    return %c0_i32, %c0_i32_0 : i32, i32
  }
  func.func @transform_3(%arg0: i32) -> (i32, i32) {
    %c0_i32 = arith.constant 0 : i32
    %c0_i32_0 = arith.constant 0 : i32
    %c0_i32_1 = arith.constant 0 : i32
    return %c0_i32, %c0_i32_0 : i32, i32
  }
  func.func @transform_4(%arg0: i32) -> (i32, i32, i32) {
    %c0_i32 = arith.constant 0 : i32
    %c0_i32_0 = arith.constant 0 : i32
    %c0_i32_1 = arith.constant 0 : i32
    return %arg0, %c0_i32, %c0_i32_0 : i32, i32, i32
  }
}

module attributes {stable_mosaic.version = 11 : i64} {
  func.func @_conv2_srm_kernel(%arg0: i32, %arg1: memref<1x342x128xbf16, #tpu.memory_space<vmem>>, %arg2: memref<1x342x128xbf16, #tpu.memory_space<vmem>>, %arg3: memref<9x128x128xbf16, #tpu.memory_space<vmem>>, %arg4: memref<1x128xf32, #tpu.memory_space<vmem>>, %arg5: memref<1x128xf32, #tpu.memory_space<vmem>>, %arg6: memref<2x128xf32, #tpu.memory_space<vmem>>, %arg7: memref<1x128xf32, #tpu.memory_space<vmem>>, %arg8: memref<1x128xf32, #tpu.memory_space<vmem>>, %arg9: memref<1x288x128xf32, #tpu.memory_space<vmem>>) attributes {dimension_semantics = [#tpu.dimension_semantics<parallel>], iteration_bounds = array<i64: 2>, scalar_prefetch = 0 : i64, scratch_operands = 0 : i64, tpu.core_type = #tpu.core_type<tc>, window_params = [{transform_indices = @transform_0, window_bounds = array<i64: 1, 342, 128>}, {transform_indices = @transform_1, window_bounds = array<i64: 1, 342, 128>}, {pipeline_mode = #tpu.pipeline_mode<synchronous>, transform_indices = @transform_2, window_bounds = array<i64: 9, 128, 128>}, {pipeline_mode = #tpu.pipeline_mode<synchronous>, transform_indices = @transform_3, window_bounds = array<i64: 1, 128>}, {pipeline_mode = #tpu.pipeline_mode<synchronous>, transform_indices = @transform_4, window_bounds = array<i64: 1, 128>}, {pipeline_mode = #tpu.pipeline_mode<synchronous>, transform_indices = @transform_5, window_bounds = array<i64: 2, 128>}, {pipeline_mode = #tpu.pipeline_mode<synchronous>, transform_indices = @transform_6, window_bounds = array<i64: 1, 128>}, {pipeline_mode = #tpu.pipeline_mode<synchronous>, transform_indices = @transform_7, window_bounds = array<i64: 1, 128>}, {transform_indices = @transform_8, window_bounds = array<i64: 1, 288, 128>}]} {
    %c0 = arith.constant 0 : index
    %c0_0 = arith.constant 0 : index
    %c0_1 = arith.constant 0 : index
    %0 = vector.load %arg1[%c0, %c0_0, %c0_1] : memref<1x342x128xbf16, #tpu.memory_space<vmem>>, vector<1x288x128xbf16>
    %1 = vector.shape_cast %0 : vector<1x288x128xbf16> to vector<288x128xbf16>
    %c0_2 = arith.constant 0 : index
    %c0_3 = arith.constant 0 : index
    %c0_4 = arith.constant 0 : index
    %2 = vector.load %arg3[%c0_2, %c0_3, %c0_4] : memref<9x128x128xbf16, #tpu.memory_space<vmem>>, vector<1x128x128xbf16>
    %3 = vector.shape_cast %2 : vector<1x128x128xbf16> to vector<128x128xbf16>
    %cst = arith.constant dense<0.000000e+00> : vector<288x128xf32>
    %4 = tpu.matmul %1, %3, %cst {dimension_numbers = #tpu.dot_dimension_numbers<[1], [0], [0], [1], [0, 0, 1, 1], [], []>} : vector<288x128xbf16>, vector<128x128xbf16>, vector<288x128xf32> -> vector<288x128xf32>
    %c0_5 = arith.constant 0 : index
    %c1 = arith.constant 1 : index
    %c0_6 = arith.constant 0 : index
    %5 = vector.load %arg1[%c0_5, %c1, %c0_6] : memref<1x342x128xbf16, #tpu.memory_space<vmem>>, vector<1x288x128xbf16>
    %6 = vector.shape_cast %5 : vector<1x288x128xbf16> to vector<288x128xbf16>
    %c1_7 = arith.constant 1 : index
    %c0_8 = arith.constant 0 : index
    %c0_9 = arith.constant 0 : index
    %7 = vector.load %arg3[%c1_7, %c0_8, %c0_9] : memref<9x128x128xbf16, #tpu.memory_space<vmem>>, vector<1x128x128xbf16>
    %8 = vector.shape_cast %7 : vector<1x128x128xbf16> to vector<128x128xbf16>
    %cst_10 = arith.constant dense<0.000000e+00> : vector<288x128xf32>
    %9 = tpu.matmul %6, %8, %cst_10 {dimension_numbers = #tpu.dot_dimension_numbers<[1], [0], [0], [1], [0, 0, 1, 1], [], []>} : vector<288x128xbf16>, vector<128x128xbf16>, vector<288x128xf32> -> vector<288x128xf32>
    %10 = arith.addf %4, %9 : vector<288x128xf32>
    %c0_11 = arith.constant 0 : index
    %c2 = arith.constant 2 : index
    %c0_12 = arith.constant 0 : index
    %11 = vector.load %arg1[%c0_11, %c2, %c0_12] : memref<1x342x128xbf16, #tpu.memory_space<vmem>>, vector<1x288x128xbf16>
    %12 = vector.shape_cast %11 : vector<1x288x128xbf16> to vector<288x128xbf16>
    %c2_13 = arith.constant 2 : index
    %c0_14 = arith.constant 0 : index
    %c0_15 = arith.constant 0 : index
    %13 = vector.load %arg3[%c2_13, %c0_14, %c0_15] : memref<9x128x128xbf16, #tpu.memory_space<vmem>>, vector<1x128x128xbf16>
    %14 = vector.shape_cast %13 : vector<1x128x128xbf16> to vector<128x128xbf16>
    %cst_16 = arith.constant dense<0.000000e+00> : vector<288x128xf32>
    %15 = tpu.matmul %12, %14, %cst_16 {dimension_numbers = #tpu.dot_dimension_numbers<[1], [0], [0], [1], [0, 0, 1, 1], [], []>} : vector<288x128xbf16>, vector<128x128xbf16>, vector<288x128xf32> -> vector<288x128xf32>
    %16 = arith.addf %10, %15 : vector<288x128xf32>
    %c0_17 = arith.constant 0 : index
    %c18 = arith.constant 18 : index
    %c0_18 = arith.constant 0 : index
    %17 = vector.load %arg1[%c0_17, %c18, %c0_18] : memref<1x342x128xbf16, #tpu.memory_space<vmem>>, vector<1x288x128xbf16>
    %18 = vector.shape_cast %17 : vector<1x288x128xbf16> to vector<288x128xbf16>
    %c3 = arith.constant 3 : index
    %c0_19 = arith.constant 0 : index
    %c0_20 = arith.constant 0 : index
    %19 = vector.load %arg3[%c3, %c0_19, %c0_20] : memref<9x128x128xbf16, #tpu.memory_space<vmem>>, vector<1x128x128xbf16>
    %20 = vector.shape_cast %19 : vector<1x128x128xbf16> to vector<128x128xbf16>
    %cst_21 = arith.constant dense<0.000000e+00> : vector<288x128xf32>
    %21 = tpu.matmul %18, %20, %cst_21 {dimension_numbers = #tpu.dot_dimension_numbers<[1], [0], [0], [1], [0, 0, 1, 1], [], []>} : vector<288x128xbf16>, vector<128x128xbf16>, vector<288x128xf32> -> vector<288x128xf32>
    %22 = arith.addf %16, %21 : vector<288x128xf32>
    %c0_22 = arith.constant 0 : index
    %c19 = arith.constant 19 : index
    %c0_23 = arith.constant 0 : index
    %23 = vector.load %arg1[%c0_22, %c19, %c0_23] : memref<1x342x128xbf16, #tpu.memory_space<vmem>>, vector<1x288x128xbf16>
    %24 = vector.shape_cast %23 : vector<1x288x128xbf16> to vector<288x128xbf16>
    %c4 = arith.constant 4 : index
    %c0_24 = arith.constant 0 : index
    %c0_25 = arith.constant 0 : index
    %25 = vector.load %arg3[%c4, %c0_24, %c0_25] : memref<9x128x128xbf16, #tpu.memory_space<vmem>>, vector<1x128x128xbf16>
    %26 = vector.shape_cast %25 : vector<1x128x128xbf16> to vector<128x128xbf16>
    %cst_26 = arith.constant dense<0.000000e+00> : vector<288x128xf32>
    %27 = tpu.matmul %24, %26, %cst_26 {dimension_numbers = #tpu.dot_dimension_numbers<[1], [0], [0], [1], [0, 0, 1, 1], [], []>} : vector<288x128xbf16>, vector<128x128xbf16>, vector<288x128xf32> -> vector<288x128xf32>
    %28 = arith.addf %22, %27 : vector<288x128xf32>
    %c0_27 = arith.constant 0 : index
    %c20 = arith.constant 20 : index
    %c0_28 = arith.constant 0 : index
    %29 = vector.load %arg1[%c0_27, %c20, %c0_28] : memref<1x342x128xbf16, #tpu.memory_space<vmem>>, vector<1x288x128xbf16>
    %30 = vector.shape_cast %29 : vector<1x288x128xbf16> to vector<288x128xbf16>
    %c5 = arith.constant 5 : index
    %c0_29 = arith.constant 0 : index
    %c0_30 = arith.constant 0 : index
    %31 = vector.load %arg3[%c5, %c0_29, %c0_30] : memref<9x128x128xbf16, #tpu.memory_space<vmem>>, vector<1x128x128xbf16>
    %32 = vector.shape_cast %31 : vector<1x128x128xbf16> to vector<128x128xbf16>
    %cst_31 = arith.constant dense<0.000000e+00> : vector<288x128xf32>
    %33 = tpu.matmul %30, %32, %cst_31 {dimension_numbers = #tpu.dot_dimension_numbers<[1], [0], [0], [1], [0, 0, 1, 1], [], []>} : vector<288x128xbf16>, vector<128x128xbf16>, vector<288x128xf32> -> vector<288x128xf32>
    %34 = arith.addf %28, %33 : vector<288x128xf32>
    %c0_32 = arith.constant 0 : index
    %c36 = arith.constant 36 : index
    %c0_33 = arith.constant 0 : index
    %35 = vector.load %arg1[%c0_32, %c36, %c0_33] : memref<1x342x128xbf16, #tpu.memory_space<vmem>>, vector<1x288x128xbf16>
    %36 = vector.shape_cast %35 : vector<1x288x128xbf16> to vector<288x128xbf16>
    %c6 = arith.constant 6 : index
    %c0_34 = arith.constant 0 : index
    %c0_35 = arith.constant 0 : index
    %37 = vector.load %arg3[%c6, %c0_34, %c0_35] : memref<9x128x128xbf16, #tpu.memory_space<vmem>>, vector<1x128x128xbf16>
    %38 = vector.shape_cast %37 : vector<1x128x128xbf16> to vector<128x128xbf16>
    %cst_36 = arith.constant dense<0.000000e+00> : vector<288x128xf32>
    %39 = tpu.matmul %36, %38, %cst_36 {dimension_numbers = #tpu.dot_dimension_numbers<[1], [0], [0], [1], [0, 0, 1, 1], [], []>} : vector<288x128xbf16>, vector<128x128xbf16>, vector<288x128xf32> -> vector<288x128xf32>
    %40 = arith.addf %34, %39 : vector<288x128xf32>
    %c0_37 = arith.constant 0 : index
    %c37 = arith.constant 37 : index
    %c0_38 = arith.constant 0 : index
    %41 = vector.load %arg1[%c0_37, %c37, %c0_38] : memref<1x342x128xbf16, #tpu.memory_space<vmem>>, vector<1x288x128xbf16>
    %42 = vector.shape_cast %41 : vector<1x288x128xbf16> to vector<288x128xbf16>
    %c7 = arith.constant 7 : index
    %c0_39 = arith.constant 0 : index
    %c0_40 = arith.constant 0 : index
    %43 = vector.load %arg3[%c7, %c0_39, %c0_40] : memref<9x128x128xbf16, #tpu.memory_space<vmem>>, vector<1x128x128xbf16>
    %44 = vector.shape_cast %43 : vector<1x128x128xbf16> to vector<128x128xbf16>
    %cst_41 = arith.constant dense<0.000000e+00> : vector<288x128xf32>
    %45 = tpu.matmul %42, %44, %cst_41 {dimension_numbers = #tpu.dot_dimension_numbers<[1], [0], [0], [1], [0, 0, 1, 1], [], []>} : vector<288x128xbf16>, vector<128x128xbf16>, vector<288x128xf32> -> vector<288x128xf32>
    %46 = arith.addf %40, %45 : vector<288x128xf32>
    %c0_42 = arith.constant 0 : index
    %c38 = arith.constant 38 : index
    %c0_43 = arith.constant 0 : index
    %47 = vector.load %arg1[%c0_42, %c38, %c0_43] : memref<1x342x128xbf16, #tpu.memory_space<vmem>>, vector<1x288x128xbf16>
    %48 = vector.shape_cast %47 : vector<1x288x128xbf16> to vector<288x128xbf16>
    %c8 = arith.constant 8 : index
    %c0_44 = arith.constant 0 : index
    %c0_45 = arith.constant 0 : index
    %49 = vector.load %arg3[%c8, %c0_44, %c0_45] : memref<9x128x128xbf16, #tpu.memory_space<vmem>>, vector<1x128x128xbf16>
    %50 = vector.shape_cast %49 : vector<1x128x128xbf16> to vector<128x128xbf16>
    %cst_46 = arith.constant dense<0.000000e+00> : vector<288x128xf32>
    %51 = tpu.matmul %48, %50, %cst_46 {dimension_numbers = #tpu.dot_dimension_numbers<[1], [0], [0], [1], [0, 0, 1, 1], [], []>} : vector<288x128xbf16>, vector<128x128xbf16>, vector<288x128xf32> -> vector<288x128xf32>
    %52 = arith.addf %46, %51 : vector<288x128xf32>
    %c0_47 = arith.constant 0 : index
    %c0_48 = arith.constant 0 : index
    %53 = vector.load %arg4[%c0_47, %c0_48] : memref<1x128xf32, #tpu.memory_space<vmem>>, vector<1x128xf32>
    %54 = vector.broadcast %53 : vector<1x128xf32> to vector<288x128xf32>
    %55 = arith.mulf %52, %54 : vector<288x128xf32>
    %c0_49 = arith.constant 0 : index
    %c0_50 = arith.constant 0 : index
    %56 = vector.load %arg5[%c0_49, %c0_50] : memref<1x128xf32, #tpu.memory_space<vmem>>, vector<1x128xf32>
    %57 = vector.broadcast %56 : vector<1x128xf32> to vector<288x128xf32>
    %58 = arith.addf %55, %57 : vector<288x128xf32>
    %59 = tpu.iota {dimensions = array<i32: 0>} : vector<288x128xi32>
    %c18_i32 = arith.constant 18 : i32
    %c0_i32 = arith.constant 0 : i32
    %60 = arith.cmpi eq, %c18_i32, %c0_i32 : i32
    %c1_i32 = arith.constant 1 : i32
    %61 = arith.select %60, %c1_i32, %c18_i32 : i32
    %62 = vector.broadcast %61 : i32 to vector<288x128xi32>
    %63 = arith.remsi %59, %62 : vector<288x128xi32>
    %c0_i32_51 = arith.constant 0 : i32
    %64 = vector.broadcast %c0_i32_51 : i32 to vector<288x128xi32>
    %65 = arith.cmpi ne, %63, %64 : vector<288x128xi32>
    %c0_i32_52 = arith.constant 0 : i32
    %66 = vector.broadcast %c0_i32_52 : i32 to vector<288x128xi32>
    %67 = arith.cmpi slt, %63, %66 : vector<288x128xi32>
    %c0_i32_53 = arith.constant 0 : i32
    %68 = arith.cmpi slt, %61, %c0_i32_53 : i32
    %69 = vector.broadcast %68 : i1 to vector<288x128xi1>
    %70 = vector.broadcast %69 : vector<288x128xi1> to vector<288x128xi1>
    %71 = arith.xori %67, %70 : vector<288x128xi1>
    %72 = arith.andi %71, %65 : vector<288x128xi1>
    %73 = vector.broadcast %61 : i32 to vector<288x128xi32>
    %74 = arith.addi %63, %73 : vector<288x128xi32>
    %75 = arith.select %72, %74, %63 : vector<288x128xi1>, vector<288x128xi32>
    %c16_i32 = arith.constant 16 : i32
    %76 = vector.broadcast %c16_i32 : i32 to vector<288x128xi32>
    %77 = arith.cmpi slt, %75, %76 : vector<288x128xi32>
    %cst_54 = arith.constant 0.000000e+00 : f32
    %78 = vector.broadcast %cst_54 : f32 to vector<288x128xf32>
    %79 = arith.select %77, %58, %78 : vector<288x128xi1>, vector<288x128xf32>
    %cst_55 = arith.constant dense<0.000000e+00> : vector<128xf32>
    %80 = vector.multi_reduction <add>, %79, %cst_55 [0] : vector<288x128xf32> to vector<128xf32>
    %81 = vector.shape_cast %80 : vector<128xf32> to vector<1x128xf32>
    %cst_56 = arith.constant 3.906250e-03 : f32
    %82 = vector.broadcast %cst_56 : f32 to vector<1x128xf32>
    %83 = arith.mulf %81, %82 : vector<1x128xf32>
    %84 = vector.broadcast %83 : vector<1x128xf32> to vector<288x128xf32>
    %85 = arith.subf %58, %84 : vector<288x128xf32>
    %cst_57 = arith.constant 0.000000e+00 : f32
    %86 = vector.broadcast %cst_57 : f32 to vector<288x128xf32>
    %87 = arith.select %77, %85, %86 : vector<288x128xi1>, vector<288x128xf32>
    %88 = arith.mulf %87, %87 : vector<288x128xf32>
    %cst_58 = arith.constant dense<0.000000e+00> : vector<128xf32>
    %89 = vector.multi_reduction <add>, %88, %cst_58 [0] : vector<288x128xf32> to vector<128xf32>
    %90 = vector.shape_cast %89 : vector<128xf32> to vector<1x128xf32>
    %cst_59 = arith.constant 0.00392156886 : f32
    %91 = vector.broadcast %cst_59 : f32 to vector<1x128xf32>
    %92 = arith.mulf %90, %91 : vector<1x128xf32>
    %cst_60 = arith.constant 9.99999974E-6 : f32
    %93 = vector.broadcast %cst_60 : f32 to vector<1x128xf32>
    %94 = arith.addf %92, %93 : vector<1x128xf32>
    %95 = math.sqrt %94 : vector<1x128xf32>
    %c0_61 = arith.constant 0 : index
    %c0_62 = arith.constant 0 : index
    %96 = vector.load %arg6[%c0_61, %c0_62] : memref<2x128xf32, #tpu.memory_space<vmem>>, vector<1x128xf32>
    %97 = arith.mulf %83, %96 : vector<1x128xf32>
    %c1_63 = arith.constant 1 : index
    %c0_64 = arith.constant 0 : index
    %98 = vector.load %arg6[%c1_63, %c0_64] : memref<2x128xf32, #tpu.memory_space<vmem>>, vector<1x128xf32>
    %99 = arith.mulf %95, %98 : vector<1x128xf32>
    %100 = arith.addf %97, %99 : vector<1x128xf32>
    %c0_65 = arith.constant 0 : index
    %c0_66 = arith.constant 0 : index
    %101 = vector.load %arg7[%c0_65, %c0_66] : memref<1x128xf32, #tpu.memory_space<vmem>>, vector<1x128xf32>
    %102 = arith.mulf %100, %101 : vector<1x128xf32>
    %c0_67 = arith.constant 0 : index
    %c0_68 = arith.constant 0 : index
    %103 = vector.load %arg8[%c0_67, %c0_68] : memref<1x128xf32, #tpu.memory_space<vmem>>, vector<1x128xf32>
    %104 = arith.addf %102, %103 : vector<1x128xf32>
    %105 = arith.negf %104 : vector<1x128xf32>
    %106 = math.exp %105 : vector<1x128xf32>
    %cst_69 = arith.constant 1.000000e+00 : f32
    %107 = vector.broadcast %cst_69 : f32 to vector<1x128xf32>
    %108 = arith.addf %107, %106 : vector<1x128xf32>
    %109 = arith.divf %107, %108 : vector<1x128xf32>
    %c0_70 = arith.constant 0 : index
    %c19_71 = arith.constant 19 : index
    %c0_72 = arith.constant 0 : index
    %110 = vector.load %arg2[%c0_70, %c19_71, %c0_72] : memref<1x342x128xbf16, #tpu.memory_space<vmem>>, vector<1x288x128xbf16>
    %111 = vector.shape_cast %110 : vector<1x288x128xbf16> to vector<288x128xbf16>
    %112 = arith.extf %111 : vector<288x128xbf16> to vector<288x128xf32>
    %113 = vector.broadcast %109 : vector<1x128xf32> to vector<288x128xf32>
    %114 = arith.mulf %58, %113 : vector<288x128xf32>
    %115 = arith.addf %114, %112 : vector<288x128xf32>
    %cst_73 = arith.constant 0.000000e+00 : f32
    %116 = vector.broadcast %cst_73 : f32 to vector<288x128xf32>
    %117 = arith.maximumf %115, %116 : vector<288x128xf32>
    %c0_74 = arith.constant 0 : index
    %c0_75 = arith.constant 0 : index
    %c0_76 = arith.constant 0 : index
    %118 = vector.load %arg9[%c0_74, %c0_75, %c0_76] : memref<1x288x128xf32, #tpu.memory_space<vmem>>, vector<1x288x128xf32>
    %119 = vector.shape_cast %118 : vector<1x288x128xf32> to vector<288x128xf32>
    %120 = vector.shape_cast %117 : vector<288x128xf32> to vector<1x288x128xf32>
    tpu.vector_store %arg9[%c0_74, %c0_75, %c0_76], %120 {strides = array<i32>} : memref<1x288x128xf32, #tpu.memory_space<vmem>>, vector<1x288x128xf32>,
    return
  }
  func.func @transform_0(%arg0: i32) -> (i32, i32, i32) {
    %c0_i32 = arith.constant 0 : i32
    %c0_i32_0 = arith.constant 0 : i32
    %c0_i32_1 = arith.constant 0 : i32
    return %arg0, %c0_i32, %c0_i32_0 : i32, i32, i32
  }
  func.func @transform_1(%arg0: i32) -> (i32, i32, i32) {
    %c0_i32 = arith.constant 0 : i32
    %c0_i32_0 = arith.constant 0 : i32
    %c0_i32_1 = arith.constant 0 : i32
    return %arg0, %c0_i32, %c0_i32_0 : i32, i32, i32
  }
  func.func @transform_2(%arg0: i32) -> (i32, i32, i32) {
    %c0_i32 = arith.constant 0 : i32
    %c0_i32_0 = arith.constant 0 : i32
    %c0_i32_1 = arith.constant 0 : i32
    %c0_i32_2 = arith.constant 0 : i32
    return %c0_i32, %c0_i32_0, %c0_i32_1 : i32, i32, i32
  }
  func.func @transform_3(%arg0: i32) -> (i32, i32) {
    %c0_i32 = arith.constant 0 : i32
    %c0_i32_0 = arith.constant 0 : i32
    %c0_i32_1 = arith.constant 0 : i32
    return %c0_i32, %c0_i32_0 : i32, i32
  }
  func.func @transform_4(%arg0: i32) -> (i32, i32) {
    %c0_i32 = arith.constant 0 : i32
    %c0_i32_0 = arith.constant 0 : i32
    %c0_i32_1 = arith.constant 0 : i32
    return %c0_i32, %c0_i32_0 : i32, i32
  }
  func.func @transform_5(%arg0: i32) -> (i32, i32) {
    %c0_i32 = arith.constant 0 : i32
    %c0_i32_0 = arith.constant 0 : i32
    %c0_i32_1 = arith.constant 0 : i32
    return %c0_i32, %c0_i32_0 : i32, i32
  }
  func.func @transform_6(%arg0: i32) -> (i32, i32) {
    %c0_i32 = arith.constant 0 : i32
    %c0_i32_0 = arith.constant 0 : i32
    %c0_i32_1 = arith.constant 0 : i32
    return %c0_i32, %c0_i32_0 : i32, i32
  }
  func.func @transform_7(%arg0: i32) -> (i32, i32) {
    %c0_i32 = arith.constant 0 : i32
    %c0_i32_0 = arith.constant 0 : i32
    %c0_i32_1 = arith.constant 0 : i32
    return %c0_i32, %c0_i32_0 : i32, i32
  }
  func.func @transform_8(%arg0: i32) -> (i32, i32, i32) {
    %c0_i32 = arith.constant 0 : i32
    %c0_i32_0 = arith.constant 0 : i32
    %c0_i32_1 = arith.constant 0 : i32
    return %arg0, %c0_i32, %c0_i32_0 : i32, i32, i32
  }
}

</mosaic_0001>

<llo_original>
// kernel: basic_block_forward.3
$region0: #{basic_block_forward.3}
  #allocation0 [shape = 'u32[]', space=smem, size = 0x4, offset = 0x4, fixed_abs, tag = 'smem constant byte address 0x4 - core index']
  #allocation1 [shape = 'u32[72,128]{1,0:T(1,128)}', space=vmem, size = 0x9000, scoped, tag = 'internal scratch']
  %s0 = inlined_call_operand.vmem [shape: bf16[2,342,128], index: 0, kind: input, shape index: {}]
  %s1 = inlined_call_operand.vmem [shape: bf16[2,342,128], index: 1, kind: input, shape index: {}]
  %s2 = inlined_call_operand.vmem [shape: bf16[9,128,128], index: 2, kind: input, shape index: {}]
  %s3 = inlined_call_operand.vmem [shape: f32[1,128], index: 3, kind: input, shape index: {}]
  %s4 = inlined_call_operand.vmem [shape: f32[1,128], index: 4, kind: input, shape index: {}]
  %s5 = inlined_call_operand.vmem [shape: f32[2,128], index: 5, kind: input, shape index: {}]
  %s6 = inlined_call_operand.vmem [shape: f32[1,128], index: 6, kind: input, shape index: {}]
  %s7 = inlined_call_operand.vmem [shape: f32[1,128], index: 7, kind: input, shape index: {}]
  %s8 = inlined_call_operand.vmem [shape: f32[2,288,128], index: 8, kind: output, shape index: {}]
  %s9 = sld [smem:[#allocation0]]
  $region65: #{basic_block_forward.3} parent=0
    _
  %s11 = ssub.s32 1, %s9
  %s12 = scalar_select 0, %s11, %s9
  loop: start=0, step=1, limit=4
  $region2: #{basic_block_forward.3} parent=0 // loop_pre_header
    _
  $region3: #{basic_block_forward.3} parent=0 // loop_header
    %s14 = sphi 0, %s18
    %p15 = scmp.ge.s32.totalorder %s14, 4
    %s24 = sphi 0, %s26
    %s27 = sphi 0, %s24
    %s28 = sphi 0, %s27
    %s44 = sphi 0, %s28
    %s50 = sphi 0, %s52
    %s53 = sphi 0, %s50
    %s54 = sphi 0, %s53
    %s70 = sphi 0, %s54
    %s74 = sphi 0, %s74
    %s76 = sphi 0, %s74
    %s77 = sphi 0, %s76
    %s91 = sphi 0, %s77
    %s95 = sphi 0, %s95
    %s97 = sphi 0, %s95
    %s98 = sphi 0, %s97
    %s112 = sphi 0, %s98
    %s116 = sphi 0, %s116
    %s118 = sphi 0, %s116
    %s119 = sphi 0, %s118
    %s133 = sphi 0, %s119
    %s137 = sphi 0, %s137
    %s139 = sphi 0, %s137
    %s140 = sphi 0, %s139
    %s154 = sphi 0, %s140
    %s158 = sphi 0, %s158
    %s160 = sphi 0, %s158
    %s161 = sphi 0, %s160
    %s175 = sphi 0, %s161
    %s179 = sphi 0, %s179
    %s181 = sphi 0, %s179
    %s182 = sphi 0, %s181
    %s196 = sphi 0, %s182
    %s202 = sphi 0, %s204
    %s205 = sphi 0, %s202
    %s206 = sphi 0, %s205
    %s222 = sphi 0, %s206
  $region4: #{basic_block_forward.3} parent=0 // loop_header_branch
    %17 = sbr.rel (%p15) target = $region8
  $region5: #{basic_block_forward.3} parent=0 // loop_body
    %s19 = ssub.s32 %s14, 1
    %s20 = ssub.s32 %s14, 2
    %s21 = sadd.s32 %s14, 1
    %s22 = ssub.s32 %s14, %s21
    %p23 = scmp.eq.s32.totalorder %s22, 0
    %s25 = sadd.s32 %s24, 1
    %s26 = scalar_select %p23, %s24, %s25
    %p29 = pneg %p23
    %p30 = scmp.eq.s32.totalorder %s14, 1
    %p31 = por %p29, %p30
    %p32 = scmp.ne.s32.totalorder %s24, %s27
    %p33 = scmp.eq.s32.totalorder %s14, 0
    %p34 = por %p32, %p33
    %p35 = scmp.ne.s32.totalorder %s24, %s27
    %p36 = scmp.eq.s32.totalorder %s19, 1
    %p37 = por %p35, %p36
    %p38 = scmp.ne.s32.totalorder %s27, %s28
    %p39 = scmp.eq.s32.totalorder %s19, 0
    %p40 = por %p38, %p39
    %p41 = scmp.ne.s32.totalorder %s27, %s28
    %p42 = scmp.eq.s32.totalorder %s20, 1
    %p43 = por %p41, %p42
    %p45 = scmp.ne.s32.totalorder %s28, %s44
    %p46 = scmp.eq.s32.totalorder %s20, 0
    %p47 = por %p45, %p46
    %s48 = ssub.s32 %s14, %s21
    %p49 = scmp.eq.s32.totalorder %s48, 0
    %s51 = sadd.s32 %s50, 1
    %s52 = scalar_select %p49, %s50, %s51
    %p55 = pneg %p49
    %p56 = scmp.eq.s32.totalorder %s14, 1
    %p57 = por %p55, %p56
    %p58 = scmp.ne.s32.totalorder %s50, %s53
    %p59 = scmp.eq.s32.totalorder %s14, 0
    %p60 = por %p58, %p59
    %p61 = scmp.ne.s32.totalorder %s50, %s53
    %p62 = scmp.eq.s32.totalorder %s19, 1
    %p63 = por %p61, %p62
    %p64 = scmp.ne.s32.totalorder %s53, %s54
    %p65 = scmp.eq.s32.totalorder %s19, 0
    %p66 = por %p64, %p65
    %p67 = scmp.ne.s32.totalorder %s53, %s54
    %p68 = scmp.eq.s32.totalorder %s20, 1
    %p69 = por %p67, %p68
    %p71 = scmp.ne.s32.totalorder %s54, %s70
    %p72 = scmp.eq.s32.totalorder %s20, 0
    %p73 = por %p71, %p72
    %s75 = sadd.s32 %s74, 1
    %p78 = scmp.eq.s32.totalorder %s14, 1
    %p79 = scmp.ne.s32.totalorder %s74, %s76
    %p80 = scmp.eq.s32.totalorder %s14, 0
    %p81 = por %p79, %p80
    %p82 = scmp.ne.s32.totalorder %s74, %s76
    %p83 = scmp.eq.s32.totalorder %s19, 1
    %p84 = por %p82, %p83
    %p85 = scmp.ne.s32.totalorder %s76, %s77
    %p86 = scmp.eq.s32.totalorder %s19, 0
    %p87 = por %p85, %p86
    %p88 = scmp.ne.s32.totalorder %s76, %s77
    %p89 = scmp.eq.s32.totalorder %s20, 1
    %p90 = por %p88, %p89
    %p92 = scmp.ne.s32.totalorder %s77, %s91
    %p93 = scmp.eq.s32.totalorder %s20, 0
    %p94 = por %p92, %p93
    %s96 = sadd.s32 %s95, 1
    %p99 = scmp.eq.s32.totalorder %s14, 1
    %p100 = scmp.ne.s32.totalorder %s95, %s97
    %p101 = scmp.eq.s32.totalorder %s14, 0
    %p102 = por %p100, %p101
    %p103 = scmp.ne.s32.totalorder %s95, %s97
    %p104 = scmp.eq.s32.totalorder %s19, 1
    %p105 = por %p103, %p104
    %p106 = scmp.ne.s32.totalorder %s97, %s98
    %p107 = scmp.eq.s32.totalorder %s19, 0
    %p108 = por %p106, %p107
    %p109 = scmp.ne.s32.totalorder %s97, %s98
    %p110 = scmp.eq.s32.totalorder %s20, 1
    %p111 = por %p109, %p110
    %p113 = scmp.ne.s32.totalorder %s98, %s112
    %p114 = scmp.eq.s32.totalorder %s20, 0
    %p115 = por %p113, %p114
    %s117 = sadd.s32 %s116, 1
    %p120 = scmp.eq.s32.totalorder %s14, 1
    %p121 = scmp.ne.s32.totalorder %s116, %s118
    %p122 = scmp.eq.s32.totalorder %s14, 0
    %p123 = por %p121, %p122
    %p124 = scmp.ne.s32.totalorder %s116, %s118
    %p125 = scmp.eq.s32.totalorder %s19, 1
    %p126 = por %p124, %p125
    %p127 = scmp.ne.s32.totalorder %s118, %s119
    %p128 = scmp.eq.s32.totalorder %s19, 0
    %p129 = por %p127, %p128
    %p130 = scmp.ne.s32.totalorder %s118, %s119
    %p131 = scmp.eq.s32.totalorder %s20, 1
    %p132 = por %p130, %p131
    %p134 = scmp.ne.s32.totalorder %s119, %s133
    %p135 = scmp.eq.s32.totalorder %s20, 0
    %p136 = por %p134, %p135
    %s138 = sadd.s32 %s137, 1
    %p141 = scmp.eq.s32.totalorder %s14, 1
    %p142 = scmp.ne.s32.totalorder %s137, %s139
    %p143 = scmp.eq.s32.totalorder %s14, 0
    %p144 = por %p142, %p143
    %p145 = scmp.ne.s32.totalorder %s137, %s139
    %p146 = scmp.eq.s32.totalorder %s19, 1
    %p147 = por %p145, %p146
    %p148 = scmp.ne.s32.totalorder %s139, %s140
    %p149 = scmp.eq.s32.totalorder %s19, 0
    %p150 = por %p148, %p149
    %p151 = scmp.ne.s32.totalorder %s139, %s140
    %p152 = scmp.eq.s32.totalorder %s20, 1
    %p153 = por %p151, %p152
    %p155 = scmp.ne.s32.totalorder %s140, %s154
    %p156 = scmp.eq.s32.totalorder %s20, 0
    %p157 = por %p155, %p156
    %s159 = sadd.s32 %s158, 1
    %p162 = scmp.eq.s32.totalorder %s14, 1
    %p163 = scmp.ne.s32.totalorder %s158, %s160
    %p164 = scmp.eq.s32.totalorder %s14, 0
    %p165 = por %p163, %p164
    %p166 = scmp.ne.s32.totalorder %s158, %s160
    %p167 = scmp.eq.s32.totalorder %s19, 1
    %p168 = por %p166, %p167
    %p169 = scmp.ne.s32.totalorder %s160, %s161
    %p170 = scmp.eq.s32.totalorder %s19, 0
    %p171 = por %p169, %p170
    %p172 = scmp.ne.s32.totalorder %s160, %s161
    %p173 = scmp.eq.s32.totalorder %s20, 1
    %p174 = por %p172, %p173
    %p176 = scmp.ne.s32.totalorder %s161, %s175
    %p177 = scmp.eq.s32.totalorder %s20, 0
    %p178 = por %p176, %p177
    %s180 = sadd.s32 %s179, 1
    %p183 = scmp.eq.s32.totalorder %s14, 1
    %p184 = scmp.ne.s32.totalorder %s179, %s181
    %p185 = scmp.eq.s32.totalorder %s14, 0
    %p186 = por %p184, %p185
    %p187 = scmp.ne.s32.totalorder %s179, %s181
    %p188 = scmp.eq.s32.totalorder %s19, 1
    %p189 = por %p187, %p188
    %p190 = scmp.ne.s32.totalorder %s181, %s182
    %p191 = scmp.eq.s32.totalorder %s19, 0
    %p192 = por %p190, %p191
    %p193 = scmp.ne.s32.totalorder %s181, %s182
    %p194 = scmp.eq.s32.totalorder %s20, 1
    %p195 = por %p193, %p194
    %p197 = scmp.ne.s32.totalorder %s182, %s196
    %p198 = scmp.eq.s32.totalorder %s20, 0
    %p199 = por %p197, %p198
    %s200 = ssub.s32 %s14, %s21
    %p201 = scmp.eq.s32.totalorder %s200, 0
    %s203 = sadd.s32 %s202, 1
    %s204 = scalar_select %p201, %s202, %s203
    %p207 = pneg %p201
    %p208 = scmp.eq.s32.totalorder %s14, 1
    %p209 = por %p207, %p208
    %p210 = scmp.ne.s32.totalorder %s202, %s205
    %p211 = scmp.eq.s32.totalorder %s14, 0
    %p212 = por %p210, %p211
    %p213 = scmp.ne.s32.totalorder %s202, %s205
    %p214 = scmp.eq.s32.totalorder %s19, 1
    %p215 = por %p213, %p214
    %p216 = scmp.ne.s32.totalorder %s205, %s206
    %p217 = scmp.eq.s32.totalorder %s19, 0
    %p218 = por %p216, %p217
    %p219 = scmp.ne.s32.totalorder %s205, %s206
    %p220 = scmp.eq.s32.totalorder %s20, 1
    %p221 = por %p219, %p220
    %p223 = scmp.ne.s32.totalorder %s206, %s222
    %p224 = scmp.eq.s32.totalorder %s20, 0
    %p225 = por %p223, %p224
    %p226 = scmp.le.s32.totalorder 1, %s14
    %p227 = scmp.lt.s32.totalorder %s14, 3
    %p228 = pnand %p226, %p227
    %p229 = pneg %p228
    // Predicated region
    $region9: #{basic_block_forward.3} parent=5 // pred_check
      _
    $region10: #{basic_block_forward.3} parent=5 // pred_check_branch
      %231 = sbr.rel (%p228) target = $region12
    $region11: #{basic_block_forward.3} parent=5 // pred_region
      %s232 = ssub.s32 %s14, 1
      // Predicated region
      $region13: #{basic_block_forward.3} parent=11 // pred_check
        %p233 = pneg %p87
      $region14: #{basic_block_forward.3} parent=11 // pred_check_branch
        %235 = sbr.rel (%p233) target = $region16
      $region15: #{basic_block_forward.3} parent=11 // pred_region
        _
      $region16: #{basic_block_forward.3} parent=11 // pred_fallthru
        _
      // Predicated region
      $region17: #{basic_block_forward.3} parent=11 // pred_check
        %p236 = pneg %p108
      $region18: #{basic_block_forward.3} parent=11 // pred_check_branch
        %238 = sbr.rel (%p236) target = $region20
      $region19: #{basic_block_forward.3} parent=11 // pred_region
        _
      $region20: #{basic_block_forward.3} parent=11 // pred_fallthru
        _
      // Predicated region
      $region21: #{basic_block_forward.3} parent=11 // pred_check
        %p239 = pneg %p129
      $region22: #{basic_block_forward.3} parent=11 // pred_check_branch
        %241 = sbr.rel (%p239) target = $region24
      $region23: #{basic_block_forward.3} parent=11 // pred_region
        _
      $region24: #{basic_block_forward.3} parent=11 // pred_fallthru
        _
      // Predicated region
      $region25: #{basic_block_forward.3} parent=11 // pred_check
        %p242 = pneg %p150
      $region26: #{basic_block_forward.3} parent=11 // pred_check_branch
        %244 = sbr.rel (%p242) target = $region28
      $region27: #{basic_block_forward.3} parent=11 // pred_region
        _
      $region28: #{basic_block_forward.3} parent=11 // pred_fallthru
        _
      // Predicated region
      $region29: #{basic_block_forward.3} parent=11 // pred_check
        %p245 = pneg %p171
      $region30: #{basic_block_forward.3} parent=11 // pred_check_branch
        %247 = sbr.rel (%p245) target = $region32
      $region31: #{basic_block_forward.3} parent=11 // pred_region
        _
      $region32: #{basic_block_forward.3} parent=11 // pred_fallthru
        _
      // Predicated region
      $region33: #{basic_block_forward.3} parent=11 // pred_check
        %p248 = pneg %p192
      $region34: #{basic_block_forward.3} parent=11 // pred_check_branch
        %250 = sbr.rel (%p248) target = $region36
      $region35: #{basic_block_forward.3} parent=11 // pred_region
        _
      $region36: #{basic_block_forward.3} parent=11 // pred_fallthru
        _
    $region12: #{basic_block_forward.3} parent=5 // pred_fallthru
      _
    %p251 = scmp.lt.s32.totalorder %s14, 2
    // Predicated region
    $region37: #{basic_block_forward.3} parent=5 // pred_check
      %p252 = pneg %p251
    $region38: #{basic_block_forward.3} parent=5 // pred_check_branch
      %254 = sbr.rel (%p252) target = $region40
    $region39: #{basic_block_forward.3} parent=5 // pred_region
      // Predicated region
      $region41: #{basic_block_forward.3} parent=39 // pred_check
        %p255 = pneg %p34
      $region42: #{basic_block_forward.3} parent=39 // pred_check_branch
        %257 = sbr.rel (%p255) target = $region44
      $region43: #{basic_block_forward.3} parent=39 // pred_region
        %p258 = scmp.lt.s32.totalorder %s14, 1
        %s259 = scalar_select %p258, %s14, 1
        %s260 = smul.addr %s259, 43
        %s261 = smul.addr %s260, 4
        %s262 = scalar_lea.vmem %s0, %s261
      $region44: #{basic_block_forward.3} parent=39 // pred_fallthru
        _
      // Predicated region
      $region45: #{basic_block_forward.3} parent=39 // pred_check
        %p263 = pneg %p60
      $region46: #{basic_block_forward.3} parent=39 // pred_check_branch
        %265 = sbr.rel (%p263) target = $region48
      $region47: #{basic_block_forward.3} parent=39 // pred_region
        %p266 = scmp.lt.s32.totalorder %s14, 1
        %s267 = scalar_select %p266, %s14, 1
        %s268 = smul.addr %s267, 43
        %s269 = smul.addr %s268, 4
        %s270 = scalar_lea.vmem %s1, %s269
      $region48: #{basic_block_forward.3} parent=39 // pred_fallthru
        _
    $region40: #{basic_block_forward.3} parent=5 // pred_fallthru
      _
    %p271 = scmp.le.s32.totalorder 1, %s14
    %p272 = scmp.lt.s32.totalorder %s14, 3
    %p273 = pnand %p271, %p272
    %p274 = pneg %p273
    // Predicated region
    $region49: #{basic_block_forward.3} parent=5 // pred_check
      _
    $region50: #{basic_block_forward.3} parent=5 // pred_check_branch
      %276 = sbr.rel (%p273) target = $region52
    $region51: #{basic_block_forward.3} parent=5 // pred_region
      %s277 = ssub.s32 %s14, 1
      %p278 = scmp.lt.s32.totalorder %s19, 1
      %s279 = scalar_select %p278, %s19, 1
      %s280 = smul.addr %s279, 43
      %s281 = smul.addr %s280, 4
      %s282 = scalar_lea.vmem %s0, %s281
      %p283 = pneg %p40
      %p284 = pneg %p37
      %p285 = scmp.lt.s32.totalorder %s19, 1
      %s286 = scalar_select %p285, %s19, 1
      %s287 = smul.addr %s286, 43
      %s288 = smul.addr %s287, 4
      %s289 = scalar_lea.vmem %s1, %s288
      %p290 = pneg %p66
      %p291 = pneg %p63
      %p292 = pneg %p87
      %p293 = pneg %p84
      %p294 = pneg %p108
      %p295 = pneg %p105
      %p296 = pneg %p129
      %p297 = pneg %p126
      %p298 = pneg %p150
      %p299 = pneg %p147
      %p300 = pneg %p171
      %p301 = pneg %p168
      %p302 = pneg %p192
      %p303 = pneg %p189
      %p304 = pneg %p218
      %p305 = pneg %p215
      %p306 = scmp.lt.s32.totalorder %s19, 1
      %s307 = scalar_select %p306, %s19, 1
      %s308 = smul.addr %s307, 36
      %s309 = smul.addr %s308, 8
      %s310 = scalar_lea.vmem %s8, %s309
      %p311 = scmp.lt.s32.totalorder %s19, 1
      %s312 = scalar_select %p311, %s19, 1
      %s313 = smul.addr %s312, 43
      %s314 = smul.addr %s313, 4
      %s315 = scalar_lea.vmem %s0, %s314
      %p316 = scmp.lt.s32.totalorder %s19, 1
      %s317 = scalar_select %p316, %s19, 1
      %s318 = smul.addr %s317, 43
      %s319 = smul.addr %s318, 4
      %s320 = scalar_lea.vmem %s1, %s319
      %p321 = scmp.lt.s32.totalorder %s19, 1
      %s322 = scalar_select %p321, %s19, 1
      %s323 = smul.addr %s322, 36
      %s324 = smul.addr %s323, 8
      %s325 = scalar_lea.vmem %s8, %s324
      %v326 = vld [vmem:[%s315] sm:$0xf]
      %v327 = vld [vmem:[%s315 + $0x4] sm:$0xf]
      %v328 = vld [vmem:[%s315 + $0x8] sm:$0xf]
      %v329 = vld [vmem:[%s315 + $0xc] sm:$0xf]
      %v330 = vld [vmem:[%s315 + $0x10] sm:$0xf]
      %v331 = vld [vmem:[%s315 + $0x14] sm:$0xf]
      %v332 = vld [vmem:[%s315 + $0x18] sm:$0xf]
      %v333 = vld [vmem:[%s315 + $0x1c] sm:$0xf]
      %v334 = vld [vmem:[%s315 + $0x20] sm:$0xf]
      %v335 = vld [vmem:[%s315 + $0x24] sm:$0xf]
      %v336 = vld [vmem:[%s315 + $0x28] sm:$0xf]
      %v337 = vld [vmem:[%s315 + $0x2c] sm:$0xf]
      %v338 = vld [vmem:[%s315 + $0x30] sm:$0xf]
      %v339 = vld [vmem:[%s315 + $0x34] sm:$0xf]
      %v340 = vld [vmem:[%s315 + $0x38] sm:$0xf]
      %v341 = vld [vmem:[%s315 + $0x3c] sm:$0xf]
      %v342 = vld [vmem:[%s315 + $0x40] sm:$0xf]
      %v343 = vld [vmem:[%s315 + $0x44] sm:$0xf]
      %v344 = vld [vmem:[%s315 + $0x48] sm:$0xf]
      %v345 = vld [vmem:[%s315 + $0x4c] sm:$0xf]
      %v346 = vld [vmem:[%s315 + $0x50] sm:$0xf]
      %v347 = vld [vmem:[%s315 + $0x54] sm:$0xf]
      %v348 = vld [vmem:[%s315 + $0x58] sm:$0xf]
      %v349 = vld [vmem:[%s315 + $0x5c] sm:$0xf]
      %v350 = vld [vmem:[%s315 + $0x60] sm:$0xf]
      %v351 = vld [vmem:[%s315 + $0x64] sm:$0xf]
      %v352 = vld [vmem:[%s315 + $0x68] sm:$0xf]
      %v353 = vld [vmem:[%s315 + $0x6c] sm:$0xf]
      %v354 = vld [vmem:[%s315 + $0x70] sm:$0xf]
      %v355 = vld [vmem:[%s315 + $0x74] sm:$0xf]
      %v356 = vld [vmem:[%s315 + $0x78] sm:$0xf]
      %v357 = vld [vmem:[%s315 + $0x7c] sm:$0xf]
      %v358 = vld [vmem:[%s315 + $0x80] sm:$0xf]
      %v359 = vld [vmem:[%s315 + $0x84] sm:$0xf]
      %v360 = vld [vmem:[%s315 + $0x88] sm:$0xf]
      %v361 = vld [vmem:[%s315 + $0x8c] sm:$0xf]
      %v362 = vld [vmem:[%s2] sm:$0xf]
      %v363 = vld [vmem:[%s2 + $0x4] sm:$0xf]
      %v364 = vld [vmem:[%s2 + $0x8] sm:$0xf]
      %v365 = vld [vmem:[%s2 + $0xc] sm:$0xf]
      %v366 = vld [vmem:[%s2 + $0x10] sm:$0xf]
      %v367 = vld [vmem:[%s2 + $0x14] sm:$0xf]
      %v368 = vld [vmem:[%s2 + $0x18] sm:$0xf]
      %v369 = vld [vmem:[%s2 + $0x1c] sm:$0xf]
      %v370 = vld [vmem:[%s2 + $0x20] sm:$0xf]
      %v371 = vld [vmem:[%s2 + $0x24] sm:$0xf]
      %v372 = vld [vmem:[%s2 + $0x28] sm:$0xf]
      %v373 = vld [vmem:[%s2 + $0x2c] sm:$0xf]
      %v374 = vld [vmem:[%s2 + $0x30] sm:$0xf]
      %v375 = vld [vmem:[%s2 + $0x34] sm:$0xf]
      %v376 = vld [vmem:[%s2 + $0x38] sm:$0xf]
      %v377 = vld [vmem:[%s2 + $0x3c] sm:$0xf]
      %v378 = vld [vmem:[%s315 + $0x90] sm:$0x1]
      %s379 = scalar_lea.vmem %s2, 64
      %v380 = vld [vmem:[%s379] sm:$0xf]
      %v381 = vld [vmem:[%s379 + $0x4] sm:$0xf]
      %v382 = vld [vmem:[%s379 + $0x8] sm:$0xf]
      %v383 = vld [vmem:[%s379 + $0xc] sm:$0xf]
      %v384 = vld [vmem:[%s379 + $0x10] sm:$0xf]
      %v385 = vld [vmem:[%s379 + $0x14] sm:$0xf]
      %v386 = vld [vmem:[%s379 + $0x18] sm:$0xf]
      %v387 = vld [vmem:[%s379 + $0x1c] sm:$0xf]
      %v388 = vld [vmem:[%s379 + $0x20] sm:$0xf]
      %v389 = vld [vmem:[%s379 + $0x24] sm:$0xf]
      %v390 = vld [vmem:[%s379 + $0x28] sm:$0xf]
      %v391 = vld [vmem:[%s379 + $0x2c] sm:$0xf]
      %v392 = vld [vmem:[%s379 + $0x30] sm:$0xf]
      %v393 = vld [vmem:[%s379 + $0x34] sm:$0xf]
      %v394 = vld [vmem:[%s379 + $0x38] sm:$0xf]
      %v395 = vld [vmem:[%s379 + $0x3c] sm:$0xf]
      %v433 = vunpack.c.l.b16 %v326
      %v434 = vunpack.c.l.b16 %v327
      %v435 = vunpack.c.l.b16 %v328
      %v436 = vunpack.c.l.b16 %v329
      %v437 = vunpack.c.l.b16 %v330
      %v438 = vunpack.c.l.b16 %v331
      %v439 = vunpack.c.l.b16 %v332
      %v440 = vunpack.c.l.b16 %v333
      %v441 = vunpack.c.l.b16 %v334
      %v442 = vunpack.c.l.b16 %v335
      %v443 = vunpack.c.l.b16 %v336
      %v444 = vunpack.c.l.b16 %v337
      %v445 = vunpack.c.l.b16 %v338
      %v446 = vunpack.c.l.b16 %v339
      %v447 = vunpack.c.l.b16 %v340
      %v448 = vunpack.c.l.b16 %v341
      %v449 = vunpack.c.l.b16 %v342
      %v450 = vunpack.c.l.b16 %v343
      %v451 = vunpack.c.l.b16 %v344
      %v452 = vunpack.c.l.b16 %v345
      %v453 = vunpack.c.l.b16 %v346
      %v454 = vunpack.c.l.b16 %v347
      %v455 = vunpack.c.l.b16 %v348
      %v456 = vunpack.c.l.b16 %v349
      %v457 = vunpack.c.l.b16 %v350
      %v458 = vunpack.c.l.b16 %v351
      %v459 = vunpack.c.l.b16 %v352
      %v460 = vunpack.c.l.b16 %v353
      %v461 = vunpack.c.l.b16 %v354
      %v462 = vunpack.c.l.b16 %v355
      %v463 = vunpack.c.l.b16 %v356
      %v464 = vunpack.c.l.b16 %v357
      %v465 = vunpack.c.l.b16 %v358
      %v466 = vunpack.c.l.b16 %v359
      %v467 = vunpack.c.l.b16 %v360
      %v468 = vunpack.c.l.b16 %v361
      %v469 = vunpack.c.l.b16 %v378
      %v470 = vpack.c.b16 %v434, %v433
      %v471 = vpack.c.b16 %v436, %v435
      %v472 = vpack.c.b16 %v438, %v437
      %v473 = vpack.c.b16 %v440, %v439
      %v474 = vpack.c.b16 %v442, %v441
      %v475 = vpack.c.b16 %v444, %v443
      %v476 = vpack.c.b16 %v446, %v445
      %v477 = vpack.c.b16 %v448, %v447
      %v478 = vpack.c.b16 %v450, %v449
      %v479 = vpack.c.b16 %v452, %v451
      %v480 = vpack.c.b16 %v454, %v453
      %v481 = vpack.c.b16 %v456, %v455
      %v482 = vpack.c.b16 %v458, %v457
      %v483 = vpack.c.b16 %v460, %v459
      %v484 = vpack.c.b16 %v462, %v461
      %v485 = vpack.c.b16 %v464, %v463
      %v486 = vpack.c.b16 %v466, %v465
      %v487 = vpack.c.b16 %v468, %v467
      %v488 = vpack.c.b16 %v469, %v469
      %vm489 = vsmask.f32 7424
      %v491 = vshrl.u32 %v470, 16
      %v493 = vshll.u32 %v470, 16
      %v495 = vrot.slane %v493, 1
      %v496 = vor.u32 %v491, %v495
      %v498 = vshll.u32 %v471, 16
      %v500 = vrot.slane %v498, 1
      %v501 = vsel %vm489, %v496, %v500
      %v502 = vshrl.u32 %v471, 16
      %v504 = vor.u32 %v502, %v500
      %v506 = vshll.u32 %v472, 16
      %v508 = vrot.slane %v506, 1
      %v509 = vsel %vm489, %v504, %v508
      %v510 = vshrl.u32 %v472, 16
      %v512 = vor.u32 %v510, %v508
      %v514 = vshll.u32 %v473, 16
      %v516 = vrot.slane %v514, 1
      %v517 = vsel %vm489, %v512, %v516
      %v518 = vshrl.u32 %v473, 16
      %v520 = vor.u32 %v518, %v516
      %v522 = vshll.u32 %v474, 16
      %v524 = vrot.slane %v522, 1
      %v525 = vsel %vm489, %v520, %v524
      %v526 = vshrl.u32 %v474, 16
      %v528 = vor.u32 %v526, %v524
      %v530 = vshll.u32 %v475, 16
      %v532 = vrot.slane %v530, 1
      %v533 = vsel %vm489, %v528, %v532
      %v534 = vshrl.u32 %v475, 16
      %v536 = vor.u32 %v534, %v532
      %v538 = vshll.u32 %v476, 16
      %v540 = vrot.slane %v538, 1
      %v541 = vsel %vm489, %v536, %v540
      %v542 = vshrl.u32 %v476, 16
      %v544 = vor.u32 %v542, %v540
      %v546 = vshll.u32 %v477, 16
      %v548 = vrot.slane %v546, 1
      %v549 = vsel %vm489, %v544, %v548
      %v550 = vshrl.u32 %v477, 16
      %v552 = vor.u32 %v550, %v548
      %v554 = vshll.u32 %v478, 16
      %v556 = vrot.slane %v554, 1
      %v557 = vsel %vm489, %v552, %v556
      %v558 = vshrl.u32 %v478, 16
      %v560 = vor.u32 %v558, %v556
      %v562 = vshll.u32 %v479, 16
      %v564 = vrot.slane %v562, 1
      %v565 = vsel %vm489, %v560, %v564
      %v566 = vshrl.u32 %v479, 16
      %v568 = vor.u32 %v566, %v564
      %v570 = vshll.u32 %v480, 16
      %v572 = vrot.slane %v570, 1
      %v573 = vsel %vm489, %v568, %v572
      %v574 = vshrl.u32 %v480, 16
      %v576 = vor.u32 %v574, %v572
      %v578 = vshll.u32 %v481, 16
      %v580 = vrot.slane %v578, 1
      %v581 = vsel %vm489, %v576, %v580
      %v582 = vshrl.u32 %v481, 16
      %v584 = vor.u32 %v582, %v580
      %v586 = vshll.u32 %v482, 16
      %v588 = vrot.slane %v586, 1
      %v589 = vsel %vm489, %v584, %v588
      %v590 = vshrl.u32 %v482, 16
      %v592 = vor.u32 %v590, %v588
      %v594 = vshll.u32 %v483, 16
      %v596 = vrot.slane %v594, 1
      %v597 = vsel %vm489, %v592, %v596
      %v598 = vshrl.u32 %v483, 16
      %v600 = vor.u32 %v598, %v596
      %v602 = vshll.u32 %v484, 16
      %v604 = vrot.slane %v602, 1
      %v605 = vsel %vm489, %v600, %v604
      %v606 = vshrl.u32 %v484, 16
      %v608 = vor.u32 %v606, %v604
      %v610 = vshll.u32 %v485, 16
      %v612 = vrot.slane %v610, 1
      %v613 = vsel %vm489, %v608, %v612
      %v614 = vshrl.u32 %v485, 16
      %v616 = vor.u32 %v614, %v612
      %v618 = vshll.u32 %v486, 16
      %v620 = vrot.slane %v618, 1
      %v621 = vsel %vm489, %v616, %v620
      %v622 = vshrl.u32 %v486, 16
      %v624 = vor.u32 %v622, %v620
      %v626 = vshll.u32 %v487, 16
      %v628 = vrot.slane %v626, 1
      %v629 = vsel %vm489, %v624, %v628
      %v630 = vshrl.u32 %v487, 16
      %v632 = vor.u32 %v630, %v628
      %v634 = vshll.u32 %v488, 16
      %v636 = vrot.slane %v634, 1
      %v637 = vsel %vm489, %v632, %v636
      %v672 = vunpack.c.l.b16 %v380
      %v673 = vunpack.c.l.b16 %v381
      %v674 = vunpack.c.l.b16 %v382
      %v675 = vunpack.c.l.b16 %v383
      %v676 = vunpack.c.l.b16 %v384
      %v677 = vunpack.c.l.b16 %v385
      %v678 = vunpack.c.l.b16 %v386
      %v679 = vunpack.c.l.b16 %v387
      %v680 = vunpack.c.l.b16 %v388
      %v681 = vunpack.c.l.b16 %v389
      %v682 = vunpack.c.l.b16 %v390
      %v683 = vunpack.c.l.b16 %v391
      %v684 = vunpack.c.l.b16 %v392
      %v685 = vunpack.c.l.b16 %v393
      %v686 = vunpack.c.l.b16 %v394
      %v687 = vunpack.c.l.b16 %v395
      %v688 = vpack.c.b16 %v673, %v672
      %v689 = vpack.c.b16 %v675, %v674
      %v690 = vpack.c.b16 %v677, %v676
      %v691 = vpack.c.b16 %v679, %v678
      %v692 = vpack.c.b16 %v681, %v680
      %v693 = vpack.c.b16 %v683, %v682
      %v694 = vpack.c.b16 %v685, %v684
      %v695 = vpack.c.b16 %v687, %v686
      %704 = vmatpush.bf16.msra.mxu0 %v695
      %705 = vmatpush.bf16.msra.mxu0 %v694
      %706 = vmatpush.bf16.msra.mxu0 %v693
      %707 = vmatpush.bf16.msra.mxu0 %v692
      %708 = vmatpush.bf16.msra.mxu0 %v691
      %709 = vmatpush.bf16.msra.mxu0 %v690
      %710 = vmatpush.bf16.msra.mxu0 %v689
      %711 = vmatpush.bf16.msra.mxu0 %v688
      %712 = vmatmul.bf16.gmra.mxu0 %v501
      %v713 = vpop.f32.mrf.mxu0
      %v714 = vadd.f32 0.0, %v713
      %v715 = vpop.f32.mrf.mxu0
      %v716 = vadd.f32 0.0, %v715
      %717 = vmatmul.bf16.gmra.mxu0 %v509
      %v718 = vpop.f32.mrf.mxu0
      %v719 = vadd.f32 0.0, %v718
      %v720 = vpop.f32.mrf.mxu0
      %v721 = vadd.f32 0.0, %v720
      %722 = vmatmul.bf16.gmra.mxu0 %v517
      %v723 = vpop.f32.mrf.mxu0
      %v724 = vadd.f32 0.0, %v723
      %v725 = vpop.f32.mrf.mxu0
      %v726 = vadd.f32 0.0, %v725
      %727 = vmatmul.bf16.gmra.mxu0 %v525
      %v728 = vpop.f32.mrf.mxu0
      %v729 = vadd.f32 0.0, %v728
      %v730 = vpop.f32.mrf.mxu0
      %v731 = vadd.f32 0.0, %v730
      %732 = vmatmul.bf16.gmra.mxu0 %v533
      %v733 = vpop.f32.mrf.mxu0
      %v734 = vadd.f32 0.0, %v733
      %v735 = vpop.f32.mrf.mxu0
      %v736 = vadd.f32 0.0, %v735
      %737 = vmatmul.bf16.gmra.mxu0 %v541
      %v738 = vpop.f32.mrf.mxu0
      %v739 = vadd.f32 0.0, %v738
      %v740 = vpop.f32.mrf.mxu0
      %v741 = vadd.f32 0.0, %v740
      %742 = vmatmul.bf16.gmra.mxu0 %v549
      %v743 = vpop.f32.mrf.mxu0
      %v744 = vadd.f32 0.0, %v743
      %v745 = vpop.f32.mrf.mxu0
      %v746 = vadd.f32 0.0, %v745
      %747 = vmatmul.bf16.gmra.mxu0 %v557
      %v748 = vpop.f32.mrf.mxu0
      %v749 = vadd.f32 0.0, %v748
      %v750 = vpop.f32.mrf.mxu0
      %v751 = vadd.f32 0.0, %v750
      %752 = vmatmul.bf16.gmra.mxu0 %v565
      %v753 = vpop.f32.mrf.mxu0
      %v754 = vadd.f32 0.0, %v753
      %v755 = vpop.f32.mrf.mxu0
      %v756 = vadd.f32 0.0, %v755
      %757 = vmatmul.bf16.gmra.mxu0 %v573
      %v758 = vpop.f32.mrf.mxu0
      %v759 = vadd.f32 0.0, %v758
      %v760 = vpop.f32.mrf.mxu0
      %v761 = vadd.f32 0.0, %v760
      %762 = vmatmul.bf16.gmra.mxu0 %v581
      %v763 = vpop.f32.mrf.mxu0
      %v764 = vadd.f32 0.0, %v763
      %v765 = vpop.f32.mrf.mxu0
      %v766 = vadd.f32 0.0, %v765
      %767 = vmatmul.bf16.gmra.mxu0 %v589
      %v768 = vpop.f32.mrf.mxu0
      %v769 = vadd.f32 0.0, %v768
      %v770 = vpop.f32.mrf.mxu0
      %v771 = vadd.f32 0.0, %v770
      %772 = vmatmul.bf16.gmra.mxu0 %v597
      %v773 = vpop.f32.mrf.mxu0
      %v774 = vadd.f32 0.0, %v773
      %v775 = vpop.f32.mrf.mxu0
      %v776 = vadd.f32 0.0, %v775
      %777 = vmatmul.bf16.gmra.mxu0 %v605
      %v778 = vpop.f32.mrf.mxu0
      %v779 = vadd.f32 0.0, %v778
      %v780 = vpop.f32.mrf.mxu0
      %v781 = vadd.f32 0.0, %v780
      %782 = vmatmul.bf16.gmra.mxu0 %v613
      %v783 = vpop.f32.mrf.mxu0
      %v784 = vadd.f32 0.0, %v783
      %v785 = vpop.f32.mrf.mxu0
      %v786 = vadd.f32 0.0, %v785
      %787 = vmatmul.bf16.gmra.mxu0 %v621
      %v788 = vpop.f32.mrf.mxu0
      %v789 = vadd.f32 0.0, %v788
      %v790 = vpop.f32.mrf.mxu0
      %v791 = vadd.f32 0.0, %v790
      %792 = vmatmul.bf16.gmra.mxu0 %v629
      %v793 = vpop.f32.mrf.mxu0
      %v794 = vadd.f32 0.0, %v793
      %v795 = vpop.f32.mrf.mxu0
      %v796 = vadd.f32 0.0, %v795
      %797 = vmatmul.bf16.gmra.mxu0 %v637
      %v798 = vpop.f32.mrf.mxu0
      %v799 = vadd.f32 0.0, %v798
      %v800 = vpop.f32.mrf.mxu0
      %v801 = vadd.f32 0.0, %v800
      %802 = vdwg.mxu0
      %v837 = vunpack.c.l.b16 %v362
      %v838 = vunpack.c.l.b16 %v363
      %v839 = vunpack.c.l.b16 %v364
      %v840 = vunpack.c.l.b16 %v365
      %v841 = vunpack.c.l.b16 %v366
      %v842 = vunpack.c.l.b16 %v367
      %v843 = vunpack.c.l.b16 %v368
      %v844 = vunpack.c.l.b16 %v369
      %v845 = vunpack.c.l.b16 %v370
      %v846 = vunpack.c.l.b16 %v371
      %v847 = vunpack.c.l.b16 %v372
      %v848 = vunpack.c.l.b16 %v373
      %v849 = vunpack.c.l.b16 %v374
      %v850 = vunpack.c.l.b16 %v375
      %v851 = vunpack.c.l.b16 %v376
      %v852 = vunpack.c.l.b16 %v377
      %v853 = vpack.c.b16 %v838, %v837
      %v854 = vpack.c.b16 %v840, %v839
      %v855 = vpack.c.b16 %v842, %v841
      %v856 = vpack.c.b16 %v844, %v843
      %v857 = vpack.c.b16 %v846, %v845
      %v858 = vpack.c.b16 %v848, %v847
      %v859 = vpack.c.b16 %v850, %v849
      %v860 = vpack.c.b16 %v852, %v851
      %869 = vmatpush.bf16.msra.mxu0 %v860
      %870 = vmatpush.bf16.msra.mxu0 %v859
      %871 = vmatpush.bf16.msra.mxu0 %v858
      %872 = vmatpush.bf16.msra.mxu0 %v857
      %873 = vmatpush.bf16.msra.mxu0 %v856
      %874 = vmatpush.bf16.msra.mxu0 %v855
      %875 = vmatpush.bf16.msra.mxu0 %v854
      %876 = vmatpush.bf16.msra.mxu0 %v853
      %877 = vmatmul.bf16.gmra.mxu0 %v470
      %v878 = vpop.f32.mrf.mxu0
      %v879 = vadd.f32 %v714, %v878
      %v880 = vpop.f32.mrf.mxu0
      %v881 = vadd.f32 %v716, %v880
      %882 = vmatmul.bf16.gmra.mxu0 %v471
      %v883 = vpop.f32.mrf.mxu0
      %v884 = vadd.f32 %v719, %v883
      %v885 = vpop.f32.mrf.mxu0
      %v886 = vadd.f32 %v721, %v885
      %887 = vmatmul.bf16.gmra.mxu0 %v472
      %v888 = vpop.f32.mrf.mxu0
      %v889 = vadd.f32 %v724, %v888
      %v890 = vpop.f32.mrf.mxu0
      %v891 = vadd.f32 %v726, %v890
      %892 = vmatmul.bf16.gmra.mxu0 %v473
      %v893 = vpop.f32.mrf.mxu0
      %v894 = vadd.f32 %v729, %v893
      %v895 = vpop.f32.mrf.mxu0
      %v896 = vadd.f32 %v731, %v895
      %897 = vmatmul.bf16.gmra.mxu0 %v474
      %v898 = vpop.f32.mrf.mxu0
      %v899 = vadd.f32 %v734, %v898
      %v900 = vpop.f32.mrf.mxu0
      %v901 = vadd.f32 %v736, %v900
      %902 = vmatmul.bf16.gmra.mxu0 %v475
      %v903 = vpop.f32.mrf.mxu0
      %v904 = vadd.f32 %v739, %v903
      %v905 = vpop.f32.mrf.mxu0
      %v906 = vadd.f32 %v741, %v905
      %907 = vmatmul.bf16.gmra.mxu0 %v476
      %v908 = vpop.f32.mrf.mxu0
      %v909 = vadd.f32 %v744, %v908
      %v910 = vpop.f32.mrf.mxu0
      %v911 = vadd.f32 %v746, %v910
      %912 = vmatmul.bf16.gmra.mxu0 %v477
      %v913 = vpop.f32.mrf.mxu0
      %v914 = vadd.f32 %v749, %v913
      %v915 = vpop.f32.mrf.mxu0
      %v916 = vadd.f32 %v751, %v915
      %917 = vmatmul.bf16.gmra.mxu0 %v478
      %v918 = vpop.f32.mrf.mxu0
      %v919 = vadd.f32 %v754, %v918
      %v920 = vpop.f32.mrf.mxu0
      %v921 = vadd.f32 %v756, %v920
      %922 = vmatmul.bf16.gmra.mxu0 %v479
      %v923 = vpop.f32.mrf.mxu0
      %v924 = vadd.f32 %v759, %v923
      %v925 = vpop.f32.mrf.mxu0
      %v926 = vadd.f32 %v761, %v925
      %927 = vmatmul.bf16.gmra.mxu0 %v480
      %v928 = vpop.f32.mrf.mxu0
      %v929 = vadd.f32 %v764, %v928
      %v930 = vpop.f32.mrf.mxu0
      %v931 = vadd.f32 %v766, %v930
      %932 = vmatmul.bf16.gmra.mxu0 %v481
      %v933 = vpop.f32.mrf.mxu0
      %v934 = vadd.f32 %v769, %v933
      %v935 = vpop.f32.mrf.mxu0
      %v936 = vadd.f32 %v771, %v935
      %937 = vmatmul.bf16.gmra.mxu0 %v482
      %v938 = vpop.f32.mrf.mxu0
      %v939 = vadd.f32 %v774, %v938
      %v940 = vpop.f32.mrf.mxu0
      %v941 = vadd.f32 %v776, %v940
      %942 = vmatmul.bf16.gmra.mxu0 %v483
      %v943 = vpop.f32.mrf.mxu0
      %v944 = vadd.f32 %v779, %v943
      %v945 = vpop.f32.mrf.mxu0
      %v946 = vadd.f32 %v781, %v945
      %947 = vmatmul.bf16.gmra.mxu0 %v484
      %v948 = vpop.f32.mrf.mxu0
      %v949 = vadd.f32 %v784, %v948
      %v950 = vpop.f32.mrf.mxu0
      %v951 = vadd.f32 %v786, %v950
      %952 = vmatmul.bf16.gmra.mxu0 %v485
      %v953 = vpop.f32.mrf.mxu0
      %v954 = vadd.f32 %v789, %v953
      %v955 = vpop.f32.mrf.mxu0
      %v956 = vadd.f32 %v791, %v955
      %957 = vmatmul.bf16.gmra.mxu0 %v486
      %v958 = vpop.f32.mrf.mxu0
      %v959 = vadd.f32 %v794, %v958
      %v960 = vpop.f32.mrf.mxu0
      %v961 = vadd.f32 %v796, %v960
      %962 = vmatmul.bf16.gmra.mxu0 %v487
      %v963 = vpop.f32.mrf.mxu0
      %v964 = vadd.f32 %v799, %v963
      %v965 = vpop.f32.mrf.mxu0
      %v966 = vadd.f32 %v801, %v965
      %967 = vdwg.mxu0
      %v968 = vld [vmem:[%s315] sm:$0xe]
      %s969 = scalar_lea.vmem %s2, 128
      %v970 = vld [vmem:[%s969] sm:$0xf]
      %v971 = vld [vmem:[%s969 + $0x4] sm:$0xf]
      %v972 = vld [vmem:[%s969 + $0x8] sm:$0xf]
      %v973 = vld [vmem:[%s969 + $0xc] sm:$0xf]
      %v974 = vld [vmem:[%s969 + $0x10] sm:$0xf]
      %v975 = vld [vmem:[%s969 + $0x14] sm:$0xf]
      %v976 = vld [vmem:[%s969 + $0x18] sm:$0xf]
      %v977 = vld [vmem:[%s969 + $0x1c] sm:$0xf]
      %v978 = vld [vmem:[%s969 + $0x20] sm:$0xf]
      %v979 = vld [vmem:[%s969 + $0x24] sm:$0xf]
      %v980 = vld [vmem:[%s969 + $0x28] sm:$0xf]
      %v981 = vld [vmem:[%s969 + $0x2c] sm:$0xf]
      %v982 = vld [vmem:[%s969 + $0x30] sm:$0xf]
      %v983 = vld [vmem:[%s969 + $0x34] sm:$0xf]
      %v984 = vld [vmem:[%s969 + $0x38] sm:$0xf]
      %v985 = vld [vmem:[%s969 + $0x3c] sm:$0xf]
      %v987 = vunpack.c.l.b16 %v968
      %v988 = vpack.c.b16 %v434, %v987
      %vm989 = vcmask 1046528
      %v990 = vrot.slane %v988, 1
      %v991 = vrot.slane %v471, 1
      %v992 = vsel %vm989, %v990, %v991
      %v993 = vrot.slane %v472, 1
      %v994 = vsel %vm989, %v991, %v993
      %v995 = vrot.slane %v473, 1
      %v996 = vsel %vm989, %v993, %v995
      %v997 = vrot.slane %v474, 1
      %v998 = vsel %vm989, %v995, %v997
      %v999 = vrot.slane %v475, 1
      %v1000 = vsel %vm989, %v997, %v999
      %v1001 = vrot.slane %v476, 1
      %v1002 = vsel %vm989, %v999, %v1001
      %v1003 = vrot.slane %v477, 1
      %v1004 = vsel %vm989, %v1001, %v1003
      %v1005 = vrot.slane %v478, 1
      %v1006 = vsel %vm989, %v1003, %v1005
      %v1007 = vrot.slane %v479, 1
      %v1008 = vsel %vm989, %v1005, %v1007
      %v1009 = vrot.slane %v480, 1
      %v1010 = vsel %vm989, %v1007, %v1009
      %v1011 = vrot.slane %v481, 1
      %v1012 = vsel %vm989, %v1009, %v1011
      %v1013 = vrot.slane %v482, 1
      %v1014 = vsel %vm989, %v1011, %v1013
      %v1015 = vrot.slane %v483, 1
      %v1016 = vsel %vm989, %v1013, %v1015
      %v1017 = vrot.slane %v484, 1
      %v1018 = vsel %vm989, %v1015, %v1017
      %v1019 = vrot.slane %v485, 1
      %v1020 = vsel %vm989, %v1017, %v1019
      %v1021 = vrot.slane %v486, 1
      %v1022 = vsel %vm989, %v1019, %v1021
      %v1023 = vrot.slane %v487, 1
      %v1024 = vsel %vm989, %v1021, %v1023
      %v1025 = vrot.slane %v488, 1
      %v1026 = vsel %vm989, %v1023, %v1025
      %v1061 = vunpack.c.l.b16 %v970
      %v1062 = vunpack.c.l.b16 %v971
      %v1063 = vunpack.c.l.b16 %v972
      %v1064 = vunpack.c.l.b16 %v973
      %v1065 = vunpack.c.l.b16 %v974
      %v1066 = vunpack.c.l.b16 %v975
      %v1067 = vunpack.c.l.b16 %v976
      %v1068 = vunpack.c.l.b16 %v977
      %v1069 = vunpack.c.l.b16 %v978
      %v1070 = vunpack.c.l.b16 %v979
      %v1071 = vunpack.c.l.b16 %v980
      %v1072 = vunpack.c.l.b16 %v981
      %v1073 = vunpack.c.l.b16 %v982
      %v1074 = vunpack.c.l.b16 %v983
      %v1075 = vunpack.c.l.b16 %v984
      %v1076 = vunpack.c.l.b16 %v985
      %v1077 = vpack.c.b16 %v1062, %v1061
      %v1078 = vpack.c.b16 %v1064, %v1063
      %v1079 = vpack.c.b16 %v1066, %v1065
      %v1080 = vpack.c.b16 %v1068, %v1067
      %v1081 = vpack.c.b16 %v1070, %v1069
      %v1082 = vpack.c.b16 %v1072, %v1071
      %v1083 = vpack.c.b16 %v1074, %v1073
      %v1084 = vpack.c.b16 %v1076, %v1075
      %1093 = vmatpush.bf16.msra.mxu0 %v1084
      %1094 = vmatpush.bf16.msra.mxu0 %v1083
      %1095 = vmatpush.bf16.msra.mxu0 %v1082
      %1096 = vmatpush.bf16.msra.mxu0 %v1081
      %1097 = vmatpush.bf16.msra.mxu0 %v1080
      %1098 = vmatpush.bf16.msra.mxu0 %v1079
      %1099 = vmatpush.bf16.msra.mxu0 %v1078
      %1100 = vmatpush.bf16.msra.mxu0 %v1077
      %1101 = vmatmul.bf16.gmra.mxu0 %v992
      %v1102 = vpop.f32.mrf.mxu0
      %v1103 = vadd.f32 0.0, %v1102
      %v1104 = vpop.f32.mrf.mxu0
      %v1105 = vadd.f32 0.0, %v1104
      %1106 = vmatmul.bf16.gmra.mxu0 %v994
      %v1107 = vpop.f32.mrf.mxu0
      %v1108 = vadd.f32 0.0, %v1107
      %v1109 = vpop.f32.mrf.mxu0
      %v1110 = vadd.f32 0.0, %v1109
      %1111 = vmatmul.bf16.gmra.mxu0 %v996
      %v1112 = vpop.f32.mrf.mxu0
      %v1113 = vadd.f32 0.0, %v1112
      %v1114 = vpop.f32.mrf.mxu0
      %v1115 = vadd.f32 0.0, %v1114
      %1116 = vmatmul.bf16.gmra.mxu0 %v998
      %v1117 = vpop.f32.mrf.mxu0
      %v1118 = vadd.f32 0.0, %v1117
      %v1119 = vpop.f32.mrf.mxu0
      %v1120 = vadd.f32 0.0, %v1119
      %1121 = vmatmul.bf16.gmra.mxu0 %v1000
      %v1122 = vpop.f32.mrf.mxu0
      %v1123 = vadd.f32 0.0, %v1122
      %v1124 = vpop.f32.mrf.mxu0
      %v1125 = vadd.f32 0.0, %v1124
      %1126 = vmatmul.bf16.gmra.mxu0 %v1002
      %v1127 = vpop.f32.mrf.mxu0
      %v1128 = vadd.f32 0.0, %v1127
      %v1129 = vpop.f32.mrf.mxu0
      %v1130 = vadd.f32 0.0, %v1129
      %1131 = vmatmul.bf16.gmra.mxu0 %v1004
      %v1132 = vpop.f32.mrf.mxu0
      %v1133 = vadd.f32 0.0, %v1132
      %v1134 = vpop.f32.mrf.mxu0
      %v1135 = vadd.f32 0.0, %v1134
      %1136 = vmatmul.bf16.gmra.mxu0 %v1006
      %v1137 = vpop.f32.mrf.mxu0
      %v1138 = vadd.f32 0.0, %v1137
      %v1139 = vpop.f32.mrf.mxu0
      %v1140 = vadd.f32 0.0, %v1139
      %1141 = vmatmul.bf16.gmra.mxu0 %v1008
      %v1142 = vpop.f32.mrf.mxu0
      %v1143 = vadd.f32 0.0, %v1142
      %v1144 = vpop.f32.mrf.mxu0
      %v1145 = vadd.f32 0.0, %v1144
      %1146 = vmatmul.bf16.gmra.mxu0 %v1010
      %v1147 = vpop.f32.mrf.mxu0
      %v1148 = vadd.f32 0.0, %v1147
      %v1149 = vpop.f32.mrf.mxu0
      %v1150 = vadd.f32 0.0, %v1149
      %1151 = vmatmul.bf16.gmra.mxu0 %v1012
      %v1152 = vpop.f32.mrf.mxu0
      %v1153 = vadd.f32 0.0, %v1152
      %v1154 = vpop.f32.mrf.mxu0
      %v1155 = vadd.f32 0.0, %v1154
      %1156 = vmatmul.bf16.gmra.mxu0 %v1014
      %v1157 = vpop.f32.mrf.mxu0
      %v1158 = vadd.f32 0.0, %v1157
      %v1159 = vpop.f32.mrf.mxu0
      %v1160 = vadd.f32 0.0, %v1159
      %1161 = vmatmul.bf16.gmra.mxu0 %v1016
      %v1162 = vpop.f32.mrf.mxu0
      %v1163 = vadd.f32 0.0, %v1162
      %v1164 = vpop.f32.mrf.mxu0
      %v1165 = vadd.f32 0.0, %v1164
      %1166 = vmatmul.bf16.gmra.mxu0 %v1018
      %v1167 = vpop.f32.mrf.mxu0
      %v1168 = vadd.f32 0.0, %v1167
      %v1169 = vpop.f32.mrf.mxu0
      %v1170 = vadd.f32 0.0, %v1169
      %1171 = vmatmul.bf16.gmra.mxu0 %v1020
      %v1172 = vpop.f32.mrf.mxu0
      %v1173 = vadd.f32 0.0, %v1172
      %v1174 = vpop.f32.mrf.mxu0
      %v1175 = vadd.f32 0.0, %v1174
      %1176 = vmatmul.bf16.gmra.mxu0 %v1022
      %v1177 = vpop.f32.mrf.mxu0
      %v1178 = vadd.f32 0.0, %v1177
      %v1179 = vpop.f32.mrf.mxu0
      %v1180 = vadd.f32 0.0, %v1179
      %1181 = vmatmul.bf16.gmra.mxu0 %v1024
      %v1182 = vpop.f32.mrf.mxu0
      %v1183 = vadd.f32 0.0, %v1182
      %v1184 = vpop.f32.mrf.mxu0
      %v1185 = vadd.f32 0.0, %v1184
      %1186 = vmatmul.bf16.gmra.mxu0 %v1026
      %v1187 = vpop.f32.mrf.mxu0
      %v1188 = vadd.f32 0.0, %v1187
      %v1189 = vpop.f32.mrf.mxu0
      %v1190 = vadd.f32 0.0, %v1189
      %1191 = vdwg.mxu0
      %v1192 = vadd.f32 %v879, %v1103
      %v1193 = vadd.f32 %v881, %v1105
      %v1194 = vadd.f32 %v884, %v1108
      %v1195 = vadd.f32 %v886, %v1110
      %v1196 = vadd.f32 %v889, %v1113
      %v1197 = vadd.f32 %v891, %v1115
      %v1198 = vadd.f32 %v894, %v1118
      %v1199 = vadd.f32 %v896, %v1120
      %v1200 = vadd.f32 %v899, %v1123
      %v1201 = vadd.f32 %v901, %v1125
      %v1202 = vadd.f32 %v904, %v1128
      %v1203 = vadd.f32 %v906, %v1130
      %v1204 = vadd.f32 %v909, %v1133
      %v1205 = vadd.f32 %v911, %v1135
      %v1206 = vadd.f32 %v914, %v1138
      %v1207 = vadd.f32 %v916, %v1140
      %v1208 = vadd.f32 %v919, %v1143
      %v1209 = vadd.f32 %v921, %v1145
      %v1210 = vadd.f32 %v924, %v1148
      %v1211 = vadd.f32 %v926, %v1150
      %v1212 = vadd.f32 %v929, %v1153
      %v1213 = vadd.f32 %v931, %v1155
      %v1214 = vadd.f32 %v934, %v1158
      %v1215 = vadd.f32 %v936, %v1160
      %v1216 = vadd.f32 %v939, %v1163
      %v1217 = vadd.f32 %v941, %v1165
      %v1218 = vadd.f32 %v944, %v1168
      %v1219 = vadd.f32 %v946, %v1170
      %v1220 = vadd.f32 %v949, %v1173
      %v1221 = vadd.f32 %v951, %v1175
      %v1222 = vadd.f32 %v954, %v1178
      %v1223 = vadd.f32 %v956, %v1180
      %v1224 = vadd.f32 %v959, %v1183
      %v1225 = vadd.f32 %v961, %v1185
      %v1226 = vadd.f32 %v964, %v1188
      %v1227 = vadd.f32 %v966, %v1190
      %v1228 = vld [vmem:[%s315 + $0x8] sm:$0xe]
      %v1229 = vld [vmem:[%s315 + $0xc] sm:$0xf]
      %v1230 = vld [vmem:[%s315 + $0x10] sm:$0xf]
      %v1231 = vld [vmem:[%s315 + $0x14] sm:$0xf]
      %v1232 = vld [vmem:[%s315 + $0x18] sm:$0xf]
      %v1233 = vld [vmem:[%s315 + $0x1c] sm:$0xf]
      %v1234 = vld [vmem:[%s315 + $0x20] sm:$0xf]
      %v1235 = vld [vmem:[%s315 + $0x24] sm:$0xf]
      %v1236 = vld [vmem:[%s315 + $0x28] sm:$0xf]
      %v1237 = vld [vmem:[%s315 + $0x2c] sm:$0xf]
      %v1238 = vld [vmem:[%s315 + $0x30] sm:$0xf]
      %v1239 = vld [vmem:[%s315 + $0x34] sm:$0xf]
      %v1240 = vld [vmem:[%s315 + $0x38] sm:$0xf]
      %v1241 = vld [vmem:[%s315 + $0x3c] sm:$0xf]
      %v1242 = vld [vmem:[%s315 + $0x40] sm:$0xf]
      %v1243 = vld [vmem:[%s315 + $0x44] sm:$0xf]
      %v1244 = vld [vmem:[%s315 + $0x48] sm:$0xf]
      %v1245 = vld [vmem:[%s315 + $0x4c] sm:$0xf]
      %v1246 = vld [vmem:[%s315 + $0x50] sm:$0xf]
      %v1247 = vld [vmem:[%s315 + $0x54] sm:$0xf]
      %v1248 = vld [vmem:[%s315 + $0x58] sm:$0xf]
      %v1249 = vld [vmem:[%s315 + $0x5c] sm:$0xf]
      %v1250 = vld [vmem:[%s315 + $0x60] sm:$0xf]
      %v1251 = vld [vmem:[%s315 + $0x64] sm:$0xf]
      %v1252 = vld [vmem:[%s315 + $0x68] sm:$0xf]
      %v1253 = vld [vmem:[%s315 + $0x6c] sm:$0xf]
      %v1254 = vld [vmem:[%s315 + $0x70] sm:$0xf]
      %v1255 = vld [vmem:[%s315 + $0x74] sm:$0xf]
      %v1256 = vld [vmem:[%s315 + $0x78] sm:$0xf]
      %v1257 = vld [vmem:[%s315 + $0x7c] sm:$0xf]
      %v1258 = vld [vmem:[%s315 + $0x80] sm:$0xf]
      %v1259 = vld [vmem:[%s315 + $0x84] sm:$0xf]
      %v1260 = vld [vmem:[%s315 + $0x88] sm:$0xf]
      %v1261 = vld [vmem:[%s315 + $0x8c] sm:$0xf]
      %v1262 = vld [vmem:[%s315 + $0x90] sm:$0xf]
      %v1263 = vld [vmem:[%s315 + $0x94] sm:$0xf]
      %v1264 = vld [vmem:[%s315 + $0x98] sm:$0x1]
      %s1265 = scalar_lea.vmem %s2, 192
      %v1266 = vld [vmem:[%s1265] sm:$0xf]
      %v1267 = vld [vmem:[%s1265 + $0x4] sm:$0xf]
      %v1268 = vld [vmem:[%s1265 + $0x8] sm:$0xf]
      %v1269 = vld [vmem:[%s1265 + $0xc] sm:$0xf]
      %v1270 = vld [vmem:[%s1265 + $0x10] sm:$0xf]
      %v1271 = vld [vmem:[%s1265 + $0x14] sm:$0xf]
      %v1272 = vld [vmem:[%s1265 + $0x18] sm:$0xf]
      %v1273 = vld [vmem:[%s1265 + $0x1c] sm:$0xf]
      %v1274 = vld [vmem:[%s1265 + $0x20] sm:$0xf]
      %v1275 = vld [vmem:[%s1265 + $0x24] sm:$0xf]
      %v1276 = vld [vmem:[%s1265 + $0x28] sm:$0xf]
      %v1277 = vld [vmem:[%s1265 + $0x2c] sm:$0xf]
      %v1278 = vld [vmem:[%s1265 + $0x30] sm:$0xf]
      %v1279 = vld [vmem:[%s1265 + $0x34] sm:$0xf]
      %v1280 = vld [vmem:[%s1265 + $0x38] sm:$0xf]
      %v1281 = vld [vmem:[%s1265 + $0x3c] sm:$0xf]
      %v1319 = vunpack.c.l.b16 %v1228
      %v1320 = vunpack.c.l.b16 %v1229
      %v1321 = vunpack.c.l.b16 %v1230
      %v1322 = vunpack.c.l.b16 %v1231
      %v1323 = vunpack.c.l.b16 %v1232
      %v1324 = vunpack.c.l.b16 %v1233
      %v1325 = vunpack.c.l.b16 %v1234
      %v1326 = vunpack.c.l.b16 %v1235
      %v1327 = vunpack.c.l.b16 %v1236
      %v1328 = vunpack.c.l.b16 %v1237
      %v1329 = vunpack.c.l.b16 %v1238
      %v1330 = vunpack.c.l.b16 %v1239
      %v1331 = vunpack.c.l.b16 %v1240
      %v1332 = vunpack.c.l.b16 %v1241
      %v1333 = vunpack.c.l.b16 %v1242
      %v1334 = vunpack.c.l.b16 %v1243
      %v1335 = vunpack.c.l.b16 %v1244
      %v1336 = vunpack.c.l.b16 %v1245
      %v1337 = vunpack.c.l.b16 %v1246
      %v1338 = vunpack.c.l.b16 %v1247
      %v1339 = vunpack.c.l.b16 %v1248
      %v1340 = vunpack.c.l.b16 %v1249
      %v1341 = vunpack.c.l.b16 %v1250
      %v1342 = vunpack.c.l.b16 %v1251
      %v1343 = vunpack.c.l.b16 %v1252
      %v1344 = vunpack.c.l.b16 %v1253
      %v1345 = vunpack.c.l.b16 %v1254
      %v1346 = vunpack.c.l.b16 %v1255
      %v1347 = vunpack.c.l.b16 %v1256
      %v1348 = vunpack.c.l.b16 %v1257
      %v1349 = vunpack.c.l.b16 %v1258
      %v1350 = vunpack.c.l.b16 %v1259
      %v1351 = vunpack.c.l.b16 %v1260
      %v1352 = vunpack.c.l.b16 %v1261
      %v1353 = vunpack.c.l.b16 %v1262
      %v1354 = vunpack.c.l.b16 %v1263
      %v1355 = vunpack.c.l.b16 %v1264
      %v1356 = vpack.c.b16 %v1320, %v1319
      %v1357 = vpack.c.b16 %v1322, %v1321
      %v1358 = vpack.c.b16 %v1324, %v1323
      %v1359 = vpack.c.b16 %v1326, %v1325
      %v1360 = vpack.c.b16 %v1328, %v1327
      %v1361 = vpack.c.b16 %v1330, %v1329
      %v1362 = vpack.c.b16 %v1332, %v1331
      %v1363 = vpack.c.b16 %v1334, %v1333
      %v1364 = vpack.c.b16 %v1336, %v1335
      %v1365 = vpack.c.b16 %v1338, %v1337
      %v1366 = vpack.c.b16 %v1340, %v1339
      %v1367 = vpack.c.b16 %v1342, %v1341
      %v1368 = vpack.c.b16 %v1344, %v1343
      %v1369 = vpack.c.b16 %v1346, %v1345
      %v1370 = vpack.c.b16 %v1348, %v1347
      %v1371 = vpack.c.b16 %v1350, %v1349
      %v1372 = vpack.c.b16 %v1352, %v1351
      %v1373 = vpack.c.b16 %v1354, %v1353
      %v1374 = vpack.c.b16 %v1355, %v1355
      %v1375 = vrot.slane %v1356, 1
      %v1376 = vrot.slane %v1357, 1
      %v1377 = vsel %vm989, %v1375, %v1376
      %v1378 = vrot.slane %v1358, 1
      %v1379 = vsel %vm989, %v1376, %v1378
      %v1380 = vrot.slane %v1359, 1
      %v1381 = vsel %vm989, %v1378, %v1380
      %v1382 = vrot.slane %v1360, 1
      %v1383 = vsel %vm989, %v1380, %v1382
      %v1384 = vrot.slane %v1361, 1
      %v1385 = vsel %vm989, %v1382, %v1384
      %v1386 = vrot.slane %v1362, 1
      %v1387 = vsel %vm989, %v1384, %v1386
      %v1388 = vrot.slane %v1363, 1
      %v1389 = vsel %vm989, %v1386, %v1388
      %v1390 = vrot.slane %v1364, 1
      %v1391 = vsel %vm989, %v1388, %v1390
      %v1392 = vrot.slane %v1365, 1
      %v1393 = vsel %vm989, %v1390, %v1392
      %v1394 = vrot.slane %v1366, 1
      %v1395 = vsel %vm989, %v1392, %v1394
      %v1396 = vrot.slane %v1367, 1
      %v1397 = vsel %vm989, %v1394, %v1396
      %v1398 = vrot.slane %v1368, 1
      %v1399 = vsel %vm989, %v1396, %v1398
      %v1400 = vrot.slane %v1369, 1
      %v1401 = vsel %vm989, %v1398, %v1400
      %v1402 = vrot.slane %v1370, 1
      %v1403 = vsel %vm989, %v1400, %v1402
      %v1404 = vrot.slane %v1371, 1
      %v1405 = vsel %vm989, %v1402, %v1404
      %v1406 = vrot.slane %v1372, 1
      %v1407 = vsel %vm989, %v1404, %v1406
      %v1408 = vrot.slane %v1373, 1
      %v1409 = vsel %vm989, %v1406, %v1408
      %v1410 = vrot.slane %v1374, 1
      %v1411 = vsel %vm989, %v1408, %v1410
      %v1446 = vunpack.c.l.b16 %v1266
      %v1447 = vunpack.c.l.b16 %v1267
      %v1448 = vunpack.c.l.b16 %v1268
      %v1449 = vunpack.c.l.b16 %v1269
      %v1450 = vunpack.c.l.b16 %v1270
      %v1451 = vunpack.c.l.b16 %v1271
      %v1452 = vunpack.c.l.b16 %v1272
      %v1453 = vunpack.c.l.b16 %v1273
      %v1454 = vunpack.c.l.b16 %v1274
      %v1455 = vunpack.c.l.b16 %v1275
      %v1456 = vunpack.c.l.b16 %v1276
      %v1457 = vunpack.c.l.b16 %v1277
      %v1458 = vunpack.c.l.b16 %v1278
      %v1459 = vunpack.c.l.b16 %v1279
      %v1460 = vunpack.c.l.b16 %v1280
      %v1461 = vunpack.c.l.b16 %v1281
      %v1462 = vpack.c.b16 %v1447, %v1446
      %v1463 = vpack.c.b16 %v1449, %v1448
      %v1464 = vpack.c.b16 %v1451, %v1450
      %v1465 = vpack.c.b16 %v1453, %v1452
      %v1466 = vpack.c.b16 %v1455, %v1454
      %v1467 = vpack.c.b16 %v1457, %v1456
      %v1468 = vpack.c.b16 %v1459, %v1458
      %v1469 = vpack.c.b16 %v1461, %v1460
      %1478 = vmatpush.bf16.msra.mxu0 %v1469
      %1479 = vmatpush.bf16.msra.mxu0 %v1468
      %1480 = vmatpush.bf16.msra.mxu0 %v1467
      %1481 = vmatpush.bf16.msra.mxu0 %v1466
      %1482 = vmatpush.bf16.msra.mxu0 %v1465
      %1483 = vmatpush.bf16.msra.mxu0 %v1464
      %1484 = vmatpush.bf16.msra.mxu0 %v1463
      %1485 = vmatpush.bf16.msra.mxu0 %v1462
      %1486 = vmatmul.bf16.gmra.mxu0 %v1377
      %v1487 = vpop.f32.mrf.mxu0
      %v1488 = vadd.f32 0.0, %v1487
      %v1489 = vpop.f32.mrf.mxu0
      %v1490 = vadd.f32 0.0, %v1489
      %1491 = vmatmul.bf16.gmra.mxu0 %v1379
      %v1492 = vpop.f32.mrf.mxu0
      %v1493 = vadd.f32 0.0, %v1492
      %v1494 = vpop.f32.mrf.mxu0
      %v1495 = vadd.f32 0.0, %v1494
      %1496 = vmatmul.bf16.gmra.mxu0 %v1381
      %v1497 = vpop.f32.mrf.mxu0
      %v1498 = vadd.f32 0.0, %v1497
      %v1499 = vpop.f32.mrf.mxu0
      %v1500 = vadd.f32 0.0, %v1499
      %1501 = vmatmul.bf16.gmra.mxu0 %v1383
      %v1502 = vpop.f32.mrf.mxu0
      %v1503 = vadd.f32 0.0, %v1502
      %v1504 = vpop.f32.mrf.mxu0
      %v1505 = vadd.f32 0.0, %v1504
      %1506 = vmatmul.bf16.gmra.mxu0 %v1385
      %v1507 = vpop.f32.mrf.mxu0
      %v1508 = vadd.f32 0.0, %v1507
      %v1509 = vpop.f32.mrf.mxu0
      %v1510 = vadd.f32 0.0, %v1509
      %1511 = vmatmul.bf16.gmra.mxu0 %v1387
      %v1512 = vpop.f32.mrf.mxu0
      %v1513 = vadd.f32 0.0, %v1512
      %v1514 = vpop.f32.mrf.mxu0
      %v1515 = vadd.f32 0.0, %v1514
      %1516 = vmatmul.bf16.gmra.mxu0 %v1389
      %v1517 = vpop.f32.mrf.mxu0
      %v1518 = vadd.f32 0.0, %v1517
      %v1519 = vpop.f32.mrf.mxu0
      %v1520 = vadd.f32 0.0, %v1519
      %1521 = vmatmul.bf16.gmra.mxu0 %v1391
      %v1522 = vpop.f32.mrf.mxu0
      %v1523 = vadd.f32 0.0, %v1522
      %v1524 = vpop.f32.mrf.mxu0
      %v1525 = vadd.f32 0.0, %v1524
      %1526 = vmatmul.bf16.gmra.mxu0 %v1393
      %v1527 = vpop.f32.mrf.mxu0
      %v1528 = vadd.f32 0.0, %v1527
      %v1529 = vpop.f32.mrf.mxu0
      %v1530 = vadd.f32 0.0, %v1529
      %1531 = vmatmul.bf16.gmra.mxu0 %v1395
      %v1532 = vpop.f32.mrf.mxu0
      %v1533 = vadd.f32 0.0, %v1532
      %v1534 = vpop.f32.mrf.mxu0
      %v1535 = vadd.f32 0.0, %v1534
      %1536 = vmatmul.bf16.gmra.mxu0 %v1397
      %v1537 = vpop.f32.mrf.mxu0
      %v1538 = vadd.f32 0.0, %v1537
      %v1539 = vpop.f32.mrf.mxu0
      %v1540 = vadd.f32 0.0, %v1539
      %1541 = vmatmul.bf16.gmra.mxu0 %v1399
      %v1542 = vpop.f32.mrf.mxu0
      %v1543 = vadd.f32 0.0, %v1542
      %v1544 = vpop.f32.mrf.mxu0
      %v1545 = vadd.f32 0.0, %v1544
      %1546 = vmatmul.bf16.gmra.mxu0 %v1401
      %v1547 = vpop.f32.mrf.mxu0
      %v1548 = vadd.f32 0.0, %v1547
      %v1549 = vpop.f32.mrf.mxu0
      %v1550 = vadd.f32 0.0, %v1549
      %1551 = vmatmul.bf16.gmra.mxu0 %v1403
      %v1552 = vpop.f32.mrf.mxu0
      %v1553 = vadd.f32 0.0, %v1552
      %v1554 = vpop.f32.mrf.mxu0
      %v1555 = vadd.f32 0.0, %v1554
      %1556 = vmatmul.bf16.gmra.mxu0 %v1405
      %v1557 = vpop.f32.mrf.mxu0
      %v1558 = vadd.f32 0.0, %v1557
      %v1559 = vpop.f32.mrf.mxu0
      %v1560 = vadd.f32 0.0, %v1559
      %1561 = vmatmul.bf16.gmra.mxu0 %v1407
      %v1562 = vpop.f32.mrf.mxu0
      %v1563 = vadd.f32 0.0, %v1562
      %v1564 = vpop.f32.mrf.mxu0
      %v1565 = vadd.f32 0.0, %v1564
      %1566 = vmatmul.bf16.gmra.mxu0 %v1409
      %v1567 = vpop.f32.mrf.mxu0
      %v1568 = vadd.f32 0.0, %v1567
      %v1569 = vpop.f32.mrf.mxu0
      %v1570 = vadd.f32 0.0, %v1569
      %1571 = vmatmul.bf16.gmra.mxu0 %v1411
      %v1572 = vpop.f32.mrf.mxu0
      %v1573 = vadd.f32 0.0, %v1572
      %v1574 = vpop.f32.mrf.mxu0
      %v1575 = vadd.f32 0.0, %v1574
      %1576 = vdwg.mxu0
      %v1577 = vadd.f32 %v1192, %v1488
      %v1578 = vadd.f32 %v1193, %v1490
      %v1579 = vadd.f32 %v1194, %v1493
      %v1580 = vadd.f32 %v1195, %v1495
      %v1581 = vadd.f32 %v1196, %v1498
      %v1582 = vadd.f32 %v1197, %v1500
      %v1583 = vadd.f32 %v1198, %v1503
      %v1584 = vadd.f32 %v1199, %v1505
      %v1585 = vadd.f32 %v1200, %v1508
      %v1586 = vadd.f32 %v1201, %v1510
      %v1587 = vadd.f32 %v1202, %v1513
      %v1588 = vadd.f32 %v1203, %v1515
      %v1589 = vadd.f32 %v1204, %v1518
      %v1590 = vadd.f32 %v1205, %v1520
      %v1591 = vadd.f32 %v1206, %v1523
      %v1592 = vadd.f32 %v1207, %v1525
      %v1593 = vadd.f32 %v1208, %v1528
      %v1594 = vadd.f32 %v1209, %v1530
      %v1595 = vadd.f32 %v1210, %v1533
      %v1596 = vadd.f32 %v1211, %v1535
      %v1597 = vadd.f32 %v1212, %v1538
      %v1598 = vadd.f32 %v1213, %v1540
      %v1599 = vadd.f32 %v1214, %v1543
      %v1600 = vadd.f32 %v1215, %v1545
      %v1601 = vadd.f32 %v1216, %v1548
      %v1602 = vadd.f32 %v1217, %v1550
      %v1603 = vadd.f32 %v1218, %v1553
      %v1604 = vadd.f32 %v1219, %v1555
      %v1605 = vadd.f32 %v1220, %v1558
      %v1606 = vadd.f32 %v1221, %v1560
      %v1607 = vadd.f32 %v1222, %v1563
      %v1608 = vadd.f32 %v1223, %v1565
      %v1609 = vadd.f32 %v1224, %v1568
      %v1610 = vadd.f32 %v1225, %v1570
      %v1611 = vadd.f32 %v1226, %v1573
      %v1612 = vadd.f32 %v1227, %v1575
      %v1613 = vld [vmem:[%s315 + $0x98] sm:$0x3]
      %s1614 = scalar_lea.vmem %s2, 256
      %v1615 = vld [vmem:[%s1614] sm:$0xf]
      %v1616 = vld [vmem:[%s1614 + $0x4] sm:$0xf]
      %v1617 = vld [vmem:[%s1614 + $0x8] sm:$0xf]
      %v1618 = vld [vmem:[%s1614 + $0xc] sm:$0xf]
      %v1619 = vld [vmem:[%s1614 + $0x10] sm:$0xf]
      %v1620 = vld [vmem:[%s1614 + $0x14] sm:$0xf]
      %v1621 = vld [vmem:[%s1614 + $0x18] sm:$0xf]
      %v1622 = vld [vmem:[%s1614 + $0x1c] sm:$0xf]
      %v1623 = vld [vmem:[%s1614 + $0x20] sm:$0xf]
      %v1624 = vld [vmem:[%s1614 + $0x24] sm:$0xf]
      %v1625 = vld [vmem:[%s1614 + $0x28] sm:$0xf]
      %v1626 = vld [vmem:[%s1614 + $0x2c] sm:$0xf]
      %v1627 = vld [vmem:[%s1614 + $0x30] sm:$0xf]
      %v1628 = vld [vmem:[%s1614 + $0x34] sm:$0xf]
      %v1629 = vld [vmem:[%s1614 + $0x38] sm:$0xf]
      %v1630 = vld [vmem:[%s1614 + $0x3c] sm:$0xf]
      %v1632 = vunpack.c.l.b16 %v1613
      %v1633 = vpack.c.b16 %v1632, %v1632
      %vm1634 = vsmask.f32 6400
      %v1636 = vshrl.u32 %v1356, 16
      %v1638 = vrot.slane %v1636, 1
      %v1639 = vshll.u32 %v1356, 16
      %v1641 = vrot.slane %v1639, 2
      %v1642 = vor.u32 %v1638, %v1641
      %v1644 = vshrl.u32 %v1357, 16
      %v1646 = vrot.slane %v1644, 1
      %v1647 = vshll.u32 %v1357, 16
      %v1649 = vrot.slane %v1647, 2
      %v1650 = vor.u32 %v1646, %v1649
      %v1651 = vsel %vm1634, %v1642, %v1650
      %v1653 = vshrl.u32 %v1358, 16
      %v1655 = vrot.slane %v1653, 1
      %v1656 = vshll.u32 %v1358, 16
      %v1658 = vrot.slane %v1656, 2
      %v1659 = vor.u32 %v1655, %v1658
      %v1660 = vsel %vm1634, %v1650, %v1659
      %v1662 = vshrl.u32 %v1359, 16
      %v1664 = vrot.slane %v1662, 1
      %v1665 = vshll.u32 %v1359, 16
      %v1667 = vrot.slane %v1665, 2
      %v1668 = vor.u32 %v1664, %v1667
      %v1669 = vsel %vm1634, %v1659, %v1668
      %v1671 = vshrl.u32 %v1360, 16
      %v1673 = vrot.slane %v1671, 1
      %v1674 = vshll.u32 %v1360, 16
      %v1676 = vrot.slane %v1674, 2
      %v1677 = vor.u32 %v1673, %v1676
      %v1678 = vsel %vm1634, %v1668, %v1677
      %v1680 = vshrl.u32 %v1361, 16
      %v1682 = vrot.slane %v1680, 1
      %v1683 = vshll.u32 %v1361, 16
      %v1685 = vrot.slane %v1683, 2
      %v1686 = vor.u32 %v1682, %v1685
      %v1687 = vsel %vm1634, %v1677, %v1686
      %v1689 = vshrl.u32 %v1362, 16
      %v1691 = vrot.slane %v1689, 1
      %v1692 = vshll.u32 %v1362, 16
      %v1694 = vrot.slane %v1692, 2
      %v1695 = vor.u32 %v1691, %v1694
      %v1696 = vsel %vm1634, %v1686, %v1695
      %v1698 = vshrl.u32 %v1363, 16
      %v1700 = vrot.slane %v1698, 1
      %v1701 = vshll.u32 %v1363, 16
      %v1703 = vrot.slane %v1701, 2
      %v1704 = vor.u32 %v1700, %v1703
      %v1705 = vsel %vm1634, %v1695, %v1704
      %v1707 = vshrl.u32 %v1364, 16
      %v1709 = vrot.slane %v1707, 1
      %v1710 = vshll.u32 %v1364, 16
      %v1712 = vrot.slane %v1710, 2
      %v1713 = vor.u32 %v1709, %v1712
      %v1714 = vsel %vm1634, %v1704, %v1713
      %v1716 = vshrl.u32 %v1365, 16
      %v1718 = vrot.slane %v1716, 1
      %v1719 = vshll.u32 %v1365, 16
      %v1721 = vrot.slane %v1719, 2
      %v1722 = vor.u32 %v1718, %v1721
      %v1723 = vsel %vm1634, %v1713, %v1722
      %v1725 = vshrl.u32 %v1366, 16
      %v1727 = vrot.slane %v1725, 1
      %v1728 = vshll.u32 %v1366, 16
      %v1730 = vrot.slane %v1728, 2
      %v1731 = vor.u32 %v1727, %v1730
      %v1732 = vsel %vm1634, %v1722, %v1731
      %v1734 = vshrl.u32 %v1367, 16
      %v1736 = vrot.slane %v1734, 1
      %v1737 = vshll.u32 %v1367, 16
      %v1739 = vrot.slane %v1737, 2
      %v1740 = vor.u32 %v1736, %v1739
      %v1741 = vsel %vm1634, %v1731, %v1740
      %v1743 = vshrl.u32 %v1368, 16
      %v1745 = vrot.slane %v1743, 1
      %v1746 = vshll.u32 %v1368, 16
      %v1748 = vrot.slane %v1746, 2
      %v1749 = vor.u32 %v1745, %v1748
      %v1750 = vsel %vm1634, %v1740, %v1749
      %v1752 = vshrl.u32 %v1369, 16
      %v1754 = vrot.slane %v1752, 1
      %v1755 = vshll.u32 %v1369, 16
      %v1757 = vrot.slane %v1755, 2
      %v1758 = vor.u32 %v1754, %v1757
      %v1759 = vsel %vm1634, %v1749, %v1758
      %v1761 = vshrl.u32 %v1370, 16
      %v1763 = vrot.slane %v1761, 1
      %v1764 = vshll.u32 %v1370, 16
      %v1766 = vrot.slane %v1764, 2
      %v1767 = vor.u32 %v1763, %v1766
      %v1768 = vsel %vm1634, %v1758, %v1767
      %v1770 = vshrl.u32 %v1371, 16
      %v1772 = vrot.slane %v1770, 1
      %v1773 = vshll.u32 %v1371, 16
      %v1775 = vrot.slane %v1773, 2
      %v1776 = vor.u32 %v1772, %v1775
      %v1777 = vsel %vm1634, %v1767, %v1776
      %v1779 = vshrl.u32 %v1372, 16
      %v1781 = vrot.slane %v1779, 1
      %v1782 = vshll.u32 %v1372, 16
      %v1784 = vrot.slane %v1782, 2
      %v1785 = vor.u32 %v1781, %v1784
      %v1786 = vsel %vm1634, %v1776, %v1785
      %v1788 = vshrl.u32 %v1373, 16
      %v1790 = vrot.slane %v1788, 1
      %v1791 = vshll.u32 %v1373, 16
      %v1793 = vrot.slane %v1791, 2
      %v1794 = vor.u32 %v1790, %v1793
      %v1795 = vsel %vm1634, %v1785, %v1794
      %v1797 = vshrl.u32 %v1633, 16
      %v1799 = vrot.slane %v1797, 1
      %v1800 = vshll.u32 %v1633, 16
      %v1802 = vrot.slane %v1800, 2
      %v1803 = vor.u32 %v1799, %v1802
      %v1804 = vsel %vm1634, %v1794, %v1803
      %v1839 = vunpack.c.l.b16 %v1615
      %v1840 = vunpack.c.l.b16 %v1616
      %v1841 = vunpack.c.l.b16 %v1617
      %v1842 = vunpack.c.l.b16 %v1618
      %v1843 = vunpack.c.l.b16 %v1619
      %v1844 = vunpack.c.l.b16 %v1620
      %v1845 = vunpack.c.l.b16 %v1621
      %v1846 = vunpack.c.l.b16 %v1622
      %v1847 = vunpack.c.l.b16 %v1623
      %v1848 = vunpack.c.l.b16 %v1624
      %v1849 = vunpack.c.l.b16 %v1625
      %v1850 = vunpack.c.l.b16 %v1626
      %v1851 = vunpack.c.l.b16 %v1627
      %v1852 = vunpack.c.l.b16 %v1628
      %v1853 = vunpack.c.l.b16 %v1629
      %v1854 = vunpack.c.l.b16 %v1630
      %v1855 = vpack.c.b16 %v1840, %v1839
      %v1856 = vpack.c.b16 %v1842, %v1841
      %v1857 = vpack.c.b16 %v1844, %v1843
      %v1858 = vpack.c.b16 %v1846, %v1845
      %v1859 = vpack.c.b16 %v1848, %v1847
      %v1860 = vpack.c.b16 %v1850, %v1849
      %v1861 = vpack.c.b16 %v1852, %v1851
      %v1862 = vpack.c.b16 %v1854, %v1853
      %1871 = vmatpush.bf16.msra.mxu0 %v1862
      %1872 = vmatpush.bf16.msra.mxu0 %v1861
      %1873 = vmatpush.bf16.msra.mxu0 %v1860
      %1874 = vmatpush.bf16.msra.mxu0 %v1859
      %1875 = vmatpush.bf16.msra.mxu0 %v1858
      %1876 = vmatpush.bf16.msra.mxu0 %v1857
      %1877 = vmatpush.bf16.msra.mxu0 %v1856
      %1878 = vmatpush.bf16.msra.mxu0 %v1855
      %1879 = vmatmul.bf16.gmra.mxu0 %v1651
      %v1880 = vpop.f32.mrf.mxu0
      %v1881 = vadd.f32 0.0, %v1880
      %v1882 = vpop.f32.mrf.mxu0
      %v1883 = vadd.f32 0.0, %v1882
      %1884 = vmatmul.bf16.gmra.mxu0 %v1660
      %v1885 = vpop.f32.mrf.mxu0
      %v1886 = vadd.f32 0.0, %v1885
      %v1887 = vpop.f32.mrf.mxu0
      %v1888 = vadd.f32 0.0, %v1887
      %1889 = vmatmul.bf16.gmra.mxu0 %v1669
      %v1890 = vpop.f32.mrf.mxu0
      %v1891 = vadd.f32 0.0, %v1890
      %v1892 = vpop.f32.mrf.mxu0
      %v1893 = vadd.f32 0.0, %v1892
      %1894 = vmatmul.bf16.gmra.mxu0 %v1678
      %v1895 = vpop.f32.mrf.mxu0
      %v1896 = vadd.f32 0.0, %v1895
      %v1897 = vpop.f32.mrf.mxu0
      %v1898 = vadd.f32 0.0, %v1897
      %1899 = vmatmul.bf16.gmra.mxu0 %v1687
      %v1900 = vpop.f32.mrf.mxu0
      %v1901 = vadd.f32 0.0, %v1900
      %v1902 = vpop.f32.mrf.mxu0
      %v1903 = vadd.f32 0.0, %v1902
      %1904 = vmatmul.bf16.gmra.mxu0 %v1696
      %v1905 = vpop.f32.mrf.mxu0
      %v1906 = vadd.f32 0.0, %v1905
      %v1907 = vpop.f32.mrf.mxu0
      %v1908 = vadd.f32 0.0, %v1907
      %1909 = vmatmul.bf16.gmra.mxu0 %v1705
      %v1910 = vpop.f32.mrf.mxu0
      %v1911 = vadd.f32 0.0, %v1910
      %v1912 = vpop.f32.mrf.mxu0
      %v1913 = vadd.f32 0.0, %v1912
      %1914 = vmatmul.bf16.gmra.mxu0 %v1714
      %v1915 = vpop.f32.mrf.mxu0
      %v1916 = vadd.f32 0.0, %v1915
      %v1917 = vpop.f32.mrf.mxu0
      %v1918 = vadd.f32 0.0, %v1917
      %1919 = vmatmul.bf16.gmra.mxu0 %v1723
      %v1920 = vpop.f32.mrf.mxu0
      %v1921 = vadd.f32 0.0, %v1920
      %v1922 = vpop.f32.mrf.mxu0
      %v1923 = vadd.f32 0.0, %v1922
      %1924 = vmatmul.bf16.gmra.mxu0 %v1732
      %v1925 = vpop.f32.mrf.mxu0
      %v1926 = vadd.f32 0.0, %v1925
      %v1927 = vpop.f32.mrf.mxu0
      %v1928 = vadd.f32 0.0, %v1927
      %1929 = vmatmul.bf16.gmra.mxu0 %v1741
      %v1930 = vpop.f32.mrf.mxu0
      %v1931 = vadd.f32 0.0, %v1930
      %v1932 = vpop.f32.mrf.mxu0
      %v1933 = vadd.f32 0.0, %v1932
      %1934 = vmatmul.bf16.gmra.mxu0 %v1750
      %v1935 = vpop.f32.mrf.mxu0
      %v1936 = vadd.f32 0.0, %v1935
      %v1937 = vpop.f32.mrf.mxu0
      %v1938 = vadd.f32 0.0, %v1937
      %1939 = vmatmul.bf16.gmra.mxu0 %v1759
      %v1940 = vpop.f32.mrf.mxu0
      %v1941 = vadd.f32 0.0, %v1940
      %v1942 = vpop.f32.mrf.mxu0
      %v1943 = vadd.f32 0.0, %v1942
      %1944 = vmatmul.bf16.gmra.mxu0 %v1768
      %v1945 = vpop.f32.mrf.mxu0
      %v1946 = vadd.f32 0.0, %v1945
      %v1947 = vpop.f32.mrf.mxu0
      %v1948 = vadd.f32 0.0, %v1947
      %1949 = vmatmul.bf16.gmra.mxu0 %v1777
      %v1950 = vpop.f32.mrf.mxu0
      %v1951 = vadd.f32 0.0, %v1950
      %v1952 = vpop.f32.mrf.mxu0
      %v1953 = vadd.f32 0.0, %v1952
      %1954 = vmatmul.bf16.gmra.mxu0 %v1786
      %v1955 = vpop.f32.mrf.mxu0
      %v1956 = vadd.f32 0.0, %v1955
      %v1957 = vpop.f32.mrf.mxu0
      %v1958 = vadd.f32 0.0, %v1957
      %1959 = vmatmul.bf16.gmra.mxu0 %v1795
      %v1960 = vpop.f32.mrf.mxu0
      %v1961 = vadd.f32 0.0, %v1960
      %v1962 = vpop.f32.mrf.mxu0
      %v1963 = vadd.f32 0.0, %v1962
      %1964 = vmatmul.bf16.gmra.mxu0 %v1804
      %v1965 = vpop.f32.mrf.mxu0
      %v1966 = vadd.f32 0.0, %v1965
      %v1967 = vpop.f32.mrf.mxu0
      %v1968 = vadd.f32 0.0, %v1967
      %1969 = vdwg.mxu0
      %v1970 = vadd.f32 %v1577, %v1881
      %v1971 = vadd.f32 %v1578, %v1883
      %v1972 = vadd.f32 %v1579, %v1886
      %v1973 = vadd.f32 %v1580, %v1888
      %v1974 = vadd.f32 %v1581, %v1891
      %v1975 = vadd.f32 %v1582, %v1893
      %v1976 = vadd.f32 %v1583, %v1896
      %v1977 = vadd.f32 %v1584, %v1898
      %v1978 = vadd.f32 %v1585, %v1901
      %v1979 = vadd.f32 %v1586, %v1903
      %v1980 = vadd.f32 %v1587, %v1906
      %v1981 = vadd.f32 %v1588, %v1908
      %v1982 = vadd.f32 %v1589, %v1911
      %v1983 = vadd.f32 %v1590, %v1913
      %v1984 = vadd.f32 %v1591, %v1916
      %v1985 = vadd.f32 %v1592, %v1918
      %v1986 = vadd.f32 %v1593, %v1921
      %v1987 = vadd.f32 %v1594, %v1923
      %v1988 = vadd.f32 %v1595, %v1926
      %v1989 = vadd.f32 %v1596, %v1928
      %v1990 = vadd.f32 %v1597, %v1931
      %v1991 = vadd.f32 %v1598, %v1933
      %v1992 = vadd.f32 %v1599, %v1936
      %v1993 = vadd.f32 %v1600, %v1938
      %v1994 = vadd.f32 %v1601, %v1941
      %v1995 = vadd.f32 %v1602, %v1943
      %v1996 = vadd.f32 %v1603, %v1946
      %v1997 = vadd.f32 %v1604, %v1948
      %v1998 = vadd.f32 %v1605, %v1951
      %v1999 = vadd.f32 %v1606, %v1953
      %v2000 = vadd.f32 %v1607, %v1956
      %v2001 = vadd.f32 %v1608, %v1958
      %v2002 = vadd.f32 %v1609, %v1961
      %v2003 = vadd.f32 %v1610, %v1963
      %v2004 = vadd.f32 %v1611, %v1966
      %v2005 = vadd.f32 %v1612, %v1968
      %v2006 = vld [vmem:[%s315 + $0x8] sm:$0xc]
      %s2007 = scalar_lea.vmem %s2, 320
      %v2008 = vld [vmem:[%s2007] sm:$0xf]
      %v2009 = vld [vmem:[%s2007 + $0x4] sm:$0xf]
      %v2010 = vld [vmem:[%s2007 + $0x8] sm:$0xf]
      %v2011 = vld [vmem:[%s2007 + $0xc] sm:$0xf]
      %v2012 = vld [vmem:[%s2007 + $0x10] sm:$0xf]
      %v2013 = vld [vmem:[%s2007 + $0x14] sm:$0xf]
      %v2014 = vld [vmem:[%s2007 + $0x18] sm:$0xf]
      %v2015 = vld [vmem:[%s2007 + $0x1c] sm:$0xf]
      %v2016 = vld [vmem:[%s2007 + $0x20] sm:$0xf]
      %v2017 = vld [vmem:[%s2007 + $0x24] sm:$0xf]
      %v2018 = vld [vmem:[%s2007 + $0x28] sm:$0xf]
      %v2019 = vld [vmem:[%s2007 + $0x2c] sm:$0xf]
      %v2020 = vld [vmem:[%s2007 + $0x30] sm:$0xf]
      %v2021 = vld [vmem:[%s2007 + $0x34] sm:$0xf]
      %v2022 = vld [vmem:[%s2007 + $0x38] sm:$0xf]
      %v2023 = vld [vmem:[%s2007 + $0x3c] sm:$0xf]
      %v2025 = vunpack.c.l.b16 %v2006
      %v2026 = vpack.c.b16 %v1320, %v2025
      %vm2027 = vcmask 1045504
      %v2028 = vrot.slane %v2026, 2
      %v2029 = vrot.slane %v1357, 2
      %v2030 = vsel %vm2027, %v2028, %v2029
      %v2031 = vrot.slane %v1358, 2
      %v2032 = vsel %vm2027, %v2029, %v2031
      %v2033 = vrot.slane %v1359, 2
      %v2034 = vsel %vm2027, %v2031, %v2033
      %v2035 = vrot.slane %v1360, 2
      %v2036 = vsel %vm2027, %v2033, %v2035
      %v2037 = vrot.slane %v1361, 2
      %v2038 = vsel %vm2027, %v2035, %v2037
      %v2039 = vrot.slane %v1362, 2
      %v2040 = vsel %vm2027, %v2037, %v2039
      %v2041 = vrot.slane %v1363, 2
      %v2042 = vsel %vm2027, %v2039, %v2041
      %v2043 = vrot.slane %v1364, 2
      %v2044 = vsel %vm2027, %v2041, %v2043
      %v2045 = vrot.slane %v1365, 2
      %v2046 = vsel %vm2027, %v2043, %v2045
      %v2047 = vrot.slane %v1366, 2
      %v2048 = vsel %vm2027, %v2045, %v2047
      %v2049 = vrot.slane %v1367, 2
      %v2050 = vsel %vm2027, %v2047, %v2049
      %v2051 = vrot.slane %v1368, 2
      %v2052 = vsel %vm2027, %v2049, %v2051
      %v2053 = vrot.slane %v1369, 2
      %v2054 = vsel %vm2027, %v2051, %v2053
      %v2055 = vrot.slane %v1370, 2
      %v2056 = vsel %vm2027, %v2053, %v2055
      %v2057 = vrot.slane %v1371, 2
      %v2058 = vsel %vm2027, %v2055, %v2057
      %v2059 = vrot.slane %v1372, 2
      %v2060 = vsel %vm2027, %v2057, %v2059
      %v2061 = vrot.slane %v1373, 2
      %v2062 = vsel %vm2027, %v2059, %v2061
      %v2063 = vrot.slane %v1633, 2
      %v2064 = vsel %vm2027, %v2061, %v2063
      %v2099 = vunpack.c.l.b16 %v2008
      %v2100 = vunpack.c.l.b16 %v2009
      %v2101 = vunpack.c.l.b16 %v2010
      %v2102 = vunpack.c.l.b16 %v2011
      %v2103 = vunpack.c.l.b16 %v2012
      %v2104 = vunpack.c.l.b16 %v2013
      %v2105 = vunpack.c.l.b16 %v2014
      %v2106 = vunpack.c.l.b16 %v2015
      %v2107 = vunpack.c.l.b16 %v2016
      %v2108 = vunpack.c.l.b16 %v2017
      %v2109 = vunpack.c.l.b16 %v2018
      %v2110 = vunpack.c.l.b16 %v2019
      %v2111 = vunpack.c.l.b16 %v2020
      %v2112 = vunpack.c.l.b16 %v2021
      %v2113 = vunpack.c.l.b16 %v2022
      %v2114 = vunpack.c.l.b16 %v2023
      %v2115 = vpack.c.b16 %v2100, %v2099
      %v2116 = vpack.c.b16 %v2102, %v2101
      %v2117 = vpack.c.b16 %v2104, %v2103
      %v2118 = vpack.c.b16 %v2106, %v2105
      %v2119 = vpack.c.b16 %v2108, %v2107
      %v2120 = vpack.c.b16 %v2110, %v2109
      %v2121 = vpack.c.b16 %v2112, %v2111
      %v2122 = vpack.c.b16 %v2114, %v2113
      %2131 = vmatpush.bf16.msra.mxu0 %v2122
      %2132 = vmatpush.bf16.msra.mxu0 %v2121
      %2133 = vmatpush.bf16.msra.mxu0 %v2120
      %2134 = vmatpush.bf16.msra.mxu0 %v2119
      %2135 = vmatpush.bf16.msra.mxu0 %v2118
      %2136 = vmatpush.bf16.msra.mxu0 %v2117
      %2137 = vmatpush.bf16.msra.mxu0 %v2116
      %2138 = vmatpush.bf16.msra.mxu0 %v2115
      %2139 = vmatmul.bf16.gmra.mxu0 %v2030
      %v2140 = vpop.f32.mrf.mxu0
      %v2141 = vadd.f32 0.0, %v2140
      %v2142 = vpop.f32.mrf.mxu0
      %v2143 = vadd.f32 0.0, %v2142
      %2144 = vmatmul.bf16.gmra.mxu0 %v2032
      %v2145 = vpop.f32.mrf.mxu0
      %v2146 = vadd.f32 0.0, %v2145
      %v2147 = vpop.f32.mrf.mxu0
      %v2148 = vadd.f32 0.0, %v2147
      %2149 = vmatmul.bf16.gmra.mxu0 %v2034
      %v2150 = vpop.f32.mrf.mxu0
      %v2151 = vadd.f32 0.0, %v2150
      %v2152 = vpop.f32.mrf.mxu0
      %v2153 = vadd.f32 0.0, %v2152
      %2154 = vmatmul.bf16.gmra.mxu0 %v2036
      %v2155 = vpop.f32.mrf.mxu0
      %v2156 = vadd.f32 0.0, %v2155
      %v2157 = vpop.f32.mrf.mxu0
      %v2158 = vadd.f32 0.0, %v2157
      %2159 = vmatmul.bf16.gmra.mxu0 %v2038
      %v2160 = vpop.f32.mrf.mxu0
      %v2161 = vadd.f32 0.0, %v2160
      %v2162 = vpop.f32.mrf.mxu0
      %v2163 = vadd.f32 0.0, %v2162
      %2164 = vmatmul.bf16.gmra.mxu0 %v2040
      %v2165 = vpop.f32.mrf.mxu0
      %v2166 = vadd.f32 0.0, %v2165
      %v2167 = vpop.f32.mrf.mxu0
      %v2168 = vadd.f32 0.0, %v2167
      %2169 = vmatmul.bf16.gmra.mxu0 %v2042
      %v2170 = vpop.f32.mrf.mxu0
      %v2171 = vadd.f32 0.0, %v2170
      %v2172 = vpop.f32.mrf.mxu0
      %v2173 = vadd.f32 0.0, %v2172
      %2174 = vmatmul.bf16.gmra.mxu0 %v2044
      %v2175 = vpop.f32.mrf.mxu0
      %v2176 = vadd.f32 0.0, %v2175
      %v2177 = vpop.f32.mrf.mxu0
      %v2178 = vadd.f32 0.0, %v2177
      %2179 = vmatmul.bf16.gmra.mxu0 %v2046
      %v2180 = vpop.f32.mrf.mxu0
      %v2181 = vadd.f32 0.0, %v2180
      %v2182 = vpop.f32.mrf.mxu0
      %v2183 = vadd.f32 0.0, %v2182
      %2184 = vmatmul.bf16.gmra.mxu0 %v2048
      %v2185 = vpop.f32.mrf.mxu0
      %v2186 = vadd.f32 0.0, %v2185
      %v2187 = vpop.f32.mrf.mxu0
      %v2188 = vadd.f32 0.0, %v2187
      %2189 = vmatmul.bf16.gmra.mxu0 %v2050
      %v2190 = vpop.f32.mrf.mxu0
      %v2191 = vadd.f32 0.0, %v2190
      %v2192 = vpop.f32.mrf.mxu0
      %v2193 = vadd.f32 0.0, %v2192
      %2194 = vmatmul.bf16.gmra.mxu0 %v2052
      %v2195 = vpop.f32.mrf.mxu0
      %v2196 = vadd.f32 0.0, %v2195
      %v2197 = vpop.f32.mrf.mxu0
      %v2198 = vadd.f32 0.0, %v2197
      %2199 = vmatmul.bf16.gmra.mxu0 %v2054
      %v2200 = vpop.f32.mrf.mxu0
      %v2201 = vadd.f32 0.0, %v2200
      %v2202 = vpop.f32.mrf.mxu0
      %v2203 = vadd.f32 0.0, %v2202
      %2204 = vmatmul.bf16.gmra.mxu0 %v2056
      %v2205 = vpop.f32.mrf.mxu0
      %v2206 = vadd.f32 0.0, %v2205
      %v2207 = vpop.f32.mrf.mxu0
      %v2208 = vadd.f32 0.0, %v2207
      %2209 = vmatmul.bf16.gmra.mxu0 %v2058
      %v2210 = vpop.f32.mrf.mxu0
      %v2211 = vadd.f32 0.0, %v2210
      %v2212 = vpop.f32.mrf.mxu0
      %v2213 = vadd.f32 0.0, %v2212
      %2214 = vmatmul.bf16.gmra.mxu0 %v2060
      %v2215 = vpop.f32.mrf.mxu0
      %v2216 = vadd.f32 0.0, %v2215
      %v2217 = vpop.f32.mrf.mxu0
      %v2218 = vadd.f32 0.0, %v2217
      %2219 = vmatmul.bf16.gmra.mxu0 %v2062
      %v2220 = vpop.f32.mrf.mxu0
      %v2221 = vadd.f32 0.0, %v2220
      %v2222 = vpop.f32.mrf.mxu0
      %v2223 = vadd.f32 0.0, %v2222
      %2224 = vmatmul.bf16.gmra.mxu0 %v2064
      %v2225 = vpop.f32.mrf.mxu0
      %v2226 = vadd.f32 0.0, %v2225
      %v2227 = vpop.f32.mrf.mxu0
      %v2228 = vadd.f32 0.0, %v2227
      %2229 = vdwg.mxu0
      %v2230 = vadd.f32 %v1970, %v2141
      %v2231 = vadd.f32 %v1971, %v2143
      %v2232 = vadd.f32 %v1972, %v2146
      %v2233 = vadd.f32 %v1973, %v2148
      %v2234 = vadd.f32 %v1974, %v2151
      %v2235 = vadd.f32 %v1975, %v2153
      %v2236 = vadd.f32 %v1976, %v2156
      %v2237 = vadd.f32 %v1977, %v2158
      %v2238 = vadd.f32 %v1978, %v2161
      %v2239 = vadd.f32 %v1979, %v2163
      %v2240 = vadd.f32 %v1980, %v2166
      %v2241 = vadd.f32 %v1981, %v2168
      %v2242 = vadd.f32 %v1982, %v2171
      %v2243 = vadd.f32 %v1983, %v2173
      %v2244 = vadd.f32 %v1984, %v2176
      %v2245 = vadd.f32 %v1985, %v2178
      %v2246 = vadd.f32 %v1986, %v2181
      %v2247 = vadd.f32 %v1987, %v2183
      %v2248 = vadd.f32 %v1988, %v2186
      %v2249 = vadd.f32 %v1989, %v2188
      %v2250 = vadd.f32 %v1990, %v2191
      %v2251 = vadd.f32 %v1991, %v2193
      %v2252 = vadd.f32 %v1992, %v2196
      %v2253 = vadd.f32 %v1993, %v2198
      %v2254 = vadd.f32 %v1994, %v2201
      %v2255 = vadd.f32 %v1995, %v2203
      %v2256 = vadd.f32 %v1996, %v2206
      %v2257 = vadd.f32 %v1997, %v2208
      %v2258 = vadd.f32 %v1998, %v2211
      %v2259 = vadd.f32 %v1999, %v2213
      %v2260 = vadd.f32 %v2000, %v2216
      %v2261 = vadd.f32 %v2001, %v2218
      %v2262 = vadd.f32 %v2002, %v2221
      %v2263 = vadd.f32 %v2003, %v2223
      %v2264 = vadd.f32 %v2004, %v2226
      %v2265 = vadd.f32 %v2005, %v2228
      %v2266 = vld [vmem:[%s315 + $0x10] sm:$0xc]
      %v2267 = vld [vmem:[%s315 + $0x14] sm:$0xf]
      %v2268 = vld [vmem:[%s315 + $0x18] sm:$0xf]
      %v2269 = vld [vmem:[%s315 + $0x1c] sm:$0xf]
      %v2270 = vld [vmem:[%s315 + $0x20] sm:$0xf]
      %v2271 = vld [vmem:[%s315 + $0x24] sm:$0xf]
      %v2272 = vld [vmem:[%s315 + $0x28] sm:$0xf]
      %v2273 = vld [vmem:[%s315 + $0x2c] sm:$0xf]
      %v2274 = vld [vmem:[%s315 + $0x30] sm:$0xf]
      %v2275 = vld [vmem:[%s315 + $0x34] sm:$0xf]
      %v2276 = vld [vmem:[%s315 + $0x38] sm:$0xf]
      %v2277 = vld [vmem:[%s315 + $0x3c] sm:$0xf]
      %v2278 = vld [vmem:[%s315 + $0x40] sm:$0xf]
      %v2279 = vld [vmem:[%s315 + $0x44] sm:$0xf]
      %v2280 = vld [vmem:[%s315 + $0x48] sm:$0xf]
      %v2281 = vld [vmem:[%s315 + $0x4c] sm:$0xf]
      %v2282 = vld [vmem:[%s315 + $0x50] sm:$0xf]
      %v2283 = vld [vmem:[%s315 + $0x54] sm:$0xf]
      %v2284 = vld [vmem:[%s315 + $0x58] sm:$0xf]
      %v2285 = vld [vmem:[%s315 + $0x5c] sm:$0xf]
      %v2286 = vld [vmem:[%s315 + $0x60] sm:$0xf]
      %v2287 = vld [vmem:[%s315 + $0x64] sm:$0xf]
      %v2288 = vld [vmem:[%s315 + $0x68] sm:$0xf]
      %v2289 = vld [vmem:[%s315 + $0x6c] sm:$0xf]
      %v2290 = vld [vmem:[%s315 + $0x70] sm:$0xf]
      %v2291 = vld [vmem:[%s315 + $0x74] sm:$0xf]
      %v2292 = vld [vmem:[%s315 + $0x78] sm:$0xf]
      %v2293 = vld [vmem:[%s315 + $0x7c] sm:$0xf]
      %v2294 = vld [vmem:[%s315 + $0x80] sm:$0xf]
      %v2295 = vld [vmem:[%s315 + $0x84] sm:$0xf]
      %v2296 = vld [vmem:[%s315 + $0x88] sm:$0xf]
      %v2297 = vld [vmem:[%s315 + $0x8c] sm:$0xf]
      %v2298 = vld [vmem:[%s315 + $0x90] sm:$0xf]
      %v2299 = vld [vmem:[%s315 + $0x94] sm:$0xf]
      %v2300 = vld [vmem:[%s315 + $0x98] sm:$0xf]
      %v2301 = vld [vmem:[%s315 + $0x9c] sm:$0xf]
      %v2302 = vld [vmem:[%s315 + $0xa0] sm:$0x3]
      %s2303 = scalar_lea.vmem %s2, 384
      %v2304 = vld [vmem:[%s2303] sm:$0xf]
      %v2305 = vld [vmem:[%s2303 + $0x4] sm:$0xf]
      %v2306 = vld [vmem:[%s2303 + $0x8] sm:$0xf]
      %v2307 = vld [vmem:[%s2303 + $0xc] sm:$0xf]
      %v2308 = vld [vmem:[%s2303 + $0x10] sm:$0xf]
      %v2309 = vld [vmem:[%s2303 + $0x14] sm:$0xf]
      %v2310 = vld [vmem:[%s2303 + $0x18] sm:$0xf]
      %v2311 = vld [vmem:[%s2303 + $0x1c] sm:$0xf]
      %v2312 = vld [vmem:[%s2303 + $0x20] sm:$0xf]
      %v2313 = vld [vmem:[%s2303 + $0x24] sm:$0xf]
      %v2314 = vld [vmem:[%s2303 + $0x28] sm:$0xf]
      %v2315 = vld [vmem:[%s2303 + $0x2c] sm:$0xf]
      %v2316 = vld [vmem:[%s2303 + $0x30] sm:$0xf]
      %v2317 = vld [vmem:[%s2303 + $0x34] sm:$0xf]
      %v2318 = vld [vmem:[%s2303 + $0x38] sm:$0xf]
      %v2319 = vld [vmem:[%s2303 + $0x3c] sm:$0xf]
      %v2357 = vunpack.c.l.b16 %v2266
      %v2358 = vunpack.c.l.b16 %v2267
      %v2359 = vunpack.c.l.b16 %v2268
      %v2360 = vunpack.c.l.b16 %v2269
      %v2361 = vunpack.c.l.b16 %v2270
      %v2362 = vunpack.c.l.b16 %v2271
      %v2363 = vunpack.c.l.b16 %v2272
      %v2364 = vunpack.c.l.b16 %v2273
      %v2365 = vunpack.c.l.b16 %v2274
      %v2366 = vunpack.c.l.b16 %v2275
      %v2367 = vunpack.c.l.b16 %v2276
      %v2368 = vunpack.c.l.b16 %v2277
      %v2369 = vunpack.c.l.b16 %v2278
      %v2370 = vunpack.c.l.b16 %v2279
      %v2371 = vunpack.c.l.b16 %v2280
      %v2372 = vunpack.c.l.b16 %v2281
      %v2373 = vunpack.c.l.b16 %v2282
      %v2374 = vunpack.c.l.b16 %v2283
      %v2375 = vunpack.c.l.b16 %v2284
      %v2376 = vunpack.c.l.b16 %v2285
      %v2377 = vunpack.c.l.b16 %v2286
      %v2378 = vunpack.c.l.b16 %v2287
      %v2379 = vunpack.c.l.b16 %v2288
      %v2380 = vunpack.c.l.b16 %v2289
      %v2381 = vunpack.c.l.b16 %v2290
      %v2382 = vunpack.c.l.b16 %v2291
      %v2383 = vunpack.c.l.b16 %v2292
      %v2384 = vunpack.c.l.b16 %v2293
      %v2385 = vunpack.c.l.b16 %v2294
      %v2386 = vunpack.c.l.b16 %v2295
      %v2387 = vunpack.c.l.b16 %v2296
      %v2388 = vunpack.c.l.b16 %v2297
      %v2389 = vunpack.c.l.b16 %v2298
      %v2390 = vunpack.c.l.b16 %v2299
      %v2391 = vunpack.c.l.b16 %v2300
      %v2392 = vunpack.c.l.b16 %v2301
      %v2393 = vunpack.c.l.b16 %v2302
      %v2394 = vpack.c.b16 %v2358, %v2357
      %v2395 = vpack.c.b16 %v2360, %v2359
      %v2396 = vpack.c.b16 %v2362, %v2361
      %v2397 = vpack.c.b16 %v2364, %v2363
      %v2398 = vpack.c.b16 %v2366, %v2365
      %v2399 = vpack.c.b16 %v2368, %v2367
      %v2400 = vpack.c.b16 %v2370, %v2369
      %v2401 = vpack.c.b16 %v2372, %v2371
      %v2402 = vpack.c.b16 %v2374, %v2373
      %v2403 = vpack.c.b16 %v2376, %v2375
      %v2404 = vpack.c.b16 %v2378, %v2377
      %v2405 = vpack.c.b16 %v2380, %v2379
      %v2406 = vpack.c.b16 %v2382, %v2381
      %v2407 = vpack.c.b16 %v2384, %v2383
      %v2408 = vpack.c.b16 %v2386, %v2385
      %v2409 = vpack.c.b16 %v2388, %v2387
      %v2410 = vpack.c.b16 %v2390, %v2389
      %v2411 = vpack.c.b16 %v2392, %v2391
      %v2412 = vpack.c.b16 %v2393, %v2393
      %v2413 = vrot.slane %v2394, 2
      %v2414 = vrot.slane %v2395, 2
      %v2415 = vsel %vm2027, %v2413, %v2414
      %v2416 = vrot.slane %v2396, 2
      %v2417 = vsel %vm2027, %v2414, %v2416
      %v2418 = vrot.slane %v2397, 2
      %v2419 = vsel %vm2027, %v2416, %v2418
      %v2420 = vrot.slane %v2398, 2
      %v2421 = vsel %vm2027, %v2418, %v2420
      %v2422 = vrot.slane %v2399, 2
      %v2423 = vsel %vm2027, %v2420, %v2422
      %v2424 = vrot.slane %v2400, 2
      %v2425 = vsel %vm2027, %v2422, %v2424
      %v2426 = vrot.slane %v2401, 2
      %v2427 = vsel %vm2027, %v2424, %v2426
      %v2428 = vrot.slane %v2402, 2
      %v2429 = vsel %vm2027, %v2426, %v2428
      %v2430 = vrot.slane %v2403, 2
      %v2431 = vsel %vm2027, %v2428, %v2430
      %v2432 = vrot.slane %v2404, 2
      %v2433 = vsel %vm2027, %v2430, %v2432
      %v2434 = vrot.slane %v2405, 2
      %v2435 = vsel %vm2027, %v2432, %v2434
      %v2436 = vrot.slane %v2406, 2
      %v2437 = vsel %vm2027, %v2434, %v2436
      %v2438 = vrot.slane %v2407, 2
      %v2439 = vsel %vm2027, %v2436, %v2438
      %v2440 = vrot.slane %v2408, 2
      %v2441 = vsel %vm2027, %v2438, %v2440
      %v2442 = vrot.slane %v2409, 2
      %v2443 = vsel %vm2027, %v2440, %v2442
      %v2444 = vrot.slane %v2410, 2
      %v2445 = vsel %vm2027, %v2442, %v2444
      %v2446 = vrot.slane %v2411, 2
      %v2447 = vsel %vm2027, %v2444, %v2446
      %v2448 = vrot.slane %v2412, 2
      %v2449 = vsel %vm2027, %v2446, %v2448
      %v2484 = vunpack.c.l.b16 %v2304
      %v2485 = vunpack.c.l.b16 %v2305
      %v2486 = vunpack.c.l.b16 %v2306
      %v2487 = vunpack.c.l.b16 %v2307
      %v2488 = vunpack.c.l.b16 %v2308
      %v2489 = vunpack.c.l.b16 %v2309
      %v2490 = vunpack.c.l.b16 %v2310
      %v2491 = vunpack.c.l.b16 %v2311
      %v2492 = vunpack.c.l.b16 %v2312
      %v2493 = vunpack.c.l.b16 %v2313
      %v2494 = vunpack.c.l.b16 %v2314
      %v2495 = vunpack.c.l.b16 %v2315
      %v2496 = vunpack.c.l.b16 %v2316
      %v2497 = vunpack.c.l.b16 %v2317
      %v2498 = vunpack.c.l.b16 %v2318
      %v2499 = vunpack.c.l.b16 %v2319
      %v2500 = vpack.c.b16 %v2485, %v2484
      %v2501 = vpack.c.b16 %v2487, %v2486
      %v2502 = vpack.c.b16 %v2489, %v2488
      %v2503 = vpack.c.b16 %v2491, %v2490
      %v2504 = vpack.c.b16 %v2493, %v2492
      %v2505 = vpack.c.b16 %v2495, %v2494
      %v2506 = vpack.c.b16 %v2497, %v2496
      %v2507 = vpack.c.b16 %v2499, %v2498
      %2516 = vmatpush.bf16.msra.mxu0 %v2507
      %2517 = vmatpush.bf16.msra.mxu0 %v2506
      %2518 = vmatpush.bf16.msra.mxu0 %v2505
      %2519 = vmatpush.bf16.msra.mxu0 %v2504
      %2520 = vmatpush.bf16.msra.mxu0 %v2503
      %2521 = vmatpush.bf16.msra.mxu0 %v2502
      %2522 = vmatpush.bf16.msra.mxu0 %v2501
      %2523 = vmatpush.bf16.msra.mxu0 %v2500
      %2524 = vmatmul.bf16.gmra.mxu0 %v2415
      %v2525 = vpop.f32.mrf.mxu0
      %v2526 = vadd.f32 0.0, %v2525
      %v2527 = vpop.f32.mrf.mxu0
      %v2528 = vadd.f32 0.0, %v2527
      %2529 = vmatmul.bf16.gmra.mxu0 %v2417
      %v2530 = vpop.f32.mrf.mxu0
      %v2531 = vadd.f32 0.0, %v2530
      %v2532 = vpop.f32.mrf.mxu0
      %v2533 = vadd.f32 0.0, %v2532
      %2534 = vmatmul.bf16.gmra.mxu0 %v2419
      %v2535 = vpop.f32.mrf.mxu0
      %v2536 = vadd.f32 0.0, %v2535
      %v2537 = vpop.f32.mrf.mxu0
      %v2538 = vadd.f32 0.0, %v2537
      %2539 = vmatmul.bf16.gmra.mxu0 %v2421
      %v2540 = vpop.f32.mrf.mxu0
      %v2541 = vadd.f32 0.0, %v2540
      %v2542 = vpop.f32.mrf.mxu0
      %v2543 = vadd.f32 0.0, %v2542
      %2544 = vmatmul.bf16.gmra.mxu0 %v2423
      %v2545 = vpop.f32.mrf.mxu0
      %v2546 = vadd.f32 0.0, %v2545
      %v2547 = vpop.f32.mrf.mxu0
      %v2548 = vadd.f32 0.0, %v2547
      %2549 = vmatmul.bf16.gmra.mxu0 %v2425
      %v2550 = vpop.f32.mrf.mxu0
      %v2551 = vadd.f32 0.0, %v2550
      %v2552 = vpop.f32.mrf.mxu0
      %v2553 = vadd.f32 0.0, %v2552
      %2554 = vmatmul.bf16.gmra.mxu0 %v2427
      %v2555 = vpop.f32.mrf.mxu0
      %v2556 = vadd.f32 0.0, %v2555
      %v2557 = vpop.f32.mrf.mxu0
      %v2558 = vadd.f32 0.0, %v2557
      %2559 = vmatmul.bf16.gmra.mxu0 %v2429
      %v2560 = vpop.f32.mrf.mxu0
      %v2561 = vadd.f32 0.0, %v2560
      %v2562 = vpop.f32.mrf.mxu0
      %v2563 = vadd.f32 0.0, %v2562
      %2564 = vmatmul.bf16.gmra.mxu0 %v2431
      %v2565 = vpop.f32.mrf.mxu0
      %v2566 = vadd.f32 0.0, %v2565
      %v2567 = vpop.f32.mrf.mxu0
      %v2568 = vadd.f32 0.0, %v2567
      %2569 = vmatmul.bf16.gmra.mxu0 %v2433
      %v2570 = vpop.f32.mrf.mxu0
      %v2571 = vadd.f32 0.0, %v2570
      %v2572 = vpop.f32.mrf.mxu0
      %v2573 = vadd.f32 0.0, %v2572
      %2574 = vmatmul.bf16.gmra.mxu0 %v2435
      %v2575 = vpop.f32.mrf.mxu0
      %v2576 = vadd.f32 0.0, %v2575
      %v2577 = vpop.f32.mrf.mxu0
      %v2578 = vadd.f32 0.0, %v2577
      %2579 = vmatmul.bf16.gmra.mxu0 %v2437
      %v2580 = vpop.f32.mrf.mxu0
      %v2581 = vadd.f32 0.0, %v2580
      %v2582 = vpop.f32.mrf.mxu0
      %v2583 = vadd.f32 0.0, %v2582
      %2584 = vmatmul.bf16.gmra.mxu0 %v2439
      %v2585 = vpop.f32.mrf.mxu0
      %v2586 = vadd.f32 0.0, %v2585
      %v2587 = vpop.f32.mrf.mxu0
      %v2588 = vadd.f32 0.0, %v2587
      %2589 = vmatmul.bf16.gmra.mxu0 %v2441
      %v2590 = vpop.f32.mrf.mxu0
      %v2591 = vadd.f32 0.0, %v2590
      %v2592 = vpop.f32.mrf.mxu0
      %v2593 = vadd.f32 0.0, %v2592
      %2594 = vmatmul.bf16.gmra.mxu0 %v2443
      %v2595 = vpop.f32.mrf.mxu0
      %v2596 = vadd.f32 0.0, %v2595
      %v2597 = vpop.f32.mrf.mxu0
      %v2598 = vadd.f32 0.0, %v2597
      %2599 = vmatmul.bf16.gmra.mxu0 %v2445
      %v2600 = vpop.f32.mrf.mxu0
      %v2601 = vadd.f32 0.0, %v2600
      %v2602 = vpop.f32.mrf.mxu0
      %v2603 = vadd.f32 0.0, %v2602
      %2604 = vmatmul.bf16.gmra.mxu0 %v2447
      %v2605 = vpop.f32.mrf.mxu0
      %v2606 = vadd.f32 0.0, %v2605
      %v2607 = vpop.f32.mrf.mxu0
      %v2608 = vadd.f32 0.0, %v2607
      %2609 = vmatmul.bf16.gmra.mxu0 %v2449
      %v2610 = vpop.f32.mrf.mxu0
      %v2611 = vadd.f32 0.0, %v2610
      %v2612 = vpop.f32.mrf.mxu0
      %v2613 = vadd.f32 0.0, %v2612
      %2614 = vdwg.mxu0
      %v2615 = vadd.f32 %v2230, %v2526
      %v2616 = vadd.f32 %v2231, %v2528
      %v2617 = vadd.f32 %v2232, %v2531
      %v2618 = vadd.f32 %v2233, %v2533
      %v2619 = vadd.f32 %v2234, %v2536
      %v2620 = vadd.f32 %v2235, %v2538
      %v2621 = vadd.f32 %v2236, %v2541
      %v2622 = vadd.f32 %v2237, %v2543
      %v2623 = vadd.f32 %v2238, %v2546
      %v2624 = vadd.f32 %v2239, %v2548
      %v2625 = vadd.f32 %v2240, %v2551
      %v2626 = vadd.f32 %v2241, %v2553
      %v2627 = vadd.f32 %v2242, %v2556
      %v2628 = vadd.f32 %v2243, %v2558
      %v2629 = vadd.f32 %v2244, %v2561
      %v2630 = vadd.f32 %v2245, %v2563
      %v2631 = vadd.f32 %v2246, %v2566
      %v2632 = vadd.f32 %v2247, %v2568
      %v2633 = vadd.f32 %v2248, %v2571
      %v2634 = vadd.f32 %v2249, %v2573
      %v2635 = vadd.f32 %v2250, %v2576
      %v2636 = vadd.f32 %v2251, %v2578
      %v2637 = vadd.f32 %v2252, %v2581
      %v2638 = vadd.f32 %v2253, %v2583
      %v2639 = vadd.f32 %v2254, %v2586
      %v2640 = vadd.f32 %v2255, %v2588
      %v2641 = vadd.f32 %v2256, %v2591
      %v2642 = vadd.f32 %v2257, %v2593
      %v2643 = vadd.f32 %v2258, %v2596
      %v2644 = vadd.f32 %v2259, %v2598
      %v2645 = vadd.f32 %v2260, %v2601
      %v2646 = vadd.f32 %v2261, %v2603
      %v2647 = vadd.f32 %v2262, %v2606
      %v2648 = vadd.f32 %v2263, %v2608
      %v2649 = vadd.f32 %v2264, %v2611
      %v2650 = vadd.f32 %v2265, %v2613
      %v2651 = vld [vmem:[%s315 + $0xa0] sm:$0x7]
      %s2652 = scalar_lea.vmem %s2, 448
      %v2653 = vld [vmem:[%s2652] sm:$0xf]
      %v2654 = vld [vmem:[%s2652 + $0x4] sm:$0xf]
      %v2655 = vld [vmem:[%s2652 + $0x8] sm:$0xf]
      %v2656 = vld [vmem:[%s2652 + $0xc] sm:$0xf]
      %v2657 = vld [vmem:[%s2652 + $0x10] sm:$0xf]
      %v2658 = vld [vmem:[%s2652 + $0x14] sm:$0xf]
      %v2659 = vld [vmem:[%s2652 + $0x18] sm:$0xf]
      %v2660 = vld [vmem:[%s2652 + $0x1c] sm:$0xf]
      %v2661 = vld [vmem:[%s2652 + $0x20] sm:$0xf]
      %v2662 = vld [vmem:[%s2652 + $0x24] sm:$0xf]
      %v2663 = vld [vmem:[%s2652 + $0x28] sm:$0xf]
      %v2664 = vld [vmem:[%s2652 + $0x2c] sm:$0xf]
      %v2665 = vld [vmem:[%s2652 + $0x30] sm:$0xf]
      %v2666 = vld [vmem:[%s2652 + $0x34] sm:$0xf]
      %v2667 = vld [vmem:[%s2652 + $0x38] sm:$0xf]
      %v2668 = vld [vmem:[%s2652 + $0x3c] sm:$0xf]
      %v2670 = vunpack.c.l.b16 %v2651
      %v2671 = vpack.c.b16 %v2670, %v2670
      %vm2672 = vsmask.f32 5376
      %v2674 = vshrl.u32 %v2394, 16
      %v2676 = vrot.slane %v2674, 2
      %v2677 = vshll.u32 %v2394, 16
      %v2679 = vrot.slane %v2677, 3
      %v2680 = vor.u32 %v2676, %v2679
      %v2682 = vshrl.u32 %v2395, 16
      %v2684 = vrot.slane %v2682, 2
      %v2685 = vshll.u32 %v2395, 16
      %v2687 = vrot.slane %v2685, 3
      %v2688 = vor.u32 %v2684, %v2687
      %v2689 = vsel %vm2672, %v2680, %v2688
      %v2691 = vshrl.u32 %v2396, 16
      %v2693 = vrot.slane %v2691, 2
      %v2694 = vshll.u32 %v2396, 16
      %v2696 = vrot.slane %v2694, 3
      %v2697 = vor.u32 %v2693, %v2696
      %v2698 = vsel %vm2672, %v2688, %v2697
      %v2700 = vshrl.u32 %v2397, 16
      %v2702 = vrot.slane %v2700, 2
      %v2703 = vshll.u32 %v2397, 16
      %v2705 = vrot.slane %v2703, 3
      %v2706 = vor.u32 %v2702, %v2705
      %v2707 = vsel %vm2672, %v2697, %v2706
      %v2709 = vshrl.u32 %v2398, 16
      %v2711 = vrot.slane %v2709, 2
      %v2712 = vshll.u32 %v2398, 16
      %v2714 = vrot.slane %v2712, 3
      %v2715 = vor.u32 %v2711, %v2714
      %v2716 = vsel %vm2672, %v2706, %v2715
      %v2718 = vshrl.u32 %v2399, 16
      %v2720 = vrot.slane %v2718, 2
      %v2721 = vshll.u32 %v2399, 16
      %v2723 = vrot.slane %v2721, 3
      %v2724 = vor.u32 %v2720, %v2723
      %v2725 = vsel %vm2672, %v2715, %v2724
      %v2727 = vshrl.u32 %v2400, 16
      %v2729 = vrot.slane %v2727, 2
      %v2730 = vshll.u32 %v2400, 16
      %v2732 = vrot.slane %v2730, 3
      %v2733 = vor.u32 %v2729, %v2732
      %v2734 = vsel %vm2672, %v2724, %v2733
      %v2736 = vshrl.u32 %v2401, 16
      %v2738 = vrot.slane %v2736, 2
      %v2739 = vshll.u32 %v2401, 16
      %v2741 = vrot.slane %v2739, 3
      %v2742 = vor.u32 %v2738, %v2741
      %v2743 = vsel %vm2672, %v2733, %v2742
      %v2745 = vshrl.u32 %v2402, 16
      %v2747 = vrot.slane %v2745, 2
      %v2748 = vshll.u32 %v2402, 16
      %v2750 = vrot.slane %v2748, 3
      %v2751 = vor.u32 %v2747, %v2750
      %v2752 = vsel %vm2672, %v2742, %v2751
      %v2754 = vshrl.u32 %v2403, 16
      %v2756 = vrot.slane %v2754, 2
      %v2757 = vshll.u32 %v2403, 16
      %v2759 = vrot.slane %v2757, 3
      %v2760 = vor.u32 %v2756, %v2759
      %v2761 = vsel %vm2672, %v2751, %v2760
      %v2763 = vshrl.u32 %v2404, 16
      %v2765 = vrot.slane %v2763, 2
      %v2766 = vshll.u32 %v2404, 16
      %v2768 = vrot.slane %v2766, 3
      %v2769 = vor.u32 %v2765, %v2768
      %v2770 = vsel %vm2672, %v2760, %v2769
      %v2772 = vshrl.u32 %v2405, 16
      %v2774 = vrot.slane %v2772, 2
      %v2775 = vshll.u32 %v2405, 16
      %v2777 = vrot.slane %v2775, 3
      %v2778 = vor.u32 %v2774, %v2777
      %v2779 = vsel %vm2672, %v2769, %v2778
      %v2781 = vshrl.u32 %v2406, 16
      %v2783 = vrot.slane %v2781, 2
      %v2784 = vshll.u32 %v2406, 16
      %v2786 = vrot.slane %v2784, 3
      %v2787 = vor.u32 %v2783, %v2786
      %v2788 = vsel %vm2672, %v2778, %v2787
      %v2790 = vshrl.u32 %v2407, 16
      %v2792 = vrot.slane %v2790, 2
      %v2793 = vshll.u32 %v2407, 16
      %v2795 = vrot.slane %v2793, 3
      %v2796 = vor.u32 %v2792, %v2795
      %v2797 = vsel %vm2672, %v2787, %v2796
      %v2799 = vshrl.u32 %v2408, 16
      %v2801 = vrot.slane %v2799, 2
      %v2802 = vshll.u32 %v2408, 16
      %v2804 = vrot.slane %v2802, 3
      %v2805 = vor.u32 %v2801, %v2804
      %v2806 = vsel %vm2672, %v2796, %v2805
      %v2808 = vshrl.u32 %v2409, 16
      %v2810 = vrot.slane %v2808, 2
      %v2811 = vshll.u32 %v2409, 16
      %v2813 = vrot.slane %v2811, 3
      %v2814 = vor.u32 %v2810, %v2813
      %v2815 = vsel %vm2672, %v2805, %v2814
      %v2817 = vshrl.u32 %v2410, 16
      %v2819 = vrot.slane %v2817, 2
      %v2820 = vshll.u32 %v2410, 16
      %v2822 = vrot.slane %v2820, 3
      %v2823 = vor.u32 %v2819, %v2822
      %v2824 = vsel %vm2672, %v2814, %v2823
      %v2826 = vshrl.u32 %v2411, 16
      %v2828 = vrot.slane %v2826, 2
      %v2829 = vshll.u32 %v2411, 16
      %v2831 = vrot.slane %v2829, 3
      %v2832 = vor.u32 %v2828, %v2831
      %v2833 = vsel %vm2672, %v2823, %v2832
      %v2835 = vshrl.u32 %v2671, 16
      %v2837 = vrot.slane %v2835, 2
      %v2838 = vshll.u32 %v2671, 16
      %v2840 = vrot.slane %v2838, 3
      %v2841 = vor.u32 %v2837, %v2840
      %v2842 = vsel %vm2672, %v2832, %v2841
      %v2877 = vunpack.c.l.b16 %v2653
      %v2878 = vunpack.c.l.b16 %v2654
      %v2879 = vunpack.c.l.b16 %v2655
      %v2880 = vunpack.c.l.b16 %v2656
      %v2881 = vunpack.c.l.b16 %v2657
      %v2882 = vunpack.c.l.b16 %v2658
      %v2883 = vunpack.c.l.b16 %v2659
      %v2884 = vunpack.c.l.b16 %v2660
      %v2885 = vunpack.c.l.b16 %v2661
      %v2886 = vunpack.c.l.b16 %v2662
      %v2887 = vunpack.c.l.b16 %v2663
      %v2888 = vunpack.c.l.b16 %v2664
      %v2889 = vunpack.c.l.b16 %v2665
      %v2890 = vunpack.c.l.b16 %v2666
      %v2891 = vunpack.c.l.b16 %v2667
      %v2892 = vunpack.c.l.b16 %v2668
      %v2893 = vpack.c.b16 %v2878, %v2877
      %v2894 = vpack.c.b16 %v2880, %v2879
      %v2895 = vpack.c.b16 %v2882, %v2881
      %v2896 = vpack.c.b16 %v2884, %v2883
      %v2897 = vpack.c.b16 %v2886, %v2885
      %v2898 = vpack.c.b16 %v2888, %v2887
      %v2899 = vpack.c.b16 %v2890, %v2889
      %v2900 = vpack.c.b16 %v2892, %v2891
      %2909 = vmatpush.bf16.msra.mxu0 %v2900
      %2910 = vmatpush.bf16.msra.mxu0 %v2899
      %2911 = vmatpush.bf16.msra.mxu0 %v2898
      %2912 = vmatpush.bf16.msra.mxu0 %v2897
      %2913 = vmatpush.bf16.msra.mxu0 %v2896
      %2914 = vmatpush.bf16.msra.mxu0 %v2895
      %2915 = vmatpush.bf16.msra.mxu0 %v2894
      %2916 = vmatpush.bf16.msra.mxu0 %v2893
      %2917 = vmatmul.bf16.gmra.mxu0 %v2689
      %v2918 = vpop.f32.mrf.mxu0
      %v2919 = vadd.f32 0.0, %v2918
      %v2920 = vpop.f32.mrf.mxu0
      %v2921 = vadd.f32 0.0, %v2920
      %2922 = vmatmul.bf16.gmra.mxu0 %v2698
      %v2923 = vpop.f32.mrf.mxu0
      %v2924 = vadd.f32 0.0, %v2923
      %v2925 = vpop.f32.mrf.mxu0
      %v2926 = vadd.f32 0.0, %v2925
      %2927 = vmatmul.bf16.gmra.mxu0 %v2707
      %v2928 = vpop.f32.mrf.mxu0
      %v2929 = vadd.f32 0.0, %v2928
      %v2930 = vpop.f32.mrf.mxu0
      %v2931 = vadd.f32 0.0, %v2930
      %2932 = vmatmul.bf16.gmra.mxu0 %v2716
      %v2933 = vpop.f32.mrf.mxu0
      %v2934 = vadd.f32 0.0, %v2933
      %v2935 = vpop.f32.mrf.mxu0
      %v2936 = vadd.f32 0.0, %v2935
      %2937 = vmatmul.bf16.gmra.mxu0 %v2725
      %v2938 = vpop.f32.mrf.mxu0
      %v2939 = vadd.f32 0.0, %v2938
      %v2940 = vpop.f32.mrf.mxu0
      %v2941 = vadd.f32 0.0, %v2940
      %2942 = vmatmul.bf16.gmra.mxu0 %v2734
      %v2943 = vpop.f32.mrf.mxu0
      %v2944 = vadd.f32 0.0, %v2943
      %v2945 = vpop.f32.mrf.mxu0
      %v2946 = vadd.f32 0.0, %v2945
      %2947 = vmatmul.bf16.gmra.mxu0 %v2743
      %v2948 = vpop.f32.mrf.mxu0
      %v2949 = vadd.f32 0.0, %v2948
      %v2950 = vpop.f32.mrf.mxu0
      %v2951 = vadd.f32 0.0, %v2950
      %2952 = vmatmul.bf16.gmra.mxu0 %v2752
      %v2953 = vpop.f32.mrf.mxu0
      %v2954 = vadd.f32 0.0, %v2953
      %v2955 = vpop.f32.mrf.mxu0
      %v2956 = vadd.f32 0.0, %v2955
      %2957 = vmatmul.bf16.gmra.mxu0 %v2761
      %v2958 = vpop.f32.mrf.mxu0
      %v2959 = vadd.f32 0.0, %v2958
      %v2960 = vpop.f32.mrf.mxu0
      %v2961 = vadd.f32 0.0, %v2960
      %2962 = vmatmul.bf16.gmra.mxu0 %v2770
      %v2963 = vpop.f32.mrf.mxu0
      %v2964 = vadd.f32 0.0, %v2963
      %v2965 = vpop.f32.mrf.mxu0
      %v2966 = vadd.f32 0.0, %v2965
      %2967 = vmatmul.bf16.gmra.mxu0 %v2779
      %v2968 = vpop.f32.mrf.mxu0
      %v2969 = vadd.f32 0.0, %v2968
      %v2970 = vpop.f32.mrf.mxu0
      %v2971 = vadd.f32 0.0, %v2970
      %2972 = vmatmul.bf16.gmra.mxu0 %v2788
      %v2973 = vpop.f32.mrf.mxu0
      %v2974 = vadd.f32 0.0, %v2973
      %v2975 = vpop.f32.mrf.mxu0
      %v2976 = vadd.f32 0.0, %v2975
      %2977 = vmatmul.bf16.gmra.mxu0 %v2797
      %v2978 = vpop.f32.mrf.mxu0
      %v2979 = vadd.f32 0.0, %v2978
      %v2980 = vpop.f32.mrf.mxu0
      %v2981 = vadd.f32 0.0, %v2980
      %2982 = vmatmul.bf16.gmra.mxu0 %v2806
      %v2983 = vpop.f32.mrf.mxu0
      %v2984 = vadd.f32 0.0, %v2983
      %v2985 = vpop.f32.mrf.mxu0
      %v2986 = vadd.f32 0.0, %v2985
      %2987 = vmatmul.bf16.gmra.mxu0 %v2815
      %v2988 = vpop.f32.mrf.mxu0
      %v2989 = vadd.f32 0.0, %v2988
      %v2990 = vpop.f32.mrf.mxu0
      %v2991 = vadd.f32 0.0, %v2990
      %2992 = vmatmul.bf16.gmra.mxu0 %v2824
      %v2993 = vpop.f32.mrf.mxu0
      %v2994 = vadd.f32 0.0, %v2993
      %v2995 = vpop.f32.mrf.mxu0
      %v2996 = vadd.f32 0.0, %v2995
      %2997 = vmatmul.bf16.gmra.mxu0 %v2833
      %v2998 = vpop.f32.mrf.mxu0
      %v2999 = vadd.f32 0.0, %v2998
      %v3000 = vpop.f32.mrf.mxu0
      %v3001 = vadd.f32 0.0, %v3000
      %3002 = vmatmul.bf16.gmra.mxu0 %v2842
      %v3003 = vpop.f32.mrf.mxu0
      %v3004 = vadd.f32 0.0, %v3003
      %v3005 = vpop.f32.mrf.mxu0
      %v3006 = vadd.f32 0.0, %v3005
      %3007 = vdwg.mxu0
      %v3008 = vadd.f32 %v2615, %v2919
      %v3009 = vadd.f32 %v2616, %v2921
      %v3010 = vadd.f32 %v2617, %v2924
      %v3011 = vadd.f32 %v2618, %v2926
      %v3012 = vadd.f32 %v2619, %v2929
      %v3013 = vadd.f32 %v2620, %v2931
      %v3014 = vadd.f32 %v2621, %v2934
      %v3015 = vadd.f32 %v2622, %v2936
      %v3016 = vadd.f32 %v2623, %v2939
      %v3017 = vadd.f32 %v2624, %v2941
      %v3018 = vadd.f32 %v2625, %v2944
      %v3019 = vadd.f32 %v2626, %v2946
      %v3020 = vadd.f32 %v2627, %v2949
      %v3021 = vadd.f32 %v2628, %v2951
      %v3022 = vadd.f32 %v2629, %v2954
      %v3023 = vadd.f32 %v2630, %v2956
      %v3024 = vadd.f32 %v2631, %v2959
      %v3025 = vadd.f32 %v2632, %v2961
      %v3026 = vadd.f32 %v2633, %v2964
      %v3027 = vadd.f32 %v2634, %v2966
      %v3028 = vadd.f32 %v2635, %v2969
      %v3029 = vadd.f32 %v2636, %v2971
      %v3030 = vadd.f32 %v2637, %v2974
      %v3031 = vadd.f32 %v2638, %v2976
      %v3032 = vadd.f32 %v2639, %v2979
      %v3033 = vadd.f32 %v2640, %v2981
      %v3034 = vadd.f32 %v2641, %v2984
      %v3035 = vadd.f32 %v2642, %v2986
      %v3036 = vadd.f32 %v2643, %v2989
      %v3037 = vadd.f32 %v2644, %v2991
      %v3038 = vadd.f32 %v2645, %v2994
      %v3039 = vadd.f32 %v2646, %v2996
      %v3040 = vadd.f32 %v2647, %v2999
      %v3041 = vadd.f32 %v2648, %v3001
      %v3042 = vadd.f32 %v2649, %v3004
      %v3043 = vadd.f32 %v2650, %v3006
      %v3044 = vld [vmem:[%s315 + $0x10] sm:$0x8]
      %s3045 = scalar_lea.vmem %s2, 512
      %v3046 = vld [vmem:[%s3045] sm:$0xf]
      %v3047 = vld [vmem:[%s3045 + $0x4] sm:$0xf]
      %v3048 = vld [vmem:[%s3045 + $0x8] sm:$0xf]
      %v3049 = vld [vmem:[%s3045 + $0xc] sm:$0xf]
      %v3050 = vld [vmem:[%s3045 + $0x10] sm:$0xf]
      %v3051 = vld [vmem:[%s3045 + $0x14] sm:$0xf]
      %v3052 = vld [vmem:[%s3045 + $0x18] sm:$0xf]
      %v3053 = vld [vmem:[%s3045 + $0x1c] sm:$0xf]
      %v3054 = vld [vmem:[%s3045 + $0x20] sm:$0xf]
      %v3055 = vld [vmem:[%s3045 + $0x24] sm:$0xf]
      %v3056 = vld [vmem:[%s3045 + $0x28] sm:$0xf]
      %v3057 = vld [vmem:[%s3045 + $0x2c] sm:$0xf]
      %v3058 = vld [vmem:[%s3045 + $0x30] sm:$0xf]
      %v3059 = vld [vmem:[%s3045 + $0x34] sm:$0xf]
      %v3060 = vld [vmem:[%s3045 + $0x38] sm:$0xf]
      %v3061 = vld [vmem:[%s3045 + $0x3c] sm:$0xf]
      %v3063 = vunpack.c.l.b16 %v3044
      %v3064 = vpack.c.b16 %v2358, %v3063
      %vm3065 = vcmask 1044480
      %v3066 = vrot.slane %v3064, 3
      %v3067 = vrot.slane %v2395, 3
      %v3068 = vsel %vm3065, %v3066, %v3067
      %v3069 = vrot.slane %v2396, 3
      %v3070 = vsel %vm3065, %v3067, %v3069
      %v3071 = vrot.slane %v2397, 3
      %v3072 = vsel %vm3065, %v3069, %v3071
      %v3073 = vrot.slane %v2398, 3
      %v3074 = vsel %vm3065, %v3071, %v3073
      %v3075 = vrot.slane %v2399, 3
      %v3076 = vsel %vm3065, %v3073, %v3075
      %v3077 = vrot.slane %v2400, 3
      %v3078 = vsel %vm3065, %v3075, %v3077
      %v3079 = vrot.slane %v2401, 3
      %v3080 = vsel %vm3065, %v3077, %v3079
      %v3081 = vrot.slane %v2402, 3
      %v3082 = vsel %vm3065, %v3079, %v3081
      %v3083 = vrot.slane %v2403, 3
      %v3084 = vsel %vm3065, %v3081, %v3083
      %v3085 = vrot.slane %v2404, 3
      %v3086 = vsel %vm3065, %v3083, %v3085
      %v3087 = vrot.slane %v2405, 3
      %v3088 = vsel %vm3065, %v3085, %v3087
      %v3089 = vrot.slane %v2406, 3
      %v3090 = vsel %vm3065, %v3087, %v3089
      %v3091 = vrot.slane %v2407, 3
      %v3092 = vsel %vm3065, %v3089, %v3091
      %v3093 = vrot.slane %v2408, 3
      %v3094 = vsel %vm3065, %v3091, %v3093
      %v3095 = vrot.slane %v2409, 3
      %v3096 = vsel %vm3065, %v3093, %v3095
      %v3097 = vrot.slane %v2410, 3
      %v3098 = vsel %vm3065, %v3095, %v3097
      %v3099 = vrot.slane %v2411, 3
      %v3100 = vsel %vm3065, %v3097, %v3099
      %v3101 = vrot.slane %v2671, 3
      %v3102 = vsel %vm3065, %v3099, %v3101
      %v3137 = vunpack.c.l.b16 %v3046
      %v3138 = vunpack.c.l.b16 %v3047
      %v3139 = vunpack.c.l.b16 %v3048
      %v3140 = vunpack.c.l.b16 %v3049
      %v3141 = vunpack.c.l.b16 %v3050
      %v3142 = vunpack.c.l.b16 %v3051
      %v3143 = vunpack.c.l.b16 %v3052
      %v3144 = vunpack.c.l.b16 %v3053
      %v3145 = vunpack.c.l.b16 %v3054
      %v3146 = vunpack.c.l.b16 %v3055
      %v3147 = vunpack.c.l.b16 %v3056
      %v3148 = vunpack.c.l.b16 %v3057
      %v3149 = vunpack.c.l.b16 %v3058
      %v3150 = vunpack.c.l.b16 %v3059
      %v3151 = vunpack.c.l.b16 %v3060
      %v3152 = vunpack.c.l.b16 %v3061
      %v3153 = vpack.c.b16 %v3138, %v3137
      %v3154 = vpack.c.b16 %v3140, %v3139
      %v3155 = vpack.c.b16 %v3142, %v3141
      %v3156 = vpack.c.b16 %v3144, %v3143
      %v3157 = vpack.c.b16 %v3146, %v3145
      %v3158 = vpack.c.b16 %v3148, %v3147
      %v3159 = vpack.c.b16 %v3150, %v3149
      %v3160 = vpack.c.b16 %v3152, %v3151
      %3169 = vmatpush.bf16.msra.mxu0 %v3160
      %3170 = vmatpush.bf16.msra.mxu0 %v3159
      %3171 = vmatpush.bf16.msra.mxu0 %v3158
      %3172 = vmatpush.bf16.msra.mxu0 %v3157
      %3173 = vmatpush.bf16.msra.mxu0 %v3156
      %3174 = vmatpush.bf16.msra.mxu0 %v3155
      %3175 = vmatpush.bf16.msra.mxu0 %v3154
      %3176 = vmatpush.bf16.msra.mxu0 %v3153
      %3177 = vmatmul.bf16.gmra.mxu0 %v3068
      %v3178 = vpop.f32.mrf.mxu0
      %v3179 = vadd.f32 0.0, %v3178
      %v3180 = vpop.f32.mrf.mxu0
      %v3181 = vadd.f32 0.0, %v3180
      %3182 = vmatmul.bf16.gmra.mxu0 %v3070
      %v3183 = vpop.f32.mrf.mxu0
      %v3184 = vadd.f32 0.0, %v3183
      %v3185 = vpop.f32.mrf.mxu0
      %v3186 = vadd.f32 0.0, %v3185
      %3187 = vmatmul.bf16.gmra.mxu0 %v3072
      %v3188 = vpop.f32.mrf.mxu0
      %v3189 = vadd.f32 0.0, %v3188
      %v3190 = vpop.f32.mrf.mxu0
      %v3191 = vadd.f32 0.0, %v3190
      %3192 = vmatmul.bf16.gmra.mxu0 %v3074
      %v3193 = vpop.f32.mrf.mxu0
      %v3194 = vadd.f32 0.0, %v3193
      %v3195 = vpop.f32.mrf.mxu0
      %v3196 = vadd.f32 0.0, %v3195
      %3197 = vmatmul.bf16.gmra.mxu0 %v3076
      %v3198 = vpop.f32.mrf.mxu0
      %v3199 = vadd.f32 0.0, %v3198
      %v3200 = vpop.f32.mrf.mxu0
      %v3201 = vadd.f32 0.0, %v3200
      %3202 = vmatmul.bf16.gmra.mxu0 %v3078
      %v3203 = vpop.f32.mrf.mxu0
      %v3204 = vadd.f32 0.0, %v3203
      %v3205 = vpop.f32.mrf.mxu0
      %v3206 = vadd.f32 0.0, %v3205
      %3207 = vmatmul.bf16.gmra.mxu0 %v3080
      %v3208 = vpop.f32.mrf.mxu0
      %v3209 = vadd.f32 0.0, %v3208
      %v3210 = vpop.f32.mrf.mxu0
      %v3211 = vadd.f32 0.0, %v3210
      %3212 = vmatmul.bf16.gmra.mxu0 %v3082
      %v3213 = vpop.f32.mrf.mxu0
      %v3214 = vadd.f32 0.0, %v3213
      %v3215 = vpop.f32.mrf.mxu0
      %v3216 = vadd.f32 0.0, %v3215
      %3217 = vmatmul.bf16.gmra.mxu0 %v3084
      %v3218 = vpop.f32.mrf.mxu0
      %v3219 = vadd.f32 0.0, %v3218
      %v3220 = vpop.f32.mrf.mxu0
      %v3221 = vadd.f32 0.0, %v3220
      %3222 = vmatmul.bf16.gmra.mxu0 %v3086
      %v3223 = vpop.f32.mrf.mxu0
      %v3224 = vadd.f32 0.0, %v3223
      %v3225 = vpop.f32.mrf.mxu0
      %v3226 = vadd.f32 0.0, %v3225
      %3227 = vmatmul.bf16.gmra.mxu0 %v3088
      %v3228 = vpop.f32.mrf.mxu0
      %v3229 = vadd.f32 0.0, %v3228
      %v3230 = vpop.f32.mrf.mxu0
      %v3231 = vadd.f32 0.0, %v3230
      %3232 = vmatmul.bf16.gmra.mxu0 %v3090
      %v3233 = vpop.f32.mrf.mxu0
      %v3234 = vadd.f32 0.0, %v3233
      %v3235 = vpop.f32.mrf.mxu0
      %v3236 = vadd.f32 0.0, %v3235
      %3237 = vmatmul.bf16.gmra.mxu0 %v3092
      %v3238 = vpop.f32.mrf.mxu0
      %v3239 = vadd.f32 0.0, %v3238
      %v3240 = vpop.f32.mrf.mxu0
      %v3241 = vadd.f32 0.0, %v3240
      %3242 = vmatmul.bf16.gmra.mxu0 %v3094
      %v3243 = vpop.f32.mrf.mxu0
      %v3244 = vadd.f32 0.0, %v3243
      %v3245 = vpop.f32.mrf.mxu0
      %v3246 = vadd.f32 0.0, %v3245
      %3247 = vmatmul.bf16.gmra.mxu0 %v3096
      %v3248 = vpop.f32.mrf.mxu0
      %v3249 = vadd.f32 0.0, %v3248
      %v3250 = vpop.f32.mrf.mxu0
      %v3251 = vadd.f32 0.0, %v3250
      %3252 = vmatmul.bf16.gmra.mxu0 %v3098
      %v3253 = vpop.f32.mrf.mxu0
      %v3254 = vadd.f32 0.0, %v3253
      %v3255 = vpop.f32.mrf.mxu0
      %v3256 = vadd.f32 0.0, %v3255
      %3257 = vmatmul.bf16.gmra.mxu0 %v3100
      %v3258 = vpop.f32.mrf.mxu0
      %v3259 = vadd.f32 0.0, %v3258
      %v3260 = vpop.f32.mrf.mxu0
      %v3261 = vadd.f32 0.0, %v3260
      %3262 = vmatmul.bf16.gmra.mxu0 %v3102
      %v3263 = vpop.f32.mrf.mxu0
      %v3264 = vadd.f32 0.0, %v3263
      %v3265 = vpop.f32.mrf.mxu0
      %v3266 = vadd.f32 0.0, %v3265
      %3267 = vdwg.mxu0
      %v3268 = vadd.f32 %v3008, %v3179
      %v3269 = vadd.f32 %v3009, %v3181
      %v3270 = vadd.f32 %v3010, %v3184
      %v3271 = vadd.f32 %v3011, %v3186
      %v3272 = vadd.f32 %v3012, %v3189
      %v3273 = vadd.f32 %v3013, %v3191
      %v3274 = vadd.f32 %v3014, %v3194
      %v3275 = vadd.f32 %v3015, %v3196
      %v3276 = vadd.f32 %v3016, %v3199
      %v3277 = vadd.f32 %v3017, %v3201
      %v3278 = vadd.f32 %v3018, %v3204
      %v3279 = vadd.f32 %v3019, %v3206
      %v3280 = vadd.f32 %v3020, %v3209
      %v3281 = vadd.f32 %v3021, %v3211
      %v3282 = vadd.f32 %v3022, %v3214
      %v3283 = vadd.f32 %v3023, %v3216
      %v3284 = vadd.f32 %v3024, %v3219
      %v3285 = vadd.f32 %v3025, %v3221
      %v3286 = vadd.f32 %v3026, %v3224
      %v3287 = vadd.f32 %v3027, %v3226
      %v3288 = vadd.f32 %v3028, %v3229
      %v3289 = vadd.f32 %v3029, %v3231
      %v3290 = vadd.f32 %v3030, %v3234
      %v3291 = vadd.f32 %v3031, %v3236
      %v3292 = vadd.f32 %v3032, %v3239
      %v3293 = vadd.f32 %v3033, %v3241
      %v3294 = vadd.f32 %v3034, %v3244
      %v3295 = vadd.f32 %v3035, %v3246
      %v3296 = vadd.f32 %v3036, %v3249
      %v3297 = vadd.f32 %v3037, %v3251
      %v3298 = vadd.f32 %v3038, %v3254
      %v3299 = vadd.f32 %v3039, %v3256
      %v3300 = vadd.f32 %v3040, %v3259
      %v3301 = vadd.f32 %v3041, %v3261
      %v3302 = vadd.f32 %v3042, %v3264
      %v3303 = vadd.f32 %v3043, %v3266
      %v3304 = vld [vmem:[%s3] sm:$0x1]
      %v3306 = vperm.slane %v3304, 0
      %v3308 = vmul.f32 %v3268, %v3306
      %v3309 = vmul.f32 %v3269, %v3306
      %v3310 = vmul.f32 %v3270, %v3306
      %v3311 = vmul.f32 %v3271, %v3306
      %v3312 = vmul.f32 %v3272, %v3306
      %v3313 = vmul.f32 %v3273, %v3306
      %v3314 = vmul.f32 %v3274, %v3306
      %v3315 = vmul.f32 %v3275, %v3306
      %v3316 = vmul.f32 %v3276, %v3306
      %v3317 = vmul.f32 %v3277, %v3306
      %v3318 = vmul.f32 %v3278, %v3306
      %v3319 = vmul.f32 %v3279, %v3306
      %v3320 = vmul.f32 %v3280, %v3306
      %v3321 = vmul.f32 %v3281, %v3306
      %v3322 = vmul.f32 %v3282, %v3306
      %v3323 = vmul.f32 %v3283, %v3306
      %v3324 = vmul.f32 %v3284, %v3306
      %v3325 = vmul.f32 %v3285, %v3306
      %v3326 = vmul.f32 %v3286, %v3306
      %v3327 = vmul.f32 %v3287, %v3306
      %v3328 = vmul.f32 %v3288, %v3306
      %v3329 = vmul.f32 %v3289, %v3306
      %v3330 = vmul.f32 %v3290, %v3306
      %v3331 = vmul.f32 %v3291, %v3306
      %v3332 = vmul.f32 %v3292, %v3306
      %v3333 = vmul.f32 %v3293, %v3306
      %v3334 = vmul.f32 %v3294, %v3306
      %v3335 = vmul.f32 %v3295, %v3306
      %v3336 = vmul.f32 %v3296, %v3306
      %v3337 = vmul.f32 %v3297, %v3306
      %v3338 = vmul.f32 %v3298, %v3306
      %v3339 = vmul.f32 %v3299, %v3306
      %v3340 = vmul.f32 %v3300, %v3306
      %v3341 = vmul.f32 %v3301, %v3306
      %v3342 = vmul.f32 %v3302, %v3306
      %v3343 = vmul.f32 %v3303, %v3306
      %v3344 = vld [vmem:[%s4] sm:$0x1]
      %v3346 = vperm.slane %v3344, 0
      %v3348 = vadd.f32 %v3308, %v3346
      %v3349 = vadd.f32 %v3309, %v3346
      %v3350 = vadd.f32 %v3310, %v3346
      %v3351 = vadd.f32 %v3311, %v3346
      %v3352 = vadd.f32 %v3312, %v3346
      %v3353 = vadd.f32 %v3313, %v3346
      %v3354 = vadd.f32 %v3314, %v3346
      %v3355 = vadd.f32 %v3315, %v3346
      %v3356 = vadd.f32 %v3316, %v3346
      %v3357 = vadd.f32 %v3317, %v3346
      %v3358 = vadd.f32 %v3318, %v3346
      %v3359 = vadd.f32 %v3319, %v3346
      %v3360 = vadd.f32 %v3320, %v3346
      %v3361 = vadd.f32 %v3321, %v3346
      %v3362 = vadd.f32 %v3322, %v3346
      %v3363 = vadd.f32 %v3323, %v3346
      %v3364 = vadd.f32 %v3324, %v3346
      %v3365 = vadd.f32 %v3325, %v3346
      %v3366 = vadd.f32 %v3326, %v3346
      %v3367 = vadd.f32 %v3327, %v3346
      %v3368 = vadd.f32 %v3328, %v3346
      %v3369 = vadd.f32 %v3329, %v3346
      %v3370 = vadd.f32 %v3330, %v3346
      %v3371 = vadd.f32 %v3331, %v3346
      %v3372 = vadd.f32 %v3332, %v3346
      %v3373 = vadd.f32 %v3333, %v3346
      %v3374 = vadd.f32 %v3334, %v3346
      %v3375 = vadd.f32 %v3335, %v3346
      %v3376 = vadd.f32 %v3336, %v3346
      %v3377 = vadd.f32 %v3337, %v3346
      %v3378 = vadd.f32 %v3338, %v3346
      %v3379 = vadd.f32 %v3339, %v3346
      %v3380 = vadd.f32 %v3340, %v3346
      %v3381 = vadd.f32 %v3341, %v3346
      %v3382 = vadd.f32 %v3342, %v3346
      %v3383 = vadd.f32 %v3343, %v3346
      %v3384 = vlaneseq
      %v3385 = vshrl.u32 %v3384, 7
      %v3386 = vadd.s32 %v3385, 8
      %v3387 = vadd.s32 %v3385, 16
      %v3388 = vadd.s32 %v3385, 24
      %v3389 = vadd.s32 %v3385, 32
      %v3390 = vadd.s32 %v3385, 40
      %v3391 = vadd.s32 %v3385, 48
      %v3392 = vadd.s32 %v3385, 56
      %v3393 = vadd.s32 %v3385, 64
      %v3394 = vadd.s32 %v3385, 72
      %v3395 = vadd.s32 %v3385, 80
      %v3396 = vadd.s32 %v3385, 88
      %v3397 = vadd.s32 %v3385, 96
      %v3398 = vadd.s32 %v3385, 104
      %v3399 = vadd.s32 %v3385, 112
      %v3400 = vadd.s32 %v3385, 120
      %v3401 = vadd.s32 %v3385, 128
      %v3402 = vadd.s32 %v3385, 136
      %v3403 = vadd.s32 %v3385, 144
      %v3404 = vadd.s32 %v3385, 152
      %v3405 = vadd.s32 %v3385, 160
      %v3406 = vadd.s32 %v3385, 168
      %v3407 = vadd.s32 %v3385, 176
      %v3408 = vadd.s32 %v3385, 184
      %v3409 = vadd.s32 %v3385, 192
      %v3410 = vadd.s32 %v3385, 200
      %v3411 = vadd.s32 %v3385, 208
      %v3412 = vadd.s32 %v3385, 216
      %v3413 = vadd.s32 %v3385, 224
      %v3414 = vadd.s32 %v3385, 232
      %v3415 = vadd.s32 %v3385, 240
      %v3416 = vadd.s32 %v3385, 248
      %v3417 = vadd.s32 %v3385, 256
      %v3418 = vadd.s32 %v3385, 264
      %v3419 = vadd.s32 %v3385, 272
      %v3420 = vadd.s32 %v3385, 280
      %vm3421 = vcmp.lt.s32.totalorder %v3385, 0
      %v3422 = vsub.s32 0, %v3385
      %v3423 = vsel %vm3421, %v3422, %v3385
      %v3424 = vand.u32 %v3423, 65535
      %v3425 = vshrl.u32 %v3423, 16
      %v3427 = vmul.u32 %v3424, 14564
      %v3428 = vmul.u32 %v3424, 58254
      %v3429 = vmul.u32 %v3425, 14564
      %v3430 = vmul.u32 %v3425, 58254
      %v3431 = vshll.u32 %v3428, 16
      %v3432 = vshrl.u32 %v3428, 16
      %v3433 = vshll.u32 %v3429, 16
      %v3434 = vshrl.u32 %v3429, 16
      %vm3435 = vc.u32 %v3427, %v3431
      %v3436 = vsel %vm3435, 1, 0
      %v3437 = vadd.s32 %v3427, %v3431
      %v3438 = vadd.s32 %v3430, %v3436
      %vm3439 = vc.u32 %v3437, %v3433
      %v3440 = vsel %vm3439, 1, 0
      %v3441 = vadd.s32 %v3437, %v3433
      %v3442 = vadd.s32 %v3438, %v3440
      %v3443 = vadd.s32 %v3442, %v3432
      %v3444 = vadd.s32 %v3443, %v3434
      %v3445 = vshrl.u32 %v3444, 4
      %v3446 = vmul.u32 %v3445, 18
      %v3447 = vsub.s32 %v3423, %v3446
      %v3448 = vsub.s32 0, %v3447
      %v3449 = vsel %vm3421, %v3448, %v3447
      %vm3450 = vcmp.lt.s32.totalorder %v3386, 0
      %v3451 = vsub.s32 0, %v3386
      %v3452 = vsel %vm3450, %v3451, %v3386
      %v3453 = vand.u32 %v3452, 65535
      %v3454 = vshrl.u32 %v3452, 16
      %v3456 = vmul.u32 %v3453, 14564
      %v3457 = vmul.u32 %v3453, 58254
      %v3458 = vmul.u32 %v3454, 14564
      %v3459 = vmul.u32 %v3454, 58254
      %v3460 = vshll.u32 %v3457, 16
      %v3461 = vshrl.u32 %v3457, 16
      %v3462 = vshll.u32 %v3458, 16
      %v3463 = vshrl.u32 %v3458, 16
      %vm3464 = vc.u32 %v3456, %v3460
      %v3465 = vsel %vm3464, 1, 0
      %v3466 = vadd.s32 %v3456, %v3460
      %v3467 = vadd.s32 %v3459, %v3465
      %vm3468 = vc.u32 %v3466, %v3462
      %v3469 = vsel %vm3468, 1, 0
      %v3470 = vadd.s32 %v3466, %v3462
      %v3471 = vadd.s32 %v3467, %v3469
      %v3472 = vadd.s32 %v3471, %v3461
      %v3473 = vadd.s32 %v3472, %v3463
      %v3474 = vshrl.u32 %v3473, 4
      %v3475 = vmul.u32 %v3474, 18
      %v3476 = vsub.s32 %v3452, %v3475
      %v3477 = vsub.s32 0, %v3476
      %v3478 = vsel %vm3450, %v3477, %v3476
      %vm3479 = vcmp.lt.s32.totalorder %v3387, 0
      %v3480 = vsub.s32 0, %v3387
      %v3481 = vsel %vm3479, %v3480, %v3387
      %v3482 = vand.u32 %v3481, 65535
      %v3483 = vshrl.u32 %v3481, 16
      %v3485 = vmul.u32 %v3482, 14564
      %v3486 = vmul.u32 %v3482, 58254
      %v3487 = vmul.u32 %v3483, 14564
      %v3488 = vmul.u32 %v3483, 58254
      %v3489 = vshll.u32 %v3486, 16
      %v3490 = vshrl.u32 %v3486, 16
      %v3491 = vshll.u32 %v3487, 16
      %v3492 = vshrl.u32 %v3487, 16
      %vm3493 = vc.u32 %v3485, %v3489
      %v3494 = vsel %vm3493, 1, 0
      %v3495 = vadd.s32 %v3485, %v3489
      %v3496 = vadd.s32 %v3488, %v3494
      %vm3497 = vc.u32 %v3495, %v3491
      %v3498 = vsel %vm3497, 1, 0
      %v3499 = vadd.s32 %v3495, %v3491
      %v3500 = vadd.s32 %v3496, %v3498
      %v3501 = vadd.s32 %v3500, %v3490
      %v3502 = vadd.s32 %v3501, %v3492
      %v3503 = vshrl.u32 %v3502, 4
      %v3504 = vmul.u32 %v3503, 18
      %v3505 = vsub.s32 %v3481, %v3504
      %v3506 = vsub.s32 0, %v3505
      %v3507 = vsel %vm3479, %v3506, %v3505
      %vm3508 = vcmp.lt.s32.totalorder %v3388, 0
      %v3509 = vsub.s32 0, %v3388
      %v3510 = vsel %vm3508, %v3509, %v3388
      %v3511 = vand.u32 %v3510, 65535
      %v3512 = vshrl.u32 %v3510, 16
      %v3514 = vmul.u32 %v3511, 14564
      %v3515 = vmul.u32 %v3511, 58254
      %v3516 = vmul.u32 %v3512, 14564
      %v3517 = vmul.u32 %v3512, 58254
      %v3518 = vshll.u32 %v3515, 16
      %v3519 = vshrl.u32 %v3515, 16
      %v3520 = vshll.u32 %v3516, 16
      %v3521 = vshrl.u32 %v3516, 16
      %vm3522 = vc.u32 %v3514, %v3518
      %v3523 = vsel %vm3522, 1, 0
      %v3524 = vadd.s32 %v3514, %v3518
      %v3525 = vadd.s32 %v3517, %v3523
      %vm3526 = vc.u32 %v3524, %v3520
      %v3527 = vsel %vm3526, 1, 0
      %v3528 = vadd.s32 %v3524, %v3520
      %v3529 = vadd.s32 %v3525, %v3527
      %v3530 = vadd.s32 %v3529, %v3519
      %v3531 = vadd.s32 %v3530, %v3521
      %v3532 = vshrl.u32 %v3531, 4
      %v3533 = vmul.u32 %v3532, 18
      %v3534 = vsub.s32 %v3510, %v3533
      %v3535 = vsub.s32 0, %v3534
      %v3536 = vsel %vm3508, %v3535, %v3534
      %vm3537 = vcmp.lt.s32.totalorder %v3389, 0
      %v3538 = vsub.s32 0, %v3389
      %v3539 = vsel %vm3537, %v3538, %v3389
      %v3540 = vand.u32 %v3539, 65535
      %v3541 = vshrl.u32 %v3539, 16
      %v3543 = vmul.u32 %v3540, 14564
      %v3544 = vmul.u32 %v3540, 58254
      %v3545 = vmul.u32 %v3541, 14564
      %v3546 = vmul.u32 %v3541, 58254
      %v3547 = vshll.u32 %v3544, 16
      %v3548 = vshrl.u32 %v3544, 16
      %v3549 = vshll.u32 %v3545, 16
      %v3550 = vshrl.u32 %v3545, 16
      %vm3551 = vc.u32 %v3543, %v3547
      %v3552 = vsel %vm3551, 1, 0
      %v3553 = vadd.s32 %v3543, %v3547
      %v3554 = vadd.s32 %v3546, %v3552
      %vm3555 = vc.u32 %v3553, %v3549
      %v3556 = vsel %vm3555, 1, 0
      %v3557 = vadd.s32 %v3553, %v3549
      %v3558 = vadd.s32 %v3554, %v3556
      %v3559 = vadd.s32 %v3558, %v3548
      %v3560 = vadd.s32 %v3559, %v3550
      %v3561 = vshrl.u32 %v3560, 4
      %v3562 = vmul.u32 %v3561, 18
      %v3563 = vsub.s32 %v3539, %v3562
      %v3564 = vsub.s32 0, %v3563
      %v3565 = vsel %vm3537, %v3564, %v3563
      %vm3566 = vcmp.lt.s32.totalorder %v3390, 0
      %v3567 = vsub.s32 0, %v3390
      %v3568 = vsel %vm3566, %v3567, %v3390
      %v3569 = vand.u32 %v3568, 65535
      %v3570 = vshrl.u32 %v3568, 16
      %v3572 = vmul.u32 %v3569, 14564
      %v3573 = vmul.u32 %v3569, 58254
      %v3574 = vmul.u32 %v3570, 14564
      %v3575 = vmul.u32 %v3570, 58254
      %v3576 = vshll.u32 %v3573, 16
      %v3577 = vshrl.u32 %v3573, 16
      %v3578 = vshll.u32 %v3574, 16
      %v3579 = vshrl.u32 %v3574, 16
      %vm3580 = vc.u32 %v3572, %v3576
      %v3581 = vsel %vm3580, 1, 0
      %v3582 = vadd.s32 %v3572, %v3576
      %v3583 = vadd.s32 %v3575, %v3581
      %vm3584 = vc.u32 %v3582, %v3578
      %v3585 = vsel %vm3584, 1, 0
      %v3586 = vadd.s32 %v3582, %v3578
      %v3587 = vadd.s32 %v3583, %v3585
      %v3588 = vadd.s32 %v3587, %v3577
      %v3589 = vadd.s32 %v3588, %v3579
      %v3590 = vshrl.u32 %v3589, 4
      %v3591 = vmul.u32 %v3590, 18
      %v3592 = vsub.s32 %v3568, %v3591
      %v3593 = vsub.s32 0, %v3592
      %v3594 = vsel %vm3566, %v3593, %v3592
      %vm3595 = vcmp.lt.s32.totalorder %v3391, 0
      %v3596 = vsub.s32 0, %v3391
      %v3597 = vsel %vm3595, %v3596, %v3391
      %v3598 = vand.u32 %v3597, 65535
      %v3599 = vshrl.u32 %v3597, 16
      %v3601 = vmul.u32 %v3598, 14564
      %v3602 = vmul.u32 %v3598, 58254
      %v3603 = vmul.u32 %v3599, 14564
      %v3604 = vmul.u32 %v3599, 58254
      %v3605 = vshll.u32 %v3602, 16
      %v3606 = vshrl.u32 %v3602, 16
      %v3607 = vshll.u32 %v3603, 16
      %v3608 = vshrl.u32 %v3603, 16
      %vm3609 = vc.u32 %v3601, %v3605
      %v3610 = vsel %vm3609, 1, 0
      %v3611 = vadd.s32 %v3601, %v3605
      %v3612 = vadd.s32 %v3604, %v3610
      %vm3613 = vc.u32 %v3611, %v3607
      %v3614 = vsel %vm3613, 1, 0
      %v3615 = vadd.s32 %v3611, %v3607
      %v3616 = vadd.s32 %v3612, %v3614
      %v3617 = vadd.s32 %v3616, %v3606
      %v3618 = vadd.s32 %v3617, %v3608
      %v3619 = vshrl.u32 %v3618, 4
      %v3620 = vmul.u32 %v3619, 18
      %v3621 = vsub.s32 %v3597, %v3620
      %v3622 = vsub.s32 0, %v3621
      %v3623 = vsel %vm3595, %v3622, %v3621
      %vm3624 = vcmp.lt.s32.totalorder %v3392, 0
      %v3625 = vsub.s32 0, %v3392
      %v3626 = vsel %vm3624, %v3625, %v3392
      %v3627 = vand.u32 %v3626, 65535
      %v3628 = vshrl.u32 %v3626, 16
      %v3630 = vmul.u32 %v3627, 14564
      %v3631 = vmul.u32 %v3627, 58254
      %v3632 = vmul.u32 %v3628, 14564
      %v3633 = vmul.u32 %v3628, 58254
      %v3634 = vshll.u32 %v3631, 16
      %v3635 = vshrl.u32 %v3631, 16
      %v3636 = vshll.u32 %v3632, 16
      %v3637 = vshrl.u32 %v3632, 16
      %vm3638 = vc.u32 %v3630, %v3634
      %v3639 = vsel %vm3638, 1, 0
      %v3640 = vadd.s32 %v3630, %v3634
      %v3641 = vadd.s32 %v3633, %v3639
      %vm3642 = vc.u32 %v3640, %v3636
      %v3643 = vsel %vm3642, 1, 0
      %v3644 = vadd.s32 %v3640, %v3636
      %v3645 = vadd.s32 %v3641, %v3643
      %v3646 = vadd.s32 %v3645, %v3635
      %v3647 = vadd.s32 %v3646, %v3637
      %v3648 = vshrl.u32 %v3647, 4
      %v3649 = vmul.u32 %v3648, 18
      %v3650 = vsub.s32 %v3626, %v3649
      %v3651 = vsub.s32 0, %v3650
      %v3652 = vsel %vm3624, %v3651, %v3650
      %vm3653 = vcmp.lt.s32.totalorder %v3393, 0
      %v3654 = vsub.s32 0, %v3393
      %v3655 = vsel %vm3653, %v3654, %v3393
      %v3656 = vand.u32 %v3655, 65535
      %v3657 = vshrl.u32 %v3655, 16
      %v3659 = vmul.u32 %v3656, 14564
      %v3660 = vmul.u32 %v3656, 58254
      %v3661 = vmul.u32 %v3657, 14564
      %v3662 = vmul.u32 %v3657, 58254
      %v3663 = vshll.u32 %v3660, 16
      %v3664 = vshrl.u32 %v3660, 16
      %v3665 = vshll.u32 %v3661, 16
      %v3666 = vshrl.u32 %v3661, 16
      %vm3667 = vc.u32 %v3659, %v3663
      %v3668 = vsel %vm3667, 1, 0
      %v3669 = vadd.s32 %v3659, %v3663
      %v3670 = vadd.s32 %v3662, %v3668
      %vm3671 = vc.u32 %v3669, %v3665
      %v3672 = vsel %vm3671, 1, 0
      %v3673 = vadd.s32 %v3669, %v3665
      %v3674 = vadd.s32 %v3670, %v3672
      %v3675 = vadd.s32 %v3674, %v3664
      %v3676 = vadd.s32 %v3675, %v3666
      %v3677 = vshrl.u32 %v3676, 4
      %v3678 = vmul.u32 %v3677, 18
      %v3679 = vsub.s32 %v3655, %v3678
      %v3680 = vsub.s32 0, %v3679
      %v3681 = vsel %vm3653, %v3680, %v3679
      %vm3682 = vcmp.lt.s32.totalorder %v3394, 0
      %v3683 = vsub.s32 0, %v3394
      %v3684 = vsel %vm3682, %v3683, %v3394
      %v3685 = vand.u32 %v3684, 65535
      %v3686 = vshrl.u32 %v3684, 16
      %v3688 = vmul.u32 %v3685, 14564
      %v3689 = vmul.u32 %v3685, 58254
      %v3690 = vmul.u32 %v3686, 14564
      %v3691 = vmul.u32 %v3686, 58254
      %v3692 = vshll.u32 %v3689, 16
      %v3693 = vshrl.u32 %v3689, 16
      %v3694 = vshll.u32 %v3690, 16
      %v3695 = vshrl.u32 %v3690, 16
      %vm3696 = vc.u32 %v3688, %v3692
      %v3697 = vsel %vm3696, 1, 0
      %v3698 = vadd.s32 %v3688, %v3692
      %v3699 = vadd.s32 %v3691, %v3697
      %vm3700 = vc.u32 %v3698, %v3694
      %v3701 = vsel %vm3700, 1, 0
      %v3702 = vadd.s32 %v3698, %v3694
      %v3703 = vadd.s32 %v3699, %v3701
      %v3704 = vadd.s32 %v3703, %v3693
      %v3705 = vadd.s32 %v3704, %v3695
      %v3706 = vshrl.u32 %v3705, 4
      %v3707 = vmul.u32 %v3706, 18
      %v3708 = vsub.s32 %v3684, %v3707
      %v3709 = vsub.s32 0, %v3708
      %v3710 = vsel %vm3682, %v3709, %v3708
      %vm3711 = vcmp.lt.s32.totalorder %v3395, 0
      %v3712 = vsub.s32 0, %v3395
      %v3713 = vsel %vm3711, %v3712, %v3395
      %v3714 = vand.u32 %v3713, 65535
      %v3715 = vshrl.u32 %v3713, 16
      %v3717 = vmul.u32 %v3714, 14564
      %v3718 = vmul.u32 %v3714, 58254
      %v3719 = vmul.u32 %v3715, 14564
      %v3720 = vmul.u32 %v3715, 58254
      %v3721 = vshll.u32 %v3718, 16
      %v3722 = vshrl.u32 %v3718, 16
      %v3723 = vshll.u32 %v3719, 16
      %v3724 = vshrl.u32 %v3719, 16
      %vm3725 = vc.u32 %v3717, %v3721
      %v3726 = vsel %vm3725, 1, 0
      %v3727 = vadd.s32 %v3717, %v3721
      %v3728 = vadd.s32 %v3720, %v3726
      %vm3729 = vc.u32 %v3727, %v3723
      %v3730 = vsel %vm3729, 1, 0
      %v3731 = vadd.s32 %v3727, %v3723
      %v3732 = vadd.s32 %v3728, %v3730
      %v3733 = vadd.s32 %v3732, %v3722
      %v3734 = vadd.s32 %v3733, %v3724
      %v3735 = vshrl.u32 %v3734, 4
      %v3736 = vmul.u32 %v3735, 18
      %v3737 = vsub.s32 %v3713, %v3736
      %v3738 = vsub.s32 0, %v3737
      %v3739 = vsel %vm3711, %v3738, %v3737
      %vm3740 = vcmp.lt.s32.totalorder %v3396, 0
      %v3741 = vsub.s32 0, %v3396
      %v3742 = vsel %vm3740, %v3741, %v3396
      %v3743 = vand.u32 %v3742, 65535
      %v3744 = vshrl.u32 %v3742, 16
      %v3746 = vmul.u32 %v3743, 14564
      %v3747 = vmul.u32 %v3743, 58254
      %v3748 = vmul.u32 %v3744, 14564
      %v3749 = vmul.u32 %v3744, 58254
      %v3750 = vshll.u32 %v3747, 16
      %v3751 = vshrl.u32 %v3747, 16
      %v3752 = vshll.u32 %v3748, 16
      %v3753 = vshrl.u32 %v3748, 16
      %vm3754 = vc.u32 %v3746, %v3750
      %v3755 = vsel %vm3754, 1, 0
      %v3756 = vadd.s32 %v3746, %v3750
      %v3757 = vadd.s32 %v3749, %v3755
      %vm3758 = vc.u32 %v3756, %v3752
      %v3759 = vsel %vm3758, 1, 0
      %v3760 = vadd.s32 %v3756, %v3752
      %v3761 = vadd.s32 %v3757, %v3759
      %v3762 = vadd.s32 %v3761, %v3751
      %v3763 = vadd.s32 %v3762, %v3753
      %v3764 = vshrl.u32 %v3763, 4
      %v3765 = vmul.u32 %v3764, 18
      %v3766 = vsub.s32 %v3742, %v3765
      %v3767 = vsub.s32 0, %v3766
      %v3768 = vsel %vm3740, %v3767, %v3766
      %vm3769 = vcmp.lt.s32.totalorder %v3397, 0
      %v3770 = vsub.s32 0, %v3397
      %v3771 = vsel %vm3769, %v3770, %v3397
      %v3772 = vand.u32 %v3771, 65535
      %v3773 = vshrl.u32 %v3771, 16
      %v3775 = vmul.u32 %v3772, 14564
      %v3776 = vmul.u32 %v3772, 58254
      %v3777 = vmul.u32 %v3773, 14564
      %v3778 = vmul.u32 %v3773, 58254
      %v3779 = vshll.u32 %v3776, 16
      %v3780 = vshrl.u32 %v3776, 16
      %v3781 = vshll.u32 %v3777, 16
      %v3782 = vshrl.u32 %v3777, 16
      %vm3783 = vc.u32 %v3775, %v3779
      %v3784 = vsel %vm3783, 1, 0
      %v3785 = vadd.s32 %v3775, %v3779
      %v3786 = vadd.s32 %v3778, %v3784
      %vm3787 = vc.u32 %v3785, %v3781
      %v3788 = vsel %vm3787, 1, 0
      %v3789 = vadd.s32 %v3785, %v3781
      %v3790 = vadd.s32 %v3786, %v3788
      %v3791 = vadd.s32 %v3790, %v3780
      %v3792 = vadd.s32 %v3791, %v3782
      %v3793 = vshrl.u32 %v3792, 4
      %v3794 = vmul.u32 %v3793, 18
      %v3795 = vsub.s32 %v3771, %v3794
      %v3796 = vsub.s32 0, %v3795
      %v3797 = vsel %vm3769, %v3796, %v3795
      %vm3798 = vcmp.lt.s32.totalorder %v3398, 0
      %v3799 = vsub.s32 0, %v3398
      %v3800 = vsel %vm3798, %v3799, %v3398
      %v3801 = vand.u32 %v3800, 65535
      %v3802 = vshrl.u32 %v3800, 16
      %v3804 = vmul.u32 %v3801, 14564
      %v3805 = vmul.u32 %v3801, 58254
      %v3806 = vmul.u32 %v3802, 14564
      %v3807 = vmul.u32 %v3802, 58254
      %v3808 = vshll.u32 %v3805, 16
      %v3809 = vshrl.u32 %v3805, 16
      %v3810 = vshll.u32 %v3806, 16
      %v3811 = vshrl.u32 %v3806, 16
      %vm3812 = vc.u32 %v3804, %v3808
      %v3813 = vsel %vm3812, 1, 0
      %v3814 = vadd.s32 %v3804, %v3808
      %v3815 = vadd.s32 %v3807, %v3813
      %vm3816 = vc.u32 %v3814, %v3810
      %v3817 = vsel %vm3816, 1, 0
      %v3818 = vadd.s32 %v3814, %v3810
      %v3819 = vadd.s32 %v3815, %v3817
      %v3820 = vadd.s32 %v3819, %v3809
      %v3821 = vadd.s32 %v3820, %v3811
      %v3822 = vshrl.u32 %v3821, 4
      %v3823 = vmul.u32 %v3822, 18
      %v3824 = vsub.s32 %v3800, %v3823
      %v3825 = vsub.s32 0, %v3824
      %v3826 = vsel %vm3798, %v3825, %v3824
      %vm3827 = vcmp.lt.s32.totalorder %v3399, 0
      %v3828 = vsub.s32 0, %v3399
      %v3829 = vsel %vm3827, %v3828, %v3399
      %v3830 = vand.u32 %v3829, 65535
      %v3831 = vshrl.u32 %v3829, 16
      %v3833 = vmul.u32 %v3830, 14564
      %v3834 = vmul.u32 %v3830, 58254
      %v3835 = vmul.u32 %v3831, 14564
      %v3836 = vmul.u32 %v3831, 58254
      %v3837 = vshll.u32 %v3834, 16
      %v3838 = vshrl.u32 %v3834, 16
      %v3839 = vshll.u32 %v3835, 16
      %v3840 = vshrl.u32 %v3835, 16
      %vm3841 = vc.u32 %v3833, %v3837
      %v3842 = vsel %vm3841, 1, 0
      %v3843 = vadd.s32 %v3833, %v3837
      %v3844 = vadd.s32 %v3836, %v3842
      %vm3845 = vc.u32 %v3843, %v3839
      %v3846 = vsel %vm3845, 1, 0
      %v3847 = vadd.s32 %v3843, %v3839
      %v3848 = vadd.s32 %v3844, %v3846
      %v3849 = vadd.s32 %v3848, %v3838
      %v3850 = vadd.s32 %v3849, %v3840
      %v3851 = vshrl.u32 %v3850, 4
      %v3852 = vmul.u32 %v3851, 18
      %v3853 = vsub.s32 %v3829, %v3852
      %v3854 = vsub.s32 0, %v3853
      %v3855 = vsel %vm3827, %v3854, %v3853
      %vm3856 = vcmp.lt.s32.totalorder %v3400, 0
      %v3857 = vsub.s32 0, %v3400
      %v3858 = vsel %vm3856, %v3857, %v3400
      %v3859 = vand.u32 %v3858, 65535
      %v3860 = vshrl.u32 %v3858, 16
      %v3862 = vmul.u32 %v3859, 14564
      %v3863 = vmul.u32 %v3859, 58254
      %v3864 = vmul.u32 %v3860, 14564
      %v3865 = vmul.u32 %v3860, 58254
      %v3866 = vshll.u32 %v3863, 16
      %v3867 = vshrl.u32 %v3863, 16
      %v3868 = vshll.u32 %v3864, 16
      %v3869 = vshrl.u32 %v3864, 16
      %vm3870 = vc.u32 %v3862, %v3866
      %v3871 = vsel %vm3870, 1, 0
      %v3872 = vadd.s32 %v3862, %v3866
      %v3873 = vadd.s32 %v3865, %v3871
      %vm3874 = vc.u32 %v3872, %v3868
      %v3875 = vsel %vm3874, 1, 0
      %v3876 = vadd.s32 %v3872, %v3868
      %v3877 = vadd.s32 %v3873, %v3875
      %v3878 = vadd.s32 %v3877, %v3867
      %v3879 = vadd.s32 %v3878, %v3869
      %v3880 = vshrl.u32 %v3879, 4
      %v3881 = vmul.u32 %v3880, 18
      %v3882 = vsub.s32 %v3858, %v3881
      %v3883 = vsub.s32 0, %v3882
      %v3884 = vsel %vm3856, %v3883, %v3882
      %vm3885 = vcmp.lt.s32.totalorder %v3401, 0
      %v3886 = vsub.s32 0, %v3401
      %v3887 = vsel %vm3885, %v3886, %v3401
      %v3888 = vand.u32 %v3887, 65535
      %v3889 = vshrl.u32 %v3887, 16
      %v3891 = vmul.u32 %v3888, 14564
      %v3892 = vmul.u32 %v3888, 58254
      %v3893 = vmul.u32 %v3889, 14564
      %v3894 = vmul.u32 %v3889, 58254
      %v3895 = vshll.u32 %v3892, 16
      %v3896 = vshrl.u32 %v3892, 16
      %v3897 = vshll.u32 %v3893, 16
      %v3898 = vshrl.u32 %v3893, 16
      %vm3899 = vc.u32 %v3891, %v3895
      %v3900 = vsel %vm3899, 1, 0
      %v3901 = vadd.s32 %v3891, %v3895
      %v3902 = vadd.s32 %v3894, %v3900
      %vm3903 = vc.u32 %v3901, %v3897
      %v3904 = vsel %vm3903, 1, 0
      %v3905 = vadd.s32 %v3901, %v3897
      %v3906 = vadd.s32 %v3902, %v3904
      %v3907 = vadd.s32 %v3906, %v3896
      %v3908 = vadd.s32 %v3907, %v3898
      %v3909 = vshrl.u32 %v3908, 4
      %v3910 = vmul.u32 %v3909, 18
      %v3911 = vsub.s32 %v3887, %v3910
      %v3912 = vsub.s32 0, %v3911
      %v3913 = vsel %vm3885, %v3912, %v3911
      %vm3914 = vcmp.lt.s32.totalorder %v3402, 0
      %v3915 = vsub.s32 0, %v3402
      %v3916 = vsel %vm3914, %v3915, %v3402
      %v3917 = vand.u32 %v3916, 65535
      %v3918 = vshrl.u32 %v3916, 16
      %v3920 = vmul.u32 %v3917, 14564
      %v3921 = vmul.u32 %v3917, 58254
      %v3922 = vmul.u32 %v3918, 14564
      %v3923 = vmul.u32 %v3918, 58254
      %v3924 = vshll.u32 %v3921, 16
      %v3925 = vshrl.u32 %v3921, 16
      %v3926 = vshll.u32 %v3922, 16
      %v3927 = vshrl.u32 %v3922, 16
      %vm3928 = vc.u32 %v3920, %v3924
      %v3929 = vsel %vm3928, 1, 0
      %v3930 = vadd.s32 %v3920, %v3924
      %v3931 = vadd.s32 %v3923, %v3929
      %vm3932 = vc.u32 %v3930, %v3926
      %v3933 = vsel %vm3932, 1, 0
      %v3934 = vadd.s32 %v3930, %v3926
      %v3935 = vadd.s32 %v3931, %v3933
      %v3936 = vadd.s32 %v3935, %v3925
      %v3937 = vadd.s32 %v3936, %v3927
      %v3938 = vshrl.u32 %v3937, 4
      %v3939 = vmul.u32 %v3938, 18
      %v3940 = vsub.s32 %v3916, %v3939
      %v3941 = vsub.s32 0, %v3940
      %v3942 = vsel %vm3914, %v3941, %v3940
      %vm3943 = vcmp.lt.s32.totalorder %v3403, 0
      %v3944 = vsub.s32 0, %v3403
      %v3945 = vsel %vm3943, %v3944, %v3403
      %v3946 = vand.u32 %v3945, 65535
      %v3947 = vshrl.u32 %v3945, 16
      %v3949 = vmul.u32 %v3946, 14564
      %v3950 = vmul.u32 %v3946, 58254
      %v3951 = vmul.u32 %v3947, 14564
      %v3952 = vmul.u32 %v3947, 58254
      %v3953 = vshll.u32 %v3950, 16
      %v3954 = vshrl.u32 %v3950, 16
      %v3955 = vshll.u32 %v3951, 16
      %v3956 = vshrl.u32 %v3951, 16
      %vm3957 = vc.u32 %v3949, %v3953
      %v3958 = vsel %vm3957, 1, 0
      %v3959 = vadd.s32 %v3949, %v3953
      %v3960 = vadd.s32 %v3952, %v3958
      %vm3961 = vc.u32 %v3959, %v3955
      %v3962 = vsel %vm3961, 1, 0
      %v3963 = vadd.s32 %v3959, %v3955
      %v3964 = vadd.s32 %v3960, %v3962
      %v3965 = vadd.s32 %v3964, %v3954
      %v3966 = vadd.s32 %v3965, %v3956
      %v3967 = vshrl.u32 %v3966, 4
      %v3968 = vmul.u32 %v3967, 18
      %v3969 = vsub.s32 %v3945, %v3968
      %v3970 = vsub.s32 0, %v3969
      %v3971 = vsel %vm3943, %v3970, %v3969
      %vm3972 = vcmp.lt.s32.totalorder %v3404, 0
      %v3973 = vsub.s32 0, %v3404
      %v3974 = vsel %vm3972, %v3973, %v3404
      %v3975 = vand.u32 %v3974, 65535
      %v3976 = vshrl.u32 %v3974, 16
      %v3978 = vmul.u32 %v3975, 14564
      %v3979 = vmul.u32 %v3975, 58254
      %v3980 = vmul.u32 %v3976, 14564
      %v3981 = vmul.u32 %v3976, 58254
      %v3982 = vshll.u32 %v3979, 16
      %v3983 = vshrl.u32 %v3979, 16
      %v3984 = vshll.u32 %v3980, 16
      %v3985 = vshrl.u32 %v3980, 16
      %vm3986 = vc.u32 %v3978, %v3982
      %v3987 = vsel %vm3986, 1, 0
      %v3988 = vadd.s32 %v3978, %v3982
      %v3989 = vadd.s32 %v3981, %v3987
      %vm3990 = vc.u32 %v3988, %v3984
      %v3991 = vsel %vm3990, 1, 0
      %v3992 = vadd.s32 %v3988, %v3984
      %v3993 = vadd.s32 %v3989, %v3991
      %v3994 = vadd.s32 %v3993, %v3983
      %v3995 = vadd.s32 %v3994, %v3985
      %v3996 = vshrl.u32 %v3995, 4
      %v3997 = vmul.u32 %v3996, 18
      %v3998 = vsub.s32 %v3974, %v3997
      %v3999 = vsub.s32 0, %v3998
      %v4000 = vsel %vm3972, %v3999, %v3998
      %vm4001 = vcmp.lt.s32.totalorder %v3405, 0
      %v4002 = vsub.s32 0, %v3405
      %v4003 = vsel %vm4001, %v4002, %v3405
      %v4004 = vand.u32 %v4003, 65535
      %v4005 = vshrl.u32 %v4003, 16
      %v4007 = vmul.u32 %v4004, 14564
      %v4008 = vmul.u32 %v4004, 58254
      %v4009 = vmul.u32 %v4005, 14564
      %v4010 = vmul.u32 %v4005, 58254
      %v4011 = vshll.u32 %v4008, 16
      %v4012 = vshrl.u32 %v4008, 16
      %v4013 = vshll.u32 %v4009, 16
      %v4014 = vshrl.u32 %v4009, 16
      %vm4015 = vc.u32 %v4007, %v4011
      %v4016 = vsel %vm4015, 1, 0
      %v4017 = vadd.s32 %v4007, %v4011
      %v4018 = vadd.s32 %v4010, %v4016
      %vm4019 = vc.u32 %v4017, %v4013
      %v4020 = vsel %vm4019, 1, 0
      %v4021 = vadd.s32 %v4017, %v4013
      %v4022 = vadd.s32 %v4018, %v4020
      %v4023 = vadd.s32 %v4022, %v4012
      %v4024 = vadd.s32 %v4023, %v4014
      %v4025 = vshrl.u32 %v4024, 4
      %v4026 = vmul.u32 %v4025, 18
      %v4027 = vsub.s32 %v4003, %v4026
      %v4028 = vsub.s32 0, %v4027
      %v4029 = vsel %vm4001, %v4028, %v4027
      %vm4030 = vcmp.lt.s32.totalorder %v3406, 0
      %v4031 = vsub.s32 0, %v3406
      %v4032 = vsel %vm4030, %v4031, %v3406
      %v4033 = vand.u32 %v4032, 65535
      %v4034 = vshrl.u32 %v4032, 16
      %v4036 = vmul.u32 %v4033, 14564
      %v4037 = vmul.u32 %v4033, 58254
      %v4038 = vmul.u32 %v4034, 14564
      %v4039 = vmul.u32 %v4034, 58254
      %v4040 = vshll.u32 %v4037, 16
      %v4041 = vshrl.u32 %v4037, 16
      %v4042 = vshll.u32 %v4038, 16
      %v4043 = vshrl.u32 %v4038, 16
      %vm4044 = vc.u32 %v4036, %v4040
      %v4045 = vsel %vm4044, 1, 0
      %v4046 = vadd.s32 %v4036, %v4040
      %v4047 = vadd.s32 %v4039, %v4045
      %vm4048 = vc.u32 %v4046, %v4042
      %v4049 = vsel %vm4048, 1, 0
      %v4050 = vadd.s32 %v4046, %v4042
      %v4051 = vadd.s32 %v4047, %v4049
      %v4052 = vadd.s32 %v4051, %v4041
      %v4053 = vadd.s32 %v4052, %v4043
      %v4054 = vshrl.u32 %v4053, 4
      %v4055 = vmul.u32 %v4054, 18
      %v4056 = vsub.s32 %v4032, %v4055
      %v4057 = vsub.s32 0, %v4056
      %v4058 = vsel %vm4030, %v4057, %v4056
      %vm4059 = vcmp.lt.s32.totalorder %v3407, 0
      %v4060 = vsub.s32 0, %v3407
      %v4061 = vsel %vm4059, %v4060, %v3407
      %v4062 = vand.u32 %v4061, 65535
      %v4063 = vshrl.u32 %v4061, 16
      %v4065 = vmul.u32 %v4062, 14564
      %v4066 = vmul.u32 %v4062, 58254
      %v4067 = vmul.u32 %v4063, 14564
      %v4068 = vmul.u32 %v4063, 58254
      %v4069 = vshll.u32 %v4066, 16
      %v4070 = vshrl.u32 %v4066, 16
      %v4071 = vshll.u32 %v4067, 16
      %v4072 = vshrl.u32 %v4067, 16
      %vm4073 = vc.u32 %v4065, %v4069
      %v4074 = vsel %vm4073, 1, 0
      %v4075 = vadd.s32 %v4065, %v4069
      %v4076 = vadd.s32 %v4068, %v4074
      %vm4077 = vc.u32 %v4075, %v4071
      %v4078 = vsel %vm4077, 1, 0
      %v4079 = vadd.s32 %v4075, %v4071
      %v4080 = vadd.s32 %v4076, %v4078
      %v4081 = vadd.s32 %v4080, %v4070
      %v4082 = vadd.s32 %v4081, %v4072
      %v4083 = vshrl.u32 %v4082, 4
      %v4084 = vmul.u32 %v4083, 18
      %v4085 = vsub.s32 %v4061, %v4084
      %v4086 = vsub.s32 0, %v4085
      %v4087 = vsel %vm4059, %v4086, %v4085
      %vm4088 = vcmp.lt.s32.totalorder %v3408, 0
      %v4089 = vsub.s32 0, %v3408
      %v4090 = vsel %vm4088, %v4089, %v3408
      %v4091 = vand.u32 %v4090, 65535
      %v4092 = vshrl.u32 %v4090, 16
      %v4094 = vmul.u32 %v4091, 14564
      %v4095 = vmul.u32 %v4091, 58254
      %v4096 = vmul.u32 %v4092, 14564
      %v4097 = vmul.u32 %v4092, 58254
      %v4098 = vshll.u32 %v4095, 16
      %v4099 = vshrl.u32 %v4095, 16
      %v4100 = vshll.u32 %v4096, 16
      %v4101 = vshrl.u32 %v4096, 16
      %vm4102 = vc.u32 %v4094, %v4098
      %v4103 = vsel %vm4102, 1, 0
      %v4104 = vadd.s32 %v4094, %v4098
      %v4105 = vadd.s32 %v4097, %v4103
      %vm4106 = vc.u32 %v4104, %v4100
      %v4107 = vsel %vm4106, 1, 0
      %v4108 = vadd.s32 %v4104, %v4100
      %v4109 = vadd.s32 %v4105, %v4107
      %v4110 = vadd.s32 %v4109, %v4099
      %v4111 = vadd.s32 %v4110, %v4101
      %v4112 = vshrl.u32 %v4111, 4
      %v4113 = vmul.u32 %v4112, 18
      %v4114 = vsub.s32 %v4090, %v4113
      %v4115 = vsub.s32 0, %v4114
      %v4116 = vsel %vm4088, %v4115, %v4114
      %vm4117 = vcmp.lt.s32.totalorder %v3409, 0
      %v4118 = vsub.s32 0, %v3409
      %v4119 = vsel %vm4117, %v4118, %v3409
      %v4120 = vand.u32 %v4119, 65535
      %v4121 = vshrl.u32 %v4119, 16
      %v4123 = vmul.u32 %v4120, 14564
      %v4124 = vmul.u32 %v4120, 58254
      %v4125 = vmul.u32 %v4121, 14564
      %v4126 = vmul.u32 %v4121, 58254
      %v4127 = vshll.u32 %v4124, 16
      %v4128 = vshrl.u32 %v4124, 16
      %v4129 = vshll.u32 %v4125, 16
      %v4130 = vshrl.u32 %v4125, 16
      %vm4131 = vc.u32 %v4123, %v4127
      %v4132 = vsel %vm4131, 1, 0
      %v4133 = vadd.s32 %v4123, %v4127
      %v4134 = vadd.s32 %v4126, %v4132
      %vm4135 = vc.u32 %v4133, %v4129
      %v4136 = vsel %vm4135, 1, 0
      %v4137 = vadd.s32 %v4133, %v4129
      %v4138 = vadd.s32 %v4134, %v4136
      %v4139 = vadd.s32 %v4138, %v4128
      %v4140 = vadd.s32 %v4139, %v4130
      %v4141 = vshrl.u32 %v4140, 4
      %v4142 = vmul.u32 %v4141, 18
      %v4143 = vsub.s32 %v4119, %v4142
      %v4144 = vsub.s32 0, %v4143
      %v4145 = vsel %vm4117, %v4144, %v4143
      %vm4146 = vcmp.lt.s32.totalorder %v3410, 0
      %v4147 = vsub.s32 0, %v3410
      %v4148 = vsel %vm4146, %v4147, %v3410
      %v4149 = vand.u32 %v4148, 65535
      %v4150 = vshrl.u32 %v4148, 16
      %v4152 = vmul.u32 %v4149, 14564
      %v4153 = vmul.u32 %v4149, 58254
      %v4154 = vmul.u32 %v4150, 14564
      %v4155 = vmul.u32 %v4150, 58254
      %v4156 = vshll.u32 %v4153, 16
      %v4157 = vshrl.u32 %v4153, 16
      %v4158 = vshll.u32 %v4154, 16
      %v4159 = vshrl.u32 %v4154, 16
      %vm4160 = vc.u32 %v4152, %v4156
      %v4161 = vsel %vm4160, 1, 0
      %v4162 = vadd.s32 %v4152, %v4156
      %v4163 = vadd.s32 %v4155, %v4161
      %vm4164 = vc.u32 %v4162, %v4158
      %v4165 = vsel %vm4164, 1, 0
      %v4166 = vadd.s32 %v4162, %v4158
      %v4167 = vadd.s32 %v4163, %v4165
      %v4168 = vadd.s32 %v4167, %v4157
      %v4169 = vadd.s32 %v4168, %v4159
      %v4170 = vshrl.u32 %v4169, 4
      %v4171 = vmul.u32 %v4170, 18
      %v4172 = vsub.s32 %v4148, %v4171
      %v4173 = vsub.s32 0, %v4172
      %v4174 = vsel %vm4146, %v4173, %v4172
      %vm4175 = vcmp.lt.s32.totalorder %v3411, 0
      %v4176 = vsub.s32 0, %v3411
      %v4177 = vsel %vm4175, %v4176, %v3411
      %v4178 = vand.u32 %v4177, 65535
      %v4179 = vshrl.u32 %v4177, 16
      %v4181 = vmul.u32 %v4178, 14564
      %v4182 = vmul.u32 %v4178, 58254
      %v4183 = vmul.u32 %v4179, 14564
      %v4184 = vmul.u32 %v4179, 58254
      %v4185 = vshll.u32 %v4182, 16
      %v4186 = vshrl.u32 %v4182, 16
      %v4187 = vshll.u32 %v4183, 16
      %v4188 = vshrl.u32 %v4183, 16
      %vm4189 = vc.u32 %v4181, %v4185
      %v4190 = vsel %vm4189, 1, 0
      %v4191 = vadd.s32 %v4181, %v4185
      %v4192 = vadd.s32 %v4184, %v4190
      %vm4193 = vc.u32 %v4191, %v4187
      %v4194 = vsel %vm4193, 1, 0
      %v4195 = vadd.s32 %v4191, %v4187
      %v4196 = vadd.s32 %v4192, %v4194
      %v4197 = vadd.s32 %v4196, %v4186
      %v4198 = vadd.s32 %v4197, %v4188
      %v4199 = vshrl.u32 %v4198, 4
      %v4200 = vmul.u32 %v4199, 18
      %v4201 = vsub.s32 %v4177, %v4200
      %v4202 = vsub.s32 0, %v4201
      %v4203 = vsel %vm4175, %v4202, %v4201
      %vm4204 = vcmp.lt.s32.totalorder %v3412, 0
      %v4205 = vsub.s32 0, %v3412
      %v4206 = vsel %vm4204, %v4205, %v3412
      %v4207 = vand.u32 %v4206, 65535
      %v4208 = vshrl.u32 %v4206, 16
      %v4210 = vmul.u32 %v4207, 14564
      %v4211 = vmul.u32 %v4207, 58254
      %v4212 = vmul.u32 %v4208, 14564
      %v4213 = vmul.u32 %v4208, 58254
      %v4214 = vshll.u32 %v4211, 16
      %v4215 = vshrl.u32 %v4211, 16
      %v4216 = vshll.u32 %v4212, 16
      %v4217 = vshrl.u32 %v4212, 16
      %vm4218 = vc.u32 %v4210, %v4214
      %v4219 = vsel %vm4218, 1, 0
      %v4220 = vadd.s32 %v4210, %v4214
      %v4221 = vadd.s32 %v4213, %v4219
      %vm4222 = vc.u32 %v4220, %v4216
      %v4223 = vsel %vm4222, 1, 0
      %v4224 = vadd.s32 %v4220, %v4216
      %v4225 = vadd.s32 %v4221, %v4223
      %v4226 = vadd.s32 %v4225, %v4215
      %v4227 = vadd.s32 %v4226, %v4217
      %v4228 = vshrl.u32 %v4227, 4
      %v4229 = vmul.u32 %v4228, 18
      %v4230 = vsub.s32 %v4206, %v4229
      %v4231 = vsub.s32 0, %v4230
      %v4232 = vsel %vm4204, %v4231, %v4230
      %vm4233 = vcmp.lt.s32.totalorder %v3413, 0
      %v4234 = vsub.s32 0, %v3413
      %v4235 = vsel %vm4233, %v4234, %v3413
      %v4236 = vand.u32 %v4235, 65535
      %v4237 = vshrl.u32 %v4235, 16
      %v4239 = vmul.u32 %v4236, 14564
      %v4240 = vmul.u32 %v4236, 58254
      %v4241 = vmul.u32 %v4237, 14564
      %v4242 = vmul.u32 %v4237, 58254
      %v4243 = vshll.u32 %v4240, 16
      %v4244 = vshrl.u32 %v4240, 16
      %v4245 = vshll.u32 %v4241, 16
      %v4246 = vshrl.u32 %v4241, 16
      %vm4247 = vc.u32 %v4239, %v4243
      %v4248 = vsel %vm4247, 1, 0
      %v4249 = vadd.s32 %v4239, %v4243
      %v4250 = vadd.s32 %v4242, %v4248
      %vm4251 = vc.u32 %v4249, %v4245
      %v4252 = vsel %vm4251, 1, 0
      %v4253 = vadd.s32 %v4249, %v4245
      %v4254 = vadd.s32 %v4250, %v4252
      %v4255 = vadd.s32 %v4254, %v4244
      %v4256 = vadd.s32 %v4255, %v4246
      %v4257 = vshrl.u32 %v4256, 4
      %v4258 = vmul.u32 %v4257, 18
      %v4259 = vsub.s32 %v4235, %v4258
      %v4260 = vsub.s32 0, %v4259
      %v4261 = vsel %vm4233, %v4260, %v4259
      %vm4262 = vcmp.lt.s32.totalorder %v3414, 0
      %v4263 = vsub.s32 0, %v3414
      %v4264 = vsel %vm4262, %v4263, %v3414
      %v4265 = vand.u32 %v4264, 65535
      %v4266 = vshrl.u32 %v4264, 16
      %v4268 = vmul.u32 %v4265, 14564
      %v4269 = vmul.u32 %v4265, 58254
      %v4270 = vmul.u32 %v4266, 14564
      %v4271 = vmul.u32 %v4266, 58254
      %v4272 = vshll.u32 %v4269, 16
      %v4273 = vshrl.u32 %v4269, 16
      %v4274 = vshll.u32 %v4270, 16
      %v4275 = vshrl.u32 %v4270, 16
      %vm4276 = vc.u32 %v4268, %v4272
      %v4277 = vsel %vm4276, 1, 0
      %v4278 = vadd.s32 %v4268, %v4272
      %v4279 = vadd.s32 %v4271, %v4277
      %vm4280 = vc.u32 %v4278, %v4274
      %v4281 = vsel %vm4280, 1, 0
      %v4282 = vadd.s32 %v4278, %v4274
      %v4283 = vadd.s32 %v4279, %v4281
      %v4284 = vadd.s32 %v4283, %v4273
      %v4285 = vadd.s32 %v4284, %v4275
      %v4286 = vshrl.u32 %v4285, 4
      %v4287 = vmul.u32 %v4286, 18
      %v4288 = vsub.s32 %v4264, %v4287
      %v4289 = vsub.s32 0, %v4288
      %v4290 = vsel %vm4262, %v4289, %v4288
      %vm4291 = vcmp.lt.s32.totalorder %v3415, 0
      %v4292 = vsub.s32 0, %v3415
      %v4293 = vsel %vm4291, %v4292, %v3415
      %v4294 = vand.u32 %v4293, 65535
      %v4295 = vshrl.u32 %v4293, 16
      %v4297 = vmul.u32 %v4294, 14564
      %v4298 = vmul.u32 %v4294, 58254
      %v4299 = vmul.u32 %v4295, 14564
      %v4300 = vmul.u32 %v4295, 58254
      %v4301 = vshll.u32 %v4298, 16
      %v4302 = vshrl.u32 %v4298, 16
      %v4303 = vshll.u32 %v4299, 16
      %v4304 = vshrl.u32 %v4299, 16
      %vm4305 = vc.u32 %v4297, %v4301
      %v4306 = vsel %vm4305, 1, 0
      %v4307 = vadd.s32 %v4297, %v4301
      %v4308 = vadd.s32 %v4300, %v4306
      %vm4309 = vc.u32 %v4307, %v4303
      %v4310 = vsel %vm4309, 1, 0
      %v4311 = vadd.s32 %v4307, %v4303
      %v4312 = vadd.s32 %v4308, %v4310
      %v4313 = vadd.s32 %v4312, %v4302
      %v4314 = vadd.s32 %v4313, %v4304
      %v4315 = vshrl.u32 %v4314, 4
      %v4316 = vmul.u32 %v4315, 18
      %v4317 = vsub.s32 %v4293, %v4316
      %v4318 = vsub.s32 0, %v4317
      %v4319 = vsel %vm4291, %v4318, %v4317
      %vm4320 = vcmp.lt.s32.totalorder %v3416, 0
      %v4321 = vsub.s32 0, %v3416
      %v4322 = vsel %vm4320, %v4321, %v3416
      %v4323 = vand.u32 %v4322, 65535
      %v4324 = vshrl.u32 %v4322, 16
      %v4326 = vmul.u32 %v4323, 14564
      %v4327 = vmul.u32 %v4323, 58254
      %v4328 = vmul.u32 %v4324, 14564
      %v4329 = vmul.u32 %v4324, 58254
      %v4330 = vshll.u32 %v4327, 16
      %v4331 = vshrl.u32 %v4327, 16
      %v4332 = vshll.u32 %v4328, 16
      %v4333 = vshrl.u32 %v4328, 16
      %vm4334 = vc.u32 %v4326, %v4330
      %v4335 = vsel %vm4334, 1, 0
      %v4336 = vadd.s32 %v4326, %v4330
      %v4337 = vadd.s32 %v4329, %v4335
      %vm4338 = vc.u32 %v4336, %v4332
      %v4339 = vsel %vm4338, 1, 0
      %v4340 = vadd.s32 %v4336, %v4332
      %v4341 = vadd.s32 %v4337, %v4339
      %v4342 = vadd.s32 %v4341, %v4331
      %v4343 = vadd.s32 %v4342, %v4333
      %v4344 = vshrl.u32 %v4343, 4
      %v4345 = vmul.u32 %v4344, 18
      %v4346 = vsub.s32 %v4322, %v4345
      %v4347 = vsub.s32 0, %v4346
      %v4348 = vsel %vm4320, %v4347, %v4346
      %vm4349 = vcmp.lt.s32.totalorder %v3417, 0
      %v4350 = vsub.s32 0, %v3417
      %v4351 = vsel %vm4349, %v4350, %v3417
      %v4352 = vand.u32 %v4351, 65535
      %v4353 = vshrl.u32 %v4351, 16
      %v4355 = vmul.u32 %v4352, 14564
      %v4356 = vmul.u32 %v4352, 58254
      %v4357 = vmul.u32 %v4353, 14564
      %v4358 = vmul.u32 %v4353, 58254
      %v4359 = vshll.u32 %v4356, 16
      %v4360 = vshrl.u32 %v4356, 16
      %v4361 = vshll.u32 %v4357, 16
      %v4362 = vshrl.u32 %v4357, 16
      %vm4363 = vc.u32 %v4355, %v4359
      %v4364 = vsel %vm4363, 1, 0
      %v4365 = vadd.s32 %v4355, %v4359
      %v4366 = vadd.s32 %v4358, %v4364
      %vm4367 = vc.u32 %v4365, %v4361
      %v4368 = vsel %vm4367, 1, 0
      %v4369 = vadd.s32 %v4365, %v4361
      %v4370 = vadd.s32 %v4366, %v4368
      %v4371 = vadd.s32 %v4370, %v4360
      %v4372 = vadd.s32 %v4371, %v4362
      %v4373 = vshrl.u32 %v4372, 4
      %v4374 = vmul.u32 %v4373, 18
      %v4375 = vsub.s32 %v4351, %v4374
      %v4376 = vsub.s32 0, %v4375
      %v4377 = vsel %vm4349, %v4376, %v4375
      %vm4378 = vcmp.lt.s32.totalorder %v3418, 0
      %v4379 = vsub.s32 0, %v3418
      %v4380 = vsel %vm4378, %v4379, %v3418
      %v4381 = vand.u32 %v4380, 65535
      %v4382 = vshrl.u32 %v4380, 16
      %v4384 = vmul.u32 %v4381, 14564
      %v4385 = vmul.u32 %v4381, 58254
      %v4386 = vmul.u32 %v4382, 14564
      %v4387 = vmul.u32 %v4382, 58254
      %v4388 = vshll.u32 %v4385, 16
      %v4389 = vshrl.u32 %v4385, 16
      %v4390 = vshll.u32 %v4386, 16
      %v4391 = vshrl.u32 %v4386, 16
      %vm4392 = vc.u32 %v4384, %v4388
      %v4393 = vsel %vm4392, 1, 0
      %v4394 = vadd.s32 %v4384, %v4388
      %v4395 = vadd.s32 %v4387, %v4393
      %vm4396 = vc.u32 %v4394, %v4390
      %v4397 = vsel %vm4396, 1, 0
      %v4398 = vadd.s32 %v4394, %v4390
      %v4399 = vadd.s32 %v4395, %v4397
      %v4400 = vadd.s32 %v4399, %v4389
      %v4401 = vadd.s32 %v4400, %v4391
      %v4402 = vshrl.u32 %v4401, 4
      %v4403 = vmul.u32 %v4402, 18
      %v4404 = vsub.s32 %v4380, %v4403
      %v4405 = vsub.s32 0, %v4404
      %v4406 = vsel %vm4378, %v4405, %v4404
      %vm4407 = vcmp.lt.s32.totalorder %v3419, 0
      %v4408 = vsub.s32 0, %v3419
      %v4409 = vsel %vm4407, %v4408, %v3419
      %v4410 = vand.u32 %v4409, 65535
      %v4411 = vshrl.u32 %v4409, 16
      %v4413 = vmul.u32 %v4410, 14564
      %v4414 = vmul.u32 %v4410, 58254
      %v4415 = vmul.u32 %v4411, 14564
      %v4416 = vmul.u32 %v4411, 58254
      %v4417 = vshll.u32 %v4414, 16
      %v4418 = vshrl.u32 %v4414, 16
      %v4419 = vshll.u32 %v4415, 16
      %v4420 = vshrl.u32 %v4415, 16
      %vm4421 = vc.u32 %v4413, %v4417
      %v4422 = vsel %vm4421, 1, 0
      %v4423 = vadd.s32 %v4413, %v4417
      %v4424 = vadd.s32 %v4416, %v4422
      %vm4425 = vc.u32 %v4423, %v4419
      %v4426 = vsel %vm4425, 1, 0
      %v4427 = vadd.s32 %v4423, %v4419
      %v4428 = vadd.s32 %v4424, %v4426
      %v4429 = vadd.s32 %v4428, %v4418
      %v4430 = vadd.s32 %v4429, %v4420
      %v4431 = vshrl.u32 %v4430, 4
      %v4432 = vmul.u32 %v4431, 18
      %v4433 = vsub.s32 %v4409, %v4432
      %v4434 = vsub.s32 0, %v4433
      %v4435 = vsel %vm4407, %v4434, %v4433
      %vm4436 = vcmp.lt.s32.totalorder %v3420, 0
      %v4437 = vsub.s32 0, %v3420
      %v4438 = vsel %vm4436, %v4437, %v3420
      %v4439 = vand.u32 %v4438, 65535
      %v4440 = vshrl.u32 %v4438, 16
      %v4442 = vmul.u32 %v4439, 14564
      %v4443 = vmul.u32 %v4439, 58254
      %v4444 = vmul.u32 %v4440, 14564
      %v4445 = vmul.u32 %v4440, 58254
      %v4446 = vshll.u32 %v4443, 16
      %v4447 = vshrl.u32 %v4443, 16
      %v4448 = vshll.u32 %v4444, 16
      %v4449 = vshrl.u32 %v4444, 16
      %vm4450 = vc.u32 %v4442, %v4446
      %v4451 = vsel %vm4450, 1, 0
      %v4452 = vadd.s32 %v4442, %v4446
      %v4453 = vadd.s32 %v4445, %v4451
      %vm4454 = vc.u32 %v4452, %v4448
      %v4455 = vsel %vm4454, 1, 0
      %v4456 = vadd.s32 %v4452, %v4448
      %v4457 = vadd.s32 %v4453, %v4455
      %v4458 = vadd.s32 %v4457, %v4447
      %v4459 = vadd.s32 %v4458, %v4449
      %v4460 = vshrl.u32 %v4459, 4
      %v4461 = vmul.u32 %v4460, 18
      %v4462 = vsub.s32 %v4438, %v4461
      %v4463 = vsub.s32 0, %v4462
      %v4464 = vsel %vm4436, %v4463, %v4462
      %vm4465 = vcmp.ne.s32.totalorder %v3449, 0
      %vm4466 = vcmp.ne.s32.totalorder %v3478, 0
      %vm4467 = vcmp.ne.s32.totalorder %v3507, 0
      %vm4468 = vcmp.ne.s32.totalorder %v3536, 0
      %vm4469 = vcmp.ne.s32.totalorder %v3565, 0
      %vm4470 = vcmp.ne.s32.totalorder %v3594, 0
      %vm4471 = vcmp.ne.s32.totalorder %v3623, 0
      %vm4472 = vcmp.ne.s32.totalorder %v3652, 0
      %vm4473 = vcmp.ne.s32.totalorder %v3681, 0
      %vm4474 = vcmp.ne.s32.totalorder %v3710, 0
      %vm4475 = vcmp.ne.s32.totalorder %v3739, 0
      %vm4476 = vcmp.ne.s32.totalorder %v3768, 0
      %vm4477 = vcmp.ne.s32.totalorder %v3797, 0
      %vm4478 = vcmp.ne.s32.totalorder %v3826, 0
      %vm4479 = vcmp.ne.s32.totalorder %v3855, 0
      %vm4480 = vcmp.ne.s32.totalorder %v3884, 0
      %vm4481 = vcmp.ne.s32.totalorder %v3913, 0
      %vm4482 = vcmp.ne.s32.totalorder %v3942, 0
      %vm4483 = vcmp.ne.s32.totalorder %v3971, 0
      %vm4484 = vcmp.ne.s32.totalorder %v4000, 0
      %vm4485 = vcmp.ne.s32.totalorder %v4029, 0
      %vm4486 = vcmp.ne.s32.totalorder %v4058, 0
      %vm4487 = vcmp.ne.s32.totalorder %v4087, 0
      %vm4488 = vcmp.ne.s32.totalorder %v4116, 0
      %vm4489 = vcmp.ne.s32.totalorder %v4145, 0
      %vm4490 = vcmp.ne.s32.totalorder %v4174, 0
      %vm4491 = vcmp.ne.s32.totalorder %v4203, 0
      %vm4492 = vcmp.ne.s32.totalorder %v4232, 0
      %vm4493 = vcmp.ne.s32.totalorder %v4261, 0
      %vm4494 = vcmp.ne.s32.totalorder %v4290, 0
      %vm4495 = vcmp.ne.s32.totalorder %v4319, 0
      %vm4496 = vcmp.ne.s32.totalorder %v4348, 0
      %vm4497 = vcmp.ne.s32.totalorder %v4377, 0
      %vm4498 = vcmp.ne.s32.totalorder %v4406, 0
      %vm4499 = vcmp.ne.s32.totalorder %v4435, 0
      %vm4500 = vcmp.ne.s32.totalorder %v4464, 0
      %vm4501 = vcmp.lt.s32.totalorder %v3449, 0
      %vm4502 = vcmp.lt.s32.totalorder %v3478, 0
      %vm4503 = vcmp.lt.s32.totalorder %v3507, 0
      %vm4504 = vcmp.lt.s32.totalorder %v3536, 0
      %vm4505 = vcmp.lt.s32.totalorder %v3565, 0
      %vm4506 = vcmp.lt.s32.totalorder %v3594, 0
      %vm4507 = vcmp.lt.s32.totalorder %v3623, 0
      %vm4508 = vcmp.lt.s32.totalorder %v3652, 0
      %vm4509 = vcmp.lt.s32.totalorder %v3681, 0
      %vm4510 = vcmp.lt.s32.totalorder %v3710, 0
      %vm4511 = vcmp.lt.s32.totalorder %v3739, 0
      %vm4512 = vcmp.lt.s32.totalorder %v3768, 0
      %vm4513 = vcmp.lt.s32.totalorder %v3797, 0
      %vm4514 = vcmp.lt.s32.totalorder %v3826, 0
      %vm4515 = vcmp.lt.s32.totalorder %v3855, 0
      %vm4516 = vcmp.lt.s32.totalorder %v3884, 0
      %vm4517 = vcmp.lt.s32.totalorder %v3913, 0
      %vm4518 = vcmp.lt.s32.totalorder %v3942, 0
      %vm4519 = vcmp.lt.s32.totalorder %v3971, 0
      %vm4520 = vcmp.lt.s32.totalorder %v4000, 0
      %vm4521 = vcmp.lt.s32.totalorder %v4029, 0
      %vm4522 = vcmp.lt.s32.totalorder %v4058, 0
      %vm4523 = vcmp.lt.s32.totalorder %v4087, 0
      %vm4524 = vcmp.lt.s32.totalorder %v4116, 0
      %vm4525 = vcmp.lt.s32.totalorder %v4145, 0
      %vm4526 = vcmp.lt.s32.totalorder %v4174, 0
      %vm4527 = vcmp.lt.s32.totalorder %v4203, 0
      %vm4528 = vcmp.lt.s32.totalorder %v4232, 0
      %vm4529 = vcmp.lt.s32.totalorder %v4261, 0
      %vm4530 = vcmp.lt.s32.totalorder %v4290, 0
      %vm4531 = vcmp.lt.s32.totalorder %v4319, 0
      %vm4532 = vcmp.lt.s32.totalorder %v4348, 0
      %vm4533 = vcmp.lt.s32.totalorder %v4377, 0
      %vm4534 = vcmp.lt.s32.totalorder %v4406, 0
      %vm4535 = vcmp.lt.s32.totalorder %v4435, 0
      %vm4536 = vcmp.lt.s32.totalorder %v4464, 0
      %vm4537 = vmand %vm4501, %vm4465
      %vm4538 = vmand %vm4502, %vm4466
      %vm4539 = vmand %vm4503, %vm4467
      %vm4540 = vmand %vm4504, %vm4468
      %vm4541 = vmand %vm4505, %vm4469
      %vm4542 = vmand %vm4506, %vm4470
      %vm4543 = vmand %vm4507, %vm4471
      %vm4544 = vmand %vm4508, %vm4472
      %vm4545 = vmand %vm4509, %vm4473
      %vm4546 = vmand %vm4510, %vm4474
      %vm4547 = vmand %vm4511, %vm4475
      %vm4548 = vmand %vm4512, %vm4476
      %vm4549 = vmand %vm4513, %vm4477
      %vm4550 = vmand %vm4514, %vm4478
      %vm4551 = vmand %vm4515, %vm4479
      %vm4552 = vmand %vm4516, %vm4480
      %vm4553 = vmand %vm4517, %vm4481
      %vm4554 = vmand %vm4518, %vm4482
      %vm4555 = vmand %vm4519, %vm4483
      %vm4556 = vmand %vm4520, %vm4484
      %vm4557 = vmand %vm4521, %vm4485
      %vm4558 = vmand %vm4522, %vm4486
      %vm4559 = vmand %vm4523, %vm4487
      %vm4560 = vmand %vm4524, %vm4488
      %vm4561 = vmand %vm4525, %vm4489
      %vm4562 = vmand %vm4526, %vm4490
      %vm4563 = vmand %vm4527, %vm4491
      %vm4564 = vmand %vm4528, %vm4492
      %vm4565 = vmand %vm4529, %vm4493
      %vm4566 = vmand %vm4530, %vm4494
      %vm4567 = vmand %vm4531, %vm4495
      %vm4568 = vmand %vm4532, %vm4496
      %vm4569 = vmand %vm4533, %vm4497
      %vm4570 = vmand %vm4534, %vm4498
      %vm4571 = vmand %vm4535, %vm4499
      %vm4572 = vmand %vm4536, %vm4500
      %v4573 = vadd.s32 %v3449, 18
      %v4574 = vadd.s32 %v3478, 18
      %v4575 = vadd.s32 %v3507, 18
      %v4576 = vadd.s32 %v3536, 18
      %v4577 = vadd.s32 %v3565, 18
      %v4578 = vadd.s32 %v3594, 18
      %v4579 = vadd.s32 %v3623, 18
      %v4580 = vadd.s32 %v3652, 18
      %v4581 = vadd.s32 %v3681, 18
      %v4582 = vadd.s32 %v3710, 18
      %v4583 = vadd.s32 %v3739, 18
      %v4584 = vadd.s32 %v3768, 18
      %v4585 = vadd.s32 %v3797, 18
      %v4586 = vadd.s32 %v3826, 18
      %v4587 = vadd.s32 %v3855, 18
      %v4588 = vadd.s32 %v3884, 18
      %v4589 = vadd.s32 %v3913, 18
      %v4590 = vadd.s32 %v3942, 18
      %v4591 = vadd.s32 %v3971, 18
      %v4592 = vadd.s32 %v4000, 18
      %v4593 = vadd.s32 %v4029, 18
      %v4594 = vadd.s32 %v4058, 18
      %v4595 = vadd.s32 %v4087, 18
      %v4596 = vadd.s32 %v4116, 18
      %v4597 = vadd.s32 %v4145, 18
      %v4598 = vadd.s32 %v4174, 18
      %v4599 = vadd.s32 %v4203, 18
      %v4600 = vadd.s32 %v4232, 18
      %v4601 = vadd.s32 %v4261, 18
      %v4602 = vadd.s32 %v4290, 18
      %v4603 = vadd.s32 %v4319, 18
      %v4604 = vadd.s32 %v4348, 18
      %v4605 = vadd.s32 %v4377, 18
      %v4606 = vadd.s32 %v4406, 18
      %v4607 = vadd.s32 %v4435, 18
      %v4608 = vadd.s32 %v4464, 18
      %v4609 = vsel %vm4537, %v4573, %v3449
      %v4610 = vsel %vm4538, %v4574, %v3478
      %v4611 = vsel %vm4539, %v4575, %v3507
      %v4612 = vsel %vm4540, %v4576, %v3536
      %v4613 = vsel %vm4541, %v4577, %v3565
      %v4614 = vsel %vm4542, %v4578, %v3594
      %v4615 = vsel %vm4543, %v4579, %v3623
      %v4616 = vsel %vm4544, %v4580, %v3652
      %v4617 = vsel %vm4545, %v4581, %v3681
      %v4618 = vsel %vm4546, %v4582, %v3710
      %v4619 = vsel %vm4547, %v4583, %v3739
      %v4620 = vsel %vm4548, %v4584, %v3768
      %v4621 = vsel %vm4549, %v4585, %v3797
      %v4622 = vsel %vm4550, %v4586, %v3826
      %v4623 = vsel %vm4551, %v4587, %v3855
      %v4624 = vsel %vm4552, %v4588, %v3884
      %v4625 = vsel %vm4553, %v4589, %v3913
      %v4626 = vsel %vm4554, %v4590, %v3942
      %v4627 = vsel %vm4555, %v4591, %v3971
      %v4628 = vsel %vm4556, %v4592, %v4000
      %v4629 = vsel %vm4557, %v4593, %v4029
      %v4630 = vsel %vm4558, %v4594, %v4058
      %v4631 = vsel %vm4559, %v4595, %v4087
      %v4632 = vsel %vm4560, %v4596, %v4116
      %v4633 = vsel %vm4561, %v4597, %v4145
      %v4634 = vsel %vm4562, %v4598, %v4174
      %v4635 = vsel %vm4563, %v4599, %v4203
      %v4636 = vsel %vm4564, %v4600, %v4232
      %v4637 = vsel %vm4565, %v4601, %v4261
      %v4638 = vsel %vm4566, %v4602, %v4290
      %v4639 = vsel %vm4567, %v4603, %v4319
      %v4640 = vsel %vm4568, %v4604, %v4348
      %v4641 = vsel %vm4569, %v4605, %v4377
      %v4642 = vsel %vm4570, %v4606, %v4406
      %v4643 = vsel %vm4571, %v4607, %v4435
      %v4644 = vsel %vm4572, %v4608, %v4464
      %vm4645 = vcmp.lt.s32.totalorder %v4609, 16
      %vm4646 = vcmp.lt.s32.totalorder %v4610, 16
      %vm4647 = vcmp.lt.s32.totalorder %v4611, 16
      %vm4648 = vcmp.lt.s32.totalorder %v4612, 16
      %vm4649 = vcmp.lt.s32.totalorder %v4613, 16
      %vm4650 = vcmp.lt.s32.totalorder %v4614, 16
      %vm4651 = vcmp.lt.s32.totalorder %v4615, 16
      %vm4652 = vcmp.lt.s32.totalorder %v4616, 16
      %vm4653 = vcmp.lt.s32.totalorder %v4617, 16
      %vm4654 = vcmp.lt.s32.totalorder %v4618, 16
      %vm4655 = vcmp.lt.s32.totalorder %v4619, 16
      %vm4656 = vcmp.lt.s32.totalorder %v4620, 16
      %vm4657 = vcmp.lt.s32.totalorder %v4621, 16
      %vm4658 = vcmp.lt.s32.totalorder %v4622, 16
      %vm4659 = vcmp.lt.s32.totalorder %v4623, 16
      %vm4660 = vcmp.lt.s32.totalorder %v4624, 16
      %vm4661 = vcmp.lt.s32.totalorder %v4625, 16
      %vm4662 = vcmp.lt.s32.totalorder %v4626, 16
      %vm4663 = vcmp.lt.s32.totalorder %v4627, 16
      %vm4664 = vcmp.lt.s32.totalorder %v4628, 16
      %vm4665 = vcmp.lt.s32.totalorder %v4629, 16
      %vm4666 = vcmp.lt.s32.totalorder %v4630, 16
      %vm4667 = vcmp.lt.s32.totalorder %v4631, 16
      %vm4668 = vcmp.lt.s32.totalorder %v4632, 16
      %vm4669 = vcmp.lt.s32.totalorder %v4633, 16
      %vm4670 = vcmp.lt.s32.totalorder %v4634, 16
      %vm4671 = vcmp.lt.s32.totalorder %v4635, 16
      %vm4672 = vcmp.lt.s32.totalorder %v4636, 16
      %vm4673 = vcmp.lt.s32.totalorder %v4637, 16
      %vm4674 = vcmp.lt.s32.totalorder %v4638, 16
      %vm4675 = vcmp.lt.s32.totalorder %v4639, 16
      %vm4676 = vcmp.lt.s32.totalorder %v4640, 16
      %vm4677 = vcmp.lt.s32.totalorder %v4641, 16
      %vm4678 = vcmp.lt.s32.totalorder %v4642, 16
      %vm4679 = vcmp.lt.s32.totalorder %v4643, 16
      %vm4680 = vcmp.lt.s32.totalorder %v4644, 16
      %v4681 = vsel %vm4645, %v3348, 0.0
      %v4682 = vsel %vm4646, %v3349, 0.0
      %v4683 = vsel %vm4647, %v3350, 0.0
      %v4684 = vsel %vm4648, %v3351, 0.0
      %v4685 = vsel %vm4649, %v3352, 0.0
      %v4686 = vsel %vm4650, %v3353, 0.0
      %v4687 = vsel %vm4651, %v3354, 0.0
      %v4688 = vsel %vm4652, %v3355, 0.0
      %v4689 = vsel %vm4653, %v3356, 0.0
      %v4690 = vsel %vm4654, %v3357, 0.0
      %v4691 = vsel %vm4655, %v3358, 0.0
      %v4692 = vsel %vm4656, %v3359, 0.0
      %v4693 = vsel %vm4657, %v3360, 0.0
      %v4694 = vsel %vm4658, %v3361, 0.0
      %v4695 = vsel %vm4659, %v3362, 0.0
      %v4696 = vsel %vm4660, %v3363, 0.0
      %v4697 = vsel %vm4661, %v3364, 0.0
      %v4698 = vsel %vm4662, %v3365, 0.0
      %v4699 = vsel %vm4663, %v3366, 0.0
      %v4700 = vsel %vm4664, %v3367, 0.0
      %v4701 = vsel %vm4665, %v3368, 0.0
      %v4702 = vsel %vm4666, %v3369, 0.0
      %v4703 = vsel %vm4667, %v3370, 0.0
      %v4704 = vsel %vm4668, %v3371, 0.0
      %v4705 = vsel %vm4669, %v3372, 0.0
      %v4706 = vsel %vm4670, %v3373, 0.0
      %v4707 = vsel %vm4671, %v3374, 0.0
      %v4708 = vsel %vm4672, %v3375, 0.0
      %v4709 = vsel %vm4673, %v3376, 0.0
      %v4710 = vsel %vm4674, %v3377, 0.0
      %v4711 = vsel %vm4675, %v3378, 0.0
      %v4712 = vsel %vm4676, %v3379, 0.0
      %v4713 = vsel %vm4677, %v3380, 0.0
      %v4714 = vsel %vm4678, %v3381, 0.0
      %v4715 = vsel %vm4679, %v3382, 0.0
      %v4716 = vsel %vm4680, %v3383, 0.0
      %v4717 = vadd.f32 %v4681, %v4682
      %v4718 = vadd.f32 %v4717, %v4683
      %v4719 = vadd.f32 %v4718, %v4684
      %v4720 = vadd.f32 %v4719, %v4685
      %v4721 = vadd.f32 %v4720, %v4686
      %v4722 = vadd.f32 %v4721, %v4687
      %v4723 = vadd.f32 %v4722, %v4688
      %v4724 = vadd.f32 %v4723, %v4689
      %v4725 = vadd.f32 %v4724, %v4690
      %v4726 = vadd.f32 %v4725, %v4691
      %v4727 = vadd.f32 %v4726, %v4692
      %v4728 = vadd.f32 %v4727, %v4693
      %v4729 = vadd.f32 %v4728, %v4694
      %v4730 = vadd.f32 %v4729, %v4695
      %v4731 = vadd.f32 %v4730, %v4696
      %v4732 = vadd.f32 %v4731, %v4697
      %v4733 = vadd.f32 %v4732, %v4698
      %v4734 = vadd.f32 %v4733, %v4699
      %v4735 = vadd.f32 %v4734, %v4700
      %v4736 = vadd.f32 %v4735, %v4701
      %v4737 = vadd.f32 %v4736, %v4702
      %v4738 = vadd.f32 %v4737, %v4703
      %v4739 = vadd.f32 %v4738, %v4704
      %v4740 = vadd.f32 %v4739, %v4705
      %v4741 = vadd.f32 %v4740, %v4706
      %v4742 = vadd.f32 %v4741, %v4707
      %v4743 = vadd.f32 %v4742, %v4708
      %v4744 = vadd.f32 %v4743, %v4709
      %v4745 = vadd.f32 %v4744, %v4710
      %v4746 = vadd.f32 %v4745, %v4711
      %v4747 = vadd.f32 %v4746, %v4712
      %v4748 = vadd.f32 %v4747, %v4713
      %v4749 = vadd.f32 %v4748, %v4714
      %v4750 = vadd.f32 %v4749, %v4715
      %v4751 = vadd.f32 %v4750, %v4716
      %v4752 = vrot.slane %v4751, 4
      %v4753 = vadd.f32 %v4751, %v4752
      %v4754 = vrot.slane %v4753, 2
      %v4755 = vadd.f32 %v4753, %v4754
      %v4756 = vrot.slane %v4755, 1
      %v4757 = vadd.f32 %v4755, %v4756
      %v4758 = vmul.f32 %v4757, 0.00390625
      %v4759 = vsub.f32 %v3348, %v4758
      %v4760 = vsub.f32 %v3349, %v4758
      %v4761 = vsub.f32 %v3350, %v4758
      %v4762 = vsub.f32 %v3351, %v4758
      %v4763 = vsub.f32 %v3352, %v4758
      %v4764 = vsub.f32 %v3353, %v4758
      %v4765 = vsub.f32 %v3354, %v4758
      %v4766 = vsub.f32 %v3355, %v4758
      %v4767 = vsub.f32 %v3356, %v4758
      %v4768 = vsub.f32 %v3357, %v4758
      %v4769 = vsub.f32 %v3358, %v4758
      %v4770 = vsub.f32 %v3359, %v4758
      %v4771 = vsub.f32 %v3360, %v4758
      %v4772 = vsub.f32 %v3361, %v4758
      %v4773 = vsub.f32 %v3362, %v4758
      %v4774 = vsub.f32 %v3363, %v4758
      %v4775 = vsub.f32 %v3364, %v4758
      %v4776 = vsub.f32 %v3365, %v4758
      %v4777 = vsub.f32 %v3366, %v4758
      %v4778 = vsub.f32 %v3367, %v4758
      %v4779 = vsub.f32 %v3368, %v4758
      %v4780 = vsub.f32 %v3369, %v4758
      %v4781 = vsub.f32 %v3370, %v4758
      %v4782 = vsub.f32 %v3371, %v4758
      %v4783 = vsub.f32 %v3372, %v4758
      %v4784 = vsub.f32 %v3373, %v4758
      %v4785 = vsub.f32 %v3374, %v4758
      %v4786 = vsub.f32 %v3375, %v4758
      %v4787 = vsub.f32 %v3376, %v4758
      %v4788 = vsub.f32 %v3377, %v4758
      %v4789 = vsub.f32 %v3378, %v4758
      %v4790 = vsub.f32 %v3379, %v4758
      %v4791 = vsub.f32 %v3380, %v4758
      %v4792 = vsub.f32 %v3381, %v4758
      %v4793 = vsub.f32 %v3382, %v4758
      %v4794 = vsub.f32 %v3383, %v4758
      %v4795 = vsel %vm4645, %v4759, 0.0
      %v4796 = vsel %vm4646, %v4760, 0.0
      %v4797 = vsel %vm4647, %v4761, 0.0
      %v4798 = vsel %vm4648, %v4762, 0.0
      %v4799 = vsel %vm4649, %v4763, 0.0
      %v4800 = vsel %vm4650, %v4764, 0.0
      %v4801 = vsel %vm4651, %v4765, 0.0
      %v4802 = vsel %vm4652, %v4766, 0.0
      %v4803 = vsel %vm4653, %v4767, 0.0
      %v4804 = vsel %vm4654, %v4768, 0.0
      %v4805 = vsel %vm4655, %v4769, 0.0
      %v4806 = vsel %vm4656, %v4770, 0.0
      %v4807 = vsel %vm4657, %v4771, 0.0
      %v4808 = vsel %vm4658, %v4772, 0.0
      %v4809 = vsel %vm4659, %v4773, 0.0
      %v4810 = vsel %vm4660, %v4774, 0.0
      %v4811 = vsel %vm4661, %v4775, 0.0
      %v4812 = vsel %vm4662, %v4776, 0.0
      %v4813 = vsel %vm4663, %v4777, 0.0
      %v4814 = vsel %vm4664, %v4778, 0.0
      %v4815 = vsel %vm4665, %v4779, 0.0
      %v4816 = vsel %vm4666, %v4780, 0.0
      %v4817 = vsel %vm4667, %v4781, 0.0
      %v4818 = vsel %vm4668, %v4782, 0.0
      %v4819 = vsel %vm4669, %v4783, 0.0
      %v4820 = vsel %vm4670, %v4784, 0.0
      %v4821 = vsel %vm4671, %v4785, 0.0
      %v4822 = vsel %vm4672, %v4786, 0.0
      %v4823 = vsel %vm4673, %v4787, 0.0
      %v4824 = vsel %vm4674, %v4788, 0.0
      %v4825 = vsel %vm4675, %v4789, 0.0
      %v4826 = vsel %vm4676, %v4790, 0.0
      %v4827 = vsel %vm4677, %v4791, 0.0
      %v4828 = vsel %vm4678, %v4792, 0.0
      %v4829 = vsel %vm4679, %v4793, 0.0
      %v4830 = vsel %vm4680, %v4794, 0.0
      %v4831 = vmul.f32 %v4795, %v4795
      %v4832 = vmul.f32 %v4796, %v4796
      %v4833 = vmul.f32 %v4797, %v4797
      %v4834 = vmul.f32 %v4798, %v4798
      %v4835 = vmul.f32 %v4799, %v4799
      %v4836 = vmul.f32 %v4800, %v4800
      %v4837 = vmul.f32 %v4801, %v4801
      %v4838 = vmul.f32 %v4802, %v4802
      %v4839 = vmul.f32 %v4803, %v4803
      %v4840 = vmul.f32 %v4804, %v4804
      %v4841 = vmul.f32 %v4805, %v4805
      %v4842 = vmul.f32 %v4806, %v4806
      %v4843 = vmul.f32 %v4807, %v4807
      %v4844 = vmul.f32 %v4808, %v4808
      %v4845 = vmul.f32 %v4809, %v4809
      %v4846 = vmul.f32 %v4810, %v4810
      %v4847 = vmul.f32 %v4811, %v4811
      %v4848 = vmul.f32 %v4812, %v4812
      %v4849 = vmul.f32 %v4813, %v4813
      %v4850 = vmul.f32 %v4814, %v4814
      %v4851 = vmul.f32 %v4815, %v4815
      %v4852 = vmul.f32 %v4816, %v4816
      %v4853 = vmul.f32 %v4817, %v4817
      %v4854 = vmul.f32 %v4818, %v4818
      %v4855 = vmul.f32 %v4819, %v4819
      %v4856 = vmul.f32 %v4820, %v4820
      %v4857 = vmul.f32 %v4821, %v4821
      %v4858 = vmul.f32 %v4822, %v4822
      %v4859 = vmul.f32 %v4823, %v4823
      %v4860 = vmul.f32 %v4824, %v4824
      %v4861 = vmul.f32 %v4825, %v4825
      %v4862 = vmul.f32 %v4826, %v4826
      %v4863 = vmul.f32 %v4827, %v4827
      %v4864 = vmul.f32 %v4828, %v4828
      %v4865 = vmul.f32 %v4829, %v4829
      %v4866 = vmul.f32 %v4830, %v4830
      %v4867 = vadd.f32 %v4831, %v4832
      %v4868 = vadd.f32 %v4867, %v4833
      %v4869 = vadd.f32 %v4868, %v4834
      %v4870 = vadd.f32 %v4869, %v4835
      %v4871 = vadd.f32 %v4870, %v4836
      %v4872 = vadd.f32 %v4871, %v4837
      %v4873 = vadd.f32 %v4872, %v4838
      %v4874 = vadd.f32 %v4873, %v4839
      %v4875 = vadd.f32 %v4874, %v4840
      %v4876 = vadd.f32 %v4875, %v4841
      %v4877 = vadd.f32 %v4876, %v4842
      %v4878 = vadd.f32 %v4877, %v4843
      %v4879 = vadd.f32 %v4878, %v4844
      %v4880 = vadd.f32 %v4879, %v4845
      %v4881 = vadd.f32 %v4880, %v4846
      %v4882 = vadd.f32 %v4881, %v4847
      %v4883 = vadd.f32 %v4882, %v4848
      %v4884 = vadd.f32 %v4883, %v4849
      %v4885 = vadd.f32 %v4884, %v4850
      %v4886 = vadd.f32 %v4885, %v4851
      %v4887 = vadd.f32 %v4886, %v4852
      %v4888 = vadd.f32 %v4887, %v4853
      %v4889 = vadd.f32 %v4888, %v4854
      %v4890 = vadd.f32 %v4889, %v4855
      %v4891 = vadd.f32 %v4890, %v4856
      %v4892 = vadd.f32 %v4891, %v4857
      %v4893 = vadd.f32 %v4892, %v4858
      %v4894 = vadd.f32 %v4893, %v4859
      %v4895 = vadd.f32 %v4894, %v4860
      %v4896 = vadd.f32 %v4895, %v4861
      %v4897 = vadd.f32 %v4896, %v4862
      %v4898 = vadd.f32 %v4897, %v4863
      %v4899 = vadd.f32 %v4898, %v4864
      %v4900 = vadd.f32 %v4899, %v4865
      %v4901 = vadd.f32 %v4900, %v4866
      %v4902 = vrot.slane %v4901, 4
      %v4903 = vadd.f32 %v4901, %v4902
      %v4904 = vrot.slane %v4903, 2
      %v4905 = vadd.f32 %v4903, %v4904
      %v4906 = vrot.slane %v4905, 1
      %v4907 = vadd.f32 %v4905, %v4906
      %v4908 = vmul.f32 %v4907, 0.003921569
      %v4909 = vadd.f32 %v4908, 1e-05
      %v4910 = vrsqrt.pop %v4909
      %v4911 = vmul.f32 %v4910, %v4909
      %v4912 = vmul.f32 %v4911, %v4910
      %v4913 = vmul.f32 0.5, %v4912
      %v4914 = vsub.f32 1.5, %v4913
      %v4915 = vmul.f32 %v4910, %v4914
      %v4916 = vmul.f32 %v4909, %v4915
      %vm4917 = vcmp.eq.f32.partialorder %v4909, inf
      %v4918 = vsel %vm4917, %v4909, %v4916
      %vm4919 = vcmp.eq.f32.partialorder %v4909, 0.0
      %v4920 = vand.u32 %v4909, 2147483648
      %v4921 = vsel %vm4919, %v4920, %v4918
      %v4922 = vld [vmem:[%s5] sm:$0x1]
      %v4923 = vmul.f32 %v4758, %v4922
      %v4924 = vld [vmem:[%s5 + $0x1] sm:$0x1]
      %v4925 = vmul.f32 %v4921, %v4924
      %v4926 = vadd.f32 %v4923, %v4925
      %v4927 = vld [vmem:[%s6] sm:$0x1]
      %v4928 = vmul.f32 %v4926, %v4927
      %v4929 = vld [vmem:[%s7] sm:$0x1]
      %v4930 = vadd.f32 %v4928, %v4929
      %v4931 = vxor.u32 %v4930, 2147483648
      %v4932 = vmul.f32 %v4931, 1.442695
      %v4933 = vpow.pop %v4932
      %v4934 = vadd.f32 %v4933, 1.0
      %v4935 = vrcp.pop %v4934
      %v4936 = vmul.f32 %v4934, %v4935
      %v4937 = vsub.f32 1.0, %v4936
      %v4938 = vmul.f32 %v4935, %v4937
      %v4939 = vadd.f32 %v4935, %v4938
      %vm4940 = vweird.f32 %v4934
      %vm4941 = vweird.f32 %v4935
      %vm4942 = vmor %vm4940, %vm4941
      %v4943 = vsel %vm4942, %v4935, %v4939
      %v4944 = vand.u32 2147483647, %v4934
      %vm4945 = vcmp.eq.f32.partialorder %v4944, 8.507059e+37
      %v4946 = vand.u32 %v4934, 2147483648
      %v4947 = vor.u32 1.1754944e-38, %v4946
      %v4948 = vsel %vm4945, %v4947, %v4943
      %v4949 = vmul.f32 1.0, %v4948
      %v4950 = vld [vmem:[%s320 + $0x8] sm:$0xe]
      %v4951 = vld [vmem:[%s320 + $0xc] sm:$0xf]
      %v4952 = vld [vmem:[%s320 + $0x10] sm:$0xf]
      %v4953 = vld [vmem:[%s320 + $0x14] sm:$0xf]
      %v4954 = vld [vmem:[%s320 + $0x18] sm:$0xf]
      %v4955 = vld [vmem:[%s320 + $0x1c] sm:$0xf]
      %v4956 = vld [vmem:[%s320 + $0x20] sm:$0xf]
      %v4957 = vld [vmem:[%s320 + $0x24] sm:$0xf]
      %v4958 = vld [vmem:[%s320 + $0x28] sm:$0xf]
      %v4959 = vld [vmem:[%s320 + $0x2c] sm:$0xf]
      %v4960 = vld [vmem:[%s320 + $0x30] sm:$0xf]
      %v4961 = vld [vmem:[%s320 + $0x34] sm:$0xf]
      %v4962 = vld [vmem:[%s320 + $0x38] sm:$0xf]
      %v4963 = vld [vmem:[%s320 + $0x3c] sm:$0xf]
      %v4964 = vld [vmem:[%s320 + $0x40] sm:$0xf]
      %v4965 = vld [vmem:[%s320 + $0x44] sm:$0xf]
      %v4966 = vld [vmem:[%s320 + $0x48] sm:$0xf]
      %v4967 = vld [vmem:[%s320 + $0x4c] sm:$0xf]
      %v4968 = vld [vmem:[%s320 + $0x50] sm:$0xf]
      %v4969 = vld [vmem:[%s320 + $0x54] sm:$0xf]
      %v4970 = vld [vmem:[%s320 + $0x58] sm:$0xf]
      %v4971 = vld [vmem:[%s320 + $0x5c] sm:$0xf]
      %v4972 = vld [vmem:[%s320 + $0x60] sm:$0xf]
      %v4973 = vld [vmem:[%s320 + $0x64] sm:$0xf]
      %v4974 = vld [vmem:[%s320 + $0x68] sm:$0xf]
      %v4975 = vld [vmem:[%s320 + $0x6c] sm:$0xf]
      %v4976 = vld [vmem:[%s320 + $0x70] sm:$0xf]
      %v4977 = vld [vmem:[%s320 + $0x74] sm:$0xf]
      %v4978 = vld [vmem:[%s320 + $0x78] sm:$0xf]
      %v4979 = vld [vmem:[%s320 + $0x7c] sm:$0xf]
      %v4980 = vld [vmem:[%s320 + $0x80] sm:$0xf]
      %v4981 = vld [vmem:[%s320 + $0x84] sm:$0xf]
      %v4982 = vld [vmem:[%s320 + $0x88] sm:$0xf]
      %v4983 = vld [vmem:[%s320 + $0x8c] sm:$0xf]
      %v4984 = vld [vmem:[%s320 + $0x90] sm:$0xf]
      %v4985 = vld [vmem:[%s320 + $0x94] sm:$0xf]
      %v4986 = vld [vmem:[%s320 + $0x98] sm:$0x3]
      %v4987 = vunpack.c.l.bf16 %v4950
      %v4988 = vunpack.c.l.bf16 %v4951
      %v4989 = vunpack.c.l.bf16 %v4952
      %v4990 = vunpack.c.l.bf16 %v4953
      %v4991 = vunpack.c.l.bf16 %v4954
      %v4992 = vunpack.c.l.bf16 %v4955
      %v4993 = vunpack.c.l.bf16 %v4956
      %v4994 = vunpack.c.l.bf16 %v4957
      %v4995 = vunpack.c.l.bf16 %v4958
      %v4996 = vunpack.c.l.bf16 %v4959
      %v4997 = vunpack.c.l.bf16 %v4960
      %v4998 = vunpack.c.l.bf16 %v4961
      %v4999 = vunpack.c.l.bf16 %v4962
      %v5000 = vunpack.c.l.bf16 %v4963
      %v5001 = vunpack.c.l.bf16 %v4964
      %v5002 = vunpack.c.l.bf16 %v4965
      %v5003 = vunpack.c.l.bf16 %v4966
      %v5004 = vunpack.c.l.bf16 %v4967
      %v5005 = vunpack.c.l.bf16 %v4968
      %v5006 = vunpack.c.l.bf16 %v4969
      %v5007 = vunpack.c.l.bf16 %v4970
      %v5008 = vunpack.c.l.bf16 %v4971
      %v5009 = vunpack.c.l.bf16 %v4972
      %v5010 = vunpack.c.l.bf16 %v4973
      %v5011 = vunpack.c.l.bf16 %v4974
      %v5012 = vunpack.c.l.bf16 %v4975
      %v5013 = vunpack.c.l.bf16 %v4976
      %v5014 = vunpack.c.l.bf16 %v4977
      %v5015 = vunpack.c.l.bf16 %v4978
      %v5016 = vunpack.c.l.bf16 %v4979
      %v5017 = vunpack.c.l.bf16 %v4980
      %v5018 = vunpack.c.l.bf16 %v4981
      %v5019 = vunpack.c.l.bf16 %v4982
      %v5020 = vunpack.c.l.bf16 %v4983
      %v5021 = vunpack.c.l.bf16 %v4984
      %v5022 = vunpack.c.l.bf16 %v4985
      %v5023 = vunpack.c.l.bf16 %v4986
      %v5024 = vperm.slane %v4949, 0
      %v5025 = vmul.f32 %v3348, %v5024
      %v5026 = vmul.f32 %v3349, %v5024
      %v5027 = vmul.f32 %v3350, %v5024
      %v5028 = vmul.f32 %v3351, %v5024
      %v5029 = vmul.f32 %v3352, %v5024
      %v5030 = vmul.f32 %v3353, %v5024
      %v5031 = vmul.f32 %v3354, %v5024
      %v5032 = vmul.f32 %v3355, %v5024
      %v5033 = vmul.f32 %v3356, %v5024
      %v5034 = vmul.f32 %v3357, %v5024
      %v5035 = vmul.f32 %v3358, %v5024
      %v5036 = vmul.f32 %v3359, %v5024
      %v5037 = vmul.f32 %v3360, %v5024
      %v5038 = vmul.f32 %v3361, %v5024
      %v5039 = vmul.f32 %v3362, %v5024
      %v5040 = vmul.f32 %v3363, %v5024
      %v5041 = vmul.f32 %v3364, %v5024
      %v5042 = vmul.f32 %v3365, %v5024
      %v5043 = vmul.f32 %v3366, %v5024
      %v5044 = vmul.f32 %v3367, %v5024
      %v5045 = vmul.f32 %v3368, %v5024
      %v5046 = vmul.f32 %v3369, %v5024
      %v5047 = vmul.f32 %v3370, %v5024
      %v5048 = vmul.f32 %v3371, %v5024
      %v5049 = vmul.f32 %v3372, %v5024
      %v5050 = vmul.f32 %v3373, %v5024
      %v5051 = vmul.f32 %v3374, %v5024
      %v5052 = vmul.f32 %v3375, %v5024
      %v5053 = vmul.f32 %v3376, %v5024
      %v5054 = vmul.f32 %v3377, %v5024
      %v5055 = vmul.f32 %v3378, %v5024
      %v5056 = vmul.f32 %v3379, %v5024
      %v5057 = vmul.f32 %v3380, %v5024
      %v5058 = vmul.f32 %v3381, %v5024
      %v5059 = vmul.f32 %v3382, %v5024
      %v5060 = vmul.f32 %v3383, %v5024
      %vm5098 = vcmask 1044480
      %v5099 = vrot.slane %v4987, 3
      %v5100 = vrot.slane %v4988, 3
      %v5101 = vsel %vm5098, %v5099, %v5100
      %v5102 = vrot.slane %v4989, 3
      %v5103 = vsel %vm5098, %v5100, %v5102
      %v5104 = vrot.slane %v4990, 3
      %v5105 = vsel %vm5098, %v5102, %v5104
      %v5106 = vrot.slane %v4991, 3
      %v5107 = vsel %vm5098, %v5104, %v5106
      %v5108 = vrot.slane %v4992, 3
      %v5109 = vsel %vm5098, %v5106, %v5108
      %v5110 = vrot.slane %v4993, 3
      %v5111 = vsel %vm5098, %v5108, %v5110
      %v5112 = vrot.slane %v4994, 3
      %v5113 = vsel %vm5098, %v5110, %v5112
      %v5114 = vrot.slane %v4995, 3
      %v5115 = vsel %vm5098, %v5112, %v5114
      %v5116 = vrot.slane %v4996, 3
      %v5117 = vsel %vm5098, %v5114, %v5116
      %v5118 = vrot.slane %v4997, 3
      %v5119 = vsel %vm5098, %v5116, %v5118
      %v5120 = vrot.slane %v4998, 3
      %v5121 = vsel %vm5098, %v5118, %v5120
      %v5122 = vrot.slane %v4999, 3
      %v5123 = vsel %vm5098, %v5120, %v5122
      %v5124 = vrot.slane %v5000, 3
      %v5125 = vsel %vm5098, %v5122, %v5124
      %v5126 = vrot.slane %v5001, 3
      %v5127 = vsel %vm5098, %v5124, %v5126
      %v5128 = vrot.slane %v5002, 3
      %v5129 = vsel %vm5098, %v5126, %v5128
      %v5130 = vrot.slane %v5003, 3
      %v5131 = vsel %vm5098, %v5128, %v5130
      %v5132 = vrot.slane %v5004, 3
      %v5133 = vsel %vm5098, %v5130, %v5132
      %v5134 = vrot.slane %v5005, 3
      %v5135 = vsel %vm5098, %v5132, %v5134
      %v5136 = vrot.slane %v5006, 3
      %v5137 = vsel %vm5098, %v5134, %v5136
      %v5138 = vrot.slane %v5007, 3
      %v5139 = vsel %vm5098, %v5136, %v5138
      %v5140 = vrot.slane %v5008, 3
      %v5141 = vsel %vm5098, %v5138, %v5140
      %v5142 = vrot.slane %v5009, 3
      %v5143 = vsel %vm5098, %v5140, %v5142
      %v5144 = vrot.slane %v5010, 3
      %v5145 = vsel %vm5098, %v5142, %v5144
      %v5146 = vrot.slane %v5011, 3
      %v5147 = vsel %vm5098, %v5144, %v5146
      %v5148 = vrot.slane %v5012, 3
      %v5149 = vsel %vm5098, %v5146, %v5148
      %v5150 = vrot.slane %v5013, 3
      %v5151 = vsel %vm5098, %v5148, %v5150
      %v5152 = vrot.slane %v5014, 3
      %v5153 = vsel %vm5098, %v5150, %v5152
      %v5154 = vrot.slane %v5015, 3
      %v5155 = vsel %vm5098, %v5152, %v5154
      %v5156 = vrot.slane %v5016, 3
      %v5157 = vsel %vm5098, %v5154, %v5156
      %v5158 = vrot.slane %v5017, 3
      %v5159 = vsel %vm5098, %v5156, %v5158
      %v5160 = vrot.slane %v5018, 3
      %v5161 = vsel %vm5098, %v5158, %v5160
      %v5162 = vrot.slane %v5019, 3
      %v5163 = vsel %vm5098, %v5160, %v5162
      %v5164 = vrot.slane %v5020, 3
      %v5165 = vsel %vm5098, %v5162, %v5164
      %v5166 = vrot.slane %v5021, 3
      %v5167 = vsel %vm5098, %v5164, %v5166
      %v5168 = vrot.slane %v5022, 3
      %v5169 = vsel %vm5098, %v5166, %v5168
      %v5170 = vrot.slane %v5023, 3
      %v5171 = vsel %vm5098, %v5168, %v5170
      %v5208 = vadd.f32 %v5025, %v5101
      %v5209 = vadd.f32 %v5026, %v5103
      %v5210 = vadd.f32 %v5027, %v5105
      %v5211 = vadd.f32 %v5028, %v5107
      %v5212 = vadd.f32 %v5029, %v5109
      %v5213 = vadd.f32 %v5030, %v5111
      %v5214 = vadd.f32 %v5031, %v5113
      %v5215 = vadd.f32 %v5032, %v5115
      %v5216 = vadd.f32 %v5033, %v5117
      %v5217 = vadd.f32 %v5034, %v5119
      %v5218 = vadd.f32 %v5035, %v5121
      %v5219 = vadd.f32 %v5036, %v5123
      %v5220 = vadd.f32 %v5037, %v5125
      %v5221 = vadd.f32 %v5038, %v5127
      %v5222 = vadd.f32 %v5039, %v5129
      %v5223 = vadd.f32 %v5040, %v5131
      %v5224 = vadd.f32 %v5041, %v5133
      %v5225 = vadd.f32 %v5042, %v5135
      %v5226 = vadd.f32 %v5043, %v5137
      %v5227 = vadd.f32 %v5044, %v5139
      %v5228 = vadd.f32 %v5045, %v5141
      %v5229 = vadd.f32 %v5046, %v5143
      %v5230 = vadd.f32 %v5047, %v5145
      %v5231 = vadd.f32 %v5048, %v5147
      %v5232 = vadd.f32 %v5049, %v5149
      %v5233 = vadd.f32 %v5050, %v5151
      %v5234 = vadd.f32 %v5051, %v5153
      %v5235 = vadd.f32 %v5052, %v5155
      %v5236 = vadd.f32 %v5053, %v5157
      %v5237 = vadd.f32 %v5054, %v5159
      %v5238 = vadd.f32 %v5055, %v5161
      %v5239 = vadd.f32 %v5056, %v5163
      %v5240 = vadd.f32 %v5057, %v5165
      %v5241 = vadd.f32 %v5058, %v5167
      %v5242 = vadd.f32 %v5059, %v5169
      %v5243 = vadd.f32 %v5060, %v5171
      %v5244 = vmax.f32 %v5208, 0.0
      %v5245 = vmax.f32 %v5209, 0.0
      %v5246 = vmax.f32 %v5210, 0.0
      %v5247 = vmax.f32 %v5211, 0.0
      %v5248 = vmax.f32 %v5212, 0.0
      %v5249 = vmax.f32 %v5213, 0.0
      %v5250 = vmax.f32 %v5214, 0.0
      %v5251 = vmax.f32 %v5215, 0.0
      %v5252 = vmax.f32 %v5216, 0.0
      %v5253 = vmax.f32 %v5217, 0.0
      %v5254 = vmax.f32 %v5218, 0.0
      %v5255 = vmax.f32 %v5219, 0.0
      %v5256 = vmax.f32 %v5220, 0.0
      %v5257 = vmax.f32 %v5221, 0.0
      %v5258 = vmax.f32 %v5222, 0.0
      %v5259 = vmax.f32 %v5223, 0.0
      %v5260 = vmax.f32 %v5224, 0.0
      %v5261 = vmax.f32 %v5225, 0.0
      %v5262 = vmax.f32 %v5226, 0.0
      %v5263 = vmax.f32 %v5227, 0.0
      %v5264 = vmax.f32 %v5228, 0.0
      %v5265 = vmax.f32 %v5229, 0.0
      %v5266 = vmax.f32 %v5230, 0.0
      %v5267 = vmax.f32 %v5231, 0.0
      %v5268 = vmax.f32 %v5232, 0.0
      %v5269 = vmax.f32 %v5233, 0.0
      %v5270 = vmax.f32 %v5234, 0.0
      %v5271 = vmax.f32 %v5235, 0.0
      %v5272 = vmax.f32 %v5236, 0.0
      %v5273 = vmax.f32 %v5237, 0.0
      %v5274 = vmax.f32 %v5238, 0.0
      %v5275 = vmax.f32 %v5239, 0.0
      %v5276 = vmax.f32 %v5240, 0.0
      %v5277 = vmax.f32 %v5241, 0.0
      %v5278 = vmax.f32 %v5242, 0.0
      %v5279 = vmax.f32 %v5243, 0.0
      %5280 = vst [vmem:[%s325] sm:$0xff] %v5244
      %5281 = vst [vmem:[%s325 + $0x8] sm:$0xff] %v5245
      %5282 = vst [vmem:[%s325 + $0x10] sm:$0xff] %v5246
      %5283 = vst [vmem:[%s325 + $0x18] sm:$0xff] %v5247
      %5284 = vst [vmem:[%s325 + $0x20] sm:$0xff] %v5248
      %5285 = vst [vmem:[%s325 + $0x28] sm:$0xff] %v5249
      %5286 = vst [vmem:[%s325 + $0x30] sm:$0xff] %v5250
      %5287 = vst [vmem:[%s325 + $0x38] sm:$0xff] %v5251
      %5288 = vst [vmem:[%s325 + $0x40] sm:$0xff] %v5252
      %5289 = vst [vmem:[%s325 + $0x48] sm:$0xff] %v5253
      %5290 = vst [vmem:[%s325 + $0x50] sm:$0xff] %v5254
      %5291 = vst [vmem:[%s325 + $0x58] sm:$0xff] %v5255
      %5292 = vst [vmem:[%s325 + $0x60] sm:$0xff] %v5256
      %5293 = vst [vmem:[%s325 + $0x68] sm:$0xff] %v5257
      %5294 = vst [vmem:[%s325 + $0x70] sm:$0xff] %v5258
      %5295 = vst [vmem:[%s325 + $0x78] sm:$0xff] %v5259
      %5296 = vst [vmem:[%s325 + $0x80] sm:$0xff] %v5260
      %5297 = vst [vmem:[%s325 + $0x88] sm:$0xff] %v5261
      %5298 = vst [vmem:[%s325 + $0x90] sm:$0xff] %v5262
      %5299 = vst [vmem:[%s325 + $0x98] sm:$0xff] %v5263
      %5300 = vst [vmem:[%s325 + $0xa0] sm:$0xff] %v5264
      %5301 = vst [vmem:[%s325 + $0xa8] sm:$0xff] %v5265
      %5302 = vst [vmem:[%s325 + $0xb0] sm:$0xff] %v5266
      %5303 = vst [vmem:[%s325 + $0xb8] sm:$0xff] %v5267
      %5304 = vst [vmem:[%s325 + $0xc0] sm:$0xff] %v5268
      %5305 = vst [vmem:[%s325 + $0xc8] sm:$0xff] %v5269
      %5306 = vst [vmem:[%s325 + $0xd0] sm:$0xff] %v5270
      %5307 = vst [vmem:[%s325 + $0xd8] sm:$0xff] %v5271
      %5308 = vst [vmem:[%s325 + $0xe0] sm:$0xff] %v5272
      %5309 = vst [vmem:[%s325 + $0xe8] sm:$0xff] %v5273
      %5310 = vst [vmem:[%s325 + $0xf0] sm:$0xff] %v5274
      %5311 = vst [vmem:[%s325 + $0xf8] sm:$0xff] %v5275
      %5312 = vst [vmem:[%s325 + $0x100] sm:$0xff] %v5276
      %5313 = vst [vmem:[%s325 + $0x108] sm:$0xff] %v5277
      %5314 = vst [vmem:[%s325 + $0x110] sm:$0xff] %v5278
      %5315 = vst [vmem:[%s325 + $0x118] sm:$0xff] %v5279
      %p5316 = scmp.lt.s32.totalorder %s19, 1
      %s5317 = scalar_select %p5316, %s19, 1
      %s5318 = smul.addr %s5317, 36
      %s5319 = smul.addr %s5318, 8
      %s5320 = scalar_lea.vmem %s8, %s5319
      // Predicated region
      $region53: #{basic_block_forward.3} parent=51 // pred_check
        %p5321 = pneg %p215
      $region54: #{basic_block_forward.3} parent=51 // pred_check_branch
        %5323 = sbr.rel (%p5321) target = $region56
      $region55: #{basic_block_forward.3} parent=51 // pred_region
        _
      $region56: #{basic_block_forward.3} parent=51 // pred_fallthru
        _
    $region52: #{basic_block_forward.3} parent=5 // pred_fallthru
      _
    %p5324 = scmp.le.s32.totalorder 2, %s14
    // Predicated region
    $region57: #{basic_block_forward.3} parent=5 // pred_check
      %p5325 = pneg %p5324
    $region58: #{basic_block_forward.3} parent=5 // pred_check_branch
      %5327 = sbr.rel (%p5325) target = $region60
    $region59: #{basic_block_forward.3} parent=5 // pred_region
      %s5328 = ssub.s32 %s14, 2
      // Predicated region
      $region61: #{basic_block_forward.3} parent=59 // pred_check
        %p5329 = pneg %p221
      $region62: #{basic_block_forward.3} parent=59 // pred_check_branch
        %5331 = sbr.rel (%p5329) target = $region64
      $region63: #{basic_block_forward.3} parent=59 // pred_region
        %p5332 = scmp.lt.s32.totalorder %s20, 1
        %s5333 = scalar_select %p5332, %s20, 1
        %s5334 = smul.addr %s5333, 36
        %s5335 = smul.addr %s5334, 8
        %s5336 = scalar_lea.vmem %s8, %s5335
      $region64: #{basic_block_forward.3} parent=59 // pred_fallthru
        _
    $region60: #{basic_block_forward.3} parent=5 // pred_fallthru
      _
  $region6: #{basic_block_forward.3} parent=0 // loop_footer
    %s18 = sadd.s32 1, %s14
  $region7: #{basic_block_forward.3} parent=0 // loop_footer_branch
    %13 = sbr.rel target = $region3
  $region8: #{basic_block_forward.3} parent=0 // loop_exit
    _

// kernel: basic_block_forward.2
$region0: #{basic_block_forward.2}
  #allocation0 [shape = 'u32[]', space=smem, size = 0x4, offset = 0x4, fixed_abs, tag = 'smem constant byte address 0x4 - core index']
  #allocation1 [shape = 'u32[72,128]{1,0:T(1,128)}', space=vmem, size = 0x9000, scoped, tag = 'internal scratch']
  %s0 = inlined_call_operand.vmem [shape: bf16[2,342,128], index: 0, kind: input, shape index: {}]
  %s1 = inlined_call_operand.vmem [shape: bf16[9,128,128], index: 1, kind: input, shape index: {}]
  %s2 = inlined_call_operand.vmem [shape: f32[1,128], index: 2, kind: input, shape index: {}]
  %s3 = inlined_call_operand.vmem [shape: f32[1,128], index: 3, kind: input, shape index: {}]
  %s4 = inlined_call_operand.vmem [shape: bf16[2,342,128], index: 4, kind: output, shape index: {}]
  %s5 = sld [smem:[#allocation0]]
  $region49: #{basic_block_forward.2} parent=0
    _
  %s7 = ssub.s32 1, %s5
  %s8 = scalar_select 0, %s7, %s5
  loop: start=0, step=1, limit=4
  $region2: #{basic_block_forward.2} parent=0 // loop_pre_header
    _
  $region3: #{basic_block_forward.2} parent=0 // loop_header
    %s10 = sphi 0, %s14
    %p11 = scmp.ge.s32.totalorder %s10, 4
    %s20 = sphi 0, %s22
    %s23 = sphi 0, %s20
    %s24 = sphi 0, %s23
    %s40 = sphi 0, %s24
    %s44 = sphi 0, %s44
    %s46 = sphi 0, %s44
    %s47 = sphi 0, %s46
    %s61 = sphi 0, %s47
    %s65 = sphi 0, %s65
    %s67 = sphi 0, %s65
    %s68 = sphi 0, %s67
    %s82 = sphi 0, %s68
    %s86 = sphi 0, %s86
    %s88 = sphi 0, %s86
    %s89 = sphi 0, %s88
    %s103 = sphi 0, %s89
    %s109 = sphi 0, %s111
    %s112 = sphi 0, %s109
    %s113 = sphi 0, %s112
    %s129 = sphi 0, %s113
  $region4: #{basic_block_forward.2} parent=0 // loop_header_branch
    %13 = sbr.rel (%p11) target = $region8
  $region5: #{basic_block_forward.2} parent=0 // loop_body
    %s15 = ssub.s32 %s10, 1
    %s16 = ssub.s32 %s10, 2
    %s17 = sadd.s32 %s10, 1
    %s18 = ssub.s32 %s10, %s17
    %p19 = scmp.eq.s32.totalorder %s18, 0
    %s21 = sadd.s32 %s20, 1
    %s22 = scalar_select %p19, %s20, %s21
    %p25 = pneg %p19
    %p26 = scmp.eq.s32.totalorder %s10, 1
    %p27 = por %p25, %p26
    %p28 = scmp.ne.s32.totalorder %s20, %s23
    %p29 = scmp.eq.s32.totalorder %s10, 0
    %p30 = por %p28, %p29
    %p31 = scmp.ne.s32.totalorder %s20, %s23
    %p32 = scmp.eq.s32.totalorder %s15, 1
    %p33 = por %p31, %p32
    %p34 = scmp.ne.s32.totalorder %s23, %s24
    %p35 = scmp.eq.s32.totalorder %s15, 0
    %p36 = por %p34, %p35
    %p37 = scmp.ne.s32.totalorder %s23, %s24
    %p38 = scmp.eq.s32.totalorder %s16, 1
    %p39 = por %p37, %p38
    %p41 = scmp.ne.s32.totalorder %s24, %s40
    %p42 = scmp.eq.s32.totalorder %s16, 0
    %p43 = por %p41, %p42
    %s45 = sadd.s32 %s44, 1
    %p48 = scmp.eq.s32.totalorder %s10, 1
    %p49 = scmp.ne.s32.totalorder %s44, %s46
    %p50 = scmp.eq.s32.totalorder %s10, 0
    %p51 = por %p49, %p50
    %p52 = scmp.ne.s32.totalorder %s44, %s46
    %p53 = scmp.eq.s32.totalorder %s15, 1
    %p54 = por %p52, %p53
    %p55 = scmp.ne.s32.totalorder %s46, %s47
    %p56 = scmp.eq.s32.totalorder %s15, 0
    %p57 = por %p55, %p56
    %p58 = scmp.ne.s32.totalorder %s46, %s47
    %p59 = scmp.eq.s32.totalorder %s16, 1
    %p60 = por %p58, %p59
    %p62 = scmp.ne.s32.totalorder %s47, %s61
    %p63 = scmp.eq.s32.totalorder %s16, 0
    %p64 = por %p62, %p63
    %s66 = sadd.s32 %s65, 1
    %p69 = scmp.eq.s32.totalorder %s10, 1
    %p70 = scmp.ne.s32.totalorder %s65, %s67
    %p71 = scmp.eq.s32.totalorder %s10, 0
    %p72 = por %p70, %p71
    %p73 = scmp.ne.s32.totalorder %s65, %s67
    %p74 = scmp.eq.s32.totalorder %s15, 1
    %p75 = por %p73, %p74
    %p76 = scmp.ne.s32.totalorder %s67, %s68
    %p77 = scmp.eq.s32.totalorder %s15, 0
    %p78 = por %p76, %p77
    %p79 = scmp.ne.s32.totalorder %s67, %s68
    %p80 = scmp.eq.s32.totalorder %s16, 1
    %p81 = por %p79, %p80
    %p83 = scmp.ne.s32.totalorder %s68, %s82
    %p84 = scmp.eq.s32.totalorder %s16, 0
    %p85 = por %p83, %p84
    %s87 = sadd.s32 %s86, 1
    %p90 = scmp.eq.s32.totalorder %s10, 1
    %p91 = scmp.ne.s32.totalorder %s86, %s88
    %p92 = scmp.eq.s32.totalorder %s10, 0
    %p93 = por %p91, %p92
    %p94 = scmp.ne.s32.totalorder %s86, %s88
    %p95 = scmp.eq.s32.totalorder %s15, 1
    %p96 = por %p94, %p95
    %p97 = scmp.ne.s32.totalorder %s88, %s89
    %p98 = scmp.eq.s32.totalorder %s15, 0
    %p99 = por %p97, %p98
    %p100 = scmp.ne.s32.totalorder %s88, %s89
    %p101 = scmp.eq.s32.totalorder %s16, 1
    %p102 = por %p100, %p101
    %p104 = scmp.ne.s32.totalorder %s89, %s103
    %p105 = scmp.eq.s32.totalorder %s16, 0
    %p106 = por %p104, %p105
    %s107 = ssub.s32 %s10, %s17
    %p108 = scmp.eq.s32.totalorder %s107, 0
    %s110 = sadd.s32 %s109, 1
    %s111 = scalar_select %p108, %s109, %s110
    %p114 = pneg %p108
    %p115 = scmp.eq.s32.totalorder %s10, 1
    %p116 = por %p114, %p115
    %p117 = scmp.ne.s32.totalorder %s109, %s112
    %p118 = scmp.eq.s32.totalorder %s10, 0
    %p119 = por %p117, %p118
    %p120 = scmp.ne.s32.totalorder %s109, %s112
    %p121 = scmp.eq.s32.totalorder %s15, 1
    %p122 = por %p120, %p121
    %p123 = scmp.ne.s32.totalorder %s112, %s113
    %p124 = scmp.eq.s32.totalorder %s15, 0
    %p125 = por %p123, %p124
    %p126 = scmp.ne.s32.totalorder %s112, %s113
    %p127 = scmp.eq.s32.totalorder %s16, 1
    %p128 = por %p126, %p127
    %p130 = scmp.ne.s32.totalorder %s113, %s129
    %p131 = scmp.eq.s32.totalorder %s16, 0
    %p132 = por %p130, %p131
    %p133 = scmp.le.s32.totalorder 1, %s10
    %p134 = scmp.lt.s32.totalorder %s10, 3
    %p135 = pnand %p133, %p134
    %p136 = pneg %p135
    // Predicated region
    $region9: #{basic_block_forward.2} parent=5 // pred_check
      _
    $region10: #{basic_block_forward.2} parent=5 // pred_check_branch
      %138 = sbr.rel (%p135) target = $region12
    $region11: #{basic_block_forward.2} parent=5 // pred_region
      %s139 = ssub.s32 %s10, 1
      // Predicated region
      $region13: #{basic_block_forward.2} parent=11 // pred_check
        %p140 = pneg %p57
      $region14: #{basic_block_forward.2} parent=11 // pred_check_branch
        %142 = sbr.rel (%p140) target = $region16
      $region15: #{basic_block_forward.2} parent=11 // pred_region
        _
      $region16: #{basic_block_forward.2} parent=11 // pred_fallthru
        _
      // Predicated region
      $region17: #{basic_block_forward.2} parent=11 // pred_check
        %p143 = pneg %p78
      $region18: #{basic_block_forward.2} parent=11 // pred_check_branch
        %145 = sbr.rel (%p143) target = $region20
      $region19: #{basic_block_forward.2} parent=11 // pred_region
        _
      $region20: #{basic_block_forward.2} parent=11 // pred_fallthru
        _
      // Predicated region
      $region21: #{basic_block_forward.2} parent=11 // pred_check
        %p146 = pneg %p99
      $region22: #{basic_block_forward.2} parent=11 // pred_check_branch
        %148 = sbr.rel (%p146) target = $region24
      $region23: #{basic_block_forward.2} parent=11 // pred_region
        _
      $region24: #{basic_block_forward.2} parent=11 // pred_fallthru
        _
    $region12: #{basic_block_forward.2} parent=5 // pred_fallthru
      _
    %p149 = scmp.lt.s32.totalorder %s10, 2
    // Predicated region
    $region25: #{basic_block_forward.2} parent=5 // pred_check
      %p150 = pneg %p149
    $region26: #{basic_block_forward.2} parent=5 // pred_check_branch
      %152 = sbr.rel (%p150) target = $region28
    $region27: #{basic_block_forward.2} parent=5 // pred_region
      // Predicated region
      $region29: #{basic_block_forward.2} parent=27 // pred_check
        %p153 = pneg %p30
      $region30: #{basic_block_forward.2} parent=27 // pred_check_branch
        %155 = sbr.rel (%p153) target = $region32
      $region31: #{basic_block_forward.2} parent=27 // pred_region
        %p156 = scmp.lt.s32.totalorder %s10, 1
        %s157 = scalar_select %p156, %s10, 1
        %s158 = smul.addr %s157, 43
        %s159 = smul.addr %s158, 4
        %s160 = scalar_lea.vmem %s0, %s159
      $region32: #{basic_block_forward.2} parent=27 // pred_fallthru
        _
    $region28: #{basic_block_forward.2} parent=5 // pred_fallthru
      _
    %p161 = scmp.le.s32.totalorder 1, %s10
    %p162 = scmp.lt.s32.totalorder %s10, 3
    %p163 = pnand %p161, %p162
    %p164 = pneg %p163
    // Predicated region
    $region33: #{basic_block_forward.2} parent=5 // pred_check
      _
    $region34: #{basic_block_forward.2} parent=5 // pred_check_branch
      %166 = sbr.rel (%p163) target = $region36
    $region35: #{basic_block_forward.2} parent=5 // pred_region
      %s167 = ssub.s32 %s10, 1
      %p168 = scmp.lt.s32.totalorder %s15, 1
      %s169 = scalar_select %p168, %s15, 1
      %s170 = smul.addr %s169, 43
      %s171 = smul.addr %s170, 4
      %s172 = scalar_lea.vmem %s0, %s171
      %p173 = pneg %p36
      %p174 = pneg %p33
      %p175 = pneg %p57
      %p176 = pneg %p54
      %p177 = pneg %p78
      %p178 = pneg %p75
      %p179 = pneg %p99
      %p180 = pneg %p96
      %p181 = pneg %p125
      %p182 = pneg %p122
      %p183 = scmp.lt.s32.totalorder %s15, 1
      %s184 = scalar_select %p183, %s15, 1
      %s185 = smul.addr %s184, 43
      %s186 = smul.addr %s185, 4
      %s187 = scalar_lea.vmem %s4, %s186
      %p188 = scmp.lt.s32.totalorder %s15, 1
      %s189 = scalar_select %p188, %s15, 1
      %s190 = smul.addr %s189, 43
      %s191 = smul.addr %s190, 4
      %s192 = scalar_lea.vmem %s0, %s191
      %p193 = scmp.lt.s32.totalorder %s15, 1
      %s194 = scalar_select %p193, %s15, 1
      %s195 = smul.addr %s194, 43
      %s196 = smul.addr %s195, 4
      %s197 = scalar_lea.vmem %s4, %s196
      %v199 = vld [vmem:[%s192] sm:$0xf]
      %v200 = vld [vmem:[%s192 + $0x4] sm:$0xf]
      %v201 = vld [vmem:[%s192 + $0x8] sm:$0xf]
      %v202 = vld [vmem:[%s192 + $0xc] sm:$0xf]
      %v203 = vld [vmem:[%s192 + $0x10] sm:$0xf]
      %v204 = vld [vmem:[%s192 + $0x14] sm:$0xf]
      %v205 = vld [vmem:[%s192 + $0x18] sm:$0xf]
      %v206 = vld [vmem:[%s192 + $0x1c] sm:$0xf]
      %v207 = vld [vmem:[%s192 + $0x20] sm:$0xf]
      %v208 = vld [vmem:[%s192 + $0x24] sm:$0xf]
      %v209 = vld [vmem:[%s192 + $0x28] sm:$0xf]
      %v210 = vld [vmem:[%s192 + $0x2c] sm:$0xf]
      %v211 = vld [vmem:[%s192 + $0x30] sm:$0xf]
      %v212 = vld [vmem:[%s192 + $0x34] sm:$0xf]
      %v213 = vld [vmem:[%s192 + $0x38] sm:$0xf]
      %v214 = vld [vmem:[%s192 + $0x3c] sm:$0xf]
      %v215 = vld [vmem:[%s192 + $0x40] sm:$0xf]
      %v216 = vld [vmem:[%s192 + $0x44] sm:$0xf]
      %v217 = vld [vmem:[%s192 + $0x48] sm:$0xf]
      %v218 = vld [vmem:[%s192 + $0x4c] sm:$0xf]
      %v219 = vld [vmem:[%s192 + $0x50] sm:$0xf]
      %v220 = vld [vmem:[%s192 + $0x54] sm:$0xf]
      %v221 = vld [vmem:[%s192 + $0x58] sm:$0xf]
      %v222 = vld [vmem:[%s192 + $0x5c] sm:$0xf]
      %v223 = vld [vmem:[%s192 + $0x60] sm:$0xf]
      %v224 = vld [vmem:[%s192 + $0x64] sm:$0xf]
      %v225 = vld [vmem:[%s192 + $0x68] sm:$0xf]
      %v226 = vld [vmem:[%s192 + $0x6c] sm:$0xf]
      %v227 = vld [vmem:[%s192 + $0x70] sm:$0xf]
      %v228 = vld [vmem:[%s192 + $0x74] sm:$0xf]
      %v229 = vld [vmem:[%s192 + $0x78] sm:$0xf]
      %v230 = vld [vmem:[%s192 + $0x7c] sm:$0xf]
      %v231 = vld [vmem:[%s192 + $0x80] sm:$0xf]
      %v232 = vld [vmem:[%s192 + $0x84] sm:$0xf]
      %v233 = vld [vmem:[%s192 + $0x88] sm:$0xf]
      %v234 = vld [vmem:[%s192 + $0x8c] sm:$0xf]
      %v235 = vld [vmem:[%s1] sm:$0xf]
      %v236 = vld [vmem:[%s1 + $0x4] sm:$0xf]
      %v237 = vld [vmem:[%s1 + $0x8] sm:$0xf]
      %v238 = vld [vmem:[%s1 + $0xc] sm:$0xf]
      %v239 = vld [vmem:[%s1 + $0x10] sm:$0xf]
      %v240 = vld [vmem:[%s1 + $0x14] sm:$0xf]
      %v241 = vld [vmem:[%s1 + $0x18] sm:$0xf]
      %v242 = vld [vmem:[%s1 + $0x1c] sm:$0xf]
      %v243 = vld [vmem:[%s1 + $0x20] sm:$0xf]
      %v244 = vld [vmem:[%s1 + $0x24] sm:$0xf]
      %v245 = vld [vmem:[%s1 + $0x28] sm:$0xf]
      %v246 = vld [vmem:[%s1 + $0x2c] sm:$0xf]
      %v247 = vld [vmem:[%s1 + $0x30] sm:$0xf]
      %v248 = vld [vmem:[%s1 + $0x34] sm:$0xf]
      %v249 = vld [vmem:[%s1 + $0x38] sm:$0xf]
      %v250 = vld [vmem:[%s1 + $0x3c] sm:$0xf]
      %v251 = vld [vmem:[%s192 + $0x90] sm:$0x1]
      %s252 = scalar_lea.vmem %s1, 64
      %v253 = vld [vmem:[%s252] sm:$0xf]
      %v254 = vld [vmem:[%s252 + $0x4] sm:$0xf]
      %v255 = vld [vmem:[%s252 + $0x8] sm:$0xf]
      %v256 = vld [vmem:[%s252 + $0xc] sm:$0xf]
      %v257 = vld [vmem:[%s252 + $0x10] sm:$0xf]
      %v258 = vld [vmem:[%s252 + $0x14] sm:$0xf]
      %v259 = vld [vmem:[%s252 + $0x18] sm:$0xf]
      %v260 = vld [vmem:[%s252 + $0x1c] sm:$0xf]
      %v261 = vld [vmem:[%s252 + $0x20] sm:$0xf]
      %v262 = vld [vmem:[%s252 + $0x24] sm:$0xf]
      %v263 = vld [vmem:[%s252 + $0x28] sm:$0xf]
      %v264 = vld [vmem:[%s252 + $0x2c] sm:$0xf]
      %v265 = vld [vmem:[%s252 + $0x30] sm:$0xf]
      %v266 = vld [vmem:[%s252 + $0x34] sm:$0xf]
      %v267 = vld [vmem:[%s252 + $0x38] sm:$0xf]
      %v268 = vld [vmem:[%s252 + $0x3c] sm:$0xf]
      %v306 = vunpack.c.l.b16 %v199
      %v307 = vunpack.c.l.b16 %v200
      %v308 = vunpack.c.l.b16 %v201
      %v309 = vunpack.c.l.b16 %v202
      %v310 = vunpack.c.l.b16 %v203
      %v311 = vunpack.c.l.b16 %v204
      %v312 = vunpack.c.l.b16 %v205
      %v313 = vunpack.c.l.b16 %v206
      %v314 = vunpack.c.l.b16 %v207
      %v315 = vunpack.c.l.b16 %v208
      %v316 = vunpack.c.l.b16 %v209
      %v317 = vunpack.c.l.b16 %v210
      %v318 = vunpack.c.l.b16 %v211
      %v319 = vunpack.c.l.b16 %v212
      %v320 = vunpack.c.l.b16 %v213
      %v321 = vunpack.c.l.b16 %v214
      %v322 = vunpack.c.l.b16 %v215
      %v323 = vunpack.c.l.b16 %v216
      %v324 = vunpack.c.l.b16 %v217
      %v325 = vunpack.c.l.b16 %v218
      %v326 = vunpack.c.l.b16 %v219
      %v327 = vunpack.c.l.b16 %v220
      %v328 = vunpack.c.l.b16 %v221
      %v329 = vunpack.c.l.b16 %v222
      %v330 = vunpack.c.l.b16 %v223
      %v331 = vunpack.c.l.b16 %v224
      %v332 = vunpack.c.l.b16 %v225
      %v333 = vunpack.c.l.b16 %v226
      %v334 = vunpack.c.l.b16 %v227
      %v335 = vunpack.c.l.b16 %v228
      %v336 = vunpack.c.l.b16 %v229
      %v337 = vunpack.c.l.b16 %v230
      %v338 = vunpack.c.l.b16 %v231
      %v339 = vunpack.c.l.b16 %v232
      %v340 = vunpack.c.l.b16 %v233
      %v341 = vunpack.c.l.b16 %v234
      %v342 = vunpack.c.l.b16 %v251
      %v343 = vpack.c.b16 %v307, %v306
      %v344 = vpack.c.b16 %v309, %v308
      %v345 = vpack.c.b16 %v311, %v310
      %v346 = vpack.c.b16 %v313, %v312
      %v347 = vpack.c.b16 %v315, %v314
      %v348 = vpack.c.b16 %v317, %v316
      %v349 = vpack.c.b16 %v319, %v318
      %v350 = vpack.c.b16 %v321, %v320
      %v351 = vpack.c.b16 %v323, %v322
      %v352 = vpack.c.b16 %v325, %v324
      %v353 = vpack.c.b16 %v327, %v326
      %v354 = vpack.c.b16 %v329, %v328
      %v355 = vpack.c.b16 %v331, %v330
      %v356 = vpack.c.b16 %v333, %v332
      %v357 = vpack.c.b16 %v335, %v334
      %v358 = vpack.c.b16 %v337, %v336
      %v359 = vpack.c.b16 %v339, %v338
      %v360 = vpack.c.b16 %v341, %v340
      %v361 = vpack.c.b16 %v342, %v342
      %vm362 = vsmask.f32 7424
      %v364 = vshrl.u32 %v343, 16
      %v366 = vshll.u32 %v343, 16
      %v368 = vrot.slane %v366, 1
      %v369 = vor.u32 %v364, %v368
      %v371 = vshll.u32 %v344, 16
      %v373 = vrot.slane %v371, 1
      %v374 = vsel %vm362, %v369, %v373
      %v375 = vshrl.u32 %v344, 16
      %v377 = vor.u32 %v375, %v373
      %v379 = vshll.u32 %v345, 16
      %v381 = vrot.slane %v379, 1
      %v382 = vsel %vm362, %v377, %v381
      %v383 = vshrl.u32 %v345, 16
      %v385 = vor.u32 %v383, %v381
      %v387 = vshll.u32 %v346, 16
      %v389 = vrot.slane %v387, 1
      %v390 = vsel %vm362, %v385, %v389
      %v391 = vshrl.u32 %v346, 16
      %v393 = vor.u32 %v391, %v389
      %v395 = vshll.u32 %v347, 16
      %v397 = vrot.slane %v395, 1
      %v398 = vsel %vm362, %v393, %v397
      %v399 = vshrl.u32 %v347, 16
      %v401 = vor.u32 %v399, %v397
      %v403 = vshll.u32 %v348, 16
      %v405 = vrot.slane %v403, 1
      %v406 = vsel %vm362, %v401, %v405
      %v407 = vshrl.u32 %v348, 16
      %v409 = vor.u32 %v407, %v405
      %v411 = vshll.u32 %v349, 16
      %v413 = vrot.slane %v411, 1
      %v414 = vsel %vm362, %v409, %v413
      %v415 = vshrl.u32 %v349, 16
      %v417 = vor.u32 %v415, %v413
      %v419 = vshll.u32 %v350, 16
      %v421 = vrot.slane %v419, 1
      %v422 = vsel %vm362, %v417, %v421
      %v423 = vshrl.u32 %v350, 16
      %v425 = vor.u32 %v423, %v421
      %v427 = vshll.u32 %v351, 16
      %v429 = vrot.slane %v427, 1
      %v430 = vsel %vm362, %v425, %v429
      %v431 = vshrl.u32 %v351, 16
      %v433 = vor.u32 %v431, %v429
      %v435 = vshll.u32 %v352, 16
      %v437 = vrot.slane %v435, 1
      %v438 = vsel %vm362, %v433, %v437
      %v439 = vshrl.u32 %v352, 16
      %v441 = vor.u32 %v439, %v437
      %v443 = vshll.u32 %v353, 16
      %v445 = vrot.slane %v443, 1
      %v446 = vsel %vm362, %v441, %v445
      %v447 = vshrl.u32 %v353, 16
      %v449 = vor.u32 %v447, %v445
      %v451 = vshll.u32 %v354, 16
      %v453 = vrot.slane %v451, 1
      %v454 = vsel %vm362, %v449, %v453
      %v455 = vshrl.u32 %v354, 16
      %v457 = vor.u32 %v455, %v453
      %v459 = vshll.u32 %v355, 16
      %v461 = vrot.slane %v459, 1
      %v462 = vsel %vm362, %v457, %v461
      %v463 = vshrl.u32 %v355, 16
      %v465 = vor.u32 %v463, %v461
      %v467 = vshll.u32 %v356, 16
      %v469 = vrot.slane %v467, 1
      %v470 = vsel %vm362, %v465, %v469
      %v471 = vshrl.u32 %v356, 16
      %v473 = vor.u32 %v471, %v469
      %v475 = vshll.u32 %v357, 16
      %v477 = vrot.slane %v475, 1
      %v478 = vsel %vm362, %v473, %v477
      %v479 = vshrl.u32 %v357, 16
      %v481 = vor.u32 %v479, %v477
      %v483 = vshll.u32 %v358, 16
      %v485 = vrot.slane %v483, 1
      %v486 = vsel %vm362, %v481, %v485
      %v487 = vshrl.u32 %v358, 16
      %v489 = vor.u32 %v487, %v485
      %v491 = vshll.u32 %v359, 16
      %v493 = vrot.slane %v491, 1
      %v494 = vsel %vm362, %v489, %v493
      %v495 = vshrl.u32 %v359, 16
      %v497 = vor.u32 %v495, %v493
      %v499 = vshll.u32 %v360, 16
      %v501 = vrot.slane %v499, 1
      %v502 = vsel %vm362, %v497, %v501
      %v503 = vshrl.u32 %v360, 16
      %v505 = vor.u32 %v503, %v501
      %v507 = vshll.u32 %v361, 16
      %v509 = vrot.slane %v507, 1
      %v510 = vsel %vm362, %v505, %v509
      %v545 = vunpack.c.l.b16 %v253
      %v546 = vunpack.c.l.b16 %v254
      %v547 = vunpack.c.l.b16 %v255
      %v548 = vunpack.c.l.b16 %v256
      %v549 = vunpack.c.l.b16 %v257
      %v550 = vunpack.c.l.b16 %v258
      %v551 = vunpack.c.l.b16 %v259
      %v552 = vunpack.c.l.b16 %v260
      %v553 = vunpack.c.l.b16 %v261
      %v554 = vunpack.c.l.b16 %v262
      %v555 = vunpack.c.l.b16 %v263
      %v556 = vunpack.c.l.b16 %v264
      %v557 = vunpack.c.l.b16 %v265
      %v558 = vunpack.c.l.b16 %v266
      %v559 = vunpack.c.l.b16 %v267
      %v560 = vunpack.c.l.b16 %v268
      %v561 = vpack.c.b16 %v546, %v545
      %v562 = vpack.c.b16 %v548, %v547
      %v563 = vpack.c.b16 %v550, %v549
      %v564 = vpack.c.b16 %v552, %v551
      %v565 = vpack.c.b16 %v554, %v553
      %v566 = vpack.c.b16 %v556, %v555
      %v567 = vpack.c.b16 %v558, %v557
      %v568 = vpack.c.b16 %v560, %v559
      %577 = vmatpush.bf16.msra.mxu0 %v568
      %578 = vmatpush.bf16.msra.mxu0 %v567
      %579 = vmatpush.bf16.msra.mxu0 %v566
      %580 = vmatpush.bf16.msra.mxu0 %v565
      %581 = vmatpush.bf16.msra.mxu0 %v564
      %582 = vmatpush.bf16.msra.mxu0 %v563
      %583 = vmatpush.bf16.msra.mxu0 %v562
      %584 = vmatpush.bf16.msra.mxu0 %v561
      %585 = vmatmul.bf16.gmra.mxu0 %v374
      %v586 = vpop.f32.mrf.mxu0
      %v587 = vadd.f32 0.0, %v586
      %v588 = vpop.f32.mrf.mxu0
      %v589 = vadd.f32 0.0, %v588
      %590 = vmatmul.bf16.gmra.mxu0 %v382
      %v591 = vpop.f32.mrf.mxu0
      %v592 = vadd.f32 0.0, %v591
      %v593 = vpop.f32.mrf.mxu0
      %v594 = vadd.f32 0.0, %v593
      %595 = vmatmul.bf16.gmra.mxu0 %v390
      %v596 = vpop.f32.mrf.mxu0
      %v597 = vadd.f32 0.0, %v596
      %v598 = vpop.f32.mrf.mxu0
      %v599 = vadd.f32 0.0, %v598
      %600 = vmatmul.bf16.gmra.mxu0 %v398
      %v601 = vpop.f32.mrf.mxu0
      %v602 = vadd.f32 0.0, %v601
      %v603 = vpop.f32.mrf.mxu0
      %v604 = vadd.f32 0.0, %v603
      %605 = vmatmul.bf16.gmra.mxu0 %v406
      %v606 = vpop.f32.mrf.mxu0
      %v607 = vadd.f32 0.0, %v606
      %v608 = vpop.f32.mrf.mxu0
      %v609 = vadd.f32 0.0, %v608
      %610 = vmatmul.bf16.gmra.mxu0 %v414
      %v611 = vpop.f32.mrf.mxu0
      %v612 = vadd.f32 0.0, %v611
      %v613 = vpop.f32.mrf.mxu0
      %v614 = vadd.f32 0.0, %v613
      %615 = vmatmul.bf16.gmra.mxu0 %v422
      %v616 = vpop.f32.mrf.mxu0
      %v617 = vadd.f32 0.0, %v616
      %v618 = vpop.f32.mrf.mxu0
      %v619 = vadd.f32 0.0, %v618
      %620 = vmatmul.bf16.gmra.mxu0 %v430
      %v621 = vpop.f32.mrf.mxu0
      %v622 = vadd.f32 0.0, %v621
      %v623 = vpop.f32.mrf.mxu0
      %v624 = vadd.f32 0.0, %v623
      %625 = vmatmul.bf16.gmra.mxu0 %v438
      %v626 = vpop.f32.mrf.mxu0
      %v627 = vadd.f32 0.0, %v626
      %v628 = vpop.f32.mrf.mxu0
      %v629 = vadd.f32 0.0, %v628
      %630 = vmatmul.bf16.gmra.mxu0 %v446
      %v631 = vpop.f32.mrf.mxu0
      %v632 = vadd.f32 0.0, %v631
      %v633 = vpop.f32.mrf.mxu0
      %v634 = vadd.f32 0.0, %v633
      %635 = vmatmul.bf16.gmra.mxu0 %v454
      %v636 = vpop.f32.mrf.mxu0
      %v637 = vadd.f32 0.0, %v636
      %v638 = vpop.f32.mrf.mxu0
      %v639 = vadd.f32 0.0, %v638
      %640 = vmatmul.bf16.gmra.mxu0 %v462
      %v641 = vpop.f32.mrf.mxu0
      %v642 = vadd.f32 0.0, %v641
      %v643 = vpop.f32.mrf.mxu0
      %v644 = vadd.f32 0.0, %v643
      %645 = vmatmul.bf16.gmra.mxu0 %v470
      %v646 = vpop.f32.mrf.mxu0
      %v647 = vadd.f32 0.0, %v646
      %v648 = vpop.f32.mrf.mxu0
      %v649 = vadd.f32 0.0, %v648
      %650 = vmatmul.bf16.gmra.mxu0 %v478
      %v651 = vpop.f32.mrf.mxu0
      %v652 = vadd.f32 0.0, %v651
      %v653 = vpop.f32.mrf.mxu0
      %v654 = vadd.f32 0.0, %v653
      %655 = vmatmul.bf16.gmra.mxu0 %v486
      %v656 = vpop.f32.mrf.mxu0
      %v657 = vadd.f32 0.0, %v656
      %v658 = vpop.f32.mrf.mxu0
      %v659 = vadd.f32 0.0, %v658
      %660 = vmatmul.bf16.gmra.mxu0 %v494
      %v661 = vpop.f32.mrf.mxu0
      %v662 = vadd.f32 0.0, %v661
      %v663 = vpop.f32.mrf.mxu0
      %v664 = vadd.f32 0.0, %v663
      %665 = vmatmul.bf16.gmra.mxu0 %v502
      %v666 = vpop.f32.mrf.mxu0
      %v667 = vadd.f32 0.0, %v666
      %v668 = vpop.f32.mrf.mxu0
      %v669 = vadd.f32 0.0, %v668
      %670 = vmatmul.bf16.gmra.mxu0 %v510
      %v671 = vpop.f32.mrf.mxu0
      %v672 = vadd.f32 0.0, %v671
      %v673 = vpop.f32.mrf.mxu0
      %v674 = vadd.f32 0.0, %v673
      %675 = vdwg.mxu0
      %v710 = vunpack.c.l.b16 %v235
      %v711 = vunpack.c.l.b16 %v236
      %v712 = vunpack.c.l.b16 %v237
      %v713 = vunpack.c.l.b16 %v238
      %v714 = vunpack.c.l.b16 %v239
      %v715 = vunpack.c.l.b16 %v240
      %v716 = vunpack.c.l.b16 %v241
      %v717 = vunpack.c.l.b16 %v242
      %v718 = vunpack.c.l.b16 %v243
      %v719 = vunpack.c.l.b16 %v244
      %v720 = vunpack.c.l.b16 %v245
      %v721 = vunpack.c.l.b16 %v246
      %v722 = vunpack.c.l.b16 %v247
      %v723 = vunpack.c.l.b16 %v248
      %v724 = vunpack.c.l.b16 %v249
      %v725 = vunpack.c.l.b16 %v250
      %v726 = vpack.c.b16 %v711, %v710
      %v727 = vpack.c.b16 %v713, %v712
      %v728 = vpack.c.b16 %v715, %v714
      %v729 = vpack.c.b16 %v717, %v716
      %v730 = vpack.c.b16 %v719, %v718
      %v731 = vpack.c.b16 %v721, %v720
      %v732 = vpack.c.b16 %v723, %v722
      %v733 = vpack.c.b16 %v725, %v724
      %742 = vmatpush.bf16.msra.mxu0 %v733
      %743 = vmatpush.bf16.msra.mxu0 %v732
      %744 = vmatpush.bf16.msra.mxu0 %v731
      %745 = vmatpush.bf16.msra.mxu0 %v730
      %746 = vmatpush.bf16.msra.mxu0 %v729
      %747 = vmatpush.bf16.msra.mxu0 %v728
      %748 = vmatpush.bf16.msra.mxu0 %v727
      %749 = vmatpush.bf16.msra.mxu0 %v726
      %750 = vmatmul.bf16.gmra.mxu0 %v343
      %v751 = vpop.f32.mrf.mxu0
      %v752 = vadd.f32 %v587, %v751
      %v753 = vpop.f32.mrf.mxu0
      %v754 = vadd.f32 %v589, %v753
      %755 = vmatmul.bf16.gmra.mxu0 %v344
      %v756 = vpop.f32.mrf.mxu0
      %v757 = vadd.f32 %v592, %v756
      %v758 = vpop.f32.mrf.mxu0
      %v759 = vadd.f32 %v594, %v758
      %760 = vmatmul.bf16.gmra.mxu0 %v345
      %v761 = vpop.f32.mrf.mxu0
      %v762 = vadd.f32 %v597, %v761
      %v763 = vpop.f32.mrf.mxu0
      %v764 = vadd.f32 %v599, %v763
      %765 = vmatmul.bf16.gmra.mxu0 %v346
      %v766 = vpop.f32.mrf.mxu0
      %v767 = vadd.f32 %v602, %v766
      %v768 = vpop.f32.mrf.mxu0
      %v769 = vadd.f32 %v604, %v768
      %770 = vmatmul.bf16.gmra.mxu0 %v347
      %v771 = vpop.f32.mrf.mxu0
      %v772 = vadd.f32 %v607, %v771
      %v773 = vpop.f32.mrf.mxu0
      %v774 = vadd.f32 %v609, %v773
      %775 = vmatmul.bf16.gmra.mxu0 %v348
      %v776 = vpop.f32.mrf.mxu0
      %v777 = vadd.f32 %v612, %v776
      %v778 = vpop.f32.mrf.mxu0
      %v779 = vadd.f32 %v614, %v778
      %780 = vmatmul.bf16.gmra.mxu0 %v349
      %v781 = vpop.f32.mrf.mxu0
      %v782 = vadd.f32 %v617, %v781
      %v783 = vpop.f32.mrf.mxu0
      %v784 = vadd.f32 %v619, %v783
      %785 = vmatmul.bf16.gmra.mxu0 %v350
      %v786 = vpop.f32.mrf.mxu0
      %v787 = vadd.f32 %v622, %v786
      %v788 = vpop.f32.mrf.mxu0
      %v789 = vadd.f32 %v624, %v788
      %790 = vmatmul.bf16.gmra.mxu0 %v351
      %v791 = vpop.f32.mrf.mxu0
      %v792 = vadd.f32 %v627, %v791
      %v793 = vpop.f32.mrf.mxu0
      %v794 = vadd.f32 %v629, %v793
      %795 = vmatmul.bf16.gmra.mxu0 %v352
      %v796 = vpop.f32.mrf.mxu0
      %v797 = vadd.f32 %v632, %v796
      %v798 = vpop.f32.mrf.mxu0
      %v799 = vadd.f32 %v634, %v798
      %800 = vmatmul.bf16.gmra.mxu0 %v353
      %v801 = vpop.f32.mrf.mxu0
      %v802 = vadd.f32 %v637, %v801
      %v803 = vpop.f32.mrf.mxu0
      %v804 = vadd.f32 %v639, %v803
      %805 = vmatmul.bf16.gmra.mxu0 %v354
      %v806 = vpop.f32.mrf.mxu0
      %v807 = vadd.f32 %v642, %v806
      %v808 = vpop.f32.mrf.mxu0
      %v809 = vadd.f32 %v644, %v808
      %810 = vmatmul.bf16.gmra.mxu0 %v355
      %v811 = vpop.f32.mrf.mxu0
      %v812 = vadd.f32 %v647, %v811
      %v813 = vpop.f32.mrf.mxu0
      %v814 = vadd.f32 %v649, %v813
      %815 = vmatmul.bf16.gmra.mxu0 %v356
      %v816 = vpop.f32.mrf.mxu0
      %v817 = vadd.f32 %v652, %v816
      %v818 = vpop.f32.mrf.mxu0
      %v819 = vadd.f32 %v654, %v818
      %820 = vmatmul.bf16.gmra.mxu0 %v357
      %v821 = vpop.f32.mrf.mxu0
      %v822 = vadd.f32 %v657, %v821
      %v823 = vpop.f32.mrf.mxu0
      %v824 = vadd.f32 %v659, %v823
      %825 = vmatmul.bf16.gmra.mxu0 %v358
      %v826 = vpop.f32.mrf.mxu0
      %v827 = vadd.f32 %v662, %v826
      %v828 = vpop.f32.mrf.mxu0
      %v829 = vadd.f32 %v664, %v828
      %830 = vmatmul.bf16.gmra.mxu0 %v359
      %v831 = vpop.f32.mrf.mxu0
      %v832 = vadd.f32 %v667, %v831
      %v833 = vpop.f32.mrf.mxu0
      %v834 = vadd.f32 %v669, %v833
      %835 = vmatmul.bf16.gmra.mxu0 %v360
      %v836 = vpop.f32.mrf.mxu0
      %v837 = vadd.f32 %v672, %v836
      %v838 = vpop.f32.mrf.mxu0
      %v839 = vadd.f32 %v674, %v838
      %840 = vdwg.mxu0
      %v841 = vld [vmem:[%s192] sm:$0xe]
      %s842 = scalar_lea.vmem %s1, 128
      %v843 = vld [vmem:[%s842] sm:$0xf]
      %v844 = vld [vmem:[%s842 + $0x4] sm:$0xf]
      %v845 = vld [vmem:[%s842 + $0x8] sm:$0xf]
      %v846 = vld [vmem:[%s842 + $0xc] sm:$0xf]
      %v847 = vld [vmem:[%s842 + $0x10] sm:$0xf]
      %v848 = vld [vmem:[%s842 + $0x14] sm:$0xf]
      %v849 = vld [vmem:[%s842 + $0x18] sm:$0xf]
      %v850 = vld [vmem:[%s842 + $0x1c] sm:$0xf]
      %v851 = vld [vmem:[%s842 + $0x20] sm:$0xf]
      %v852 = vld [vmem:[%s842 + $0x24] sm:$0xf]
      %v853 = vld [vmem:[%s842 + $0x28] sm:$0xf]
      %v854 = vld [vmem:[%s842 + $0x2c] sm:$0xf]
      %v855 = vld [vmem:[%s842 + $0x30] sm:$0xf]
      %v856 = vld [vmem:[%s842 + $0x34] sm:$0xf]
      %v857 = vld [vmem:[%s842 + $0x38] sm:$0xf]
      %v858 = vld [vmem:[%s842 + $0x3c] sm:$0xf]
      %v860 = vunpack.c.l.b16 %v841
      %v861 = vpack.c.b16 %v307, %v860
      %vm862 = vcmask 1046528
      %v863 = vrot.slane %v861, 1
      %v864 = vrot.slane %v344, 1
      %v865 = vsel %vm862, %v863, %v864
      %v866 = vrot.slane %v345, 1
      %v867 = vsel %vm862, %v864, %v866
      %v868 = vrot.slane %v346, 1
      %v869 = vsel %vm862, %v866, %v868
      %v870 = vrot.slane %v347, 1
      %v871 = vsel %vm862, %v868, %v870
      %v872 = vrot.slane %v348, 1
      %v873 = vsel %vm862, %v870, %v872
      %v874 = vrot.slane %v349, 1
      %v875 = vsel %vm862, %v872, %v874
      %v876 = vrot.slane %v350, 1
      %v877 = vsel %vm862, %v874, %v876
      %v878 = vrot.slane %v351, 1
      %v879 = vsel %vm862, %v876, %v878
      %v880 = vrot.slane %v352, 1
      %v881 = vsel %vm862, %v878, %v880
      %v882 = vrot.slane %v353, 1
      %v883 = vsel %vm862, %v880, %v882
      %v884 = vrot.slane %v354, 1
      %v885 = vsel %vm862, %v882, %v884
      %v886 = vrot.slane %v355, 1
      %v887 = vsel %vm862, %v884, %v886
      %v888 = vrot.slane %v356, 1
      %v889 = vsel %vm862, %v886, %v888
      %v890 = vrot.slane %v357, 1
      %v891 = vsel %vm862, %v888, %v890
      %v892 = vrot.slane %v358, 1
      %v893 = vsel %vm862, %v890, %v892
      %v894 = vrot.slane %v359, 1
      %v895 = vsel %vm862, %v892, %v894
      %v896 = vrot.slane %v360, 1
      %v897 = vsel %vm862, %v894, %v896
      %v898 = vrot.slane %v361, 1
      %v899 = vsel %vm862, %v896, %v898
      %v934 = vunpack.c.l.b16 %v843
      %v935 = vunpack.c.l.b16 %v844
      %v936 = vunpack.c.l.b16 %v845
      %v937 = vunpack.c.l.b16 %v846
      %v938 = vunpack.c.l.b16 %v847
      %v939 = vunpack.c.l.b16 %v848
      %v940 = vunpack.c.l.b16 %v849
      %v941 = vunpack.c.l.b16 %v850
      %v942 = vunpack.c.l.b16 %v851
      %v943 = vunpack.c.l.b16 %v852
      %v944 = vunpack.c.l.b16 %v853
      %v945 = vunpack.c.l.b16 %v854
      %v946 = vunpack.c.l.b16 %v855
      %v947 = vunpack.c.l.b16 %v856
      %v948 = vunpack.c.l.b16 %v857
      %v949 = vunpack.c.l.b16 %v858
      %v950 = vpack.c.b16 %v935, %v934
      %v951 = vpack.c.b16 %v937, %v936
      %v952 = vpack.c.b16 %v939, %v938
      %v953 = vpack.c.b16 %v941, %v940
      %v954 = vpack.c.b16 %v943, %v942
      %v955 = vpack.c.b16 %v945, %v944
      %v956 = vpack.c.b16 %v947, %v946
      %v957 = vpack.c.b16 %v949, %v948
      %966 = vmatpush.bf16.msra.mxu0 %v957
      %967 = vmatpush.bf16.msra.mxu0 %v956
      %968 = vmatpush.bf16.msra.mxu0 %v955
      %969 = vmatpush.bf16.msra.mxu0 %v954
      %970 = vmatpush.bf16.msra.mxu0 %v953
      %971 = vmatpush.bf16.msra.mxu0 %v952
      %972 = vmatpush.bf16.msra.mxu0 %v951
      %973 = vmatpush.bf16.msra.mxu0 %v950
      %974 = vmatmul.bf16.gmra.mxu0 %v865
      %v975 = vpop.f32.mrf.mxu0
      %v976 = vadd.f32 0.0, %v975
      %v977 = vpop.f32.mrf.mxu0
      %v978 = vadd.f32 0.0, %v977
      %979 = vmatmul.bf16.gmra.mxu0 %v867
      %v980 = vpop.f32.mrf.mxu0
      %v981 = vadd.f32 0.0, %v980
      %v982 = vpop.f32.mrf.mxu0
      %v983 = vadd.f32 0.0, %v982
      %984 = vmatmul.bf16.gmra.mxu0 %v869
      %v985 = vpop.f32.mrf.mxu0
      %v986 = vadd.f32 0.0, %v985
      %v987 = vpop.f32.mrf.mxu0
      %v988 = vadd.f32 0.0, %v987
      %989 = vmatmul.bf16.gmra.mxu0 %v871
      %v990 = vpop.f32.mrf.mxu0
      %v991 = vadd.f32 0.0, %v990
      %v992 = vpop.f32.mrf.mxu0
      %v993 = vadd.f32 0.0, %v992
      %994 = vmatmul.bf16.gmra.mxu0 %v873
      %v995 = vpop.f32.mrf.mxu0
      %v996 = vadd.f32 0.0, %v995
      %v997 = vpop.f32.mrf.mxu0
      %v998 = vadd.f32 0.0, %v997
      %999 = vmatmul.bf16.gmra.mxu0 %v875
      %v1000 = vpop.f32.mrf.mxu0
      %v1001 = vadd.f32 0.0, %v1000
      %v1002 = vpop.f32.mrf.mxu0
      %v1003 = vadd.f32 0.0, %v1002
      %1004 = vmatmul.bf16.gmra.mxu0 %v877
      %v1005 = vpop.f32.mrf.mxu0
      %v1006 = vadd.f32 0.0, %v1005
      %v1007 = vpop.f32.mrf.mxu0
      %v1008 = vadd.f32 0.0, %v1007
      %1009 = vmatmul.bf16.gmra.mxu0 %v879
      %v1010 = vpop.f32.mrf.mxu0
      %v1011 = vadd.f32 0.0, %v1010
      %v1012 = vpop.f32.mrf.mxu0
      %v1013 = vadd.f32 0.0, %v1012
      %1014 = vmatmul.bf16.gmra.mxu0 %v881
      %v1015 = vpop.f32.mrf.mxu0
      %v1016 = vadd.f32 0.0, %v1015
      %v1017 = vpop.f32.mrf.mxu0
      %v1018 = vadd.f32 0.0, %v1017
      %1019 = vmatmul.bf16.gmra.mxu0 %v883
      %v1020 = vpop.f32.mrf.mxu0
      %v1021 = vadd.f32 0.0, %v1020
      %v1022 = vpop.f32.mrf.mxu0
      %v1023 = vadd.f32 0.0, %v1022
      %1024 = vmatmul.bf16.gmra.mxu0 %v885
      %v1025 = vpop.f32.mrf.mxu0
      %v1026 = vadd.f32 0.0, %v1025
      %v1027 = vpop.f32.mrf.mxu0
      %v1028 = vadd.f32 0.0, %v1027
      %1029 = vmatmul.bf16.gmra.mxu0 %v887
      %v1030 = vpop.f32.mrf.mxu0
      %v1031 = vadd.f32 0.0, %v1030
      %v1032 = vpop.f32.mrf.mxu0
      %v1033 = vadd.f32 0.0, %v1032
      %1034 = vmatmul.bf16.gmra.mxu0 %v889
      %v1035 = vpop.f32.mrf.mxu0
      %v1036 = vadd.f32 0.0, %v1035
      %v1037 = vpop.f32.mrf.mxu0
      %v1038 = vadd.f32 0.0, %v1037
      %1039 = vmatmul.bf16.gmra.mxu0 %v891
      %v1040 = vpop.f32.mrf.mxu0
      %v1041 = vadd.f32 0.0, %v1040
      %v1042 = vpop.f32.mrf.mxu0
      %v1043 = vadd.f32 0.0, %v1042
      %1044 = vmatmul.bf16.gmra.mxu0 %v893
      %v1045 = vpop.f32.mrf.mxu0
      %v1046 = vadd.f32 0.0, %v1045
      %v1047 = vpop.f32.mrf.mxu0
      %v1048 = vadd.f32 0.0, %v1047
      %1049 = vmatmul.bf16.gmra.mxu0 %v895
      %v1050 = vpop.f32.mrf.mxu0
      %v1051 = vadd.f32 0.0, %v1050
      %v1052 = vpop.f32.mrf.mxu0
      %v1053 = vadd.f32 0.0, %v1052
      %1054 = vmatmul.bf16.gmra.mxu0 %v897
      %v1055 = vpop.f32.mrf.mxu0
      %v1056 = vadd.f32 0.0, %v1055
      %v1057 = vpop.f32.mrf.mxu0
      %v1058 = vadd.f32 0.0, %v1057
      %1059 = vmatmul.bf16.gmra.mxu0 %v899
      %v1060 = vpop.f32.mrf.mxu0
      %v1061 = vadd.f32 0.0, %v1060
      %v1062 = vpop.f32.mrf.mxu0
      %v1063 = vadd.f32 0.0, %v1062
      %1064 = vdwg.mxu0
      %v1065 = vadd.f32 %v752, %v976
      %v1066 = vadd.f32 %v754, %v978
      %v1067 = vadd.f32 %v757, %v981
      %v1068 = vadd.f32 %v759, %v983
      %v1069 = vadd.f32 %v762, %v986
      %v1070 = vadd.f32 %v764, %v988
      %v1071 = vadd.f32 %v767, %v991
      %v1072 = vadd.f32 %v769, %v993
      %v1073 = vadd.f32 %v772, %v996
      %v1074 = vadd.f32 %v774, %v998
      %v1075 = vadd.f32 %v777, %v1001
      %v1076 = vadd.f32 %v779, %v1003
      %v1077 = vadd.f32 %v782, %v1006
      %v1078 = vadd.f32 %v784, %v1008
      %v1079 = vadd.f32 %v787, %v1011
      %v1080 = vadd.f32 %v789, %v1013
      %v1081 = vadd.f32 %v792, %v1016
      %v1082 = vadd.f32 %v794, %v1018
      %v1083 = vadd.f32 %v797, %v1021
      %v1084 = vadd.f32 %v799, %v1023
      %v1085 = vadd.f32 %v802, %v1026
      %v1086 = vadd.f32 %v804, %v1028
      %v1087 = vadd.f32 %v807, %v1031
      %v1088 = vadd.f32 %v809, %v1033
      %v1089 = vadd.f32 %v812, %v1036
      %v1090 = vadd.f32 %v814, %v1038
      %v1091 = vadd.f32 %v817, %v1041
      %v1092 = vadd.f32 %v819, %v1043
      %v1093 = vadd.f32 %v822, %v1046
      %v1094 = vadd.f32 %v824, %v1048
      %v1095 = vadd.f32 %v827, %v1051
      %v1096 = vadd.f32 %v829, %v1053
      %v1097 = vadd.f32 %v832, %v1056
      %v1098 = vadd.f32 %v834, %v1058
      %v1099 = vadd.f32 %v837, %v1061
      %v1100 = vadd.f32 %v839, %v1063
      %v1101 = vld [vmem:[%s192 + $0x8] sm:$0xe]
      %v1102 = vld [vmem:[%s192 + $0xc] sm:$0xf]
      %v1103 = vld [vmem:[%s192 + $0x10] sm:$0xf]
      %v1104 = vld [vmem:[%s192 + $0x14] sm:$0xf]
      %v1105 = vld [vmem:[%s192 + $0x18] sm:$0xf]
      %v1106 = vld [vmem:[%s192 + $0x1c] sm:$0xf]
      %v1107 = vld [vmem:[%s192 + $0x20] sm:$0xf]
      %v1108 = vld [vmem:[%s192 + $0x24] sm:$0xf]
      %v1109 = vld [vmem:[%s192 + $0x28] sm:$0xf]
      %v1110 = vld [vmem:[%s192 + $0x2c] sm:$0xf]
      %v1111 = vld [vmem:[%s192 + $0x30] sm:$0xf]
      %v1112 = vld [vmem:[%s192 + $0x34] sm:$0xf]
      %v1113 = vld [vmem:[%s192 + $0x38] sm:$0xf]
      %v1114 = vld [vmem:[%s192 + $0x3c] sm:$0xf]
      %v1115 = vld [vmem:[%s192 + $0x40] sm:$0xf]
      %v1116 = vld [vmem:[%s192 + $0x44] sm:$0xf]
      %v1117 = vld [vmem:[%s192 + $0x48] sm:$0xf]
      %v1118 = vld [vmem:[%s192 + $0x4c] sm:$0xf]
      %v1119 = vld [vmem:[%s192 + $0x50] sm:$0xf]
      %v1120 = vld [vmem:[%s192 + $0x54] sm:$0xf]
      %v1121 = vld [vmem:[%s192 + $0x58] sm:$0xf]
      %v1122 = vld [vmem:[%s192 + $0x5c] sm:$0xf]
      %v1123 = vld [vmem:[%s192 + $0x60] sm:$0xf]
      %v1124 = vld [vmem:[%s192 + $0x64] sm:$0xf]
      %v1125 = vld [vmem:[%s192 + $0x68] sm:$0xf]
      %v1126 = vld [vmem:[%s192 + $0x6c] sm:$0xf]
      %v1127 = vld [vmem:[%s192 + $0x70] sm:$0xf]
      %v1128 = vld [vmem:[%s192 + $0x74] sm:$0xf]
      %v1129 = vld [vmem:[%s192 + $0x78] sm:$0xf]
      %v1130 = vld [vmem:[%s192 + $0x7c] sm:$0xf]
      %v1131 = vld [vmem:[%s192 + $0x80] sm:$0xf]
      %v1132 = vld [vmem:[%s192 + $0x84] sm:$0xf]
      %v1133 = vld [vmem:[%s192 + $0x88] sm:$0xf]
      %v1134 = vld [vmem:[%s192 + $0x8c] sm:$0xf]
      %v1135 = vld [vmem:[%s192 + $0x90] sm:$0xf]
      %v1136 = vld [vmem:[%s192 + $0x94] sm:$0xf]
      %v1137 = vld [vmem:[%s192 + $0x98] sm:$0x1]
      %s1138 = scalar_lea.vmem %s1, 192
      %v1139 = vld [vmem:[%s1138] sm:$0xf]
      %v1140 = vld [vmem:[%s1138 + $0x4] sm:$0xf]
      %v1141 = vld [vmem:[%s1138 + $0x8] sm:$0xf]
      %v1142 = vld [vmem:[%s1138 + $0xc] sm:$0xf]
      %v1143 = vld [vmem:[%s1138 + $0x10] sm:$0xf]
      %v1144 = vld [vmem:[%s1138 + $0x14] sm:$0xf]
      %v1145 = vld [vmem:[%s1138 + $0x18] sm:$0xf]
      %v1146 = vld [vmem:[%s1138 + $0x1c] sm:$0xf]
      %v1147 = vld [vmem:[%s1138 + $0x20] sm:$0xf]
      %v1148 = vld [vmem:[%s1138 + $0x24] sm:$0xf]
      %v1149 = vld [vmem:[%s1138 + $0x28] sm:$0xf]
      %v1150 = vld [vmem:[%s1138 + $0x2c] sm:$0xf]
      %v1151 = vld [vmem:[%s1138 + $0x30] sm:$0xf]
      %v1152 = vld [vmem:[%s1138 + $0x34] sm:$0xf]
      %v1153 = vld [vmem:[%s1138 + $0x38] sm:$0xf]
      %v1154 = vld [vmem:[%s1138 + $0x3c] sm:$0xf]
      %v1192 = vunpack.c.l.b16 %v1101
      %v1193 = vunpack.c.l.b16 %v1102
      %v1194 = vunpack.c.l.b16 %v1103
      %v1195 = vunpack.c.l.b16 %v1104
      %v1196 = vunpack.c.l.b16 %v1105
      %v1197 = vunpack.c.l.b16 %v1106
      %v1198 = vunpack.c.l.b16 %v1107
      %v1199 = vunpack.c.l.b16 %v1108
      %v1200 = vunpack.c.l.b16 %v1109
      %v1201 = vunpack.c.l.b16 %v1110
      %v1202 = vunpack.c.l.b16 %v1111
      %v1203 = vunpack.c.l.b16 %v1112
      %v1204 = vunpack.c.l.b16 %v1113
      %v1205 = vunpack.c.l.b16 %v1114
      %v1206 = vunpack.c.l.b16 %v1115
      %v1207 = vunpack.c.l.b16 %v1116
      %v1208 = vunpack.c.l.b16 %v1117
      %v1209 = vunpack.c.l.b16 %v1118
      %v1210 = vunpack.c.l.b16 %v1119
      %v1211 = vunpack.c.l.b16 %v1120
      %v1212 = vunpack.c.l.b16 %v1121
      %v1213 = vunpack.c.l.b16 %v1122
      %v1214 = vunpack.c.l.b16 %v1123
      %v1215 = vunpack.c.l.b16 %v1124
      %v1216 = vunpack.c.l.b16 %v1125
      %v1217 = vunpack.c.l.b16 %v1126
      %v1218 = vunpack.c.l.b16 %v1127
      %v1219 = vunpack.c.l.b16 %v1128
      %v1220 = vunpack.c.l.b16 %v1129
      %v1221 = vunpack.c.l.b16 %v1130
      %v1222 = vunpack.c.l.b16 %v1131
      %v1223 = vunpack.c.l.b16 %v1132
      %v1224 = vunpack.c.l.b16 %v1133
      %v1225 = vunpack.c.l.b16 %v1134
      %v1226 = vunpack.c.l.b16 %v1135
      %v1227 = vunpack.c.l.b16 %v1136
      %v1228 = vunpack.c.l.b16 %v1137
      %v1229 = vpack.c.b16 %v1193, %v1192
      %v1230 = vpack.c.b16 %v1195, %v1194
      %v1231 = vpack.c.b16 %v1197, %v1196
      %v1232 = vpack.c.b16 %v1199, %v1198
      %v1233 = vpack.c.b16 %v1201, %v1200
      %v1234 = vpack.c.b16 %v1203, %v1202
      %v1235 = vpack.c.b16 %v1205, %v1204
      %v1236 = vpack.c.b16 %v1207, %v1206
      %v1237 = vpack.c.b16 %v1209, %v1208
      %v1238 = vpack.c.b16 %v1211, %v1210
      %v1239 = vpack.c.b16 %v1213, %v1212
      %v1240 = vpack.c.b16 %v1215, %v1214
      %v1241 = vpack.c.b16 %v1217, %v1216
      %v1242 = vpack.c.b16 %v1219, %v1218
      %v1243 = vpack.c.b16 %v1221, %v1220
      %v1244 = vpack.c.b16 %v1223, %v1222
      %v1245 = vpack.c.b16 %v1225, %v1224
      %v1246 = vpack.c.b16 %v1227, %v1226
      %v1247 = vpack.c.b16 %v1228, %v1228
      %v1248 = vrot.slane %v1229, 1
      %v1249 = vrot.slane %v1230, 1
      %v1250 = vsel %vm862, %v1248, %v1249
      %v1251 = vrot.slane %v1231, 1
      %v1252 = vsel %vm862, %v1249, %v1251
      %v1253 = vrot.slane %v1232, 1
      %v1254 = vsel %vm862, %v1251, %v1253
      %v1255 = vrot.slane %v1233, 1
      %v1256 = vsel %vm862, %v1253, %v1255
      %v1257 = vrot.slane %v1234, 1
      %v1258 = vsel %vm862, %v1255, %v1257
      %v1259 = vrot.slane %v1235, 1
      %v1260 = vsel %vm862, %v1257, %v1259
      %v1261 = vrot.slane %v1236, 1
      %v1262 = vsel %vm862, %v1259, %v1261
      %v1263 = vrot.slane %v1237, 1
      %v1264 = vsel %vm862, %v1261, %v1263
      %v1265 = vrot.slane %v1238, 1
      %v1266 = vsel %vm862, %v1263, %v1265
      %v1267 = vrot.slane %v1239, 1
      %v1268 = vsel %vm862, %v1265, %v1267
      %v1269 = vrot.slane %v1240, 1
      %v1270 = vsel %vm862, %v1267, %v1269
      %v1271 = vrot.slane %v1241, 1
      %v1272 = vsel %vm862, %v1269, %v1271
      %v1273 = vrot.slane %v1242, 1
      %v1274 = vsel %vm862, %v1271, %v1273
      %v1275 = vrot.slane %v1243, 1
      %v1276 = vsel %vm862, %v1273, %v1275
      %v1277 = vrot.slane %v1244, 1
      %v1278 = vsel %vm862, %v1275, %v1277
      %v1279 = vrot.slane %v1245, 1
      %v1280 = vsel %vm862, %v1277, %v1279
      %v1281 = vrot.slane %v1246, 1
      %v1282 = vsel %vm862, %v1279, %v1281
      %v1283 = vrot.slane %v1247, 1
      %v1284 = vsel %vm862, %v1281, %v1283
      %v1319 = vunpack.c.l.b16 %v1139
      %v1320 = vunpack.c.l.b16 %v1140
      %v1321 = vunpack.c.l.b16 %v1141
      %v1322 = vunpack.c.l.b16 %v1142
      %v1323 = vunpack.c.l.b16 %v1143
      %v1324 = vunpack.c.l.b16 %v1144
      %v1325 = vunpack.c.l.b16 %v1145
      %v1326 = vunpack.c.l.b16 %v1146
      %v1327 = vunpack.c.l.b16 %v1147
      %v1328 = vunpack.c.l.b16 %v1148
      %v1329 = vunpack.c.l.b16 %v1149
      %v1330 = vunpack.c.l.b16 %v1150
      %v1331 = vunpack.c.l.b16 %v1151
      %v1332 = vunpack.c.l.b16 %v1152
      %v1333 = vunpack.c.l.b16 %v1153
      %v1334 = vunpack.c.l.b16 %v1154
      %v1335 = vpack.c.b16 %v1320, %v1319
      %v1336 = vpack.c.b16 %v1322, %v1321
      %v1337 = vpack.c.b16 %v1324, %v1323
      %v1338 = vpack.c.b16 %v1326, %v1325
      %v1339 = vpack.c.b16 %v1328, %v1327
      %v1340 = vpack.c.b16 %v1330, %v1329
      %v1341 = vpack.c.b16 %v1332, %v1331
      %v1342 = vpack.c.b16 %v1334, %v1333
      %1351 = vmatpush.bf16.msra.mxu0 %v1342
      %1352 = vmatpush.bf16.msra.mxu0 %v1341
      %1353 = vmatpush.bf16.msra.mxu0 %v1340
      %1354 = vmatpush.bf16.msra.mxu0 %v1339
      %1355 = vmatpush.bf16.msra.mxu0 %v1338
      %1356 = vmatpush.bf16.msra.mxu0 %v1337
      %1357 = vmatpush.bf16.msra.mxu0 %v1336
      %1358 = vmatpush.bf16.msra.mxu0 %v1335
      %1359 = vmatmul.bf16.gmra.mxu0 %v1250
      %v1360 = vpop.f32.mrf.mxu0
      %v1361 = vadd.f32 0.0, %v1360
      %v1362 = vpop.f32.mrf.mxu0
      %v1363 = vadd.f32 0.0, %v1362
      %1364 = vmatmul.bf16.gmra.mxu0 %v1252
      %v1365 = vpop.f32.mrf.mxu0
      %v1366 = vadd.f32 0.0, %v1365
      %v1367 = vpop.f32.mrf.mxu0
      %v1368 = vadd.f32 0.0, %v1367
      %1369 = vmatmul.bf16.gmra.mxu0 %v1254
      %v1370 = vpop.f32.mrf.mxu0
      %v1371 = vadd.f32 0.0, %v1370
      %v1372 = vpop.f32.mrf.mxu0
      %v1373 = vadd.f32 0.0, %v1372
      %1374 = vmatmul.bf16.gmra.mxu0 %v1256
      %v1375 = vpop.f32.mrf.mxu0
      %v1376 = vadd.f32 0.0, %v1375
      %v1377 = vpop.f32.mrf.mxu0
      %v1378 = vadd.f32 0.0, %v1377
      %1379 = vmatmul.bf16.gmra.mxu0 %v1258
      %v1380 = vpop.f32.mrf.mxu0
      %v1381 = vadd.f32 0.0, %v1380
      %v1382 = vpop.f32.mrf.mxu0
      %v1383 = vadd.f32 0.0, %v1382
      %1384 = vmatmul.bf16.gmra.mxu0 %v1260
      %v1385 = vpop.f32.mrf.mxu0
      %v1386 = vadd.f32 0.0, %v1385
      %v1387 = vpop.f32.mrf.mxu0
      %v1388 = vadd.f32 0.0, %v1387
      %1389 = vmatmul.bf16.gmra.mxu0 %v1262
      %v1390 = vpop.f32.mrf.mxu0
      %v1391 = vadd.f32 0.0, %v1390
      %v1392 = vpop.f32.mrf.mxu0
      %v1393 = vadd.f32 0.0, %v1392
      %1394 = vmatmul.bf16.gmra.mxu0 %v1264
      %v1395 = vpop.f32.mrf.mxu0
      %v1396 = vadd.f32 0.0, %v1395
      %v1397 = vpop.f32.mrf.mxu0
      %v1398 = vadd.f32 0.0, %v1397
      %1399 = vmatmul.bf16.gmra.mxu0 %v1266
      %v1400 = vpop.f32.mrf.mxu0
      %v1401 = vadd.f32 0.0, %v1400
      %v1402 = vpop.f32.mrf.mxu0
      %v1403 = vadd.f32 0.0, %v1402
      %1404 = vmatmul.bf16.gmra.mxu0 %v1268
      %v1405 = vpop.f32.mrf.mxu0
      %v1406 = vadd.f32 0.0, %v1405
      %v1407 = vpop.f32.mrf.mxu0
      %v1408 = vadd.f32 0.0, %v1407
      %1409 = vmatmul.bf16.gmra.mxu0 %v1270
      %v1410 = vpop.f32.mrf.mxu0
      %v1411 = vadd.f32 0.0, %v1410
      %v1412 = vpop.f32.mrf.mxu0
      %v1413 = vadd.f32 0.0, %v1412
      %1414 = vmatmul.bf16.gmra.mxu0 %v1272
      %v1415 = vpop.f32.mrf.mxu0
      %v1416 = vadd.f32 0.0, %v1415
      %v1417 = vpop.f32.mrf.mxu0
      %v1418 = vadd.f32 0.0, %v1417
      %1419 = vmatmul.bf16.gmra.mxu0 %v1274
      %v1420 = vpop.f32.mrf.mxu0
      %v1421 = vadd.f32 0.0, %v1420
      %v1422 = vpop.f32.mrf.mxu0
      %v1423 = vadd.f32 0.0, %v1422
      %1424 = vmatmul.bf16.gmra.mxu0 %v1276
      %v1425 = vpop.f32.mrf.mxu0
      %v1426 = vadd.f32 0.0, %v1425
      %v1427 = vpop.f32.mrf.mxu0
      %v1428 = vadd.f32 0.0, %v1427
      %1429 = vmatmul.bf16.gmra.mxu0 %v1278
      %v1430 = vpop.f32.mrf.mxu0
      %v1431 = vadd.f32 0.0, %v1430
      %v1432 = vpop.f32.mrf.mxu0
      %v1433 = vadd.f32 0.0, %v1432
      %1434 = vmatmul.bf16.gmra.mxu0 %v1280
      %v1435 = vpop.f32.mrf.mxu0
      %v1436 = vadd.f32 0.0, %v1435
      %v1437 = vpop.f32.mrf.mxu0
      %v1438 = vadd.f32 0.0, %v1437
      %1439 = vmatmul.bf16.gmra.mxu0 %v1282
      %v1440 = vpop.f32.mrf.mxu0
      %v1441 = vadd.f32 0.0, %v1440
      %v1442 = vpop.f32.mrf.mxu0
      %v1443 = vadd.f32 0.0, %v1442
      %1444 = vmatmul.bf16.gmra.mxu0 %v1284
      %v1445 = vpop.f32.mrf.mxu0
      %v1446 = vadd.f32 0.0, %v1445
      %v1447 = vpop.f32.mrf.mxu0
      %v1448 = vadd.f32 0.0, %v1447
      %1449 = vdwg.mxu0
      %v1450 = vadd.f32 %v1065, %v1361
      %v1451 = vadd.f32 %v1066, %v1363
      %v1452 = vadd.f32 %v1067, %v1366
      %v1453 = vadd.f32 %v1068, %v1368
      %v1454 = vadd.f32 %v1069, %v1371
      %v1455 = vadd.f32 %v1070, %v1373
      %v1456 = vadd.f32 %v1071, %v1376
      %v1457 = vadd.f32 %v1072, %v1378
      %v1458 = vadd.f32 %v1073, %v1381
      %v1459 = vadd.f32 %v1074, %v1383
      %v1460 = vadd.f32 %v1075, %v1386
      %v1461 = vadd.f32 %v1076, %v1388
      %v1462 = vadd.f32 %v1077, %v1391
      %v1463 = vadd.f32 %v1078, %v1393
      %v1464 = vadd.f32 %v1079, %v1396
      %v1465 = vadd.f32 %v1080, %v1398
      %v1466 = vadd.f32 %v1081, %v1401
      %v1467 = vadd.f32 %v1082, %v1403
      %v1468 = vadd.f32 %v1083, %v1406
      %v1469 = vadd.f32 %v1084, %v1408
      %v1470 = vadd.f32 %v1085, %v1411
      %v1471 = vadd.f32 %v1086, %v1413
      %v1472 = vadd.f32 %v1087, %v1416
      %v1473 = vadd.f32 %v1088, %v1418
      %v1474 = vadd.f32 %v1089, %v1421
      %v1475 = vadd.f32 %v1090, %v1423
      %v1476 = vadd.f32 %v1091, %v1426
      %v1477 = vadd.f32 %v1092, %v1428
      %v1478 = vadd.f32 %v1093, %v1431
      %v1479 = vadd.f32 %v1094, %v1433
      %v1480 = vadd.f32 %v1095, %v1436
      %v1481 = vadd.f32 %v1096, %v1438
      %v1482 = vadd.f32 %v1097, %v1441
      %v1483 = vadd.f32 %v1098, %v1443
      %v1484 = vadd.f32 %v1099, %v1446
      %v1485 = vadd.f32 %v1100, %v1448
      %v1486 = vld [vmem:[%s192 + $0x98] sm:$0x3]
      %s1487 = scalar_lea.vmem %s1, 256
      %v1488 = vld [vmem:[%s1487] sm:$0xf]
      %v1489 = vld [vmem:[%s1487 + $0x4] sm:$0xf]
      %v1490 = vld [vmem:[%s1487 + $0x8] sm:$0xf]
      %v1491 = vld [vmem:[%s1487 + $0xc] sm:$0xf]
      %v1492 = vld [vmem:[%s1487 + $0x10] sm:$0xf]
      %v1493 = vld [vmem:[%s1487 + $0x14] sm:$0xf]
      %v1494 = vld [vmem:[%s1487 + $0x18] sm:$0xf]
      %v1495 = vld [vmem:[%s1487 + $0x1c] sm:$0xf]
      %v1496 = vld [vmem:[%s1487 + $0x20] sm:$0xf]
      %v1497 = vld [vmem:[%s1487 + $0x24] sm:$0xf]
      %v1498 = vld [vmem:[%s1487 + $0x28] sm:$0xf]
      %v1499 = vld [vmem:[%s1487 + $0x2c] sm:$0xf]
      %v1500 = vld [vmem:[%s1487 + $0x30] sm:$0xf]
      %v1501 = vld [vmem:[%s1487 + $0x34] sm:$0xf]
      %v1502 = vld [vmem:[%s1487 + $0x38] sm:$0xf]
      %v1503 = vld [vmem:[%s1487 + $0x3c] sm:$0xf]
      %v1505 = vunpack.c.l.b16 %v1486
      %v1506 = vpack.c.b16 %v1505, %v1505
      %vm1507 = vsmask.f32 6400
      %v1509 = vshrl.u32 %v1229, 16
      %v1511 = vrot.slane %v1509, 1
      %v1512 = vshll.u32 %v1229, 16
      %v1514 = vrot.slane %v1512, 2
      %v1515 = vor.u32 %v1511, %v1514
      %v1517 = vshrl.u32 %v1230, 16
      %v1519 = vrot.slane %v1517, 1
      %v1520 = vshll.u32 %v1230, 16
      %v1522 = vrot.slane %v1520, 2
      %v1523 = vor.u32 %v1519, %v1522
      %v1524 = vsel %vm1507, %v1515, %v1523
      %v1526 = vshrl.u32 %v1231, 16
      %v1528 = vrot.slane %v1526, 1
      %v1529 = vshll.u32 %v1231, 16
      %v1531 = vrot.slane %v1529, 2
      %v1532 = vor.u32 %v1528, %v1531
      %v1533 = vsel %vm1507, %v1523, %v1532
      %v1535 = vshrl.u32 %v1232, 16
      %v1537 = vrot.slane %v1535, 1
      %v1538 = vshll.u32 %v1232, 16
      %v1540 = vrot.slane %v1538, 2
      %v1541 = vor.u32 %v1537, %v1540
      %v1542 = vsel %vm1507, %v1532, %v1541
      %v1544 = vshrl.u32 %v1233, 16
      %v1546 = vrot.slane %v1544, 1
      %v1547 = vshll.u32 %v1233, 16
      %v1549 = vrot.slane %v1547, 2
      %v1550 = vor.u32 %v1546, %v1549
      %v1551 = vsel %vm1507, %v1541, %v1550
      %v1553 = vshrl.u32 %v1234, 16
      %v1555 = vrot.slane %v1553, 1
      %v1556 = vshll.u32 %v1234, 16
      %v1558 = vrot.slane %v1556, 2
      %v1559 = vor.u32 %v1555, %v1558
      %v1560 = vsel %vm1507, %v1550, %v1559
      %v1562 = vshrl.u32 %v1235, 16
      %v1564 = vrot.slane %v1562, 1
      %v1565 = vshll.u32 %v1235, 16
      %v1567 = vrot.slane %v1565, 2
      %v1568 = vor.u32 %v1564, %v1567
      %v1569 = vsel %vm1507, %v1559, %v1568
      %v1571 = vshrl.u32 %v1236, 16
      %v1573 = vrot.slane %v1571, 1
      %v1574 = vshll.u32 %v1236, 16
      %v1576 = vrot.slane %v1574, 2
      %v1577 = vor.u32 %v1573, %v1576
      %v1578 = vsel %vm1507, %v1568, %v1577
      %v1580 = vshrl.u32 %v1237, 16
      %v1582 = vrot.slane %v1580, 1
      %v1583 = vshll.u32 %v1237, 16
      %v1585 = vrot.slane %v1583, 2
      %v1586 = vor.u32 %v1582, %v1585
      %v1587 = vsel %vm1507, %v1577, %v1586
      %v1589 = vshrl.u32 %v1238, 16
      %v1591 = vrot.slane %v1589, 1
      %v1592 = vshll.u32 %v1238, 16
      %v1594 = vrot.slane %v1592, 2
      %v1595 = vor.u32 %v1591, %v1594
      %v1596 = vsel %vm1507, %v1586, %v1595
      %v1598 = vshrl.u32 %v1239, 16
      %v1600 = vrot.slane %v1598, 1
      %v1601 = vshll.u32 %v1239, 16
      %v1603 = vrot.slane %v1601, 2
      %v1604 = vor.u32 %v1600, %v1603
      %v1605 = vsel %vm1507, %v1595, %v1604
      %v1607 = vshrl.u32 %v1240, 16
      %v1609 = vrot.slane %v1607, 1
      %v1610 = vshll.u32 %v1240, 16
      %v1612 = vrot.slane %v1610, 2
      %v1613 = vor.u32 %v1609, %v1612
      %v1614 = vsel %vm1507, %v1604, %v1613
      %v1616 = vshrl.u32 %v1241, 16
      %v1618 = vrot.slane %v1616, 1
      %v1619 = vshll.u32 %v1241, 16
      %v1621 = vrot.slane %v1619, 2
      %v1622 = vor.u32 %v1618, %v1621
      %v1623 = vsel %vm1507, %v1613, %v1622
      %v1625 = vshrl.u32 %v1242, 16
      %v1627 = vrot.slane %v1625, 1
      %v1628 = vshll.u32 %v1242, 16
      %v1630 = vrot.slane %v1628, 2
      %v1631 = vor.u32 %v1627, %v1630
      %v1632 = vsel %vm1507, %v1622, %v1631
      %v1634 = vshrl.u32 %v1243, 16
      %v1636 = vrot.slane %v1634, 1
      %v1637 = vshll.u32 %v1243, 16
      %v1639 = vrot.slane %v1637, 2
      %v1640 = vor.u32 %v1636, %v1639
      %v1641 = vsel %vm1507, %v1631, %v1640
      %v1643 = vshrl.u32 %v1244, 16
      %v1645 = vrot.slane %v1643, 1
      %v1646 = vshll.u32 %v1244, 16
      %v1648 = vrot.slane %v1646, 2
      %v1649 = vor.u32 %v1645, %v1648
      %v1650 = vsel %vm1507, %v1640, %v1649
      %v1652 = vshrl.u32 %v1245, 16
      %v1654 = vrot.slane %v1652, 1
      %v1655 = vshll.u32 %v1245, 16
      %v1657 = vrot.slane %v1655, 2
      %v1658 = vor.u32 %v1654, %v1657
      %v1659 = vsel %vm1507, %v1649, %v1658
      %v1661 = vshrl.u32 %v1246, 16
      %v1663 = vrot.slane %v1661, 1
      %v1664 = vshll.u32 %v1246, 16
      %v1666 = vrot.slane %v1664, 2
      %v1667 = vor.u32 %v1663, %v1666
      %v1668 = vsel %vm1507, %v1658, %v1667
      %v1670 = vshrl.u32 %v1506, 16
      %v1672 = vrot.slane %v1670, 1
      %v1673 = vshll.u32 %v1506, 16
      %v1675 = vrot.slane %v1673, 2
      %v1676 = vor.u32 %v1672, %v1675
      %v1677 = vsel %vm1507, %v1667, %v1676
      %v1712 = vunpack.c.l.b16 %v1488
      %v1713 = vunpack.c.l.b16 %v1489
      %v1714 = vunpack.c.l.b16 %v1490
      %v1715 = vunpack.c.l.b16 %v1491
      %v1716 = vunpack.c.l.b16 %v1492
      %v1717 = vunpack.c.l.b16 %v1493
      %v1718 = vunpack.c.l.b16 %v1494
      %v1719 = vunpack.c.l.b16 %v1495
      %v1720 = vunpack.c.l.b16 %v1496
      %v1721 = vunpack.c.l.b16 %v1497
      %v1722 = vunpack.c.l.b16 %v1498
      %v1723 = vunpack.c.l.b16 %v1499
      %v1724 = vunpack.c.l.b16 %v1500
      %v1725 = vunpack.c.l.b16 %v1501
      %v1726 = vunpack.c.l.b16 %v1502
      %v1727 = vunpack.c.l.b16 %v1503
      %v1728 = vpack.c.b16 %v1713, %v1712
      %v1729 = vpack.c.b16 %v1715, %v1714
      %v1730 = vpack.c.b16 %v1717, %v1716
      %v1731 = vpack.c.b16 %v1719, %v1718
      %v1732 = vpack.c.b16 %v1721, %v1720
      %v1733 = vpack.c.b16 %v1723, %v1722
      %v1734 = vpack.c.b16 %v1725, %v1724
      %v1735 = vpack.c.b16 %v1727, %v1726
      %1744 = vmatpush.bf16.msra.mxu0 %v1735
      %1745 = vmatpush.bf16.msra.mxu0 %v1734
      %1746 = vmatpush.bf16.msra.mxu0 %v1733
      %1747 = vmatpush.bf16.msra.mxu0 %v1732
      %1748 = vmatpush.bf16.msra.mxu0 %v1731
      %1749 = vmatpush.bf16.msra.mxu0 %v1730
      %1750 = vmatpush.bf16.msra.mxu0 %v1729
      %1751 = vmatpush.bf16.msra.mxu0 %v1728
      %1752 = vmatmul.bf16.gmra.mxu0 %v1524
      %v1753 = vpop.f32.mrf.mxu0
      %v1754 = vadd.f32 0.0, %v1753
      %v1755 = vpop.f32.mrf.mxu0
      %v1756 = vadd.f32 0.0, %v1755
      %1757 = vmatmul.bf16.gmra.mxu0 %v1533
      %v1758 = vpop.f32.mrf.mxu0
      %v1759 = vadd.f32 0.0, %v1758
      %v1760 = vpop.f32.mrf.mxu0
      %v1761 = vadd.f32 0.0, %v1760
      %1762 = vmatmul.bf16.gmra.mxu0 %v1542
      %v1763 = vpop.f32.mrf.mxu0
      %v1764 = vadd.f32 0.0, %v1763
      %v1765 = vpop.f32.mrf.mxu0
      %v1766 = vadd.f32 0.0, %v1765
      %1767 = vmatmul.bf16.gmra.mxu0 %v1551
      %v1768 = vpop.f32.mrf.mxu0
      %v1769 = vadd.f32 0.0, %v1768
      %v1770 = vpop.f32.mrf.mxu0
      %v1771 = vadd.f32 0.0, %v1770
      %1772 = vmatmul.bf16.gmra.mxu0 %v1560
      %v1773 = vpop.f32.mrf.mxu0
      %v1774 = vadd.f32 0.0, %v1773
      %v1775 = vpop.f32.mrf.mxu0
      %v1776 = vadd.f32 0.0, %v1775
      %1777 = vmatmul.bf16.gmra.mxu0 %v1569
      %v1778 = vpop.f32.mrf.mxu0
      %v1779 = vadd.f32 0.0, %v1778
      %v1780 = vpop.f32.mrf.mxu0
      %v1781 = vadd.f32 0.0, %v1780
      %1782 = vmatmul.bf16.gmra.mxu0 %v1578
      %v1783 = vpop.f32.mrf.mxu0
      %v1784 = vadd.f32 0.0, %v1783
      %v1785 = vpop.f32.mrf.mxu0
      %v1786 = vadd.f32 0.0, %v1785
      %1787 = vmatmul.bf16.gmra.mxu0 %v1587
      %v1788 = vpop.f32.mrf.mxu0
      %v1789 = vadd.f32 0.0, %v1788
      %v1790 = vpop.f32.mrf.mxu0
      %v1791 = vadd.f32 0.0, %v1790
      %1792 = vmatmul.bf16.gmra.mxu0 %v1596
      %v1793 = vpop.f32.mrf.mxu0
      %v1794 = vadd.f32 0.0, %v1793
      %v1795 = vpop.f32.mrf.mxu0
      %v1796 = vadd.f32 0.0, %v1795
      %1797 = vmatmul.bf16.gmra.mxu0 %v1605
      %v1798 = vpop.f32.mrf.mxu0
      %v1799 = vadd.f32 0.0, %v1798
      %v1800 = vpop.f32.mrf.mxu0
      %v1801 = vadd.f32 0.0, %v1800
      %1802 = vmatmul.bf16.gmra.mxu0 %v1614
      %v1803 = vpop.f32.mrf.mxu0
      %v1804 = vadd.f32 0.0, %v1803
      %v1805 = vpop.f32.mrf.mxu0
      %v1806 = vadd.f32 0.0, %v1805
      %1807 = vmatmul.bf16.gmra.mxu0 %v1623
      %v1808 = vpop.f32.mrf.mxu0
      %v1809 = vadd.f32 0.0, %v1808
      %v1810 = vpop.f32.mrf.mxu0
      %v1811 = vadd.f32 0.0, %v1810
      %1812 = vmatmul.bf16.gmra.mxu0 %v1632
      %v1813 = vpop.f32.mrf.mxu0
      %v1814 = vadd.f32 0.0, %v1813
      %v1815 = vpop.f32.mrf.mxu0
      %v1816 = vadd.f32 0.0, %v1815
      %1817 = vmatmul.bf16.gmra.mxu0 %v1641
      %v1818 = vpop.f32.mrf.mxu0
      %v1819 = vadd.f32 0.0, %v1818
      %v1820 = vpop.f32.mrf.mxu0
      %v1821 = vadd.f32 0.0, %v1820
      %1822 = vmatmul.bf16.gmra.mxu0 %v1650
      %v1823 = vpop.f32.mrf.mxu0
      %v1824 = vadd.f32 0.0, %v1823
      %v1825 = vpop.f32.mrf.mxu0
      %v1826 = vadd.f32 0.0, %v1825
      %1827 = vmatmul.bf16.gmra.mxu0 %v1659
      %v1828 = vpop.f32.mrf.mxu0
      %v1829 = vadd.f32 0.0, %v1828
      %v1830 = vpop.f32.mrf.mxu0
      %v1831 = vadd.f32 0.0, %v1830
      %1832 = vmatmul.bf16.gmra.mxu0 %v1668
      %v1833 = vpop.f32.mrf.mxu0
      %v1834 = vadd.f32 0.0, %v1833
      %v1835 = vpop.f32.mrf.mxu0
      %v1836 = vadd.f32 0.0, %v1835
      %1837 = vmatmul.bf16.gmra.mxu0 %v1677
      %v1838 = vpop.f32.mrf.mxu0
      %v1839 = vadd.f32 0.0, %v1838
      %v1840 = vpop.f32.mrf.mxu0
      %v1841 = vadd.f32 0.0, %v1840
      %1842 = vdwg.mxu0
      %v1843 = vadd.f32 %v1450, %v1754
      %v1844 = vadd.f32 %v1451, %v1756
      %v1845 = vadd.f32 %v1452, %v1759
      %v1846 = vadd.f32 %v1453, %v1761
      %v1847 = vadd.f32 %v1454, %v1764
      %v1848 = vadd.f32 %v1455, %v1766
      %v1849 = vadd.f32 %v1456, %v1769
      %v1850 = vadd.f32 %v1457, %v1771
      %v1851 = vadd.f32 %v1458, %v1774
      %v1852 = vadd.f32 %v1459, %v1776
      %v1853 = vadd.f32 %v1460, %v1779
      %v1854 = vadd.f32 %v1461, %v1781
      %v1855 = vadd.f32 %v1462, %v1784
      %v1856 = vadd.f32 %v1463, %v1786
      %v1857 = vadd.f32 %v1464, %v1789
      %v1858 = vadd.f32 %v1465, %v1791
      %v1859 = vadd.f32 %v1466, %v1794
      %v1860 = vadd.f32 %v1467, %v1796
      %v1861 = vadd.f32 %v1468, %v1799
      %v1862 = vadd.f32 %v1469, %v1801
      %v1863 = vadd.f32 %v1470, %v1804
      %v1864 = vadd.f32 %v1471, %v1806
      %v1865 = vadd.f32 %v1472, %v1809
      %v1866 = vadd.f32 %v1473, %v1811
      %v1867 = vadd.f32 %v1474, %v1814
      %v1868 = vadd.f32 %v1475, %v1816
      %v1869 = vadd.f32 %v1476, %v1819
      %v1870 = vadd.f32 %v1477, %v1821
      %v1871 = vadd.f32 %v1478, %v1824
      %v1872 = vadd.f32 %v1479, %v1826
      %v1873 = vadd.f32 %v1480, %v1829
      %v1874 = vadd.f32 %v1481, %v1831
      %v1875 = vadd.f32 %v1482, %v1834
      %v1876 = vadd.f32 %v1483, %v1836
      %v1877 = vadd.f32 %v1484, %v1839
      %v1878 = vadd.f32 %v1485, %v1841
      %v1879 = vld [vmem:[%s192 + $0x8] sm:$0xc]
      %s1880 = scalar_lea.vmem %s1, 320
      %v1881 = vld [vmem:[%s1880] sm:$0xf]
      %v1882 = vld [vmem:[%s1880 + $0x4] sm:$0xf]
      %v1883 = vld [vmem:[%s1880 + $0x8] sm:$0xf]
      %v1884 = vld [vmem:[%s1880 + $0xc] sm:$0xf]
      %v1885 = vld [vmem:[%s1880 + $0x10] sm:$0xf]
      %v1886 = vld [vmem:[%s1880 + $0x14] sm:$0xf]
      %v1887 = vld [vmem:[%s1880 + $0x18] sm:$0xf]
      %v1888 = vld [vmem:[%s1880 + $0x1c] sm:$0xf]
      %v1889 = vld [vmem:[%s1880 + $0x20] sm:$0xf]
      %v1890 = vld [vmem:[%s1880 + $0x24] sm:$0xf]
      %v1891 = vld [vmem:[%s1880 + $0x28] sm:$0xf]
      %v1892 = vld [vmem:[%s1880 + $0x2c] sm:$0xf]
      %v1893 = vld [vmem:[%s1880 + $0x30] sm:$0xf]
      %v1894 = vld [vmem:[%s1880 + $0x34] sm:$0xf]
      %v1895 = vld [vmem:[%s1880 + $0x38] sm:$0xf]
      %v1896 = vld [vmem:[%s1880 + $0x3c] sm:$0xf]
      %v1898 = vunpack.c.l.b16 %v1879
      %v1899 = vpack.c.b16 %v1193, %v1898
      %vm1900 = vcmask 1045504
      %v1901 = vrot.slane %v1899, 2
      %v1902 = vrot.slane %v1230, 2
      %v1903 = vsel %vm1900, %v1901, %v1902
      %v1904 = vrot.slane %v1231, 2
      %v1905 = vsel %vm1900, %v1902, %v1904
      %v1906 = vrot.slane %v1232, 2
      %v1907 = vsel %vm1900, %v1904, %v1906
      %v1908 = vrot.slane %v1233, 2
      %v1909 = vsel %vm1900, %v1906, %v1908
      %v1910 = vrot.slane %v1234, 2
      %v1911 = vsel %vm1900, %v1908, %v1910
      %v1912 = vrot.slane %v1235, 2
      %v1913 = vsel %vm1900, %v1910, %v1912
      %v1914 = vrot.slane %v1236, 2
      %v1915 = vsel %vm1900, %v1912, %v1914
      %v1916 = vrot.slane %v1237, 2
      %v1917 = vsel %vm1900, %v1914, %v1916
      %v1918 = vrot.slane %v1238, 2
      %v1919 = vsel %vm1900, %v1916, %v1918
      %v1920 = vrot.slane %v1239, 2
      %v1921 = vsel %vm1900, %v1918, %v1920
      %v1922 = vrot.slane %v1240, 2
      %v1923 = vsel %vm1900, %v1920, %v1922
      %v1924 = vrot.slane %v1241, 2
      %v1925 = vsel %vm1900, %v1922, %v1924
      %v1926 = vrot.slane %v1242, 2
      %v1927 = vsel %vm1900, %v1924, %v1926
      %v1928 = vrot.slane %v1243, 2
      %v1929 = vsel %vm1900, %v1926, %v1928
      %v1930 = vrot.slane %v1244, 2
      %v1931 = vsel %vm1900, %v1928, %v1930
      %v1932 = vrot.slane %v1245, 2
      %v1933 = vsel %vm1900, %v1930, %v1932
      %v1934 = vrot.slane %v1246, 2
      %v1935 = vsel %vm1900, %v1932, %v1934
      %v1936 = vrot.slane %v1506, 2
      %v1937 = vsel %vm1900, %v1934, %v1936
      %v1972 = vunpack.c.l.b16 %v1881
      %v1973 = vunpack.c.l.b16 %v1882
      %v1974 = vunpack.c.l.b16 %v1883
      %v1975 = vunpack.c.l.b16 %v1884
      %v1976 = vunpack.c.l.b16 %v1885
      %v1977 = vunpack.c.l.b16 %v1886
      %v1978 = vunpack.c.l.b16 %v1887
      %v1979 = vunpack.c.l.b16 %v1888
      %v1980 = vunpack.c.l.b16 %v1889
      %v1981 = vunpack.c.l.b16 %v1890
      %v1982 = vunpack.c.l.b16 %v1891
      %v1983 = vunpack.c.l.b16 %v1892
      %v1984 = vunpack.c.l.b16 %v1893
      %v1985 = vunpack.c.l.b16 %v1894
      %v1986 = vunpack.c.l.b16 %v1895
      %v1987 = vunpack.c.l.b16 %v1896
      %v1988 = vpack.c.b16 %v1973, %v1972
      %v1989 = vpack.c.b16 %v1975, %v1974
      %v1990 = vpack.c.b16 %v1977, %v1976
      %v1991 = vpack.c.b16 %v1979, %v1978
      %v1992 = vpack.c.b16 %v1981, %v1980
      %v1993 = vpack.c.b16 %v1983, %v1982
      %v1994 = vpack.c.b16 %v1985, %v1984
      %v1995 = vpack.c.b16 %v1987, %v1986
      %2004 = vmatpush.bf16.msra.mxu0 %v1995
      %2005 = vmatpush.bf16.msra.mxu0 %v1994
      %2006 = vmatpush.bf16.msra.mxu0 %v1993
      %2007 = vmatpush.bf16.msra.mxu0 %v1992
      %2008 = vmatpush.bf16.msra.mxu0 %v1991
      %2009 = vmatpush.bf16.msra.mxu0 %v1990
      %2010 = vmatpush.bf16.msra.mxu0 %v1989
      %2011 = vmatpush.bf16.msra.mxu0 %v1988
      %2012 = vmatmul.bf16.gmra.mxu0 %v1903
      %v2013 = vpop.f32.mrf.mxu0
      %v2014 = vadd.f32 0.0, %v2013
      %v2015 = vpop.f32.mrf.mxu0
      %v2016 = vadd.f32 0.0, %v2015
      %2017 = vmatmul.bf16.gmra.mxu0 %v1905
      %v2018 = vpop.f32.mrf.mxu0
      %v2019 = vadd.f32 0.0, %v2018
      %v2020 = vpop.f32.mrf.mxu0
      %v2021 = vadd.f32 0.0, %v2020
      %2022 = vmatmul.bf16.gmra.mxu0 %v1907
      %v2023 = vpop.f32.mrf.mxu0
      %v2024 = vadd.f32 0.0, %v2023
      %v2025 = vpop.f32.mrf.mxu0
      %v2026 = vadd.f32 0.0, %v2025
      %2027 = vmatmul.bf16.gmra.mxu0 %v1909
      %v2028 = vpop.f32.mrf.mxu0
      %v2029 = vadd.f32 0.0, %v2028
      %v2030 = vpop.f32.mrf.mxu0
      %v2031 = vadd.f32 0.0, %v2030
      %2032 = vmatmul.bf16.gmra.mxu0 %v1911
      %v2033 = vpop.f32.mrf.mxu0
      %v2034 = vadd.f32 0.0, %v2033
      %v2035 = vpop.f32.mrf.mxu0
      %v2036 = vadd.f32 0.0, %v2035
      %2037 = vmatmul.bf16.gmra.mxu0 %v1913
      %v2038 = vpop.f32.mrf.mxu0
      %v2039 = vadd.f32 0.0, %v2038
      %v2040 = vpop.f32.mrf.mxu0
      %v2041 = vadd.f32 0.0, %v2040
      %2042 = vmatmul.bf16.gmra.mxu0 %v1915
      %v2043 = vpop.f32.mrf.mxu0
      %v2044 = vadd.f32 0.0, %v2043
      %v2045 = vpop.f32.mrf.mxu0
      %v2046 = vadd.f32 0.0, %v2045
      %2047 = vmatmul.bf16.gmra.mxu0 %v1917
      %v2048 = vpop.f32.mrf.mxu0
      %v2049 = vadd.f32 0.0, %v2048
      %v2050 = vpop.f32.mrf.mxu0
      %v2051 = vadd.f32 0.0, %v2050
      %2052 = vmatmul.bf16.gmra.mxu0 %v1919
      %v2053 = vpop.f32.mrf.mxu0
      %v2054 = vadd.f32 0.0, %v2053
      %v2055 = vpop.f32.mrf.mxu0
      %v2056 = vadd.f32 0.0, %v2055
      %2057 = vmatmul.bf16.gmra.mxu0 %v1921
      %v2058 = vpop.f32.mrf.mxu0
      %v2059 = vadd.f32 0.0, %v2058
      %v2060 = vpop.f32.mrf.mxu0
      %v2061 = vadd.f32 0.0, %v2060
      %2062 = vmatmul.bf16.gmra.mxu0 %v1923
      %v2063 = vpop.f32.mrf.mxu0
      %v2064 = vadd.f32 0.0, %v2063
      %v2065 = vpop.f32.mrf.mxu0
      %v2066 = vadd.f32 0.0, %v2065
      %2067 = vmatmul.bf16.gmra.mxu0 %v1925
      %v2068 = vpop.f32.mrf.mxu0
      %v2069 = vadd.f32 0.0, %v2068
      %v2070 = vpop.f32.mrf.mxu0
      %v2071 = vadd.f32 0.0, %v2070
      %2072 = vmatmul.bf16.gmra.mxu0 %v1927
      %v2073 = vpop.f32.mrf.mxu0
      %v2074 = vadd.f32 0.0, %v2073
      %v2075 = vpop.f32.mrf.mxu0
      %v2076 = vadd.f32 0.0, %v2075
      %2077 = vmatmul.bf16.gmra.mxu0 %v1929
      %v2078 = vpop.f32.mrf.mxu0
      %v2079 = vadd.f32 0.0, %v2078
      %v2080 = vpop.f32.mrf.mxu0
      %v2081 = vadd.f32 0.0, %v2080
      %2082 = vmatmul.bf16.gmra.mxu0 %v1931
      %v2083 = vpop.f32.mrf.mxu0
      %v2084 = vadd.f32 0.0, %v2083
      %v2085 = vpop.f32.mrf.mxu0
      %v2086 = vadd.f32 0.0, %v2085
      %2087 = vmatmul.bf16.gmra.mxu0 %v1933
      %v2088 = vpop.f32.mrf.mxu0
      %v2089 = vadd.f32 0.0, %v2088
      %v2090 = vpop.f32.mrf.mxu0
      %v2091 = vadd.f32 0.0, %v2090
      %2092 = vmatmul.bf16.gmra.mxu0 %v1935
      %v2093 = vpop.f32.mrf.mxu0
      %v2094 = vadd.f32 0.0, %v2093
      %v2095 = vpop.f32.mrf.mxu0
      %v2096 = vadd.f32 0.0, %v2095
      %2097 = vmatmul.bf16.gmra.mxu0 %v1937
      %v2098 = vpop.f32.mrf.mxu0
      %v2099 = vadd.f32 0.0, %v2098
      %v2100 = vpop.f32.mrf.mxu0
      %v2101 = vadd.f32 0.0, %v2100
      %2102 = vdwg.mxu0
      %v2103 = vadd.f32 %v1843, %v2014
      %v2104 = vadd.f32 %v1844, %v2016
      %v2105 = vadd.f32 %v1845, %v2019
      %v2106 = vadd.f32 %v1846, %v2021
      %v2107 = vadd.f32 %v1847, %v2024
      %v2108 = vadd.f32 %v1848, %v2026
      %v2109 = vadd.f32 %v1849, %v2029
      %v2110 = vadd.f32 %v1850, %v2031
      %v2111 = vadd.f32 %v1851, %v2034
      %v2112 = vadd.f32 %v1852, %v2036
      %v2113 = vadd.f32 %v1853, %v2039
      %v2114 = vadd.f32 %v1854, %v2041
      %v2115 = vadd.f32 %v1855, %v2044
      %v2116 = vadd.f32 %v1856, %v2046
      %v2117 = vadd.f32 %v1857, %v2049
      %v2118 = vadd.f32 %v1858, %v2051
      %v2119 = vadd.f32 %v1859, %v2054
      %v2120 = vadd.f32 %v1860, %v2056
      %v2121 = vadd.f32 %v1861, %v2059
      %v2122 = vadd.f32 %v1862, %v2061
      %v2123 = vadd.f32 %v1863, %v2064
      %v2124 = vadd.f32 %v1864, %v2066
      %v2125 = vadd.f32 %v1865, %v2069
      %v2126 = vadd.f32 %v1866, %v2071
      %v2127 = vadd.f32 %v1867, %v2074
      %v2128 = vadd.f32 %v1868, %v2076
      %v2129 = vadd.f32 %v1869, %v2079
      %v2130 = vadd.f32 %v1870, %v2081
      %v2131 = vadd.f32 %v1871, %v2084
      %v2132 = vadd.f32 %v1872, %v2086
      %v2133 = vadd.f32 %v1873, %v2089
      %v2134 = vadd.f32 %v1874, %v2091
      %v2135 = vadd.f32 %v1875, %v2094
      %v2136 = vadd.f32 %v1876, %v2096
      %v2137 = vadd.f32 %v1877, %v2099
      %v2138 = vadd.f32 %v1878, %v2101
      %v2139 = vld [vmem:[%s192 + $0x10] sm:$0xc]
      %v2140 = vld [vmem:[%s192 + $0x14] sm:$0xf]
      %v2141 = vld [vmem:[%s192 + $0x18] sm:$0xf]
      %v2142 = vld [vmem:[%s192 + $0x1c] sm:$0xf]
      %v2143 = vld [vmem:[%s192 + $0x20] sm:$0xf]
      %v2144 = vld [vmem:[%s192 + $0x24] sm:$0xf]
      %v2145 = vld [vmem:[%s192 + $0x28] sm:$0xf]
      %v2146 = vld [vmem:[%s192 + $0x2c] sm:$0xf]
      %v2147 = vld [vmem:[%s192 + $0x30] sm:$0xf]
      %v2148 = vld [vmem:[%s192 + $0x34] sm:$0xf]
      %v2149 = vld [vmem:[%s192 + $0x38] sm:$0xf]
      %v2150 = vld [vmem:[%s192 + $0x3c] sm:$0xf]
      %v2151 = vld [vmem:[%s192 + $0x40] sm:$0xf]
      %v2152 = vld [vmem:[%s192 + $0x44] sm:$0xf]
      %v2153 = vld [vmem:[%s192 + $0x48] sm:$0xf]
      %v2154 = vld [vmem:[%s192 + $0x4c] sm:$0xf]
      %v2155 = vld [vmem:[%s192 + $0x50] sm:$0xf]
      %v2156 = vld [vmem:[%s192 + $0x54] sm:$0xf]
      %v2157 = vld [vmem:[%s192 + $0x58] sm:$0xf]
      %v2158 = vld [vmem:[%s192 + $0x5c] sm:$0xf]
      %v2159 = vld [vmem:[%s192 + $0x60] sm:$0xf]
      %v2160 = vld [vmem:[%s192 + $0x64] sm:$0xf]
      %v2161 = vld [vmem:[%s192 + $0x68] sm:$0xf]
      %v2162 = vld [vmem:[%s192 + $0x6c] sm:$0xf]
      %v2163 = vld [vmem:[%s192 + $0x70] sm:$0xf]
      %v2164 = vld [vmem:[%s192 + $0x74] sm:$0xf]
      %v2165 = vld [vmem:[%s192 + $0x78] sm:$0xf]
      %v2166 = vld [vmem:[%s192 + $0x7c] sm:$0xf]
      %v2167 = vld [vmem:[%s192 + $0x80] sm:$0xf]
      %v2168 = vld [vmem:[%s192 + $0x84] sm:$0xf]
      %v2169 = vld [vmem:[%s192 + $0x88] sm:$0xf]
      %v2170 = vld [vmem:[%s192 + $0x8c] sm:$0xf]
      %v2171 = vld [vmem:[%s192 + $0x90] sm:$0xf]
      %v2172 = vld [vmem:[%s192 + $0x94] sm:$0xf]
      %v2173 = vld [vmem:[%s192 + $0x98] sm:$0xf]
      %v2174 = vld [vmem:[%s192 + $0x9c] sm:$0xf]
      %v2175 = vld [vmem:[%s192 + $0xa0] sm:$0x3]
      %s2176 = scalar_lea.vmem %s1, 384
      %v2177 = vld [vmem:[%s2176] sm:$0xf]
      %v2178 = vld [vmem:[%s2176 + $0x4] sm:$0xf]
      %v2179 = vld [vmem:[%s2176 + $0x8] sm:$0xf]
      %v2180 = vld [vmem:[%s2176 + $0xc] sm:$0xf]
      %v2181 = vld [vmem:[%s2176 + $0x10] sm:$0xf]
      %v2182 = vld [vmem:[%s2176 + $0x14] sm:$0xf]
      %v2183 = vld [vmem:[%s2176 + $0x18] sm:$0xf]
      %v2184 = vld [vmem:[%s2176 + $0x1c] sm:$0xf]
      %v2185 = vld [vmem:[%s2176 + $0x20] sm:$0xf]
      %v2186 = vld [vmem:[%s2176 + $0x24] sm:$0xf]
      %v2187 = vld [vmem:[%s2176 + $0x28] sm:$0xf]
      %v2188 = vld [vmem:[%s2176 + $0x2c] sm:$0xf]
      %v2189 = vld [vmem:[%s2176 + $0x30] sm:$0xf]
      %v2190 = vld [vmem:[%s2176 + $0x34] sm:$0xf]
      %v2191 = vld [vmem:[%s2176 + $0x38] sm:$0xf]
      %v2192 = vld [vmem:[%s2176 + $0x3c] sm:$0xf]
      %v2230 = vunpack.c.l.b16 %v2139
      %v2231 = vunpack.c.l.b16 %v2140
      %v2232 = vunpack.c.l.b16 %v2141
      %v2233 = vunpack.c.l.b16 %v2142
      %v2234 = vunpack.c.l.b16 %v2143
      %v2235 = vunpack.c.l.b16 %v2144
      %v2236 = vunpack.c.l.b16 %v2145
      %v2237 = vunpack.c.l.b16 %v2146
      %v2238 = vunpack.c.l.b16 %v2147
      %v2239 = vunpack.c.l.b16 %v2148
      %v2240 = vunpack.c.l.b16 %v2149
      %v2241 = vunpack.c.l.b16 %v2150
      %v2242 = vunpack.c.l.b16 %v2151
      %v2243 = vunpack.c.l.b16 %v2152
      %v2244 = vunpack.c.l.b16 %v2153
      %v2245 = vunpack.c.l.b16 %v2154
      %v2246 = vunpack.c.l.b16 %v2155
      %v2247 = vunpack.c.l.b16 %v2156
      %v2248 = vunpack.c.l.b16 %v2157
      %v2249 = vunpack.c.l.b16 %v2158
      %v2250 = vunpack.c.l.b16 %v2159
      %v2251 = vunpack.c.l.b16 %v2160
      %v2252 = vunpack.c.l.b16 %v2161
      %v2253 = vunpack.c.l.b16 %v2162
      %v2254 = vunpack.c.l.b16 %v2163
      %v2255 = vunpack.c.l.b16 %v2164
      %v2256 = vunpack.c.l.b16 %v2165
      %v2257 = vunpack.c.l.b16 %v2166
      %v2258 = vunpack.c.l.b16 %v2167
      %v2259 = vunpack.c.l.b16 %v2168
      %v2260 = vunpack.c.l.b16 %v2169
      %v2261 = vunpack.c.l.b16 %v2170
      %v2262 = vunpack.c.l.b16 %v2171
      %v2263 = vunpack.c.l.b16 %v2172
      %v2264 = vunpack.c.l.b16 %v2173
      %v2265 = vunpack.c.l.b16 %v2174
      %v2266 = vunpack.c.l.b16 %v2175
      %v2267 = vpack.c.b16 %v2231, %v2230
      %v2268 = vpack.c.b16 %v2233, %v2232
      %v2269 = vpack.c.b16 %v2235, %v2234
      %v2270 = vpack.c.b16 %v2237, %v2236
      %v2271 = vpack.c.b16 %v2239, %v2238
      %v2272 = vpack.c.b16 %v2241, %v2240
      %v2273 = vpack.c.b16 %v2243, %v2242
      %v2274 = vpack.c.b16 %v2245, %v2244
      %v2275 = vpack.c.b16 %v2247, %v2246
      %v2276 = vpack.c.b16 %v2249, %v2248
      %v2277 = vpack.c.b16 %v2251, %v2250
      %v2278 = vpack.c.b16 %v2253, %v2252
      %v2279 = vpack.c.b16 %v2255, %v2254
      %v2280 = vpack.c.b16 %v2257, %v2256
      %v2281 = vpack.c.b16 %v2259, %v2258
      %v2282 = vpack.c.b16 %v2261, %v2260
      %v2283 = vpack.c.b16 %v2263, %v2262
      %v2284 = vpack.c.b16 %v2265, %v2264
      %v2285 = vpack.c.b16 %v2266, %v2266
      %v2286 = vrot.slane %v2267, 2
      %v2287 = vrot.slane %v2268, 2
      %v2288 = vsel %vm1900, %v2286, %v2287
      %v2289 = vrot.slane %v2269, 2
      %v2290 = vsel %vm1900, %v2287, %v2289
      %v2291 = vrot.slane %v2270, 2
      %v2292 = vsel %vm1900, %v2289, %v2291
      %v2293 = vrot.slane %v2271, 2
      %v2294 = vsel %vm1900, %v2291, %v2293
      %v2295 = vrot.slane %v2272, 2
      %v2296 = vsel %vm1900, %v2293, %v2295
      %v2297 = vrot.slane %v2273, 2
      %v2298 = vsel %vm1900, %v2295, %v2297
      %v2299 = vrot.slane %v2274, 2
      %v2300 = vsel %vm1900, %v2297, %v2299
      %v2301 = vrot.slane %v2275, 2
      %v2302 = vsel %vm1900, %v2299, %v2301
      %v2303 = vrot.slane %v2276, 2
      %v2304 = vsel %vm1900, %v2301, %v2303
      %v2305 = vrot.slane %v2277, 2
      %v2306 = vsel %vm1900, %v2303, %v2305
      %v2307 = vrot.slane %v2278, 2
      %v2308 = vsel %vm1900, %v2305, %v2307
      %v2309 = vrot.slane %v2279, 2
      %v2310 = vsel %vm1900, %v2307, %v2309
      %v2311 = vrot.slane %v2280, 2
      %v2312 = vsel %vm1900, %v2309, %v2311
      %v2313 = vrot.slane %v2281, 2
      %v2314 = vsel %vm1900, %v2311, %v2313
      %v2315 = vrot.slane %v2282, 2
      %v2316 = vsel %vm1900, %v2313, %v2315
      %v2317 = vrot.slane %v2283, 2
      %v2318 = vsel %vm1900, %v2315, %v2317
      %v2319 = vrot.slane %v2284, 2
      %v2320 = vsel %vm1900, %v2317, %v2319
      %v2321 = vrot.slane %v2285, 2
      %v2322 = vsel %vm1900, %v2319, %v2321
      %v2357 = vunpack.c.l.b16 %v2177
      %v2358 = vunpack.c.l.b16 %v2178
      %v2359 = vunpack.c.l.b16 %v2179
      %v2360 = vunpack.c.l.b16 %v2180
      %v2361 = vunpack.c.l.b16 %v2181
      %v2362 = vunpack.c.l.b16 %v2182
      %v2363 = vunpack.c.l.b16 %v2183
      %v2364 = vunpack.c.l.b16 %v2184
      %v2365 = vunpack.c.l.b16 %v2185
      %v2366 = vunpack.c.l.b16 %v2186
      %v2367 = vunpack.c.l.b16 %v2187
      %v2368 = vunpack.c.l.b16 %v2188
      %v2369 = vunpack.c.l.b16 %v2189
      %v2370 = vunpack.c.l.b16 %v2190
      %v2371 = vunpack.c.l.b16 %v2191
      %v2372 = vunpack.c.l.b16 %v2192
      %v2373 = vpack.c.b16 %v2358, %v2357
      %v2374 = vpack.c.b16 %v2360, %v2359
      %v2375 = vpack.c.b16 %v2362, %v2361
      %v2376 = vpack.c.b16 %v2364, %v2363
      %v2377 = vpack.c.b16 %v2366, %v2365
      %v2378 = vpack.c.b16 %v2368, %v2367
      %v2379 = vpack.c.b16 %v2370, %v2369
      %v2380 = vpack.c.b16 %v2372, %v2371
      %2389 = vmatpush.bf16.msra.mxu0 %v2380
      %2390 = vmatpush.bf16.msra.mxu0 %v2379
      %2391 = vmatpush.bf16.msra.mxu0 %v2378
      %2392 = vmatpush.bf16.msra.mxu0 %v2377
      %2393 = vmatpush.bf16.msra.mxu0 %v2376
      %2394 = vmatpush.bf16.msra.mxu0 %v2375
      %2395 = vmatpush.bf16.msra.mxu0 %v2374
      %2396 = vmatpush.bf16.msra.mxu0 %v2373
      %2397 = vmatmul.bf16.gmra.mxu0 %v2288
      %v2398 = vpop.f32.mrf.mxu0
      %v2399 = vadd.f32 0.0, %v2398
      %v2400 = vpop.f32.mrf.mxu0
      %v2401 = vadd.f32 0.0, %v2400
      %2402 = vmatmul.bf16.gmra.mxu0 %v2290
      %v2403 = vpop.f32.mrf.mxu0
      %v2404 = vadd.f32 0.0, %v2403
      %v2405 = vpop.f32.mrf.mxu0
      %v2406 = vadd.f32 0.0, %v2405
      %2407 = vmatmul.bf16.gmra.mxu0 %v2292
      %v2408 = vpop.f32.mrf.mxu0
      %v2409 = vadd.f32 0.0, %v2408
      %v2410 = vpop.f32.mrf.mxu0
      %v2411 = vadd.f32 0.0, %v2410
      %2412 = vmatmul.bf16.gmra.mxu0 %v2294
      %v2413 = vpop.f32.mrf.mxu0
      %v2414 = vadd.f32 0.0, %v2413
      %v2415 = vpop.f32.mrf.mxu0
      %v2416 = vadd.f32 0.0, %v2415
      %2417 = vmatmul.bf16.gmra.mxu0 %v2296
      %v2418 = vpop.f32.mrf.mxu0
      %v2419 = vadd.f32 0.0, %v2418
      %v2420 = vpop.f32.mrf.mxu0
      %v2421 = vadd.f32 0.0, %v2420
      %2422 = vmatmul.bf16.gmra.mxu0 %v2298
      %v2423 = vpop.f32.mrf.mxu0
      %v2424 = vadd.f32 0.0, %v2423
      %v2425 = vpop.f32.mrf.mxu0
      %v2426 = vadd.f32 0.0, %v2425
      %2427 = vmatmul.bf16.gmra.mxu0 %v2300
      %v2428 = vpop.f32.mrf.mxu0
      %v2429 = vadd.f32 0.0, %v2428
      %v2430 = vpop.f32.mrf.mxu0
      %v2431 = vadd.f32 0.0, %v2430
      %2432 = vmatmul.bf16.gmra.mxu0 %v2302
      %v2433 = vpop.f32.mrf.mxu0
      %v2434 = vadd.f32 0.0, %v2433
      %v2435 = vpop.f32.mrf.mxu0
      %v2436 = vadd.f32 0.0, %v2435
      %2437 = vmatmul.bf16.gmra.mxu0 %v2304
      %v2438 = vpop.f32.mrf.mxu0
      %v2439 = vadd.f32 0.0, %v2438
      %v2440 = vpop.f32.mrf.mxu0
      %v2441 = vadd.f32 0.0, %v2440
      %2442 = vmatmul.bf16.gmra.mxu0 %v2306
      %v2443 = vpop.f32.mrf.mxu0
      %v2444 = vadd.f32 0.0, %v2443
      %v2445 = vpop.f32.mrf.mxu0
      %v2446 = vadd.f32 0.0, %v2445
      %2447 = vmatmul.bf16.gmra.mxu0 %v2308
      %v2448 = vpop.f32.mrf.mxu0
      %v2449 = vadd.f32 0.0, %v2448
      %v2450 = vpop.f32.mrf.mxu0
      %v2451 = vadd.f32 0.0, %v2450
      %2452 = vmatmul.bf16.gmra.mxu0 %v2310
      %v2453 = vpop.f32.mrf.mxu0
      %v2454 = vadd.f32 0.0, %v2453
      %v2455 = vpop.f32.mrf.mxu0
      %v2456 = vadd.f32 0.0, %v2455
      %2457 = vmatmul.bf16.gmra.mxu0 %v2312
      %v2458 = vpop.f32.mrf.mxu0
      %v2459 = vadd.f32 0.0, %v2458
      %v2460 = vpop.f32.mrf.mxu0
      %v2461 = vadd.f32 0.0, %v2460
      %2462 = vmatmul.bf16.gmra.mxu0 %v2314
      %v2463 = vpop.f32.mrf.mxu0
      %v2464 = vadd.f32 0.0, %v2463
      %v2465 = vpop.f32.mrf.mxu0
      %v2466 = vadd.f32 0.0, %v2465
      %2467 = vmatmul.bf16.gmra.mxu0 %v2316
      %v2468 = vpop.f32.mrf.mxu0
      %v2469 = vadd.f32 0.0, %v2468
      %v2470 = vpop.f32.mrf.mxu0
      %v2471 = vadd.f32 0.0, %v2470
      %2472 = vmatmul.bf16.gmra.mxu0 %v2318
      %v2473 = vpop.f32.mrf.mxu0
      %v2474 = vadd.f32 0.0, %v2473
      %v2475 = vpop.f32.mrf.mxu0
      %v2476 = vadd.f32 0.0, %v2475
      %2477 = vmatmul.bf16.gmra.mxu0 %v2320
      %v2478 = vpop.f32.mrf.mxu0
      %v2479 = vadd.f32 0.0, %v2478
      %v2480 = vpop.f32.mrf.mxu0
      %v2481 = vadd.f32 0.0, %v2480
      %2482 = vmatmul.bf16.gmra.mxu0 %v2322
      %v2483 = vpop.f32.mrf.mxu0
      %v2484 = vadd.f32 0.0, %v2483
      %v2485 = vpop.f32.mrf.mxu0
      %v2486 = vadd.f32 0.0, %v2485
      %2487 = vdwg.mxu0
      %v2488 = vadd.f32 %v2103, %v2399
      %v2489 = vadd.f32 %v2104, %v2401
      %v2490 = vadd.f32 %v2105, %v2404
      %v2491 = vadd.f32 %v2106, %v2406
      %v2492 = vadd.f32 %v2107, %v2409
      %v2493 = vadd.f32 %v2108, %v2411
      %v2494 = vadd.f32 %v2109, %v2414
      %v2495 = vadd.f32 %v2110, %v2416
      %v2496 = vadd.f32 %v2111, %v2419
      %v2497 = vadd.f32 %v2112, %v2421
      %v2498 = vadd.f32 %v2113, %v2424
      %v2499 = vadd.f32 %v2114, %v2426
      %v2500 = vadd.f32 %v2115, %v2429
      %v2501 = vadd.f32 %v2116, %v2431
      %v2502 = vadd.f32 %v2117, %v2434
      %v2503 = vadd.f32 %v2118, %v2436
      %v2504 = vadd.f32 %v2119, %v2439
      %v2505 = vadd.f32 %v2120, %v2441
      %v2506 = vadd.f32 %v2121, %v2444
      %v2507 = vadd.f32 %v2122, %v2446
      %v2508 = vadd.f32 %v2123, %v2449
      %v2509 = vadd.f32 %v2124, %v2451
      %v2510 = vadd.f32 %v2125, %v2454
      %v2511 = vadd.f32 %v2126, %v2456
      %v2512 = vadd.f32 %v2127, %v2459
      %v2513 = vadd.f32 %v2128, %v2461
      %v2514 = vadd.f32 %v2129, %v2464
      %v2515 = vadd.f32 %v2130, %v2466
      %v2516 = vadd.f32 %v2131, %v2469
      %v2517 = vadd.f32 %v2132, %v2471
      %v2518 = vadd.f32 %v2133, %v2474
      %v2519 = vadd.f32 %v2134, %v2476
      %v2520 = vadd.f32 %v2135, %v2479
      %v2521 = vadd.f32 %v2136, %v2481
      %v2522 = vadd.f32 %v2137, %v2484
      %v2523 = vadd.f32 %v2138, %v2486
      %v2524 = vld [vmem:[%s192 + $0xa0] sm:$0x7]
      %s2525 = scalar_lea.vmem %s1, 448
      %v2526 = vld [vmem:[%s2525] sm:$0xf]
      %v2527 = vld [vmem:[%s2525 + $0x4] sm:$0xf]
      %v2528 = vld [vmem:[%s2525 + $0x8] sm:$0xf]
      %v2529 = vld [vmem:[%s2525 + $0xc] sm:$0xf]
      %v2530 = vld [vmem:[%s2525 + $0x10] sm:$0xf]
      %v2531 = vld [vmem:[%s2525 + $0x14] sm:$0xf]
      %v2532 = vld [vmem:[%s2525 + $0x18] sm:$0xf]
      %v2533 = vld [vmem:[%s2525 + $0x1c] sm:$0xf]
      %v2534 = vld [vmem:[%s2525 + $0x20] sm:$0xf]
      %v2535 = vld [vmem:[%s2525 + $0x24] sm:$0xf]
      %v2536 = vld [vmem:[%s2525 + $0x28] sm:$0xf]
      %v2537 = vld [vmem:[%s2525 + $0x2c] sm:$0xf]
      %v2538 = vld [vmem:[%s2525 + $0x30] sm:$0xf]
      %v2539 = vld [vmem:[%s2525 + $0x34] sm:$0xf]
      %v2540 = vld [vmem:[%s2525 + $0x38] sm:$0xf]
      %v2541 = vld [vmem:[%s2525 + $0x3c] sm:$0xf]
      %v2543 = vunpack.c.l.b16 %v2524
      %v2544 = vpack.c.b16 %v2543, %v2543
      %vm2545 = vsmask.f32 5376
      %v2547 = vshrl.u32 %v2267, 16
      %v2549 = vrot.slane %v2547, 2
      %v2550 = vshll.u32 %v2267, 16
      %v2552 = vrot.slane %v2550, 3
      %v2553 = vor.u32 %v2549, %v2552
      %v2555 = vshrl.u32 %v2268, 16
      %v2557 = vrot.slane %v2555, 2
      %v2558 = vshll.u32 %v2268, 16
      %v2560 = vrot.slane %v2558, 3
      %v2561 = vor.u32 %v2557, %v2560
      %v2562 = vsel %vm2545, %v2553, %v2561
      %v2564 = vshrl.u32 %v2269, 16
      %v2566 = vrot.slane %v2564, 2
      %v2567 = vshll.u32 %v2269, 16
      %v2569 = vrot.slane %v2567, 3
      %v2570 = vor.u32 %v2566, %v2569
      %v2571 = vsel %vm2545, %v2561, %v2570
      %v2573 = vshrl.u32 %v2270, 16
      %v2575 = vrot.slane %v2573, 2
      %v2576 = vshll.u32 %v2270, 16
      %v2578 = vrot.slane %v2576, 3
      %v2579 = vor.u32 %v2575, %v2578
      %v2580 = vsel %vm2545, %v2570, %v2579
      %v2582 = vshrl.u32 %v2271, 16
      %v2584 = vrot.slane %v2582, 2
      %v2585 = vshll.u32 %v2271, 16
      %v2587 = vrot.slane %v2585, 3
      %v2588 = vor.u32 %v2584, %v2587
      %v2589 = vsel %vm2545, %v2579, %v2588
      %v2591 = vshrl.u32 %v2272, 16
      %v2593 = vrot.slane %v2591, 2
      %v2594 = vshll.u32 %v2272, 16
      %v2596 = vrot.slane %v2594, 3
      %v2597 = vor.u32 %v2593, %v2596
      %v2598 = vsel %vm2545, %v2588, %v2597
      %v2600 = vshrl.u32 %v2273, 16
      %v2602 = vrot.slane %v2600, 2
      %v2603 = vshll.u32 %v2273, 16
      %v2605 = vrot.slane %v2603, 3
      %v2606 = vor.u32 %v2602, %v2605
      %v2607 = vsel %vm2545, %v2597, %v2606
      %v2609 = vshrl.u32 %v2274, 16
      %v2611 = vrot.slane %v2609, 2
      %v2612 = vshll.u32 %v2274, 16
      %v2614 = vrot.slane %v2612, 3
      %v2615 = vor.u32 %v2611, %v2614
      %v2616 = vsel %vm2545, %v2606, %v2615
      %v2618 = vshrl.u32 %v2275, 16
      %v2620 = vrot.slane %v2618, 2
      %v2621 = vshll.u32 %v2275, 16
      %v2623 = vrot.slane %v2621, 3
      %v2624 = vor.u32 %v2620, %v2623
      %v2625 = vsel %vm2545, %v2615, %v2624
      %v2627 = vshrl.u32 %v2276, 16
      %v2629 = vrot.slane %v2627, 2
      %v2630 = vshll.u32 %v2276, 16
      %v2632 = vrot.slane %v2630, 3
      %v2633 = vor.u32 %v2629, %v2632
      %v2634 = vsel %vm2545, %v2624, %v2633
      %v2636 = vshrl.u32 %v2277, 16
      %v2638 = vrot.slane %v2636, 2
      %v2639 = vshll.u32 %v2277, 16
      %v2641 = vrot.slane %v2639, 3
      %v2642 = vor.u32 %v2638, %v2641
      %v2643 = vsel %vm2545, %v2633, %v2642
      %v2645 = vshrl.u32 %v2278, 16
      %v2647 = vrot.slane %v2645, 2
      %v2648 = vshll.u32 %v2278, 16
      %v2650 = vrot.slane %v2648, 3
      %v2651 = vor.u32 %v2647, %v2650
      %v2652 = vsel %vm2545, %v2642, %v2651
      %v2654 = vshrl.u32 %v2279, 16
      %v2656 = vrot.slane %v2654, 2
      %v2657 = vshll.u32 %v2279, 16
      %v2659 = vrot.slane %v2657, 3
      %v2660 = vor.u32 %v2656, %v2659
      %v2661 = vsel %vm2545, %v2651, %v2660
      %v2663 = vshrl.u32 %v2280, 16
      %v2665 = vrot.slane %v2663, 2
      %v2666 = vshll.u32 %v2280, 16
      %v2668 = vrot.slane %v2666, 3
      %v2669 = vor.u32 %v2665, %v2668
      %v2670 = vsel %vm2545, %v2660, %v2669
      %v2672 = vshrl.u32 %v2281, 16
      %v2674 = vrot.slane %v2672, 2
      %v2675 = vshll.u32 %v2281, 16
      %v2677 = vrot.slane %v2675, 3
      %v2678 = vor.u32 %v2674, %v2677
      %v2679 = vsel %vm2545, %v2669, %v2678
      %v2681 = vshrl.u32 %v2282, 16
      %v2683 = vrot.slane %v2681, 2
      %v2684 = vshll.u32 %v2282, 16
      %v2686 = vrot.slane %v2684, 3
      %v2687 = vor.u32 %v2683, %v2686
      %v2688 = vsel %vm2545, %v2678, %v2687
      %v2690 = vshrl.u32 %v2283, 16
      %v2692 = vrot.slane %v2690, 2
      %v2693 = vshll.u32 %v2283, 16
      %v2695 = vrot.slane %v2693, 3
      %v2696 = vor.u32 %v2692, %v2695
      %v2697 = vsel %vm2545, %v2687, %v2696
      %v2699 = vshrl.u32 %v2284, 16
      %v2701 = vrot.slane %v2699, 2
      %v2702 = vshll.u32 %v2284, 16
      %v2704 = vrot.slane %v2702, 3
      %v2705 = vor.u32 %v2701, %v2704
      %v2706 = vsel %vm2545, %v2696, %v2705
      %v2708 = vshrl.u32 %v2544, 16
      %v2710 = vrot.slane %v2708, 2
      %v2711 = vshll.u32 %v2544, 16
      %v2713 = vrot.slane %v2711, 3
      %v2714 = vor.u32 %v2710, %v2713
      %v2715 = vsel %vm2545, %v2705, %v2714
      %v2750 = vunpack.c.l.b16 %v2526
      %v2751 = vunpack.c.l.b16 %v2527
      %v2752 = vunpack.c.l.b16 %v2528
      %v2753 = vunpack.c.l.b16 %v2529
      %v2754 = vunpack.c.l.b16 %v2530
      %v2755 = vunpack.c.l.b16 %v2531
      %v2756 = vunpack.c.l.b16 %v2532
      %v2757 = vunpack.c.l.b16 %v2533
      %v2758 = vunpack.c.l.b16 %v2534
      %v2759 = vunpack.c.l.b16 %v2535
      %v2760 = vunpack.c.l.b16 %v2536
      %v2761 = vunpack.c.l.b16 %v2537
      %v2762 = vunpack.c.l.b16 %v2538
      %v2763 = vunpack.c.l.b16 %v2539
      %v2764 = vunpack.c.l.b16 %v2540
      %v2765 = vunpack.c.l.b16 %v2541
      %v2766 = vpack.c.b16 %v2751, %v2750
      %v2767 = vpack.c.b16 %v2753, %v2752
      %v2768 = vpack.c.b16 %v2755, %v2754
      %v2769 = vpack.c.b16 %v2757, %v2756
      %v2770 = vpack.c.b16 %v2759, %v2758
      %v2771 = vpack.c.b16 %v2761, %v2760
      %v2772 = vpack.c.b16 %v2763, %v2762
      %v2773 = vpack.c.b16 %v2765, %v2764
      %2782 = vmatpush.bf16.msra.mxu0 %v2773
      %2783 = vmatpush.bf16.msra.mxu0 %v2772
      %2784 = vmatpush.bf16.msra.mxu0 %v2771
      %2785 = vmatpush.bf16.msra.mxu0 %v2770
      %2786 = vmatpush.bf16.msra.mxu0 %v2769
      %2787 = vmatpush.bf16.msra.mxu0 %v2768
      %2788 = vmatpush.bf16.msra.mxu0 %v2767
      %2789 = vmatpush.bf16.msra.mxu0 %v2766
      %2790 = vmatmul.bf16.gmra.mxu0 %v2562
      %v2791 = vpop.f32.mrf.mxu0
      %v2792 = vadd.f32 0.0, %v2791
      %v2793 = vpop.f32.mrf.mxu0
      %v2794 = vadd.f32 0.0, %v2793
      %2795 = vmatmul.bf16.gmra.mxu0 %v2571
      %v2796 = vpop.f32.mrf.mxu0
      %v2797 = vadd.f32 0.0, %v2796
      %v2798 = vpop.f32.mrf.mxu0
      %v2799 = vadd.f32 0.0, %v2798
      %2800 = vmatmul.bf16.gmra.mxu0 %v2580
      %v2801 = vpop.f32.mrf.mxu0
      %v2802 = vadd.f32 0.0, %v2801
      %v2803 = vpop.f32.mrf.mxu0
      %v2804 = vadd.f32 0.0, %v2803
      %2805 = vmatmul.bf16.gmra.mxu0 %v2589
      %v2806 = vpop.f32.mrf.mxu0
      %v2807 = vadd.f32 0.0, %v2806
      %v2808 = vpop.f32.mrf.mxu0
      %v2809 = vadd.f32 0.0, %v2808
      %2810 = vmatmul.bf16.gmra.mxu0 %v2598
      %v2811 = vpop.f32.mrf.mxu0
      %v2812 = vadd.f32 0.0, %v2811
      %v2813 = vpop.f32.mrf.mxu0
      %v2814 = vadd.f32 0.0, %v2813
      %2815 = vmatmul.bf16.gmra.mxu0 %v2607
      %v2816 = vpop.f32.mrf.mxu0
      %v2817 = vadd.f32 0.0, %v2816
      %v2818 = vpop.f32.mrf.mxu0
      %v2819 = vadd.f32 0.0, %v2818
      %2820 = vmatmul.bf16.gmra.mxu0 %v2616
      %v2821 = vpop.f32.mrf.mxu0
      %v2822 = vadd.f32 0.0, %v2821
      %v2823 = vpop.f32.mrf.mxu0
      %v2824 = vadd.f32 0.0, %v2823
      %2825 = vmatmul.bf16.gmra.mxu0 %v2625
      %v2826 = vpop.f32.mrf.mxu0
      %v2827 = vadd.f32 0.0, %v2826
      %v2828 = vpop.f32.mrf.mxu0
      %v2829 = vadd.f32 0.0, %v2828
      %2830 = vmatmul.bf16.gmra.mxu0 %v2634
      %v2831 = vpop.f32.mrf.mxu0
      %v2832 = vadd.f32 0.0, %v2831
      %v2833 = vpop.f32.mrf.mxu0
      %v2834 = vadd.f32 0.0, %v2833
      %2835 = vmatmul.bf16.gmra.mxu0 %v2643
      %v2836 = vpop.f32.mrf.mxu0
      %v2837 = vadd.f32 0.0, %v2836
      %v2838 = vpop.f32.mrf.mxu0
      %v2839 = vadd.f32 0.0, %v2838
      %2840 = vmatmul.bf16.gmra.mxu0 %v2652
      %v2841 = vpop.f32.mrf.mxu0
      %v2842 = vadd.f32 0.0, %v2841
      %v2843 = vpop.f32.mrf.mxu0
      %v2844 = vadd.f32 0.0, %v2843
      %2845 = vmatmul.bf16.gmra.mxu0 %v2661
      %v2846 = vpop.f32.mrf.mxu0
      %v2847 = vadd.f32 0.0, %v2846
      %v2848 = vpop.f32.mrf.mxu0
      %v2849 = vadd.f32 0.0, %v2848
      %2850 = vmatmul.bf16.gmra.mxu0 %v2670
      %v2851 = vpop.f32.mrf.mxu0
      %v2852 = vadd.f32 0.0, %v2851
      %v2853 = vpop.f32.mrf.mxu0
      %v2854 = vadd.f32 0.0, %v2853
      %2855 = vmatmul.bf16.gmra.mxu0 %v2679
      %v2856 = vpop.f32.mrf.mxu0
      %v2857 = vadd.f32 0.0, %v2856
      %v2858 = vpop.f32.mrf.mxu0
      %v2859 = vadd.f32 0.0, %v2858
      %2860 = vmatmul.bf16.gmra.mxu0 %v2688
      %v2861 = vpop.f32.mrf.mxu0
      %v2862 = vadd.f32 0.0, %v2861
      %v2863 = vpop.f32.mrf.mxu0
      %v2864 = vadd.f32 0.0, %v2863
      %2865 = vmatmul.bf16.gmra.mxu0 %v2697
      %v2866 = vpop.f32.mrf.mxu0
      %v2867 = vadd.f32 0.0, %v2866
      %v2868 = vpop.f32.mrf.mxu0
      %v2869 = vadd.f32 0.0, %v2868
      %2870 = vmatmul.bf16.gmra.mxu0 %v2706
      %v2871 = vpop.f32.mrf.mxu0
      %v2872 = vadd.f32 0.0, %v2871
      %v2873 = vpop.f32.mrf.mxu0
      %v2874 = vadd.f32 0.0, %v2873
      %2875 = vmatmul.bf16.gmra.mxu0 %v2715
      %v2876 = vpop.f32.mrf.mxu0
      %v2877 = vadd.f32 0.0, %v2876
      %v2878 = vpop.f32.mrf.mxu0
      %v2879 = vadd.f32 0.0, %v2878
      %2880 = vdwg.mxu0
      %v2881 = vadd.f32 %v2488, %v2792
      %v2882 = vadd.f32 %v2489, %v2794
      %v2883 = vadd.f32 %v2490, %v2797
      %v2884 = vadd.f32 %v2491, %v2799
      %v2885 = vadd.f32 %v2492, %v2802
      %v2886 = vadd.f32 %v2493, %v2804
      %v2887 = vadd.f32 %v2494, %v2807
      %v2888 = vadd.f32 %v2495, %v2809
      %v2889 = vadd.f32 %v2496, %v2812
      %v2890 = vadd.f32 %v2497, %v2814
      %v2891 = vadd.f32 %v2498, %v2817
      %v2892 = vadd.f32 %v2499, %v2819
      %v2893 = vadd.f32 %v2500, %v2822
      %v2894 = vadd.f32 %v2501, %v2824
      %v2895 = vadd.f32 %v2502, %v2827
      %v2896 = vadd.f32 %v2503, %v2829
      %v2897 = vadd.f32 %v2504, %v2832
      %v2898 = vadd.f32 %v2505, %v2834
      %v2899 = vadd.f32 %v2506, %v2837
      %v2900 = vadd.f32 %v2507, %v2839
      %v2901 = vadd.f32 %v2508, %v2842
      %v2902 = vadd.f32 %v2509, %v2844
      %v2903 = vadd.f32 %v2510, %v2847
      %v2904 = vadd.f32 %v2511, %v2849
      %v2905 = vadd.f32 %v2512, %v2852
      %v2906 = vadd.f32 %v2513, %v2854
      %v2907 = vadd.f32 %v2514, %v2857
      %v2908 = vadd.f32 %v2515, %v2859
      %v2909 = vadd.f32 %v2516, %v2862
      %v2910 = vadd.f32 %v2517, %v2864
      %v2911 = vadd.f32 %v2518, %v2867
      %v2912 = vadd.f32 %v2519, %v2869
      %v2913 = vadd.f32 %v2520, %v2872
      %v2914 = vadd.f32 %v2521, %v2874
      %v2915 = vadd.f32 %v2522, %v2877
      %v2916 = vadd.f32 %v2523, %v2879
      %v2917 = vld [vmem:[%s192 + $0x10] sm:$0x8]
      %s2918 = scalar_lea.vmem %s1, 512
      %v2919 = vld [vmem:[%s2918] sm:$0xf]
      %v2920 = vld [vmem:[%s2918 + $0x4] sm:$0xf]
      %v2921 = vld [vmem:[%s2918 + $0x8] sm:$0xf]
      %v2922 = vld [vmem:[%s2918 + $0xc] sm:$0xf]
      %v2923 = vld [vmem:[%s2918 + $0x10] sm:$0xf]
      %v2924 = vld [vmem:[%s2918 + $0x14] sm:$0xf]
      %v2925 = vld [vmem:[%s2918 + $0x18] sm:$0xf]
      %v2926 = vld [vmem:[%s2918 + $0x1c] sm:$0xf]
      %v2927 = vld [vmem:[%s2918 + $0x20] sm:$0xf]
      %v2928 = vld [vmem:[%s2918 + $0x24] sm:$0xf]
      %v2929 = vld [vmem:[%s2918 + $0x28] sm:$0xf]
      %v2930 = vld [vmem:[%s2918 + $0x2c] sm:$0xf]
      %v2931 = vld [vmem:[%s2918 + $0x30] sm:$0xf]
      %v2932 = vld [vmem:[%s2918 + $0x34] sm:$0xf]
      %v2933 = vld [vmem:[%s2918 + $0x38] sm:$0xf]
      %v2934 = vld [vmem:[%s2918 + $0x3c] sm:$0xf]
      %v2936 = vunpack.c.l.b16 %v2917
      %v2937 = vpack.c.b16 %v2231, %v2936
      %vm2938 = vcmask 1044480
      %v2939 = vrot.slane %v2937, 3
      %v2940 = vrot.slane %v2268, 3
      %v2941 = vsel %vm2938, %v2939, %v2940
      %v2942 = vrot.slane %v2269, 3
      %v2943 = vsel %vm2938, %v2940, %v2942
      %v2944 = vrot.slane %v2270, 3
      %v2945 = vsel %vm2938, %v2942, %v2944
      %v2946 = vrot.slane %v2271, 3
      %v2947 = vsel %vm2938, %v2944, %v2946
      %v2948 = vrot.slane %v2272, 3
      %v2949 = vsel %vm2938, %v2946, %v2948
      %v2950 = vrot.slane %v2273, 3
      %v2951 = vsel %vm2938, %v2948, %v2950
      %v2952 = vrot.slane %v2274, 3
      %v2953 = vsel %vm2938, %v2950, %v2952
      %v2954 = vrot.slane %v2275, 3
      %v2955 = vsel %vm2938, %v2952, %v2954
      %v2956 = vrot.slane %v2276, 3
      %v2957 = vsel %vm2938, %v2954, %v2956
      %v2958 = vrot.slane %v2277, 3
      %v2959 = vsel %vm2938, %v2956, %v2958
      %v2960 = vrot.slane %v2278, 3
      %v2961 = vsel %vm2938, %v2958, %v2960
      %v2962 = vrot.slane %v2279, 3
      %v2963 = vsel %vm2938, %v2960, %v2962
      %v2964 = vrot.slane %v2280, 3
      %v2965 = vsel %vm2938, %v2962, %v2964
      %v2966 = vrot.slane %v2281, 3
      %v2967 = vsel %vm2938, %v2964, %v2966
      %v2968 = vrot.slane %v2282, 3
      %v2969 = vsel %vm2938, %v2966, %v2968
      %v2970 = vrot.slane %v2283, 3
      %v2971 = vsel %vm2938, %v2968, %v2970
      %v2972 = vrot.slane %v2284, 3
      %v2973 = vsel %vm2938, %v2970, %v2972
      %v2974 = vrot.slane %v2544, 3
      %v2975 = vsel %vm2938, %v2972, %v2974
      %v3010 = vunpack.c.l.b16 %v2919
      %v3011 = vunpack.c.l.b16 %v2920
      %v3012 = vunpack.c.l.b16 %v2921
      %v3013 = vunpack.c.l.b16 %v2922
      %v3014 = vunpack.c.l.b16 %v2923
      %v3015 = vunpack.c.l.b16 %v2924
      %v3016 = vunpack.c.l.b16 %v2925
      %v3017 = vunpack.c.l.b16 %v2926
      %v3018 = vunpack.c.l.b16 %v2927
      %v3019 = vunpack.c.l.b16 %v2928
      %v3020 = vunpack.c.l.b16 %v2929
      %v3021 = vunpack.c.l.b16 %v2930
      %v3022 = vunpack.c.l.b16 %v2931
      %v3023 = vunpack.c.l.b16 %v2932
      %v3024 = vunpack.c.l.b16 %v2933
      %v3025 = vunpack.c.l.b16 %v2934
      %v3026 = vpack.c.b16 %v3011, %v3010
      %v3027 = vpack.c.b16 %v3013, %v3012
      %v3028 = vpack.c.b16 %v3015, %v3014
      %v3029 = vpack.c.b16 %v3017, %v3016
      %v3030 = vpack.c.b16 %v3019, %v3018
      %v3031 = vpack.c.b16 %v3021, %v3020
      %v3032 = vpack.c.b16 %v3023, %v3022
      %v3033 = vpack.c.b16 %v3025, %v3024
      %3042 = vmatpush.bf16.msra.mxu0 %v3033
      %3043 = vmatpush.bf16.msra.mxu0 %v3032
      %3044 = vmatpush.bf16.msra.mxu0 %v3031
      %3045 = vmatpush.bf16.msra.mxu0 %v3030
      %3046 = vmatpush.bf16.msra.mxu0 %v3029
      %3047 = vmatpush.bf16.msra.mxu0 %v3028
      %3048 = vmatpush.bf16.msra.mxu0 %v3027
      %3049 = vmatpush.bf16.msra.mxu0 %v3026
      %3050 = vmatmul.bf16.gmra.mxu0 %v2941
      %v3051 = vpop.f32.mrf.mxu0
      %v3052 = vadd.f32 0.0, %v3051
      %v3053 = vpop.f32.mrf.mxu0
      %v3054 = vadd.f32 0.0, %v3053
      %3055 = vmatmul.bf16.gmra.mxu0 %v2943
      %v3056 = vpop.f32.mrf.mxu0
      %v3057 = vadd.f32 0.0, %v3056
      %v3058 = vpop.f32.mrf.mxu0
      %v3059 = vadd.f32 0.0, %v3058
      %3060 = vmatmul.bf16.gmra.mxu0 %v2945
      %v3061 = vpop.f32.mrf.mxu0
      %v3062 = vadd.f32 0.0, %v3061
      %v3063 = vpop.f32.mrf.mxu0
      %v3064 = vadd.f32 0.0, %v3063
      %3065 = vmatmul.bf16.gmra.mxu0 %v2947
      %v3066 = vpop.f32.mrf.mxu0
      %v3067 = vadd.f32 0.0, %v3066
      %v3068 = vpop.f32.mrf.mxu0
      %v3069 = vadd.f32 0.0, %v3068
      %3070 = vmatmul.bf16.gmra.mxu0 %v2949
      %v3071 = vpop.f32.mrf.mxu0
      %v3072 = vadd.f32 0.0, %v3071
      %v3073 = vpop.f32.mrf.mxu0
      %v3074 = vadd.f32 0.0, %v3073
      %3075 = vmatmul.bf16.gmra.mxu0 %v2951
      %v3076 = vpop.f32.mrf.mxu0
      %v3077 = vadd.f32 0.0, %v3076
      %v3078 = vpop.f32.mrf.mxu0
      %v3079 = vadd.f32 0.0, %v3078
      %3080 = vmatmul.bf16.gmra.mxu0 %v2953
      %v3081 = vpop.f32.mrf.mxu0
      %v3082 = vadd.f32 0.0, %v3081
      %v3083 = vpop.f32.mrf.mxu0
      %v3084 = vadd.f32 0.0, %v3083
      %3085 = vmatmul.bf16.gmra.mxu0 %v2955
      %v3086 = vpop.f32.mrf.mxu0
      %v3087 = vadd.f32 0.0, %v3086
      %v3088 = vpop.f32.mrf.mxu0
      %v3089 = vadd.f32 0.0, %v3088
      %3090 = vmatmul.bf16.gmra.mxu0 %v2957
      %v3091 = vpop.f32.mrf.mxu0
      %v3092 = vadd.f32 0.0, %v3091
      %v3093 = vpop.f32.mrf.mxu0
      %v3094 = vadd.f32 0.0, %v3093
      %3095 = vmatmul.bf16.gmra.mxu0 %v2959
      %v3096 = vpop.f32.mrf.mxu0
      %v3097 = vadd.f32 0.0, %v3096
      %v3098 = vpop.f32.mrf.mxu0
      %v3099 = vadd.f32 0.0, %v3098
      %3100 = vmatmul.bf16.gmra.mxu0 %v2961
      %v3101 = vpop.f32.mrf.mxu0
      %v3102 = vadd.f32 0.0, %v3101
      %v3103 = vpop.f32.mrf.mxu0
      %v3104 = vadd.f32 0.0, %v3103
      %3105 = vmatmul.bf16.gmra.mxu0 %v2963
      %v3106 = vpop.f32.mrf.mxu0
      %v3107 = vadd.f32 0.0, %v3106
      %v3108 = vpop.f32.mrf.mxu0
      %v3109 = vadd.f32 0.0, %v3108
      %3110 = vmatmul.bf16.gmra.mxu0 %v2965
      %v3111 = vpop.f32.mrf.mxu0
      %v3112 = vadd.f32 0.0, %v3111
      %v3113 = vpop.f32.mrf.mxu0
      %v3114 = vadd.f32 0.0, %v3113
      %3115 = vmatmul.bf16.gmra.mxu0 %v2967
      %v3116 = vpop.f32.mrf.mxu0
      %v3117 = vadd.f32 0.0, %v3116
      %v3118 = vpop.f32.mrf.mxu0
      %v3119 = vadd.f32 0.0, %v3118
      %3120 = vmatmul.bf16.gmra.mxu0 %v2969
      %v3121 = vpop.f32.mrf.mxu0
      %v3122 = vadd.f32 0.0, %v3121
      %v3123 = vpop.f32.mrf.mxu0
      %v3124 = vadd.f32 0.0, %v3123
      %3125 = vmatmul.bf16.gmra.mxu0 %v2971
      %v3126 = vpop.f32.mrf.mxu0
      %v3127 = vadd.f32 0.0, %v3126
      %v3128 = vpop.f32.mrf.mxu0
      %v3129 = vadd.f32 0.0, %v3128
      %3130 = vmatmul.bf16.gmra.mxu0 %v2973
      %v3131 = vpop.f32.mrf.mxu0
      %v3132 = vadd.f32 0.0, %v3131
      %v3133 = vpop.f32.mrf.mxu0
      %v3134 = vadd.f32 0.0, %v3133
      %3135 = vmatmul.bf16.gmra.mxu0 %v2975
      %v3136 = vpop.f32.mrf.mxu0
      %v3137 = vadd.f32 0.0, %v3136
      %v3138 = vpop.f32.mrf.mxu0
      %v3139 = vadd.f32 0.0, %v3138
      %3140 = vdwg.mxu0
      %v3141 = vadd.f32 %v2881, %v3052
      %v3142 = vadd.f32 %v2882, %v3054
      %v3143 = vadd.f32 %v2883, %v3057
      %v3144 = vadd.f32 %v2884, %v3059
      %v3145 = vadd.f32 %v2885, %v3062
      %v3146 = vadd.f32 %v2886, %v3064
      %v3147 = vadd.f32 %v2887, %v3067
      %v3148 = vadd.f32 %v2888, %v3069
      %v3149 = vadd.f32 %v2889, %v3072
      %v3150 = vadd.f32 %v2890, %v3074
      %v3151 = vadd.f32 %v2891, %v3077
      %v3152 = vadd.f32 %v2892, %v3079
      %v3153 = vadd.f32 %v2893, %v3082
      %v3154 = vadd.f32 %v2894, %v3084
      %v3155 = vadd.f32 %v2895, %v3087
      %v3156 = vadd.f32 %v2896, %v3089
      %v3157 = vadd.f32 %v2897, %v3092
      %v3158 = vadd.f32 %v2898, %v3094
      %v3159 = vadd.f32 %v2899, %v3097
      %v3160 = vadd.f32 %v2900, %v3099
      %v3161 = vadd.f32 %v2901, %v3102
      %v3162 = vadd.f32 %v2902, %v3104
      %v3163 = vadd.f32 %v2903, %v3107
      %v3164 = vadd.f32 %v2904, %v3109
      %v3165 = vadd.f32 %v2905, %v3112
      %v3166 = vadd.f32 %v2906, %v3114
      %v3167 = vadd.f32 %v2907, %v3117
      %v3168 = vadd.f32 %v2908, %v3119
      %v3169 = vadd.f32 %v2909, %v3122
      %v3170 = vadd.f32 %v2910, %v3124
      %v3171 = vadd.f32 %v2911, %v3127
      %v3172 = vadd.f32 %v2912, %v3129
      %v3173 = vadd.f32 %v2913, %v3132
      %v3174 = vadd.f32 %v2914, %v3134
      %v3175 = vadd.f32 %v2915, %v3137
      %v3176 = vadd.f32 %v2916, %v3139
      %v3177 = vld [vmem:[%s2] sm:$0x1]
      %v3179 = vperm.slane %v3177, 0
      %v3181 = vmul.f32 %v3141, %v3179
      %v3182 = vmul.f32 %v3142, %v3179
      %v3183 = vmul.f32 %v3143, %v3179
      %v3184 = vmul.f32 %v3144, %v3179
      %v3185 = vmul.f32 %v3145, %v3179
      %v3186 = vmul.f32 %v3146, %v3179
      %v3187 = vmul.f32 %v3147, %v3179
      %v3188 = vmul.f32 %v3148, %v3179
      %v3189 = vmul.f32 %v3149, %v3179
      %v3190 = vmul.f32 %v3150, %v3179
      %v3191 = vmul.f32 %v3151, %v3179
      %v3192 = vmul.f32 %v3152, %v3179
      %v3193 = vmul.f32 %v3153, %v3179
      %v3194 = vmul.f32 %v3154, %v3179
      %v3195 = vmul.f32 %v3155, %v3179
      %v3196 = vmul.f32 %v3156, %v3179
      %v3197 = vmul.f32 %v3157, %v3179
      %v3198 = vmul.f32 %v3158, %v3179
      %v3199 = vmul.f32 %v3159, %v3179
      %v3200 = vmul.f32 %v3160, %v3179
      %v3201 = vmul.f32 %v3161, %v3179
      %v3202 = vmul.f32 %v3162, %v3179
      %v3203 = vmul.f32 %v3163, %v3179
      %v3204 = vmul.f32 %v3164, %v3179
      %v3205 = vmul.f32 %v3165, %v3179
      %v3206 = vmul.f32 %v3166, %v3179
      %v3207 = vmul.f32 %v3167, %v3179
      %v3208 = vmul.f32 %v3168, %v3179
      %v3209 = vmul.f32 %v3169, %v3179
      %v3210 = vmul.f32 %v3170, %v3179
      %v3211 = vmul.f32 %v3171, %v3179
      %v3212 = vmul.f32 %v3172, %v3179
      %v3213 = vmul.f32 %v3173, %v3179
      %v3214 = vmul.f32 %v3174, %v3179
      %v3215 = vmul.f32 %v3175, %v3179
      %v3216 = vmul.f32 %v3176, %v3179
      %v3217 = vld [vmem:[%s3] sm:$0x1]
      %v3219 = vperm.slane %v3217, 0
      %v3221 = vadd.f32 %v3181, %v3219
      %v3222 = vadd.f32 %v3182, %v3219
      %v3223 = vadd.f32 %v3183, %v3219
      %v3224 = vadd.f32 %v3184, %v3219
      %v3225 = vadd.f32 %v3185, %v3219
      %v3226 = vadd.f32 %v3186, %v3219
      %v3227 = vadd.f32 %v3187, %v3219
      %v3228 = vadd.f32 %v3188, %v3219
      %v3229 = vadd.f32 %v3189, %v3219
      %v3230 = vadd.f32 %v3190, %v3219
      %v3231 = vadd.f32 %v3191, %v3219
      %v3232 = vadd.f32 %v3192, %v3219
      %v3233 = vadd.f32 %v3193, %v3219
      %v3234 = vadd.f32 %v3194, %v3219
      %v3235 = vadd.f32 %v3195, %v3219
      %v3236 = vadd.f32 %v3196, %v3219
      %v3237 = vadd.f32 %v3197, %v3219
      %v3238 = vadd.f32 %v3198, %v3219
      %v3239 = vadd.f32 %v3199, %v3219
      %v3240 = vadd.f32 %v3200, %v3219
      %v3241 = vadd.f32 %v3201, %v3219
      %v3242 = vadd.f32 %v3202, %v3219
      %v3243 = vadd.f32 %v3203, %v3219
      %v3244 = vadd.f32 %v3204, %v3219
      %v3245 = vadd.f32 %v3205, %v3219
      %v3246 = vadd.f32 %v3206, %v3219
      %v3247 = vadd.f32 %v3207, %v3219
      %v3248 = vadd.f32 %v3208, %v3219
      %v3249 = vadd.f32 %v3209, %v3219
      %v3250 = vadd.f32 %v3210, %v3219
      %v3251 = vadd.f32 %v3211, %v3219
      %v3252 = vadd.f32 %v3212, %v3219
      %v3253 = vadd.f32 %v3213, %v3219
      %v3254 = vadd.f32 %v3214, %v3219
      %v3255 = vadd.f32 %v3215, %v3219
      %v3256 = vadd.f32 %v3216, %v3219
      %v3257 = vmax.f32 %v3221, 0.0
      %v3258 = vmax.f32 %v3222, 0.0
      %v3259 = vmax.f32 %v3223, 0.0
      %v3260 = vmax.f32 %v3224, 0.0
      %v3261 = vmax.f32 %v3225, 0.0
      %v3262 = vmax.f32 %v3226, 0.0
      %v3263 = vmax.f32 %v3227, 0.0
      %v3264 = vmax.f32 %v3228, 0.0
      %v3265 = vmax.f32 %v3229, 0.0
      %v3266 = vmax.f32 %v3230, 0.0
      %v3267 = vmax.f32 %v3231, 0.0
      %v3268 = vmax.f32 %v3232, 0.0
      %v3269 = vmax.f32 %v3233, 0.0
      %v3270 = vmax.f32 %v3234, 0.0
      %v3271 = vmax.f32 %v3235, 0.0
      %v3272 = vmax.f32 %v3236, 0.0
      %v3273 = vmax.f32 %v3237, 0.0
      %v3274 = vmax.f32 %v3238, 0.0
      %v3275 = vmax.f32 %v3239, 0.0
      %v3276 = vmax.f32 %v3240, 0.0
      %v3277 = vmax.f32 %v3241, 0.0
      %v3278 = vmax.f32 %v3242, 0.0
      %v3279 = vmax.f32 %v3243, 0.0
      %v3280 = vmax.f32 %v3244, 0.0
      %v3281 = vmax.f32 %v3245, 0.0
      %v3282 = vmax.f32 %v3246, 0.0
      %v3283 = vmax.f32 %v3247, 0.0
      %v3284 = vmax.f32 %v3248, 0.0
      %v3285 = vmax.f32 %v3249, 0.0
      %v3286 = vmax.f32 %v3250, 0.0
      %v3287 = vmax.f32 %v3251, 0.0
      %v3288 = vmax.f32 %v3252, 0.0
      %v3289 = vmax.f32 %v3253, 0.0
      %v3290 = vmax.f32 %v3254, 0.0
      %v3291 = vmax.f32 %v3255, 0.0
      %v3292 = vmax.f32 %v3256, 0.0
      %v3293 = vlaneseq
      %v3294 = vshrl.u32 %v3293, 7
      %v3295 = vadd.s32 %v3294, 8
      %v3296 = vadd.s32 %v3294, 16
      %v3297 = vadd.s32 %v3294, 24
      %v3298 = vadd.s32 %v3294, 32
      %v3299 = vadd.s32 %v3294, 40
      %v3300 = vadd.s32 %v3294, 48
      %v3301 = vadd.s32 %v3294, 56
      %v3302 = vadd.s32 %v3294, 64
      %v3303 = vadd.s32 %v3294, 72
      %v3304 = vadd.s32 %v3294, 80
      %v3305 = vadd.s32 %v3294, 88
      %v3306 = vadd.s32 %v3294, 96
      %v3307 = vadd.s32 %v3294, 104
      %v3308 = vadd.s32 %v3294, 112
      %v3309 = vadd.s32 %v3294, 120
      %v3310 = vadd.s32 %v3294, 128
      %v3311 = vadd.s32 %v3294, 136
      %v3312 = vadd.s32 %v3294, 144
      %v3313 = vadd.s32 %v3294, 152
      %v3314 = vadd.s32 %v3294, 160
      %v3315 = vadd.s32 %v3294, 168
      %v3316 = vadd.s32 %v3294, 176
      %v3317 = vadd.s32 %v3294, 184
      %v3318 = vadd.s32 %v3294, 192
      %v3319 = vadd.s32 %v3294, 200
      %v3320 = vadd.s32 %v3294, 208
      %v3321 = vadd.s32 %v3294, 216
      %v3322 = vadd.s32 %v3294, 224
      %v3323 = vadd.s32 %v3294, 232
      %v3324 = vadd.s32 %v3294, 240
      %v3325 = vadd.s32 %v3294, 248
      %v3326 = vadd.s32 %v3294, 256
      %v3327 = vadd.s32 %v3294, 264
      %v3328 = vadd.s32 %v3294, 272
      %v3329 = vadd.s32 %v3294, 280
      %vm3330 = vcmp.lt.s32.totalorder %v3294, 0
      %v3331 = vsub.s32 0, %v3294
      %v3332 = vsel %vm3330, %v3331, %v3294
      %v3333 = vand.u32 %v3332, 65535
      %v3334 = vshrl.u32 %v3332, 16
      %v3336 = vmul.u32 %v3333, 14564
      %v3337 = vmul.u32 %v3333, 58254
      %v3338 = vmul.u32 %v3334, 14564
      %v3339 = vmul.u32 %v3334, 58254
      %v3340 = vshll.u32 %v3337, 16
      %v3341 = vshrl.u32 %v3337, 16
      %v3342 = vshll.u32 %v3338, 16
      %v3343 = vshrl.u32 %v3338, 16
      %vm3344 = vc.u32 %v3336, %v3340
      %v3345 = vsel %vm3344, 1, 0
      %v3346 = vadd.s32 %v3336, %v3340
      %v3347 = vadd.s32 %v3339, %v3345
      %vm3348 = vc.u32 %v3346, %v3342
      %v3349 = vsel %vm3348, 1, 0
      %v3350 = vadd.s32 %v3346, %v3342
      %v3351 = vadd.s32 %v3347, %v3349
      %v3352 = vadd.s32 %v3351, %v3341
      %v3353 = vadd.s32 %v3352, %v3343
      %v3354 = vshrl.u32 %v3353, 4
      %v3355 = vmul.u32 %v3354, 18
      %v3356 = vsub.s32 %v3332, %v3355
      %v3357 = vsub.s32 0, %v3356
      %v3358 = vsel %vm3330, %v3357, %v3356
      %vm3359 = vcmp.lt.s32.totalorder %v3295, 0
      %v3360 = vsub.s32 0, %v3295
      %v3361 = vsel %vm3359, %v3360, %v3295
      %v3362 = vand.u32 %v3361, 65535
      %v3363 = vshrl.u32 %v3361, 16
      %v3365 = vmul.u32 %v3362, 14564
      %v3366 = vmul.u32 %v3362, 58254
      %v3367 = vmul.u32 %v3363, 14564
      %v3368 = vmul.u32 %v3363, 58254
      %v3369 = vshll.u32 %v3366, 16
      %v3370 = vshrl.u32 %v3366, 16
      %v3371 = vshll.u32 %v3367, 16
      %v3372 = vshrl.u32 %v3367, 16
      %vm3373 = vc.u32 %v3365, %v3369
      %v3374 = vsel %vm3373, 1, 0
      %v3375 = vadd.s32 %v3365, %v3369
      %v3376 = vadd.s32 %v3368, %v3374
      %vm3377 = vc.u32 %v3375, %v3371
      %v3378 = vsel %vm3377, 1, 0
      %v3379 = vadd.s32 %v3375, %v3371
      %v3380 = vadd.s32 %v3376, %v3378
      %v3381 = vadd.s32 %v3380, %v3370
      %v3382 = vadd.s32 %v3381, %v3372
      %v3383 = vshrl.u32 %v3382, 4
      %v3384 = vmul.u32 %v3383, 18
      %v3385 = vsub.s32 %v3361, %v3384
      %v3386 = vsub.s32 0, %v3385
      %v3387 = vsel %vm3359, %v3386, %v3385
      %vm3388 = vcmp.lt.s32.totalorder %v3296, 0
      %v3389 = vsub.s32 0, %v3296
      %v3390 = vsel %vm3388, %v3389, %v3296
      %v3391 = vand.u32 %v3390, 65535
      %v3392 = vshrl.u32 %v3390, 16
      %v3394 = vmul.u32 %v3391, 14564
      %v3395 = vmul.u32 %v3391, 58254
      %v3396 = vmul.u32 %v3392, 14564
      %v3397 = vmul.u32 %v3392, 58254
      %v3398 = vshll.u32 %v3395, 16
      %v3399 = vshrl.u32 %v3395, 16
      %v3400 = vshll.u32 %v3396, 16
      %v3401 = vshrl.u32 %v3396, 16
      %vm3402 = vc.u32 %v3394, %v3398
      %v3403 = vsel %vm3402, 1, 0
      %v3404 = vadd.s32 %v3394, %v3398
      %v3405 = vadd.s32 %v3397, %v3403
      %vm3406 = vc.u32 %v3404, %v3400
      %v3407 = vsel %vm3406, 1, 0
      %v3408 = vadd.s32 %v3404, %v3400
      %v3409 = vadd.s32 %v3405, %v3407
      %v3410 = vadd.s32 %v3409, %v3399
      %v3411 = vadd.s32 %v3410, %v3401
      %v3412 = vshrl.u32 %v3411, 4
      %v3413 = vmul.u32 %v3412, 18
      %v3414 = vsub.s32 %v3390, %v3413
      %v3415 = vsub.s32 0, %v3414
      %v3416 = vsel %vm3388, %v3415, %v3414
      %vm3417 = vcmp.lt.s32.totalorder %v3297, 0
      %v3418 = vsub.s32 0, %v3297
      %v3419 = vsel %vm3417, %v3418, %v3297
      %v3420 = vand.u32 %v3419, 65535
      %v3421 = vshrl.u32 %v3419, 16
      %v3423 = vmul.u32 %v3420, 14564
      %v3424 = vmul.u32 %v3420, 58254
      %v3425 = vmul.u32 %v3421, 14564
      %v3426 = vmul.u32 %v3421, 58254
      %v3427 = vshll.u32 %v3424, 16
      %v3428 = vshrl.u32 %v3424, 16
      %v3429 = vshll.u32 %v3425, 16
      %v3430 = vshrl.u32 %v3425, 16
      %vm3431 = vc.u32 %v3423, %v3427
      %v3432 = vsel %vm3431, 1, 0
      %v3433 = vadd.s32 %v3423, %v3427
      %v3434 = vadd.s32 %v3426, %v3432
      %vm3435 = vc.u32 %v3433, %v3429
      %v3436 = vsel %vm3435, 1, 0
      %v3437 = vadd.s32 %v3433, %v3429
      %v3438 = vadd.s32 %v3434, %v3436
      %v3439 = vadd.s32 %v3438, %v3428
      %v3440 = vadd.s32 %v3439, %v3430
      %v3441 = vshrl.u32 %v3440, 4
      %v3442 = vmul.u32 %v3441, 18
      %v3443 = vsub.s32 %v3419, %v3442
      %v3444 = vsub.s32 0, %v3443
      %v3445 = vsel %vm3417, %v3444, %v3443
      %vm3446 = vcmp.lt.s32.totalorder %v3298, 0
      %v3447 = vsub.s32 0, %v3298
      %v3448 = vsel %vm3446, %v3447, %v3298
      %v3449 = vand.u32 %v3448, 65535
      %v3450 = vshrl.u32 %v3448, 16
      %v3452 = vmul.u32 %v3449, 14564
      %v3453 = vmul.u32 %v3449, 58254
      %v3454 = vmul.u32 %v3450, 14564
      %v3455 = vmul.u32 %v3450, 58254
      %v3456 = vshll.u32 %v3453, 16
      %v3457 = vshrl.u32 %v3453, 16
      %v3458 = vshll.u32 %v3454, 16
      %v3459 = vshrl.u32 %v3454, 16
      %vm3460 = vc.u32 %v3452, %v3456
      %v3461 = vsel %vm3460, 1, 0
      %v3462 = vadd.s32 %v3452, %v3456
      %v3463 = vadd.s32 %v3455, %v3461
      %vm3464 = vc.u32 %v3462, %v3458
      %v3465 = vsel %vm3464, 1, 0
      %v3466 = vadd.s32 %v3462, %v3458
      %v3467 = vadd.s32 %v3463, %v3465
      %v3468 = vadd.s32 %v3467, %v3457
      %v3469 = vadd.s32 %v3468, %v3459
      %v3470 = vshrl.u32 %v3469, 4
      %v3471 = vmul.u32 %v3470, 18
      %v3472 = vsub.s32 %v3448, %v3471
      %v3473 = vsub.s32 0, %v3472
      %v3474 = vsel %vm3446, %v3473, %v3472
      %vm3475 = vcmp.lt.s32.totalorder %v3299, 0
      %v3476 = vsub.s32 0, %v3299
      %v3477 = vsel %vm3475, %v3476, %v3299
      %v3478 = vand.u32 %v3477, 65535
      %v3479 = vshrl.u32 %v3477, 16
      %v3481 = vmul.u32 %v3478, 14564
      %v3482 = vmul.u32 %v3478, 58254
      %v3483 = vmul.u32 %v3479, 14564
      %v3484 = vmul.u32 %v3479, 58254
      %v3485 = vshll.u32 %v3482, 16
      %v3486 = vshrl.u32 %v3482, 16
      %v3487 = vshll.u32 %v3483, 16
      %v3488 = vshrl.u32 %v3483, 16
      %vm3489 = vc.u32 %v3481, %v3485
      %v3490 = vsel %vm3489, 1, 0
      %v3491 = vadd.s32 %v3481, %v3485
      %v3492 = vadd.s32 %v3484, %v3490
      %vm3493 = vc.u32 %v3491, %v3487
      %v3494 = vsel %vm3493, 1, 0
      %v3495 = vadd.s32 %v3491, %v3487
      %v3496 = vadd.s32 %v3492, %v3494
      %v3497 = vadd.s32 %v3496, %v3486
      %v3498 = vadd.s32 %v3497, %v3488
      %v3499 = vshrl.u32 %v3498, 4
      %v3500 = vmul.u32 %v3499, 18
      %v3501 = vsub.s32 %v3477, %v3500
      %v3502 = vsub.s32 0, %v3501
      %v3503 = vsel %vm3475, %v3502, %v3501
      %vm3504 = vcmp.lt.s32.totalorder %v3300, 0
      %v3505 = vsub.s32 0, %v3300
      %v3506 = vsel %vm3504, %v3505, %v3300
      %v3507 = vand.u32 %v3506, 65535
      %v3508 = vshrl.u32 %v3506, 16
      %v3510 = vmul.u32 %v3507, 14564
      %v3511 = vmul.u32 %v3507, 58254
      %v3512 = vmul.u32 %v3508, 14564
      %v3513 = vmul.u32 %v3508, 58254
      %v3514 = vshll.u32 %v3511, 16
      %v3515 = vshrl.u32 %v3511, 16
      %v3516 = vshll.u32 %v3512, 16
      %v3517 = vshrl.u32 %v3512, 16
      %vm3518 = vc.u32 %v3510, %v3514
      %v3519 = vsel %vm3518, 1, 0
      %v3520 = vadd.s32 %v3510, %v3514
      %v3521 = vadd.s32 %v3513, %v3519
      %vm3522 = vc.u32 %v3520, %v3516
      %v3523 = vsel %vm3522, 1, 0
      %v3524 = vadd.s32 %v3520, %v3516
      %v3525 = vadd.s32 %v3521, %v3523
      %v3526 = vadd.s32 %v3525, %v3515
      %v3527 = vadd.s32 %v3526, %v3517
      %v3528 = vshrl.u32 %v3527, 4
      %v3529 = vmul.u32 %v3528, 18
      %v3530 = vsub.s32 %v3506, %v3529
      %v3531 = vsub.s32 0, %v3530
      %v3532 = vsel %vm3504, %v3531, %v3530
      %vm3533 = vcmp.lt.s32.totalorder %v3301, 0
      %v3534 = vsub.s32 0, %v3301
      %v3535 = vsel %vm3533, %v3534, %v3301
      %v3536 = vand.u32 %v3535, 65535
      %v3537 = vshrl.u32 %v3535, 16
      %v3539 = vmul.u32 %v3536, 14564
      %v3540 = vmul.u32 %v3536, 58254
      %v3541 = vmul.u32 %v3537, 14564
      %v3542 = vmul.u32 %v3537, 58254
      %v3543 = vshll.u32 %v3540, 16
      %v3544 = vshrl.u32 %v3540, 16
      %v3545 = vshll.u32 %v3541, 16
      %v3546 = vshrl.u32 %v3541, 16
      %vm3547 = vc.u32 %v3539, %v3543
      %v3548 = vsel %vm3547, 1, 0
      %v3549 = vadd.s32 %v3539, %v3543
      %v3550 = vadd.s32 %v3542, %v3548
      %vm3551 = vc.u32 %v3549, %v3545
      %v3552 = vsel %vm3551, 1, 0
      %v3553 = vadd.s32 %v3549, %v3545
      %v3554 = vadd.s32 %v3550, %v3552
      %v3555 = vadd.s32 %v3554, %v3544
      %v3556 = vadd.s32 %v3555, %v3546
      %v3557 = vshrl.u32 %v3556, 4
      %v3558 = vmul.u32 %v3557, 18
      %v3559 = vsub.s32 %v3535, %v3558
      %v3560 = vsub.s32 0, %v3559
      %v3561 = vsel %vm3533, %v3560, %v3559
      %vm3562 = vcmp.lt.s32.totalorder %v3302, 0
      %v3563 = vsub.s32 0, %v3302
      %v3564 = vsel %vm3562, %v3563, %v3302
      %v3565 = vand.u32 %v3564, 65535
      %v3566 = vshrl.u32 %v3564, 16
      %v3568 = vmul.u32 %v3565, 14564
      %v3569 = vmul.u32 %v3565, 58254
      %v3570 = vmul.u32 %v3566, 14564
      %v3571 = vmul.u32 %v3566, 58254
      %v3572 = vshll.u32 %v3569, 16
      %v3573 = vshrl.u32 %v3569, 16
      %v3574 = vshll.u32 %v3570, 16
      %v3575 = vshrl.u32 %v3570, 16
      %vm3576 = vc.u32 %v3568, %v3572
      %v3577 = vsel %vm3576, 1, 0
      %v3578 = vadd.s32 %v3568, %v3572
      %v3579 = vadd.s32 %v3571, %v3577
      %vm3580 = vc.u32 %v3578, %v3574
      %v3581 = vsel %vm3580, 1, 0
      %v3582 = vadd.s32 %v3578, %v3574
      %v3583 = vadd.s32 %v3579, %v3581
      %v3584 = vadd.s32 %v3583, %v3573
      %v3585 = vadd.s32 %v3584, %v3575
      %v3586 = vshrl.u32 %v3585, 4
      %v3587 = vmul.u32 %v3586, 18
      %v3588 = vsub.s32 %v3564, %v3587
      %v3589 = vsub.s32 0, %v3588
      %v3590 = vsel %vm3562, %v3589, %v3588
      %vm3591 = vcmp.lt.s32.totalorder %v3303, 0
      %v3592 = vsub.s32 0, %v3303
      %v3593 = vsel %vm3591, %v3592, %v3303
      %v3594 = vand.u32 %v3593, 65535
      %v3595 = vshrl.u32 %v3593, 16
      %v3597 = vmul.u32 %v3594, 14564
      %v3598 = vmul.u32 %v3594, 58254
      %v3599 = vmul.u32 %v3595, 14564
      %v3600 = vmul.u32 %v3595, 58254
      %v3601 = vshll.u32 %v3598, 16
      %v3602 = vshrl.u32 %v3598, 16
      %v3603 = vshll.u32 %v3599, 16
      %v3604 = vshrl.u32 %v3599, 16
      %vm3605 = vc.u32 %v3597, %v3601
      %v3606 = vsel %vm3605, 1, 0
      %v3607 = vadd.s32 %v3597, %v3601
      %v3608 = vadd.s32 %v3600, %v3606
      %vm3609 = vc.u32 %v3607, %v3603
      %v3610 = vsel %vm3609, 1, 0
      %v3611 = vadd.s32 %v3607, %v3603
      %v3612 = vadd.s32 %v3608, %v3610
      %v3613 = vadd.s32 %v3612, %v3602
      %v3614 = vadd.s32 %v3613, %v3604
      %v3615 = vshrl.u32 %v3614, 4
      %v3616 = vmul.u32 %v3615, 18
      %v3617 = vsub.s32 %v3593, %v3616
      %v3618 = vsub.s32 0, %v3617
      %v3619 = vsel %vm3591, %v3618, %v3617
      %vm3620 = vcmp.lt.s32.totalorder %v3304, 0
      %v3621 = vsub.s32 0, %v3304
      %v3622 = vsel %vm3620, %v3621, %v3304
      %v3623 = vand.u32 %v3622, 65535
      %v3624 = vshrl.u32 %v3622, 16
      %v3626 = vmul.u32 %v3623, 14564
      %v3627 = vmul.u32 %v3623, 58254
      %v3628 = vmul.u32 %v3624, 14564
      %v3629 = vmul.u32 %v3624, 58254
      %v3630 = vshll.u32 %v3627, 16
      %v3631 = vshrl.u32 %v3627, 16
      %v3632 = vshll.u32 %v3628, 16
      %v3633 = vshrl.u32 %v3628, 16
      %vm3634 = vc.u32 %v3626, %v3630
      %v3635 = vsel %vm3634, 1, 0
      %v3636 = vadd.s32 %v3626, %v3630
      %v3637 = vadd.s32 %v3629, %v3635
      %vm3638 = vc.u32 %v3636, %v3632
      %v3639 = vsel %vm3638, 1, 0
      %v3640 = vadd.s32 %v3636, %v3632
      %v3641 = vadd.s32 %v3637, %v3639
      %v3642 = vadd.s32 %v3641, %v3631
      %v3643 = vadd.s32 %v3642, %v3633
      %v3644 = vshrl.u32 %v3643, 4
      %v3645 = vmul.u32 %v3644, 18
      %v3646 = vsub.s32 %v3622, %v3645
      %v3647 = vsub.s32 0, %v3646
      %v3648 = vsel %vm3620, %v3647, %v3646
      %vm3649 = vcmp.lt.s32.totalorder %v3305, 0
      %v3650 = vsub.s32 0, %v3305
      %v3651 = vsel %vm3649, %v3650, %v3305
      %v3652 = vand.u32 %v3651, 65535
      %v3653 = vshrl.u32 %v3651, 16
      %v3655 = vmul.u32 %v3652, 14564
      %v3656 = vmul.u32 %v3652, 58254
      %v3657 = vmul.u32 %v3653, 14564
      %v3658 = vmul.u32 %v3653, 58254
      %v3659 = vshll.u32 %v3656, 16
      %v3660 = vshrl.u32 %v3656, 16
      %v3661 = vshll.u32 %v3657, 16
      %v3662 = vshrl.u32 %v3657, 16
      %vm3663 = vc.u32 %v3655, %v3659
      %v3664 = vsel %vm3663, 1, 0
      %v3665 = vadd.s32 %v3655, %v3659
      %v3666 = vadd.s32 %v3658, %v3664
      %vm3667 = vc.u32 %v3665, %v3661
      %v3668 = vsel %vm3667, 1, 0
      %v3669 = vadd.s32 %v3665, %v3661
      %v3670 = vadd.s32 %v3666, %v3668
      %v3671 = vadd.s32 %v3670, %v3660
      %v3672 = vadd.s32 %v3671, %v3662
      %v3673 = vshrl.u32 %v3672, 4
      %v3674 = vmul.u32 %v3673, 18
      %v3675 = vsub.s32 %v3651, %v3674
      %v3676 = vsub.s32 0, %v3675
      %v3677 = vsel %vm3649, %v3676, %v3675
      %vm3678 = vcmp.lt.s32.totalorder %v3306, 0
      %v3679 = vsub.s32 0, %v3306
      %v3680 = vsel %vm3678, %v3679, %v3306
      %v3681 = vand.u32 %v3680, 65535
      %v3682 = vshrl.u32 %v3680, 16
      %v3684 = vmul.u32 %v3681, 14564
      %v3685 = vmul.u32 %v3681, 58254
      %v3686 = vmul.u32 %v3682, 14564
      %v3687 = vmul.u32 %v3682, 58254
      %v3688 = vshll.u32 %v3685, 16
      %v3689 = vshrl.u32 %v3685, 16
      %v3690 = vshll.u32 %v3686, 16
      %v3691 = vshrl.u32 %v3686, 16
      %vm3692 = vc.u32 %v3684, %v3688
      %v3693 = vsel %vm3692, 1, 0
      %v3694 = vadd.s32 %v3684, %v3688
      %v3695 = vadd.s32 %v3687, %v3693
      %vm3696 = vc.u32 %v3694, %v3690
      %v3697 = vsel %vm3696, 1, 0
      %v3698 = vadd.s32 %v3694, %v3690
      %v3699 = vadd.s32 %v3695, %v3697
      %v3700 = vadd.s32 %v3699, %v3689
      %v3701 = vadd.s32 %v3700, %v3691
      %v3702 = vshrl.u32 %v3701, 4
      %v3703 = vmul.u32 %v3702, 18
      %v3704 = vsub.s32 %v3680, %v3703
      %v3705 = vsub.s32 0, %v3704
      %v3706 = vsel %vm3678, %v3705, %v3704
      %vm3707 = vcmp.lt.s32.totalorder %v3307, 0
      %v3708 = vsub.s32 0, %v3307
      %v3709 = vsel %vm3707, %v3708, %v3307
      %v3710 = vand.u32 %v3709, 65535
      %v3711 = vshrl.u32 %v3709, 16
      %v3713 = vmul.u32 %v3710, 14564
      %v3714 = vmul.u32 %v3710, 58254
      %v3715 = vmul.u32 %v3711, 14564
      %v3716 = vmul.u32 %v3711, 58254
      %v3717 = vshll.u32 %v3714, 16
      %v3718 = vshrl.u32 %v3714, 16
      %v3719 = vshll.u32 %v3715, 16
      %v3720 = vshrl.u32 %v3715, 16
      %vm3721 = vc.u32 %v3713, %v3717
      %v3722 = vsel %vm3721, 1, 0
      %v3723 = vadd.s32 %v3713, %v3717
      %v3724 = vadd.s32 %v3716, %v3722
      %vm3725 = vc.u32 %v3723, %v3719
      %v3726 = vsel %vm3725, 1, 0
      %v3727 = vadd.s32 %v3723, %v3719
      %v3728 = vadd.s32 %v3724, %v3726
      %v3729 = vadd.s32 %v3728, %v3718
      %v3730 = vadd.s32 %v3729, %v3720
      %v3731 = vshrl.u32 %v3730, 4
      %v3732 = vmul.u32 %v3731, 18
      %v3733 = vsub.s32 %v3709, %v3732
      %v3734 = vsub.s32 0, %v3733
      %v3735 = vsel %vm3707, %v3734, %v3733
      %vm3736 = vcmp.lt.s32.totalorder %v3308, 0
      %v3737 = vsub.s32 0, %v3308
      %v3738 = vsel %vm3736, %v3737, %v3308
      %v3739 = vand.u32 %v3738, 65535
      %v3740 = vshrl.u32 %v3738, 16
      %v3742 = vmul.u32 %v3739, 14564
      %v3743 = vmul.u32 %v3739, 58254
      %v3744 = vmul.u32 %v3740, 14564
      %v3745 = vmul.u32 %v3740, 58254
      %v3746 = vshll.u32 %v3743, 16
      %v3747 = vshrl.u32 %v3743, 16
      %v3748 = vshll.u32 %v3744, 16
      %v3749 = vshrl.u32 %v3744, 16
      %vm3750 = vc.u32 %v3742, %v3746
      %v3751 = vsel %vm3750, 1, 0
      %v3752 = vadd.s32 %v3742, %v3746
      %v3753 = vadd.s32 %v3745, %v3751
      %vm3754 = vc.u32 %v3752, %v3748
      %v3755 = vsel %vm3754, 1, 0
      %v3756 = vadd.s32 %v3752, %v3748
      %v3757 = vadd.s32 %v3753, %v3755
      %v3758 = vadd.s32 %v3757, %v3747
      %v3759 = vadd.s32 %v3758, %v3749
      %v3760 = vshrl.u32 %v3759, 4
      %v3761 = vmul.u32 %v3760, 18
      %v3762 = vsub.s32 %v3738, %v3761
      %v3763 = vsub.s32 0, %v3762
      %v3764 = vsel %vm3736, %v3763, %v3762
      %vm3765 = vcmp.lt.s32.totalorder %v3309, 0
      %v3766 = vsub.s32 0, %v3309
      %v3767 = vsel %vm3765, %v3766, %v3309
      %v3768 = vand.u32 %v3767, 65535
      %v3769 = vshrl.u32 %v3767, 16
      %v3771 = vmul.u32 %v3768, 14564
      %v3772 = vmul.u32 %v3768, 58254
      %v3773 = vmul.u32 %v3769, 14564
      %v3774 = vmul.u32 %v3769, 58254
      %v3775 = vshll.u32 %v3772, 16
      %v3776 = vshrl.u32 %v3772, 16
      %v3777 = vshll.u32 %v3773, 16
      %v3778 = vshrl.u32 %v3773, 16
      %vm3779 = vc.u32 %v3771, %v3775
      %v3780 = vsel %vm3779, 1, 0
      %v3781 = vadd.s32 %v3771, %v3775
      %v3782 = vadd.s32 %v3774, %v3780
      %vm3783 = vc.u32 %v3781, %v3777
      %v3784 = vsel %vm3783, 1, 0
      %v3785 = vadd.s32 %v3781, %v3777
      %v3786 = vadd.s32 %v3782, %v3784
      %v3787 = vadd.s32 %v3786, %v3776
      %v3788 = vadd.s32 %v3787, %v3778
      %v3789 = vshrl.u32 %v3788, 4
      %v3790 = vmul.u32 %v3789, 18
      %v3791 = vsub.s32 %v3767, %v3790
      %v3792 = vsub.s32 0, %v3791
      %v3793 = vsel %vm3765, %v3792, %v3791
      %vm3794 = vcmp.lt.s32.totalorder %v3310, 0
      %v3795 = vsub.s32 0, %v3310
      %v3796 = vsel %vm3794, %v3795, %v3310
      %v3797 = vand.u32 %v3796, 65535
      %v3798 = vshrl.u32 %v3796, 16
      %v3800 = vmul.u32 %v3797, 14564
      %v3801 = vmul.u32 %v3797, 58254
      %v3802 = vmul.u32 %v3798, 14564
      %v3803 = vmul.u32 %v3798, 58254
      %v3804 = vshll.u32 %v3801, 16
      %v3805 = vshrl.u32 %v3801, 16
      %v3806 = vshll.u32 %v3802, 16
      %v3807 = vshrl.u32 %v3802, 16
      %vm3808 = vc.u32 %v3800, %v3804
      %v3809 = vsel %vm3808, 1, 0
      %v3810 = vadd.s32 %v3800, %v3804
      %v3811 = vadd.s32 %v3803, %v3809
      %vm3812 = vc.u32 %v3810, %v3806
      %v3813 = vsel %vm3812, 1, 0
      %v3814 = vadd.s32 %v3810, %v3806
      %v3815 = vadd.s32 %v3811, %v3813
      %v3816 = vadd.s32 %v3815, %v3805
      %v3817 = vadd.s32 %v3816, %v3807
      %v3818 = vshrl.u32 %v3817, 4
      %v3819 = vmul.u32 %v3818, 18
      %v3820 = vsub.s32 %v3796, %v3819
      %v3821 = vsub.s32 0, %v3820
      %v3822 = vsel %vm3794, %v3821, %v3820
      %vm3823 = vcmp.lt.s32.totalorder %v3311, 0
      %v3824 = vsub.s32 0, %v3311
      %v3825 = vsel %vm3823, %v3824, %v3311
      %v3826 = vand.u32 %v3825, 65535
      %v3827 = vshrl.u32 %v3825, 16
      %v3829 = vmul.u32 %v3826, 14564
      %v3830 = vmul.u32 %v3826, 58254
      %v3831 = vmul.u32 %v3827, 14564
      %v3832 = vmul.u32 %v3827, 58254
      %v3833 = vshll.u32 %v3830, 16
      %v3834 = vshrl.u32 %v3830, 16
      %v3835 = vshll.u32 %v3831, 16
      %v3836 = vshrl.u32 %v3831, 16
      %vm3837 = vc.u32 %v3829, %v3833
      %v3838 = vsel %vm3837, 1, 0
      %v3839 = vadd.s32 %v3829, %v3833
      %v3840 = vadd.s32 %v3832, %v3838
      %vm3841 = vc.u32 %v3839, %v3835
      %v3842 = vsel %vm3841, 1, 0
      %v3843 = vadd.s32 %v3839, %v3835
      %v3844 = vadd.s32 %v3840, %v3842
      %v3845 = vadd.s32 %v3844, %v3834
      %v3846 = vadd.s32 %v3845, %v3836
      %v3847 = vshrl.u32 %v3846, 4
      %v3848 = vmul.u32 %v3847, 18
      %v3849 = vsub.s32 %v3825, %v3848
      %v3850 = vsub.s32 0, %v3849
      %v3851 = vsel %vm3823, %v3850, %v3849
      %vm3852 = vcmp.lt.s32.totalorder %v3312, 0
      %v3853 = vsub.s32 0, %v3312
      %v3854 = vsel %vm3852, %v3853, %v3312
      %v3855 = vand.u32 %v3854, 65535
      %v3856 = vshrl.u32 %v3854, 16
      %v3858 = vmul.u32 %v3855, 14564
      %v3859 = vmul.u32 %v3855, 58254
      %v3860 = vmul.u32 %v3856, 14564
      %v3861 = vmul.u32 %v3856, 58254
      %v3862 = vshll.u32 %v3859, 16
      %v3863 = vshrl.u32 %v3859, 16
      %v3864 = vshll.u32 %v3860, 16
      %v3865 = vshrl.u32 %v3860, 16
      %vm3866 = vc.u32 %v3858, %v3862
      %v3867 = vsel %vm3866, 1, 0
      %v3868 = vadd.s32 %v3858, %v3862
      %v3869 = vadd.s32 %v3861, %v3867
      %vm3870 = vc.u32 %v3868, %v3864
      %v3871 = vsel %vm3870, 1, 0
      %v3872 = vadd.s32 %v3868, %v3864
      %v3873 = vadd.s32 %v3869, %v3871
      %v3874 = vadd.s32 %v3873, %v3863
      %v3875 = vadd.s32 %v3874, %v3865
      %v3876 = vshrl.u32 %v3875, 4
      %v3877 = vmul.u32 %v3876, 18
      %v3878 = vsub.s32 %v3854, %v3877
      %v3879 = vsub.s32 0, %v3878
      %v3880 = vsel %vm3852, %v3879, %v3878
      %vm3881 = vcmp.lt.s32.totalorder %v3313, 0
      %v3882 = vsub.s32 0, %v3313
      %v3883 = vsel %vm3881, %v3882, %v3313
      %v3884 = vand.u32 %v3883, 65535
      %v3885 = vshrl.u32 %v3883, 16
      %v3887 = vmul.u32 %v3884, 14564
      %v3888 = vmul.u32 %v3884, 58254
      %v3889 = vmul.u32 %v3885, 14564
      %v3890 = vmul.u32 %v3885, 58254
      %v3891 = vshll.u32 %v3888, 16
      %v3892 = vshrl.u32 %v3888, 16
      %v3893 = vshll.u32 %v3889, 16
      %v3894 = vshrl.u32 %v3889, 16
      %vm3895 = vc.u32 %v3887, %v3891
      %v3896 = vsel %vm3895, 1, 0
      %v3897 = vadd.s32 %v3887, %v3891
      %v3898 = vadd.s32 %v3890, %v3896
      %vm3899 = vc.u32 %v3897, %v3893
      %v3900 = vsel %vm3899, 1, 0
      %v3901 = vadd.s32 %v3897, %v3893
      %v3902 = vadd.s32 %v3898, %v3900
      %v3903 = vadd.s32 %v3902, %v3892
      %v3904 = vadd.s32 %v3903, %v3894
      %v3905 = vshrl.u32 %v3904, 4
      %v3906 = vmul.u32 %v3905, 18
      %v3907 = vsub.s32 %v3883, %v3906
      %v3908 = vsub.s32 0, %v3907
      %v3909 = vsel %vm3881, %v3908, %v3907
      %vm3910 = vcmp.lt.s32.totalorder %v3314, 0
      %v3911 = vsub.s32 0, %v3314
      %v3912 = vsel %vm3910, %v3911, %v3314
      %v3913 = vand.u32 %v3912, 65535
      %v3914 = vshrl.u32 %v3912, 16
      %v3916 = vmul.u32 %v3913, 14564
      %v3917 = vmul.u32 %v3913, 58254
      %v3918 = vmul.u32 %v3914, 14564
      %v3919 = vmul.u32 %v3914, 58254
      %v3920 = vshll.u32 %v3917, 16
      %v3921 = vshrl.u32 %v3917, 16
      %v3922 = vshll.u32 %v3918, 16
      %v3923 = vshrl.u32 %v3918, 16
      %vm3924 = vc.u32 %v3916, %v3920
      %v3925 = vsel %vm3924, 1, 0
      %v3926 = vadd.s32 %v3916, %v3920
      %v3927 = vadd.s32 %v3919, %v3925
      %vm3928 = vc.u32 %v3926, %v3922
      %v3929 = vsel %vm3928, 1, 0
      %v3930 = vadd.s32 %v3926, %v3922
      %v3931 = vadd.s32 %v3927, %v3929
      %v3932 = vadd.s32 %v3931, %v3921
      %v3933 = vadd.s32 %v3932, %v3923
      %v3934 = vshrl.u32 %v3933, 4
      %v3935 = vmul.u32 %v3934, 18
      %v3936 = vsub.s32 %v3912, %v3935
      %v3937 = vsub.s32 0, %v3936
      %v3938 = vsel %vm3910, %v3937, %v3936
      %vm3939 = vcmp.lt.s32.totalorder %v3315, 0
      %v3940 = vsub.s32 0, %v3315
      %v3941 = vsel %vm3939, %v3940, %v3315
      %v3942 = vand.u32 %v3941, 65535
      %v3943 = vshrl.u32 %v3941, 16
      %v3945 = vmul.u32 %v3942, 14564
      %v3946 = vmul.u32 %v3942, 58254
      %v3947 = vmul.u32 %v3943, 14564
      %v3948 = vmul.u32 %v3943, 58254
      %v3949 = vshll.u32 %v3946, 16
      %v3950 = vshrl.u32 %v3946, 16
      %v3951 = vshll.u32 %v3947, 16
      %v3952 = vshrl.u32 %v3947, 16
      %vm3953 = vc.u32 %v3945, %v3949
      %v3954 = vsel %vm3953, 1, 0
      %v3955 = vadd.s32 %v3945, %v3949
      %v3956 = vadd.s32 %v3948, %v3954
      %vm3957 = vc.u32 %v3955, %v3951
      %v3958 = vsel %vm3957, 1, 0
      %v3959 = vadd.s32 %v3955, %v3951
      %v3960 = vadd.s32 %v3956, %v3958
      %v3961 = vadd.s32 %v3960, %v3950
      %v3962 = vadd.s32 %v3961, %v3952
      %v3963 = vshrl.u32 %v3962, 4
      %v3964 = vmul.u32 %v3963, 18
      %v3965 = vsub.s32 %v3941, %v3964
      %v3966 = vsub.s32 0, %v3965
      %v3967 = vsel %vm3939, %v3966, %v3965
      %vm3968 = vcmp.lt.s32.totalorder %v3316, 0
      %v3969 = vsub.s32 0, %v3316
      %v3970 = vsel %vm3968, %v3969, %v3316
      %v3971 = vand.u32 %v3970, 65535
      %v3972 = vshrl.u32 %v3970, 16
      %v3974 = vmul.u32 %v3971, 14564
      %v3975 = vmul.u32 %v3971, 58254
      %v3976 = vmul.u32 %v3972, 14564
      %v3977 = vmul.u32 %v3972, 58254
      %v3978 = vshll.u32 %v3975, 16
      %v3979 = vshrl.u32 %v3975, 16
      %v3980 = vshll.u32 %v3976, 16
      %v3981 = vshrl.u32 %v3976, 16
      %vm3982 = vc.u32 %v3974, %v3978
      %v3983 = vsel %vm3982, 1, 0
      %v3984 = vadd.s32 %v3974, %v3978
      %v3985 = vadd.s32 %v3977, %v3983
      %vm3986 = vc.u32 %v3984, %v3980
      %v3987 = vsel %vm3986, 1, 0
      %v3988 = vadd.s32 %v3984, %v3980
      %v3989 = vadd.s32 %v3985, %v3987
      %v3990 = vadd.s32 %v3989, %v3979
      %v3991 = vadd.s32 %v3990, %v3981
      %v3992 = vshrl.u32 %v3991, 4
      %v3993 = vmul.u32 %v3992, 18
      %v3994 = vsub.s32 %v3970, %v3993
      %v3995 = vsub.s32 0, %v3994
      %v3996 = vsel %vm3968, %v3995, %v3994
      %vm3997 = vcmp.lt.s32.totalorder %v3317, 0
      %v3998 = vsub.s32 0, %v3317
      %v3999 = vsel %vm3997, %v3998, %v3317
      %v4000 = vand.u32 %v3999, 65535
      %v4001 = vshrl.u32 %v3999, 16
      %v4003 = vmul.u32 %v4000, 14564
      %v4004 = vmul.u32 %v4000, 58254
      %v4005 = vmul.u32 %v4001, 14564
      %v4006 = vmul.u32 %v4001, 58254
      %v4007 = vshll.u32 %v4004, 16
      %v4008 = vshrl.u32 %v4004, 16
      %v4009 = vshll.u32 %v4005, 16
      %v4010 = vshrl.u32 %v4005, 16
      %vm4011 = vc.u32 %v4003, %v4007
      %v4012 = vsel %vm4011, 1, 0
      %v4013 = vadd.s32 %v4003, %v4007
      %v4014 = vadd.s32 %v4006, %v4012
      %vm4015 = vc.u32 %v4013, %v4009
      %v4016 = vsel %vm4015, 1, 0
      %v4017 = vadd.s32 %v4013, %v4009
      %v4018 = vadd.s32 %v4014, %v4016
      %v4019 = vadd.s32 %v4018, %v4008
      %v4020 = vadd.s32 %v4019, %v4010
      %v4021 = vshrl.u32 %v4020, 4
      %v4022 = vmul.u32 %v4021, 18
      %v4023 = vsub.s32 %v3999, %v4022
      %v4024 = vsub.s32 0, %v4023
      %v4025 = vsel %vm3997, %v4024, %v4023
      %vm4026 = vcmp.lt.s32.totalorder %v3318, 0
      %v4027 = vsub.s32 0, %v3318
      %v4028 = vsel %vm4026, %v4027, %v3318
      %v4029 = vand.u32 %v4028, 65535
      %v4030 = vshrl.u32 %v4028, 16
      %v4032 = vmul.u32 %v4029, 14564
      %v4033 = vmul.u32 %v4029, 58254
      %v4034 = vmul.u32 %v4030, 14564
      %v4035 = vmul.u32 %v4030, 58254
      %v4036 = vshll.u32 %v4033, 16
      %v4037 = vshrl.u32 %v4033, 16
      %v4038 = vshll.u32 %v4034, 16
      %v4039 = vshrl.u32 %v4034, 16
      %vm4040 = vc.u32 %v4032, %v4036
      %v4041 = vsel %vm4040, 1, 0
      %v4042 = vadd.s32 %v4032, %v4036
      %v4043 = vadd.s32 %v4035, %v4041
      %vm4044 = vc.u32 %v4042, %v4038
      %v4045 = vsel %vm4044, 1, 0
      %v4046 = vadd.s32 %v4042, %v4038
      %v4047 = vadd.s32 %v4043, %v4045
      %v4048 = vadd.s32 %v4047, %v4037
      %v4049 = vadd.s32 %v4048, %v4039
      %v4050 = vshrl.u32 %v4049, 4
      %v4051 = vmul.u32 %v4050, 18
      %v4052 = vsub.s32 %v4028, %v4051
      %v4053 = vsub.s32 0, %v4052
      %v4054 = vsel %vm4026, %v4053, %v4052
      %vm4055 = vcmp.lt.s32.totalorder %v3319, 0
      %v4056 = vsub.s32 0, %v3319
      %v4057 = vsel %vm4055, %v4056, %v3319
      %v4058 = vand.u32 %v4057, 65535
      %v4059 = vshrl.u32 %v4057, 16
      %v4061 = vmul.u32 %v4058, 14564
      %v4062 = vmul.u32 %v4058, 58254
      %v4063 = vmul.u32 %v4059, 14564
      %v4064 = vmul.u32 %v4059, 58254
      %v4065 = vshll.u32 %v4062, 16
      %v4066 = vshrl.u32 %v4062, 16
      %v4067 = vshll.u32 %v4063, 16
      %v4068 = vshrl.u32 %v4063, 16
      %vm4069 = vc.u32 %v4061, %v4065
      %v4070 = vsel %vm4069, 1, 0
      %v4071 = vadd.s32 %v4061, %v4065
      %v4072 = vadd.s32 %v4064, %v4070
      %vm4073 = vc.u32 %v4071, %v4067
      %v4074 = vsel %vm4073, 1, 0
      %v4075 = vadd.s32 %v4071, %v4067
      %v4076 = vadd.s32 %v4072, %v4074
      %v4077 = vadd.s32 %v4076, %v4066
      %v4078 = vadd.s32 %v4077, %v4068
      %v4079 = vshrl.u32 %v4078, 4
      %v4080 = vmul.u32 %v4079, 18
      %v4081 = vsub.s32 %v4057, %v4080
      %v4082 = vsub.s32 0, %v4081
      %v4083 = vsel %vm4055, %v4082, %v4081
      %vm4084 = vcmp.lt.s32.totalorder %v3320, 0
      %v4085 = vsub.s32 0, %v3320
      %v4086 = vsel %vm4084, %v4085, %v3320
      %v4087 = vand.u32 %v4086, 65535
      %v4088 = vshrl.u32 %v4086, 16
      %v4090 = vmul.u32 %v4087, 14564
      %v4091 = vmul.u32 %v4087, 58254
      %v4092 = vmul.u32 %v4088, 14564
      %v4093 = vmul.u32 %v4088, 58254
      %v4094 = vshll.u32 %v4091, 16
      %v4095 = vshrl.u32 %v4091, 16
      %v4096 = vshll.u32 %v4092, 16
      %v4097 = vshrl.u32 %v4092, 16
      %vm4098 = vc.u32 %v4090, %v4094
      %v4099 = vsel %vm4098, 1, 0
      %v4100 = vadd.s32 %v4090, %v4094
      %v4101 = vadd.s32 %v4093, %v4099
      %vm4102 = vc.u32 %v4100, %v4096
      %v4103 = vsel %vm4102, 1, 0
      %v4104 = vadd.s32 %v4100, %v4096
      %v4105 = vadd.s32 %v4101, %v4103
      %v4106 = vadd.s32 %v4105, %v4095
      %v4107 = vadd.s32 %v4106, %v4097
      %v4108 = vshrl.u32 %v4107, 4
      %v4109 = vmul.u32 %v4108, 18
      %v4110 = vsub.s32 %v4086, %v4109
      %v4111 = vsub.s32 0, %v4110
      %v4112 = vsel %vm4084, %v4111, %v4110
      %vm4113 = vcmp.lt.s32.totalorder %v3321, 0
      %v4114 = vsub.s32 0, %v3321
      %v4115 = vsel %vm4113, %v4114, %v3321
      %v4116 = vand.u32 %v4115, 65535
      %v4117 = vshrl.u32 %v4115, 16
      %v4119 = vmul.u32 %v4116, 14564
      %v4120 = vmul.u32 %v4116, 58254
      %v4121 = vmul.u32 %v4117, 14564
      %v4122 = vmul.u32 %v4117, 58254
      %v4123 = vshll.u32 %v4120, 16
      %v4124 = vshrl.u32 %v4120, 16
      %v4125 = vshll.u32 %v4121, 16
      %v4126 = vshrl.u32 %v4121, 16
      %vm4127 = vc.u32 %v4119, %v4123
      %v4128 = vsel %vm4127, 1, 0
      %v4129 = vadd.s32 %v4119, %v4123
      %v4130 = vadd.s32 %v4122, %v4128
      %vm4131 = vc.u32 %v4129, %v4125
      %v4132 = vsel %vm4131, 1, 0
      %v4133 = vadd.s32 %v4129, %v4125
      %v4134 = vadd.s32 %v4130, %v4132
      %v4135 = vadd.s32 %v4134, %v4124
      %v4136 = vadd.s32 %v4135, %v4126
      %v4137 = vshrl.u32 %v4136, 4
      %v4138 = vmul.u32 %v4137, 18
      %v4139 = vsub.s32 %v4115, %v4138
      %v4140 = vsub.s32 0, %v4139
      %v4141 = vsel %vm4113, %v4140, %v4139
      %vm4142 = vcmp.lt.s32.totalorder %v3322, 0
      %v4143 = vsub.s32 0, %v3322
      %v4144 = vsel %vm4142, %v4143, %v3322
      %v4145 = vand.u32 %v4144, 65535
      %v4146 = vshrl.u32 %v4144, 16
      %v4148 = vmul.u32 %v4145, 14564
      %v4149 = vmul.u32 %v4145, 58254
      %v4150 = vmul.u32 %v4146, 14564
      %v4151 = vmul.u32 %v4146, 58254
      %v4152 = vshll.u32 %v4149, 16
      %v4153 = vshrl.u32 %v4149, 16
      %v4154 = vshll.u32 %v4150, 16
      %v4155 = vshrl.u32 %v4150, 16
      %vm4156 = vc.u32 %v4148, %v4152
      %v4157 = vsel %vm4156, 1, 0
      %v4158 = vadd.s32 %v4148, %v4152
      %v4159 = vadd.s32 %v4151, %v4157
      %vm4160 = vc.u32 %v4158, %v4154
      %v4161 = vsel %vm4160, 1, 0
      %v4162 = vadd.s32 %v4158, %v4154
      %v4163 = vadd.s32 %v4159, %v4161
      %v4164 = vadd.s32 %v4163, %v4153
      %v4165 = vadd.s32 %v4164, %v4155
      %v4166 = vshrl.u32 %v4165, 4
      %v4167 = vmul.u32 %v4166, 18
      %v4168 = vsub.s32 %v4144, %v4167
      %v4169 = vsub.s32 0, %v4168
      %v4170 = vsel %vm4142, %v4169, %v4168
      %vm4171 = vcmp.lt.s32.totalorder %v3323, 0
      %v4172 = vsub.s32 0, %v3323
      %v4173 = vsel %vm4171, %v4172, %v3323
      %v4174 = vand.u32 %v4173, 65535
      %v4175 = vshrl.u32 %v4173, 16
      %v4177 = vmul.u32 %v4174, 14564
      %v4178 = vmul.u32 %v4174, 58254
      %v4179 = vmul.u32 %v4175, 14564
      %v4180 = vmul.u32 %v4175, 58254
      %v4181 = vshll.u32 %v4178, 16
      %v4182 = vshrl.u32 %v4178, 16
      %v4183 = vshll.u32 %v4179, 16
      %v4184 = vshrl.u32 %v4179, 16
      %vm4185 = vc.u32 %v4177, %v4181
      %v4186 = vsel %vm4185, 1, 0
      %v4187 = vadd.s32 %v4177, %v4181
      %v4188 = vadd.s32 %v4180, %v4186
      %vm4189 = vc.u32 %v4187, %v4183
      %v4190 = vsel %vm4189, 1, 0
      %v4191 = vadd.s32 %v4187, %v4183
      %v4192 = vadd.s32 %v4188, %v4190
      %v4193 = vadd.s32 %v4192, %v4182
      %v4194 = vadd.s32 %v4193, %v4184
      %v4195 = vshrl.u32 %v4194, 4
      %v4196 = vmul.u32 %v4195, 18
      %v4197 = vsub.s32 %v4173, %v4196
      %v4198 = vsub.s32 0, %v4197
      %v4199 = vsel %vm4171, %v4198, %v4197
      %vm4200 = vcmp.lt.s32.totalorder %v3324, 0
      %v4201 = vsub.s32 0, %v3324
      %v4202 = vsel %vm4200, %v4201, %v3324
      %v4203 = vand.u32 %v4202, 65535
      %v4204 = vshrl.u32 %v4202, 16
      %v4206 = vmul.u32 %v4203, 14564
      %v4207 = vmul.u32 %v4203, 58254
      %v4208 = vmul.u32 %v4204, 14564
      %v4209 = vmul.u32 %v4204, 58254
      %v4210 = vshll.u32 %v4207, 16
      %v4211 = vshrl.u32 %v4207, 16
      %v4212 = vshll.u32 %v4208, 16
      %v4213 = vshrl.u32 %v4208, 16
      %vm4214 = vc.u32 %v4206, %v4210
      %v4215 = vsel %vm4214, 1, 0
      %v4216 = vadd.s32 %v4206, %v4210
      %v4217 = vadd.s32 %v4209, %v4215
      %vm4218 = vc.u32 %v4216, %v4212
      %v4219 = vsel %vm4218, 1, 0
      %v4220 = vadd.s32 %v4216, %v4212
      %v4221 = vadd.s32 %v4217, %v4219
      %v4222 = vadd.s32 %v4221, %v4211
      %v4223 = vadd.s32 %v4222, %v4213
      %v4224 = vshrl.u32 %v4223, 4
      %v4225 = vmul.u32 %v4224, 18
      %v4226 = vsub.s32 %v4202, %v4225
      %v4227 = vsub.s32 0, %v4226
      %v4228 = vsel %vm4200, %v4227, %v4226
      %vm4229 = vcmp.lt.s32.totalorder %v3325, 0
      %v4230 = vsub.s32 0, %v3325
      %v4231 = vsel %vm4229, %v4230, %v3325
      %v4232 = vand.u32 %v4231, 65535
      %v4233 = vshrl.u32 %v4231, 16
      %v4235 = vmul.u32 %v4232, 14564
      %v4236 = vmul.u32 %v4232, 58254
      %v4237 = vmul.u32 %v4233, 14564
      %v4238 = vmul.u32 %v4233, 58254
      %v4239 = vshll.u32 %v4236, 16
      %v4240 = vshrl.u32 %v4236, 16
      %v4241 = vshll.u32 %v4237, 16
      %v4242 = vshrl.u32 %v4237, 16
      %vm4243 = vc.u32 %v4235, %v4239
      %v4244 = vsel %vm4243, 1, 0
      %v4245 = vadd.s32 %v4235, %v4239
      %v4246 = vadd.s32 %v4238, %v4244
      %vm4247 = vc.u32 %v4245, %v4241
      %v4248 = vsel %vm4247, 1, 0
      %v4249 = vadd.s32 %v4245, %v4241
      %v4250 = vadd.s32 %v4246, %v4248
      %v4251 = vadd.s32 %v4250, %v4240
      %v4252 = vadd.s32 %v4251, %v4242
      %v4253 = vshrl.u32 %v4252, 4
      %v4254 = vmul.u32 %v4253, 18
      %v4255 = vsub.s32 %v4231, %v4254
      %v4256 = vsub.s32 0, %v4255
      %v4257 = vsel %vm4229, %v4256, %v4255
      %vm4258 = vcmp.lt.s32.totalorder %v3326, 0
      %v4259 = vsub.s32 0, %v3326
      %v4260 = vsel %vm4258, %v4259, %v3326
      %v4261 = vand.u32 %v4260, 65535
      %v4262 = vshrl.u32 %v4260, 16
      %v4264 = vmul.u32 %v4261, 14564
      %v4265 = vmul.u32 %v4261, 58254
      %v4266 = vmul.u32 %v4262, 14564
      %v4267 = vmul.u32 %v4262, 58254
      %v4268 = vshll.u32 %v4265, 16
      %v4269 = vshrl.u32 %v4265, 16
      %v4270 = vshll.u32 %v4266, 16
      %v4271 = vshrl.u32 %v4266, 16
      %vm4272 = vc.u32 %v4264, %v4268
      %v4273 = vsel %vm4272, 1, 0
      %v4274 = vadd.s32 %v4264, %v4268
      %v4275 = vadd.s32 %v4267, %v4273
      %vm4276 = vc.u32 %v4274, %v4270
      %v4277 = vsel %vm4276, 1, 0
      %v4278 = vadd.s32 %v4274, %v4270
      %v4279 = vadd.s32 %v4275, %v4277
      %v4280 = vadd.s32 %v4279, %v4269
      %v4281 = vadd.s32 %v4280, %v4271
      %v4282 = vshrl.u32 %v4281, 4
      %v4283 = vmul.u32 %v4282, 18
      %v4284 = vsub.s32 %v4260, %v4283
      %v4285 = vsub.s32 0, %v4284
      %v4286 = vsel %vm4258, %v4285, %v4284
      %vm4287 = vcmp.lt.s32.totalorder %v3327, 0
      %v4288 = vsub.s32 0, %v3327
      %v4289 = vsel %vm4287, %v4288, %v3327
      %v4290 = vand.u32 %v4289, 65535
      %v4291 = vshrl.u32 %v4289, 16
      %v4293 = vmul.u32 %v4290, 14564
      %v4294 = vmul.u32 %v4290, 58254
      %v4295 = vmul.u32 %v4291, 14564
      %v4296 = vmul.u32 %v4291, 58254
      %v4297 = vshll.u32 %v4294, 16
      %v4298 = vshrl.u32 %v4294, 16
      %v4299 = vshll.u32 %v4295, 16
      %v4300 = vshrl.u32 %v4295, 16
      %vm4301 = vc.u32 %v4293, %v4297
      %v4302 = vsel %vm4301, 1, 0
      %v4303 = vadd.s32 %v4293, %v4297
      %v4304 = vadd.s32 %v4296, %v4302
      %vm4305 = vc.u32 %v4303, %v4299
      %v4306 = vsel %vm4305, 1, 0
      %v4307 = vadd.s32 %v4303, %v4299
      %v4308 = vadd.s32 %v4304, %v4306
      %v4309 = vadd.s32 %v4308, %v4298
      %v4310 = vadd.s32 %v4309, %v4300
      %v4311 = vshrl.u32 %v4310, 4
      %v4312 = vmul.u32 %v4311, 18
      %v4313 = vsub.s32 %v4289, %v4312
      %v4314 = vsub.s32 0, %v4313
      %v4315 = vsel %vm4287, %v4314, %v4313
      %vm4316 = vcmp.lt.s32.totalorder %v3328, 0
      %v4317 = vsub.s32 0, %v3328
      %v4318 = vsel %vm4316, %v4317, %v3328
      %v4319 = vand.u32 %v4318, 65535
      %v4320 = vshrl.u32 %v4318, 16
      %v4322 = vmul.u32 %v4319, 14564
      %v4323 = vmul.u32 %v4319, 58254
      %v4324 = vmul.u32 %v4320, 14564
      %v4325 = vmul.u32 %v4320, 58254
      %v4326 = vshll.u32 %v4323, 16
      %v4327 = vshrl.u32 %v4323, 16
      %v4328 = vshll.u32 %v4324, 16
      %v4329 = vshrl.u32 %v4324, 16
      %vm4330 = vc.u32 %v4322, %v4326
      %v4331 = vsel %vm4330, 1, 0
      %v4332 = vadd.s32 %v4322, %v4326
      %v4333 = vadd.s32 %v4325, %v4331
      %vm4334 = vc.u32 %v4332, %v4328
      %v4335 = vsel %vm4334, 1, 0
      %v4336 = vadd.s32 %v4332, %v4328
      %v4337 = vadd.s32 %v4333, %v4335
      %v4338 = vadd.s32 %v4337, %v4327
      %v4339 = vadd.s32 %v4338, %v4329
      %v4340 = vshrl.u32 %v4339, 4
      %v4341 = vmul.u32 %v4340, 18
      %v4342 = vsub.s32 %v4318, %v4341
      %v4343 = vsub.s32 0, %v4342
      %v4344 = vsel %vm4316, %v4343, %v4342
      %vm4345 = vcmp.lt.s32.totalorder %v3329, 0
      %v4346 = vsub.s32 0, %v3329
      %v4347 = vsel %vm4345, %v4346, %v3329
      %v4348 = vand.u32 %v4347, 65535
      %v4349 = vshrl.u32 %v4347, 16
      %v4351 = vmul.u32 %v4348, 14564
      %v4352 = vmul.u32 %v4348, 58254
      %v4353 = vmul.u32 %v4349, 14564
      %v4354 = vmul.u32 %v4349, 58254
      %v4355 = vshll.u32 %v4352, 16
      %v4356 = vshrl.u32 %v4352, 16
      %v4357 = vshll.u32 %v4353, 16
      %v4358 = vshrl.u32 %v4353, 16
      %vm4359 = vc.u32 %v4351, %v4355
      %v4360 = vsel %vm4359, 1, 0
      %v4361 = vadd.s32 %v4351, %v4355
      %v4362 = vadd.s32 %v4354, %v4360
      %vm4363 = vc.u32 %v4361, %v4357
      %v4364 = vsel %vm4363, 1, 0
      %v4365 = vadd.s32 %v4361, %v4357
      %v4366 = vadd.s32 %v4362, %v4364
      %v4367 = vadd.s32 %v4366, %v4356
      %v4368 = vadd.s32 %v4367, %v4358
      %v4369 = vshrl.u32 %v4368, 4
      %v4370 = vmul.u32 %v4369, 18
      %v4371 = vsub.s32 %v4347, %v4370
      %v4372 = vsub.s32 0, %v4371
      %v4373 = vsel %vm4345, %v4372, %v4371
      %vm4374 = vcmp.ne.s32.totalorder %v3358, 0
      %vm4375 = vcmp.ne.s32.totalorder %v3387, 0
      %vm4376 = vcmp.ne.s32.totalorder %v3416, 0
      %vm4377 = vcmp.ne.s32.totalorder %v3445, 0
      %vm4378 = vcmp.ne.s32.totalorder %v3474, 0
      %vm4379 = vcmp.ne.s32.totalorder %v3503, 0
      %vm4380 = vcmp.ne.s32.totalorder %v3532, 0
      %vm4381 = vcmp.ne.s32.totalorder %v3561, 0
      %vm4382 = vcmp.ne.s32.totalorder %v3590, 0
      %vm4383 = vcmp.ne.s32.totalorder %v3619, 0
      %vm4384 = vcmp.ne.s32.totalorder %v3648, 0
      %vm4385 = vcmp.ne.s32.totalorder %v3677, 0
      %vm4386 = vcmp.ne.s32.totalorder %v3706, 0
      %vm4387 = vcmp.ne.s32.totalorder %v3735, 0
      %vm4388 = vcmp.ne.s32.totalorder %v3764, 0
      %vm4389 = vcmp.ne.s32.totalorder %v3793, 0
      %vm4390 = vcmp.ne.s32.totalorder %v3822, 0
      %vm4391 = vcmp.ne.s32.totalorder %v3851, 0
      %vm4392 = vcmp.ne.s32.totalorder %v3880, 0
      %vm4393 = vcmp.ne.s32.totalorder %v3909, 0
      %vm4394 = vcmp.ne.s32.totalorder %v3938, 0
      %vm4395 = vcmp.ne.s32.totalorder %v3967, 0
      %vm4396 = vcmp.ne.s32.totalorder %v3996, 0
      %vm4397 = vcmp.ne.s32.totalorder %v4025, 0
      %vm4398 = vcmp.ne.s32.totalorder %v4054, 0
      %vm4399 = vcmp.ne.s32.totalorder %v4083, 0
      %vm4400 = vcmp.ne.s32.totalorder %v4112, 0
      %vm4401 = vcmp.ne.s32.totalorder %v4141, 0
      %vm4402 = vcmp.ne.s32.totalorder %v4170, 0
      %vm4403 = vcmp.ne.s32.totalorder %v4199, 0
      %vm4404 = vcmp.ne.s32.totalorder %v4228, 0
      %vm4405 = vcmp.ne.s32.totalorder %v4257, 0
      %vm4406 = vcmp.ne.s32.totalorder %v4286, 0
      %vm4407 = vcmp.ne.s32.totalorder %v4315, 0
      %vm4408 = vcmp.ne.s32.totalorder %v4344, 0
      %vm4409 = vcmp.ne.s32.totalorder %v4373, 0
      %vm4410 = vcmp.lt.s32.totalorder %v3358, 0
      %vm4411 = vcmp.lt.s32.totalorder %v3387, 0
      %vm4412 = vcmp.lt.s32.totalorder %v3416, 0
      %vm4413 = vcmp.lt.s32.totalorder %v3445, 0
      %vm4414 = vcmp.lt.s32.totalorder %v3474, 0
      %vm4415 = vcmp.lt.s32.totalorder %v3503, 0
      %vm4416 = vcmp.lt.s32.totalorder %v3532, 0
      %vm4417 = vcmp.lt.s32.totalorder %v3561, 0
      %vm4418 = vcmp.lt.s32.totalorder %v3590, 0
      %vm4419 = vcmp.lt.s32.totalorder %v3619, 0
      %vm4420 = vcmp.lt.s32.totalorder %v3648, 0
      %vm4421 = vcmp.lt.s32.totalorder %v3677, 0
      %vm4422 = vcmp.lt.s32.totalorder %v3706, 0
      %vm4423 = vcmp.lt.s32.totalorder %v3735, 0
      %vm4424 = vcmp.lt.s32.totalorder %v3764, 0
      %vm4425 = vcmp.lt.s32.totalorder %v3793, 0
      %vm4426 = vcmp.lt.s32.totalorder %v3822, 0
      %vm4427 = vcmp.lt.s32.totalorder %v3851, 0
      %vm4428 = vcmp.lt.s32.totalorder %v3880, 0
      %vm4429 = vcmp.lt.s32.totalorder %v3909, 0
      %vm4430 = vcmp.lt.s32.totalorder %v3938, 0
      %vm4431 = vcmp.lt.s32.totalorder %v3967, 0
      %vm4432 = vcmp.lt.s32.totalorder %v3996, 0
      %vm4433 = vcmp.lt.s32.totalorder %v4025, 0
      %vm4434 = vcmp.lt.s32.totalorder %v4054, 0
      %vm4435 = vcmp.lt.s32.totalorder %v4083, 0
      %vm4436 = vcmp.lt.s32.totalorder %v4112, 0
      %vm4437 = vcmp.lt.s32.totalorder %v4141, 0
      %vm4438 = vcmp.lt.s32.totalorder %v4170, 0
      %vm4439 = vcmp.lt.s32.totalorder %v4199, 0
      %vm4440 = vcmp.lt.s32.totalorder %v4228, 0
      %vm4441 = vcmp.lt.s32.totalorder %v4257, 0
      %vm4442 = vcmp.lt.s32.totalorder %v4286, 0
      %vm4443 = vcmp.lt.s32.totalorder %v4315, 0
      %vm4444 = vcmp.lt.s32.totalorder %v4344, 0
      %vm4445 = vcmp.lt.s32.totalorder %v4373, 0
      %vm4446 = vmand %vm4410, %vm4374
      %vm4447 = vmand %vm4411, %vm4375
      %vm4448 = vmand %vm4412, %vm4376
      %vm4449 = vmand %vm4413, %vm4377
      %vm4450 = vmand %vm4414, %vm4378
      %vm4451 = vmand %vm4415, %vm4379
      %vm4452 = vmand %vm4416, %vm4380
      %vm4453 = vmand %vm4417, %vm4381
      %vm4454 = vmand %vm4418, %vm4382
      %vm4455 = vmand %vm4419, %vm4383
      %vm4456 = vmand %vm4420, %vm4384
      %vm4457 = vmand %vm4421, %vm4385
      %vm4458 = vmand %vm4422, %vm4386
      %vm4459 = vmand %vm4423, %vm4387
      %vm4460 = vmand %vm4424, %vm4388
      %vm4461 = vmand %vm4425, %vm4389
      %vm4462 = vmand %vm4426, %vm4390
      %vm4463 = vmand %vm4427, %vm4391
      %vm4464 = vmand %vm4428, %vm4392
      %vm4465 = vmand %vm4429, %vm4393
      %vm4466 = vmand %vm4430, %vm4394
      %vm4467 = vmand %vm4431, %vm4395
      %vm4468 = vmand %vm4432, %vm4396
      %vm4469 = vmand %vm4433, %vm4397
      %vm4470 = vmand %vm4434, %vm4398
      %vm4471 = vmand %vm4435, %vm4399
      %vm4472 = vmand %vm4436, %vm4400
      %vm4473 = vmand %vm4437, %vm4401
      %vm4474 = vmand %vm4438, %vm4402
      %vm4475 = vmand %vm4439, %vm4403
      %vm4476 = vmand %vm4440, %vm4404
      %vm4477 = vmand %vm4441, %vm4405
      %vm4478 = vmand %vm4442, %vm4406
      %vm4479 = vmand %vm4443, %vm4407
      %vm4480 = vmand %vm4444, %vm4408
      %vm4481 = vmand %vm4445, %vm4409
      %v4482 = vadd.s32 %v3358, 18
      %v4483 = vadd.s32 %v3387, 18
      %v4484 = vadd.s32 %v3416, 18
      %v4485 = vadd.s32 %v3445, 18
      %v4486 = vadd.s32 %v3474, 18
      %v4487 = vadd.s32 %v3503, 18
      %v4488 = vadd.s32 %v3532, 18
      %v4489 = vadd.s32 %v3561, 18
      %v4490 = vadd.s32 %v3590, 18
      %v4491 = vadd.s32 %v3619, 18
      %v4492 = vadd.s32 %v3648, 18
      %v4493 = vadd.s32 %v3677, 18
      %v4494 = vadd.s32 %v3706, 18
      %v4495 = vadd.s32 %v3735, 18
      %v4496 = vadd.s32 %v3764, 18
      %v4497 = vadd.s32 %v3793, 18
      %v4498 = vadd.s32 %v3822, 18
      %v4499 = vadd.s32 %v3851, 18
      %v4500 = vadd.s32 %v3880, 18
      %v4501 = vadd.s32 %v3909, 18
      %v4502 = vadd.s32 %v3938, 18
      %v4503 = vadd.s32 %v3967, 18
      %v4504 = vadd.s32 %v3996, 18
      %v4505 = vadd.s32 %v4025, 18
      %v4506 = vadd.s32 %v4054, 18
      %v4507 = vadd.s32 %v4083, 18
      %v4508 = vadd.s32 %v4112, 18
      %v4509 = vadd.s32 %v4141, 18
      %v4510 = vadd.s32 %v4170, 18
      %v4511 = vadd.s32 %v4199, 18
      %v4512 = vadd.s32 %v4228, 18
      %v4513 = vadd.s32 %v4257, 18
      %v4514 = vadd.s32 %v4286, 18
      %v4515 = vadd.s32 %v4315, 18
      %v4516 = vadd.s32 %v4344, 18
      %v4517 = vadd.s32 %v4373, 18
      %v4518 = vsel %vm4446, %v4482, %v3358
      %v4519 = vsel %vm4447, %v4483, %v3387
      %v4520 = vsel %vm4448, %v4484, %v3416
      %v4521 = vsel %vm4449, %v4485, %v3445
      %v4522 = vsel %vm4450, %v4486, %v3474
      %v4523 = vsel %vm4451, %v4487, %v3503
      %v4524 = vsel %vm4452, %v4488, %v3532
      %v4525 = vsel %vm4453, %v4489, %v3561
      %v4526 = vsel %vm4454, %v4490, %v3590
      %v4527 = vsel %vm4455, %v4491, %v3619
      %v4528 = vsel %vm4456, %v4492, %v3648
      %v4529 = vsel %vm4457, %v4493, %v3677
      %v4530 = vsel %vm4458, %v4494, %v3706
      %v4531 = vsel %vm4459, %v4495, %v3735
      %v4532 = vsel %vm4460, %v4496, %v3764
      %v4533 = vsel %vm4461, %v4497, %v3793
      %v4534 = vsel %vm4462, %v4498, %v3822
      %v4535 = vsel %vm4463, %v4499, %v3851
      %v4536 = vsel %vm4464, %v4500, %v3880
      %v4537 = vsel %vm4465, %v4501, %v3909
      %v4538 = vsel %vm4466, %v4502, %v3938
      %v4539 = vsel %vm4467, %v4503, %v3967
      %v4540 = vsel %vm4468, %v4504, %v3996
      %v4541 = vsel %vm4469, %v4505, %v4025
      %v4542 = vsel %vm4470, %v4506, %v4054
      %v4543 = vsel %vm4471, %v4507, %v4083
      %v4544 = vsel %vm4472, %v4508, %v4112
      %v4545 = vsel %vm4473, %v4509, %v4141
      %v4546 = vsel %vm4474, %v4510, %v4170
      %v4547 = vsel %vm4475, %v4511, %v4199
      %v4548 = vsel %vm4476, %v4512, %v4228
      %v4549 = vsel %vm4477, %v4513, %v4257
      %v4550 = vsel %vm4478, %v4514, %v4286
      %v4551 = vsel %vm4479, %v4515, %v4315
      %v4552 = vsel %vm4480, %v4516, %v4344
      %v4553 = vsel %vm4481, %v4517, %v4373
      %vm4554 = vcmp.lt.s32.totalorder %v4518, 16
      %vm4555 = vcmp.lt.s32.totalorder %v4519, 16
      %vm4556 = vcmp.lt.s32.totalorder %v4520, 16
      %vm4557 = vcmp.lt.s32.totalorder %v4521, 16
      %vm4558 = vcmp.lt.s32.totalorder %v4522, 16
      %vm4559 = vcmp.lt.s32.totalorder %v4523, 16
      %vm4560 = vcmp.lt.s32.totalorder %v4524, 16
      %vm4561 = vcmp.lt.s32.totalorder %v4525, 16
      %vm4562 = vcmp.lt.s32.totalorder %v4526, 16
      %vm4563 = vcmp.lt.s32.totalorder %v4527, 16
      %vm4564 = vcmp.lt.s32.totalorder %v4528, 16
      %vm4565 = vcmp.lt.s32.totalorder %v4529, 16
      %vm4566 = vcmp.lt.s32.totalorder %v4530, 16
      %vm4567 = vcmp.lt.s32.totalorder %v4531, 16
      %vm4568 = vcmp.lt.s32.totalorder %v4532, 16
      %vm4569 = vcmp.lt.s32.totalorder %v4533, 16
      %vm4570 = vcmp.lt.s32.totalorder %v4534, 16
      %vm4571 = vcmp.lt.s32.totalorder %v4535, 16
      %vm4572 = vcmp.lt.s32.totalorder %v4536, 16
      %vm4573 = vcmp.lt.s32.totalorder %v4537, 16
      %vm4574 = vcmp.lt.s32.totalorder %v4538, 16
      %vm4575 = vcmp.lt.s32.totalorder %v4539, 16
      %vm4576 = vcmp.lt.s32.totalorder %v4540, 16
      %vm4577 = vcmp.lt.s32.totalorder %v4541, 16
      %vm4578 = vcmp.lt.s32.totalorder %v4542, 16
      %vm4579 = vcmp.lt.s32.totalorder %v4543, 16
      %vm4580 = vcmp.lt.s32.totalorder %v4544, 16
      %vm4581 = vcmp.lt.s32.totalorder %v4545, 16
      %vm4582 = vcmp.lt.s32.totalorder %v4546, 16
      %vm4583 = vcmp.lt.s32.totalorder %v4547, 16
      %vm4584 = vcmp.lt.s32.totalorder %v4548, 16
      %vm4585 = vcmp.lt.s32.totalorder %v4549, 16
      %vm4586 = vcmp.lt.s32.totalorder %v4550, 16
      %vm4587 = vcmp.lt.s32.totalorder %v4551, 16
      %vm4588 = vcmp.lt.s32.totalorder %v4552, 16
      %vm4589 = vcmp.lt.s32.totalorder %v4553, 16
      %v4590 = vsel %vm4554, %v3257, 0.0
      %v4591 = vsel %vm4555, %v3258, 0.0
      %v4592 = vsel %vm4556, %v3259, 0.0
      %v4593 = vsel %vm4557, %v3260, 0.0
      %v4594 = vsel %vm4558, %v3261, 0.0
      %v4595 = vsel %vm4559, %v3262, 0.0
      %v4596 = vsel %vm4560, %v3263, 0.0
      %v4597 = vsel %vm4561, %v3264, 0.0
      %v4598 = vsel %vm4562, %v3265, 0.0
      %v4599 = vsel %vm4563, %v3266, 0.0
      %v4600 = vsel %vm4564, %v3267, 0.0
      %v4601 = vsel %vm4565, %v3268, 0.0
      %v4602 = vsel %vm4566, %v3269, 0.0
      %v4603 = vsel %vm4567, %v3270, 0.0
      %v4604 = vsel %vm4568, %v3271, 0.0
      %v4605 = vsel %vm4569, %v3272, 0.0
      %v4606 = vsel %vm4570, %v3273, 0.0
      %v4607 = vsel %vm4571, %v3274, 0.0
      %v4608 = vsel %vm4572, %v3275, 0.0
      %v4609 = vsel %vm4573, %v3276, 0.0
      %v4610 = vsel %vm4574, %v3277, 0.0
      %v4611 = vsel %vm4575, %v3278, 0.0
      %v4612 = vsel %vm4576, %v3279, 0.0
      %v4613 = vsel %vm4577, %v3280, 0.0
      %v4614 = vsel %vm4578, %v3281, 0.0
      %v4615 = vsel %vm4579, %v3282, 0.0
      %v4616 = vsel %vm4580, %v3283, 0.0
      %v4617 = vsel %vm4581, %v3284, 0.0
      %v4618 = vsel %vm4582, %v3285, 0.0
      %v4619 = vsel %vm4583, %v3286, 0.0
      %v4620 = vsel %vm4584, %v3287, 0.0
      %v4621 = vsel %vm4585, %v3288, 0.0
      %v4622 = vsel %vm4586, %v3289, 0.0
      %v4623 = vsel %vm4587, %v3290, 0.0
      %v4624 = vsel %vm4588, %v3291, 0.0
      %v4625 = vsel %vm4589, %v3292, 0.0
      %4626 = vst [vmem:[%s197] sm:$0xf] 0
      %4627 = vst [vmem:[%s197 + $0x4] sm:$0xf] 0
      %vm4628 = vcmask 1041408
      %vm4629 = vsmask.f32 1280
      %vm4630 = vmand %vm4628, %vm4629
      %v4631 = vld [vmem:[%s197 + $0x8] sm:$0x3]
      %v4632 = vsel %vm4630, 0, %v4631
      %4633 = vst [vmem:[%s197 + $0x8] sm:$0x3] %v4632
      %v4634 = vpack.c.bf16 %v4590, %v4590
      %v4635 = vpack.c.bf16 %v4591, %v4591
      %v4636 = vpack.c.bf16 %v4592, %v4592
      %v4637 = vpack.c.bf16 %v4593, %v4593
      %v4638 = vpack.c.bf16 %v4594, %v4594
      %v4639 = vpack.c.bf16 %v4595, %v4595
      %v4640 = vpack.c.bf16 %v4596, %v4596
      %v4641 = vpack.c.bf16 %v4597, %v4597
      %v4642 = vpack.c.bf16 %v4598, %v4598
      %v4643 = vpack.c.bf16 %v4599, %v4599
      %v4644 = vpack.c.bf16 %v4600, %v4600
      %v4645 = vpack.c.bf16 %v4601, %v4601
      %v4646 = vpack.c.bf16 %v4602, %v4602
      %v4647 = vpack.c.bf16 %v4603, %v4603
      %v4648 = vpack.c.bf16 %v4604, %v4604
      %v4649 = vpack.c.bf16 %v4605, %v4605
      %v4650 = vpack.c.bf16 %v4606, %v4606
      %v4651 = vpack.c.bf16 %v4607, %v4607
      %v4652 = vpack.c.bf16 %v4608, %v4608
      %v4653 = vpack.c.bf16 %v4609, %v4609
      %v4654 = vpack.c.bf16 %v4610, %v4610
      %v4655 = vpack.c.bf16 %v4611, %v4611
      %v4656 = vpack.c.bf16 %v4612, %v4612
      %v4657 = vpack.c.bf16 %v4613, %v4613
      %v4658 = vpack.c.bf16 %v4614, %v4614
      %v4659 = vpack.c.bf16 %v4615, %v4615
      %v4660 = vpack.c.bf16 %v4616, %v4616
      %v4661 = vpack.c.bf16 %v4617, %v4617
      %v4662 = vpack.c.bf16 %v4618, %v4618
      %v4663 = vpack.c.bf16 %v4619, %v4619
      %v4664 = vpack.c.bf16 %v4620, %v4620
      %v4665 = vpack.c.bf16 %v4621, %v4621
      %v4666 = vpack.c.bf16 %v4622, %v4622
      %v4667 = vpack.c.bf16 %v4623, %v4623
      %v4668 = vpack.c.bf16 %v4624, %v4624
      %v4669 = vpack.c.bf16 %v4625, %v4625
      %vm4670 = vsmask.f32 5392
      %vm4671 = vmor %vm4629, %vm4670
      %v4673 = vshrl.u32 %v4634, 16
      %v4675 = vrot.slane %v4673, 6
      %v4676 = vshll.u32 %v4634, 16
      %v4678 = vrot.slane %v4676, 7
      %v4679 = vor.u32 %v4675, %v4678
      %v4680 = vrot.slane %v4679, 4
      %v4682 = vshrl.u32 %v4635, 16
      %v4684 = vrot.slane %v4682, 6
      %v4685 = vshll.u32 %v4635, 16
      %v4687 = vrot.slane %v4685, 7
      %v4688 = vor.u32 %v4684, %v4687
      %v4689 = vsel %vm4671, %v4680, %v4688
      %v4690 = vrot.slane %v4688, 4
      %v4692 = vshrl.u32 %v4636, 16
      %v4694 = vrot.slane %v4692, 6
      %v4695 = vshll.u32 %v4636, 16
      %v4697 = vrot.slane %v4695, 7
      %v4698 = vor.u32 %v4694, %v4697
      %v4699 = vsel %vm4671, %v4690, %v4698
      %v4700 = vrot.slane %v4698, 4
      %v4702 = vshrl.u32 %v4637, 16
      %v4704 = vrot.slane %v4702, 6
      %v4705 = vshll.u32 %v4637, 16
      %v4707 = vrot.slane %v4705, 7
      %v4708 = vor.u32 %v4704, %v4707
      %v4709 = vsel %vm4671, %v4700, %v4708
      %v4710 = vrot.slane %v4708, 4
      %v4712 = vshrl.u32 %v4638, 16
      %v4714 = vrot.slane %v4712, 6
      %v4715 = vshll.u32 %v4638, 16
      %v4717 = vrot.slane %v4715, 7
      %v4718 = vor.u32 %v4714, %v4717
      %v4719 = vsel %vm4671, %v4710, %v4718
      %v4720 = vrot.slane %v4718, 4
      %v4722 = vshrl.u32 %v4639, 16
      %v4724 = vrot.slane %v4722, 6
      %v4725 = vshll.u32 %v4639, 16
      %v4727 = vrot.slane %v4725, 7
      %v4728 = vor.u32 %v4724, %v4727
      %v4729 = vsel %vm4671, %v4720, %v4728
      %v4730 = vrot.slane %v4728, 4
      %v4732 = vshrl.u32 %v4640, 16
      %v4734 = vrot.slane %v4732, 6
      %v4735 = vshll.u32 %v4640, 16
      %v4737 = vrot.slane %v4735, 7
      %v4738 = vor.u32 %v4734, %v4737
      %v4739 = vsel %vm4671, %v4730, %v4738
      %v4740 = vrot.slane %v4738, 4
      %v4742 = vshrl.u32 %v4641, 16
      %v4744 = vrot.slane %v4742, 6
      %v4745 = vshll.u32 %v4641, 16
      %v4747 = vrot.slane %v4745, 7
      %v4748 = vor.u32 %v4744, %v4747
      %v4749 = vsel %vm4671, %v4740, %v4748
      %v4750 = vrot.slane %v4748, 4
      %v4752 = vshrl.u32 %v4642, 16
      %v4754 = vrot.slane %v4752, 6
      %v4755 = vshll.u32 %v4642, 16
      %v4757 = vrot.slane %v4755, 7
      %v4758 = vor.u32 %v4754, %v4757
      %v4759 = vsel %vm4671, %v4750, %v4758
      %v4760 = vrot.slane %v4758, 4
      %v4762 = vshrl.u32 %v4643, 16
      %v4764 = vrot.slane %v4762, 6
      %v4765 = vshll.u32 %v4643, 16
      %v4767 = vrot.slane %v4765, 7
      %v4768 = vor.u32 %v4764, %v4767
      %v4769 = vsel %vm4671, %v4760, %v4768
      %v4770 = vrot.slane %v4768, 4
      %v4772 = vshrl.u32 %v4644, 16
      %v4774 = vrot.slane %v4772, 6
      %v4775 = vshll.u32 %v4644, 16
      %v4777 = vrot.slane %v4775, 7
      %v4778 = vor.u32 %v4774, %v4777
      %v4779 = vsel %vm4671, %v4770, %v4778
      %v4780 = vrot.slane %v4778, 4
      %v4782 = vshrl.u32 %v4645, 16
      %v4784 = vrot.slane %v4782, 6
      %v4785 = vshll.u32 %v4645, 16
      %v4787 = vrot.slane %v4785, 7
      %v4788 = vor.u32 %v4784, %v4787
      %v4789 = vsel %vm4671, %v4780, %v4788
      %v4790 = vrot.slane %v4788, 4
      %v4792 = vshrl.u32 %v4646, 16
      %v4794 = vrot.slane %v4792, 6
      %v4795 = vshll.u32 %v4646, 16
      %v4797 = vrot.slane %v4795, 7
      %v4798 = vor.u32 %v4794, %v4797
      %v4799 = vsel %vm4671, %v4790, %v4798
      %v4800 = vrot.slane %v4798, 4
      %v4802 = vshrl.u32 %v4647, 16
      %v4804 = vrot.slane %v4802, 6
      %v4805 = vshll.u32 %v4647, 16
      %v4807 = vrot.slane %v4805, 7
      %v4808 = vor.u32 %v4804, %v4807
      %v4809 = vsel %vm4671, %v4800, %v4808
      %v4810 = vrot.slane %v4808, 4
      %v4812 = vshrl.u32 %v4648, 16
      %v4814 = vrot.slane %v4812, 6
      %v4815 = vshll.u32 %v4648, 16
      %v4817 = vrot.slane %v4815, 7
      %v4818 = vor.u32 %v4814, %v4817
      %v4819 = vsel %vm4671, %v4810, %v4818
      %v4820 = vrot.slane %v4818, 4
      %v4822 = vshrl.u32 %v4649, 16
      %v4824 = vrot.slane %v4822, 6
      %v4825 = vshll.u32 %v4649, 16
      %v4827 = vrot.slane %v4825, 7
      %v4828 = vor.u32 %v4824, %v4827
      %v4829 = vsel %vm4671, %v4820, %v4828
      %v4830 = vrot.slane %v4828, 4
      %v4832 = vshrl.u32 %v4650, 16
      %v4834 = vrot.slane %v4832, 6
      %v4835 = vshll.u32 %v4650, 16
      %v4837 = vrot.slane %v4835, 7
      %v4838 = vor.u32 %v4834, %v4837
      %v4839 = vsel %vm4671, %v4830, %v4838
      %v4840 = vrot.slane %v4838, 4
      %v4842 = vshrl.u32 %v4651, 16
      %v4844 = vrot.slane %v4842, 6
      %v4845 = vshll.u32 %v4651, 16
      %v4847 = vrot.slane %v4845, 7
      %v4848 = vor.u32 %v4844, %v4847
      %v4849 = vsel %vm4671, %v4840, %v4848
      %v4850 = vrot.slane %v4848, 4
      %v4852 = vshrl.u32 %v4652, 16
      %v4854 = vrot.slane %v4852, 6
      %v4855 = vshll.u32 %v4652, 16
      %v4857 = vrot.slane %v4855, 7
      %v4858 = vor.u32 %v4854, %v4857
      %v4859 = vsel %vm4671, %v4850, %v4858
      %v4860 = vrot.slane %v4858, 4
      %v4862 = vshrl.u32 %v4653, 16
      %v4864 = vrot.slane %v4862, 6
      %v4865 = vshll.u32 %v4653, 16
      %v4867 = vrot.slane %v4865, 7
      %v4868 = vor.u32 %v4864, %v4867
      %v4869 = vsel %vm4671, %v4860, %v4868
      %v4870 = vrot.slane %v4868, 4
      %v4872 = vshrl.u32 %v4654, 16
      %v4874 = vrot.slane %v4872, 6
      %v4875 = vshll.u32 %v4654, 16
      %v4877 = vrot.slane %v4875, 7
      %v4878 = vor.u32 %v4874, %v4877
      %v4879 = vsel %vm4671, %v4870, %v4878
      %v4880 = vrot.slane %v4878, 4
      %v4882 = vshrl.u32 %v4655, 16
      %v4884 = vrot.slane %v4882, 6
      %v4885 = vshll.u32 %v4655, 16
      %v4887 = vrot.slane %v4885, 7
      %v4888 = vor.u32 %v4884, %v4887
      %v4889 = vsel %vm4671, %v4880, %v4888
      %v4890 = vrot.slane %v4888, 4
      %v4892 = vshrl.u32 %v4656, 16
      %v4894 = vrot.slane %v4892, 6
      %v4895 = vshll.u32 %v4656, 16
      %v4897 = vrot.slane %v4895, 7
      %v4898 = vor.u32 %v4894, %v4897
      %v4899 = vsel %vm4671, %v4890, %v4898
      %v4900 = vrot.slane %v4898, 4
      %v4902 = vshrl.u32 %v4657, 16
      %v4904 = vrot.slane %v4902, 6
      %v4905 = vshll.u32 %v4657, 16
      %v4907 = vrot.slane %v4905, 7
      %v4908 = vor.u32 %v4904, %v4907
      %v4909 = vsel %vm4671, %v4900, %v4908
      %v4910 = vrot.slane %v4908, 4
      %v4912 = vshrl.u32 %v4658, 16
      %v4914 = vrot.slane %v4912, 6
      %v4915 = vshll.u32 %v4658, 16
      %v4917 = vrot.slane %v4915, 7
      %v4918 = vor.u32 %v4914, %v4917
      %v4919 = vsel %vm4671, %v4910, %v4918
      %v4920 = vrot.slane %v4918, 4
      %v4922 = vshrl.u32 %v4659, 16
      %v4924 = vrot.slane %v4922, 6
      %v4925 = vshll.u32 %v4659, 16
      %v4927 = vrot.slane %v4925, 7
      %v4928 = vor.u32 %v4924, %v4927
      %v4929 = vsel %vm4671, %v4920, %v4928
      %v4930 = vrot.slane %v4928, 4
      %v4932 = vshrl.u32 %v4660, 16
      %v4934 = vrot.slane %v4932, 6
      %v4935 = vshll.u32 %v4660, 16
      %v4937 = vrot.slane %v4935, 7
      %v4938 = vor.u32 %v4934, %v4937
      %v4939 = vsel %vm4671, %v4930, %v4938
      %v4940 = vrot.slane %v4938, 4
      %v4942 = vshrl.u32 %v4661, 16
      %v4944 = vrot.slane %v4942, 6
      %v4945 = vshll.u32 %v4661, 16
      %v4947 = vrot.slane %v4945, 7
      %v4948 = vor.u32 %v4944, %v4947
      %v4949 = vsel %vm4671, %v4940, %v4948
      %v4950 = vrot.slane %v4948, 4
      %v4952 = vshrl.u32 %v4662, 16
      %v4954 = vrot.slane %v4952, 6
      %v4955 = vshll.u32 %v4662, 16
      %v4957 = vrot.slane %v4955, 7
      %v4958 = vor.u32 %v4954, %v4957
      %v4959 = vsel %vm4671, %v4950, %v4958
      %v4960 = vrot.slane %v4958, 4
      %v4962 = vshrl.u32 %v4663, 16
      %v4964 = vrot.slane %v4962, 6
      %v4965 = vshll.u32 %v4663, 16
      %v4967 = vrot.slane %v4965, 7
      %v4968 = vor.u32 %v4964, %v4967
      %v4969 = vsel %vm4671, %v4960, %v4968
      %v4970 = vrot.slane %v4968, 4
      %v4972 = vshrl.u32 %v4664, 16
      %v4974 = vrot.slane %v4972, 6
      %v4975 = vshll.u32 %v4664, 16
      %v4977 = vrot.slane %v4975, 7
      %v4978 = vor.u32 %v4974, %v4977
      %v4979 = vsel %vm4671, %v4970, %v4978
      %v4980 = vrot.slane %v4978, 4
      %v4982 = vshrl.u32 %v4665, 16
      %v4984 = vrot.slane %v4982, 6
      %v4985 = vshll.u32 %v4665, 16
      %v4987 = vrot.slane %v4985, 7
      %v4988 = vor.u32 %v4984, %v4987
      %v4989 = vsel %vm4671, %v4980, %v4988
      %v4990 = vrot.slane %v4988, 4
      %v4992 = vshrl.u32 %v4666, 16
      %v4994 = vrot.slane %v4992, 6
      %v4995 = vshll.u32 %v4666, 16
      %v4997 = vrot.slane %v4995, 7
      %v4998 = vor.u32 %v4994, %v4997
      %v4999 = vsel %vm4671, %v4990, %v4998
      %v5000 = vrot.slane %v4998, 4
      %v5002 = vshrl.u32 %v4667, 16
      %v5004 = vrot.slane %v5002, 6
      %v5005 = vshll.u32 %v4667, 16
      %v5007 = vrot.slane %v5005, 7
      %v5008 = vor.u32 %v5004, %v5007
      %v5009 = vsel %vm4671, %v5000, %v5008
      %v5010 = vrot.slane %v5008, 4
      %v5012 = vshrl.u32 %v4668, 16
      %v5014 = vrot.slane %v5012, 6
      %v5015 = vshll.u32 %v4668, 16
      %v5017 = vrot.slane %v5015, 7
      %v5018 = vor.u32 %v5014, %v5017
      %v5019 = vsel %vm4671, %v5010, %v5018
      %v5020 = vrot.slane %v5018, 4
      %v5022 = vshrl.u32 %v4669, 16
      %v5024 = vrot.slane %v5022, 6
      %v5025 = vshll.u32 %v4669, 16
      %v5027 = vrot.slane %v5025, 7
      %v5028 = vor.u32 %v5024, %v5027
      %v5029 = vsel %vm4671, %v5020, %v5028
      %v5030 = vrot.slane %v5028, 4
      %vm5068 = vcmask 1043457
      %vm5069 = vsmask.f32 7942
      %vm5070 = vmand %vm5068, %vm5069
      %v5071 = vld [vmem:[%s197 + $0x8] sm:$0xe]
      %v5072 = vsel %vm5070, %v4679, %v5071
      %5073 = vst [vmem:[%s197 + $0x8] sm:$0xe] %v5072
      %5074 = vst [vmem:[%s197 + $0xc] sm:$0xf] %v4689
      %5075 = vst [vmem:[%s197 + $0x10] sm:$0xf] %v4699
      %5076 = vst [vmem:[%s197 + $0x14] sm:$0xf] %v4709
      %5077 = vst [vmem:[%s197 + $0x18] sm:$0xf] %v4719
      %5078 = vst [vmem:[%s197 + $0x1c] sm:$0xf] %v4729
      %5079 = vst [vmem:[%s197 + $0x20] sm:$0xf] %v4739
      %5080 = vst [vmem:[%s197 + $0x24] sm:$0xf] %v4749
      %5081 = vst [vmem:[%s197 + $0x28] sm:$0xf] %v4759
      %5082 = vst [vmem:[%s197 + $0x2c] sm:$0xf] %v4769
      %5083 = vst [vmem:[%s197 + $0x30] sm:$0xf] %v4779
      %5084 = vst [vmem:[%s197 + $0x34] sm:$0xf] %v4789
      %5085 = vst [vmem:[%s197 + $0x38] sm:$0xf] %v4799
      %5086 = vst [vmem:[%s197 + $0x3c] sm:$0xf] %v4809
      %5087 = vst [vmem:[%s197 + $0x40] sm:$0xf] %v4819
      %5088 = vst [vmem:[%s197 + $0x44] sm:$0xf] %v4829
      %5089 = vst [vmem:[%s197 + $0x48] sm:$0xf] %v4839
      %5090 = vst [vmem:[%s197 + $0x4c] sm:$0xf] %v4849
      %5091 = vst [vmem:[%s197 + $0x50] sm:$0xf] %v4859
      %5092 = vst [vmem:[%s197 + $0x54] sm:$0xf] %v4869
      %5093 = vst [vmem:[%s197 + $0x58] sm:$0xf] %v4879
      %5094 = vst [vmem:[%s197 + $0x5c] sm:$0xf] %v4889
      %5095 = vst [vmem:[%s197 + $0x60] sm:$0xf] %v4899
      %5096 = vst [vmem:[%s197 + $0x64] sm:$0xf] %v4909
      %5097 = vst [vmem:[%s197 + $0x68] sm:$0xf] %v4919
      %5098 = vst [vmem:[%s197 + $0x6c] sm:$0xf] %v4929
      %5099 = vst [vmem:[%s197 + $0x70] sm:$0xf] %v4939
      %5100 = vst [vmem:[%s197 + $0x74] sm:$0xf] %v4949
      %5101 = vst [vmem:[%s197 + $0x78] sm:$0xf] %v4959
      %5102 = vst [vmem:[%s197 + $0x7c] sm:$0xf] %v4969
      %5103 = vst [vmem:[%s197 + $0x80] sm:$0xf] %v4979
      %5104 = vst [vmem:[%s197 + $0x84] sm:$0xf] %v4989
      %5105 = vst [vmem:[%s197 + $0x88] sm:$0xf] %v4999
      %5106 = vst [vmem:[%s197 + $0x8c] sm:$0xf] %v5009
      %5107 = vst [vmem:[%s197 + $0x90] sm:$0xf] %v5019
      %5108 = vst [vmem:[%s197 + $0x94] sm:$0xf] %v5029
      %v5109 = vld [vmem:[%s197 + $0x98] sm:$0x3]
      %v5110 = vsel %vm4630, %v5030, %v5109
      %5111 = vst [vmem:[%s197 + $0x98] sm:$0x3] %v5110
      %v5112 = vld [vmem:[%s197 + $0x98] sm:$0xe]
      %v5113 = vsel %vm5070, 0, %v5112
      %5114 = vst [vmem:[%s197 + $0x98] sm:$0xe] %v5113
      %5115 = vst [vmem:[%s197 + $0x9c] sm:$0xf] 0
      %5116 = vst [vmem:[%s197 + $0xa0] sm:$0xf] 0
      %5117 = vst [vmem:[%s197 + $0xa4] sm:$0xf] 0
      %5118 = vst [vmem:[%s197 + $0xa8] sm:$0x7] 0
      %p5119 = scmp.lt.s32.totalorder %s15, 1
      %s5120 = scalar_select %p5119, %s15, 1
      %s5121 = smul.addr %s5120, 43
      %s5122 = smul.addr %s5121, 4
      %s5123 = scalar_lea.vmem %s4, %s5122
      // Predicated region
      $region37: #{basic_block_forward.2} parent=35 // pred_check
        %p5124 = pneg %p122
      $region38: #{basic_block_forward.2} parent=35 // pred_check_branch
        %5126 = sbr.rel (%p5124) target = $region40
      $region39: #{basic_block_forward.2} parent=35 // pred_region
        _
      $region40: #{basic_block_forward.2} parent=35 // pred_fallthru
        _
    $region36: #{basic_block_forward.2} parent=5 // pred_fallthru
      _
    %p5127 = scmp.le.s32.totalorder 2, %s10
    // Predicated region
    $region41: #{basic_block_forward.2} parent=5 // pred_check
      %p5128 = pneg %p5127
    $region42: #{basic_block_forward.2} parent=5 // pred_check_branch
      %5130 = sbr.rel (%p5128) target = $region44
    $region43: #{basic_block_forward.2} parent=5 // pred_region
      %s5131 = ssub.s32 %s10, 2
      // Predicated region
      $region45: #{basic_block_forward.2} parent=43 // pred_check
        %p5132 = pneg %p128
      $region46: #{basic_block_forward.2} parent=43 // pred_check_branch
        %5134 = sbr.rel (%p5132) target = $region48
      $region47: #{basic_block_forward.2} parent=43 // pred_region
        %p5135 = scmp.lt.s32.totalorder %s16, 1
        %s5136 = scalar_select %p5135, %s16, 1
        %s5137 = smul.addr %s5136, 43
        %s5138 = smul.addr %s5137, 4
        %s5139 = scalar_lea.vmem %s4, %s5138
      $region48: #{basic_block_forward.2} parent=43 // pred_fallthru
        _
    $region44: #{basic_block_forward.2} parent=5 // pred_fallthru
      _
  $region6: #{basic_block_forward.2} parent=0 // loop_footer
    %s14 = sadd.s32 1, %s10
  $region7: #{basic_block_forward.2} parent=0 // loop_footer_branch
    %9 = sbr.rel target = $region3
  $region8: #{basic_block_forward.2} parent=0 // loop_exit
    _

</llo_original>
